<compile_context>
chip_gen: v7x
topology: tpu7x:2x2x1
jax: 0.10.0
libtpu: 0.0.40
codegen_flags: <defaults>
</compile_context>

<pallas_src>
import jax
import jax.numpy as jnp
from jax.experimental import pallas as pl
from jax.experimental.pallas import tpu as pltpu

NB_CLASSES = 10          # len(np.unique(train_labels)) for Fashion-MNIST
FC1_OUT = 256
FC2_OUT = 64

NB_IMG = 8               # images per trunk grid step (M = 16*NB_IMG = 128)
CH_STRIDE = 16           # sublanes reserved per image (>= max channel count)
ROWS = NB_IMG * CH_STRIDE            # 128 stacked sublanes

H1 = W1 = 28
HW1 = H1 * W1                        # 784 (flat 28x28, lane-major)
H2 = W2 = 14
RS2 = 16                             # row stride of the padded 14x14 layout
PW2 = H2 * RS2                       # 224 lanes; cols 14..15 of each row = pad
HW3 = 49                             # flat 7x7

X_PAD = 32                           # zero margin around the flat input row
X_WIDTH = X_PAD + HW1 + X_PAD        # 848
A1_W = HW1 + 32                      # 816: a1 slab + room for the +29 pool shift
C_PAD = 32                           # zero margin around the padded-224 slabs
C_W = C_PAD + PW2 + C_PAD            # 288
A3_W = PW2 + 32                      # 256: a3 slab + room for the +17 pool shift

BATCH_TILE_CAP = 1024                # rows per FC-head grid step (mult. of 128)
BF16 = jnp.bfloat16


# ----------------------------- Pallas kernels ------------------------------

def _trunk_kernel(x_ref, w1_ref, b1_ref, sel1_ref, w2_ref, b2_ref,
                  w3_ref, b3_ref, valid_ref, sel2_ref, edge_ref,
                  o_ref, xpad, x9, a1, p1, a2, a3):
    """conv_10+ReLU+pool -> conv_5+ReLU -> conv_16+ReLU+pool for NB_IMG images.

    Stacked layout: image n / channel c on sublane 16*n + c, spatial on lanes.
    """
    f32 = jnp.float32

    # Zero the margin lanes that shifted tap / pool reads touch.  Every data
    # lane is rewritten below, so this is the only init needed each step; no
    # state is carried across steps (safe under "parallel" / megacore).
    xpad[:, 0:X_PAD] = jnp.zeros((NB_IMG, X_PAD), f32)
    xpad[:, X_PAD + HW1:X_WIDTH] = jnp.zeros((NB_IMG, X_PAD), f32)
    a1[:, HW1:A1_W] = jnp.zeros((ROWS, A1_W - HW1), BF16)
    p1[:, 0:C_PAD] = jnp.zeros((ROWS, C_PAD), BF16)
    p1[:, C_PAD + PW2:C_W] = jnp.zeros((ROWS, C_PAD), BF16)
    a2[:, 0:C_PAD] = jnp.zeros((ROWS, C_PAD), BF16)
    a2[:, C_PAD + PW2:C_W] = jnp.zeros((ROWS, C_PAD), BF16)
    a3[:, PW2:A3_W] = jnp.zeros((ROWS, A3_W - PW2), BF16)

    # ---- conv_10 (1 -> 10): 9 edge-masked shifted copies, one MXU dot -------
    xpad[:, X_PAD:X_PAD + HW1] = x_ref[...]
    for k in range(9):
        kh, kw = divmod(k, 3)
        d = (kh - 1) * W1 + (kw - 1)
        tap = xpad[:, X_PAD + d:X_PAD + d + HW1]           # (NB_IMG, 784)
        if kw == 0:                                        # column w==0 invalid
            tap = tap * edge_ref[0:1, :]
        elif kw == 2:                                      # column w==27 invalid
            tap = tap * edge_ref[1:2, :]
        x9[k * NB_IMG:(k + 1) * NB_IMG, :] = tap
    h1 = jnp.dot(w1_ref[...], x9[...].astype(BF16),
                 preferred_element_type=f32)               # (ROWS, 784)
    a1[:, 0:HW1] = jnp.maximum(h1 + b1_ref[...], 0.0).astype(BF16)

    # ---- pool1: shift-max + ONE selection matmul into padded 14x14 layout ---
    z = a1[:, 0:HW1]
    for d in (1, W1, W1 + 1):
        z = jnp.maximum(z, a1[:, d:d + HW1])
    p1[:, C_PAD:C_PAD + PW2] = jnp.dot(
        z, sel1_ref[...], preferred_element_type=f32).astype(BF16)

    # ---- conv_5 (10 -> 5): 9 block-diagonal tap matmuls, all images at once -
    acc = None
    for k in range(9):
        kh, kw = divmod(k, 3)
        d = (kh - 1) * RS2 + (kw - 1)
        t = jnp.dot(w2_ref[k], p1[:, C_PAD + d:C_PAD + d + PW2],
                    preferred_element_type=f32)            # (ROWS, 224)
        acc = t if acc is None else acc + t
    a2[:, C_PAD:C_PAD + PW2] = (jnp.maximum(acc + b2_ref[...], 0.0)
                                * valid_ref[...]).astype(BF16)

    # ---- conv_16 (5 -> 16) ---------------------------------------------------
    acc = None
    for k in range(9):
        kh, kw = divmod(k, 3)
        d = (kh - 1) * RS2 + (kw - 1)
        t = jnp.dot(w3_ref[k], a2[:, C_PAD + d:C_PAD + d + PW2],
                    preferred_element_type=f32)
        acc = t if acc is None else acc + t
    a3[:, 0:PW2] = jnp.maximum(acc + b3_ref[...], 0.0).astype(BF16)

    # ---- pool2: shift-max + selection to flat 7x7 (torch flatten order) -----
    z = a3[:, 0:PW2]
    for d in (1, RS2, RS2 + 1):
        z = jnp.maximum(z, a3[:, d:d + PW2])
    o_ref[...] = jnp.dot(z, sel2_ref[...], preferred_element_type=f32)


def _fc_kernel(x_ref, w1_ref, b1_ref, w2_ref, b2_ref, w3_ref, b3_ref, o_ref):
    """fc1+ReLU -> fc2+ReLU -> fc3; bf16 weights, f32 accumulation."""
    f32 = jnp.float32
    h = jnp.dot(x_ref[...].astype(BF16), w1_ref[...],
                preferred_element_type=f32) + b1_ref[...]
    h = jnp.maximum(h, 0.0)
    h = jnp.dot(h.astype(BF16), w2_ref[...],
                preferred_element_type=f32) + b2_ref[...]
    h = jnp.maximum(h, 0.0)
    o_ref[...] = jnp.dot(h.astype(BF16), w3_ref[...],
                         preferred_element_type=f32) + b3_ref[...]


# ------------------------------ pallas_call wrappers ------------------------

def _conv_trunk(xf, kp):
    n_pad = xf.shape[0]
    steps = n_pad // NB_IMG
    flops_step = 2 * (ROWS * 9 * NB_IMG * HW1        # conv_10 tap-stacked dot
                      + ROWS * HW1 * PW2             # sel1
                      + 2 * 9 * ROWS * ROWS * PW2    # conv_5 + conv_16 taps
                      + ROWS * PW2 * HW3)            # sel2
    cost = pl.CostEstimate(
        flops=flops_step * steps, transcendentals=0,
        bytes_accessed=n_pad * 4 * (HW1 + 16 * HW3) + 2_000_000)
    return pl.pallas_call(
        _trunk_kernel,
        out_shape=jax.ShapeDtypeStruct((n_pad * CH_STRIDE, HW3), jnp.float32),
        grid=(steps,),
        in_specs=[
            pl.BlockSpec((NB_IMG, HW1), lambda i: (i, 0)),          # x (flat)
            pl.BlockSpec((ROWS, 9 * NB_IMG), lambda i: (0, 0)),     # conv_10 W
            pl.BlockSpec((ROWS, 1), lambda i: (0, 0)),              # b1 stacked
            pl.BlockSpec((HW1, PW2), lambda i: (0, 0)),             # sel1
            pl.BlockSpec((9, ROWS, ROWS), lambda i: (0, 0, 0)),     # conv_5 W
            pl.BlockSpec((ROWS, 1), lambda i: (0, 0)),              # b2 stacked
            pl.BlockSpec((9, ROWS, ROWS), lambda i: (0, 0, 0)),     # conv_16 W
            pl.BlockSpec((ROWS, 1), lambda i: (0, 0)),              # b3 stacked
            pl.BlockSpec((1, PW2), lambda i: (0, 0)),               # valid cols
            pl.BlockSpec((PW2, HW3), lambda i: (0, 0)),             # sel2
            pl.BlockSpec((2, HW1), lambda i: (0, 0)),               # edge masks
        ],
        out_specs=pl.BlockSpec((ROWS, HW3), lambda i: (i, 0)),
        scratch_shapes=[
            pltpu.VMEM((NB_IMG, X_WIDTH), jnp.float32),      # padded input
            pltpu.VMEM((9 * NB_IMG, HW1), jnp.float32),      # 9 stacked taps
            pltpu.VMEM((ROWS, A1_W), BF16),                  # conv_10 out
            pltpu.VMEM((ROWS, C_W), BF16),                   # pooled1 (padded)
            pltpu.VMEM((ROWS, C_W), BF16),                   # conv_5 out
            pltpu.VMEM((ROWS, A3_W), BF16),                  # conv_16 out
        ],
        compiler_params=pltpu.CompilerParams(
            dimension_semantics=("parallel",)),
        cost_estimate=cost,
    )(xf, kp["w1"], kp["b1"], kp["sel1"], kp["w2"], kp["b2"],
      kp["w3"], kp["b3"], kp["valid2"], kp["sel2"], kp["edge1"])


def _fc_head(feats, kp):
    n_pad = feats.shape[0]
    mb = n_pad if n_pad <= BATCH_TILE_CAP else BATCH_TILE_CAP
    flops = 2 * n_pad * (784 * FC1_OUT + FC1_OUT * FC2_OUT + FC2_OUT * NB_CLASSES)
    cost = pl.CostEstimate(
        flops=flops, transcendentals=0,
        bytes_accessed=n_pad * 4 * (784 + NB_CLASSES) + 600_000)
    return pl.pallas_call(
        _fc_kernel,
        out_shape=jax.ShapeDtypeStruct((n_pad, NB_CLASSES), jnp.float32),
        grid=(n_pad // mb,),
        in_specs=[
            pl.BlockSpec((mb, 16 * HW3), lambda i: (i, 0)),
            pl.BlockSpec((16 * HW3, FC1_OUT), lambda i: (0, 0)),
            pl.BlockSpec((1, FC1_OUT), lambda i: (0, 0)),
            pl.BlockSpec((FC1_OUT, FC2_OUT), lambda i: (0, 0)),
            pl.BlockSpec((1, FC2_OUT), lambda i: (0, 0)),
            pl.BlockSpec((FC2_OUT, NB_CLASSES), lambda i: (0, 0)),
            pl.BlockSpec((1, NB_CLASSES), lambda i: (0, 0)),
        ],
        out_specs=pl.BlockSpec((mb, NB_CLASSES), lambda i: (i, 0)),
        compiler_params=pltpu.CompilerParams(
            dimension_semantics=("parallel",)),
        cost_estimate=cost,
    )(feats, kp["fc1_w"], kp["fc1_b"], kp["fc2_w"], kp["fc2_b"],
      kp["fc3_w"], kp["fc3_b"])


def fmnist_cnn_forward(x, kp):
    """Forward pass of FMNISTCNN.  x is NCHW float32 (N, 1, 28, 28)."""
    n = x.shape[0]
    tile = NB_IMG if n <= BATCH_TILE_CAP else BATCH_TILE_CAP
    n_pad = ((n + tile - 1) // tile) * tile
    xf = x.astype(jnp.float32).reshape(n, HW1)
    if n_pad != n:
        xf = jnp.pad(xf, ((0, n_pad - n), (0, 0)))
    feats = _conv_trunk(xf, kp)                   # (n_pad*16, 49)
    feats = feats.reshape(n_pad, 16 * HW3)        # torch flatten order (free)
    out = _fc_head(feats, kp)                     # (n_pad, 10)
    return out[:n]


# --------------------------- parameter handling -----------------------------

def init_params(key):
    """Deterministic PyTorch-style uniform(-1/sqrt(fan_in), 1/sqrt(fan_in))."""
    def uniform(k, shape, fan_in):
        bound = 1.0 / float(fan_in) ** 0.5
        return jax.random.uniform(k, shape, jnp.float32, -bound, bound)

    ks = jax.random.split(key, 12)
    p = {}
    p["conv10_w"] = uniform(ks[0], (10, 1, 3, 3), 1 * 9)
    p["conv10_b"] = uniform(ks[1], (10,), 1 * 9)
    p["conv5_w"] = uniform(ks[2], (5, 10, 3, 3), 10 * 9)
    p["conv5_b"] = uniform(ks[3], (5,), 10 * 9)
    p["conv16_w"] = uniform(ks[4], (16, 5, 3, 3), 5 * 9)
    p["conv16_b"] = uniform(ks[5], (16,), 5 * 9)
    p["fc1_w"] = uniform(ks[6], (FC1_OUT, 16 * 7 * 7), 16 * 7 * 7)
    p["fc1_b"] = uniform(ks[7], (FC1_OUT,), 16 * 7 * 7)
    p["fc2_w"] = uniform(ks[8], (FC2_OUT, FC1_OUT), FC1_OUT)
    p["fc2_b"] = uniform(ks[9], (FC2_OUT,), FC1_OUT)
    p["fc3_w"] = uniform(ks[10], (NB_CLASSES, FC2_OUT), FC2_OUT)
    p["fc3_b"] = uniform(ks[11], (NB_CLASSES,), FC2_OUT)
    return p


def prepare_params(p):
    """Rearrange PyTorch-layout params into the kernel layout (done once)."""
    f32 = jnp.float32
    eye = jnp.eye(NB_IMG, dtype=f32)

    def conv_taps(w):                            # (O, C, 3, 3) -> (9, O, C)
        o, c = w.shape[0], w.shape[1]
        return jnp.transpose(w.reshape(o, c, 9), (2, 0, 1))

    def block_diag_taps(w):
        # (O, C, 3, 3) -> (9, ROWS, ROWS) bf16, block-diagonal over images.
        o, c = w.shape[0], w.shape[1]
        wk = conv_taps(w)
        blk = jnp.zeros((9, CH_STRIDE, CH_STRIDE), f32).at[:, :o, :c].set(wk)
        big = jnp.einsum("nm,koc->knomc", eye, blk)
        return big.reshape(9, ROWS, ROWS).astype(BF16)

    def stacked_bias(b):
        bb = jnp.zeros((CH_STRIDE,), f32).at[:b.shape[0]].set(b)
        return jnp.tile(bb, NB_IMG).reshape(ROWS, 1)

    # conv_10: tap-stacked block-diagonal weight, shape (ROWS, 9*NB_IMG).
    w1f = p["conv10_w"].reshape(10, 9)
    blk1 = jnp.zeros((CH_STRIDE, 9), f32).at[:10, :].set(w1f)
    w1big = jnp.einsum("nm,ok->nokm", eye, blk1).reshape(ROWS, 9 * NB_IMG)

    # sel1: flat 28x28 -> padded 14x14 (row stride 16), picks even (h, w).
    q = jnp.arange(HW1)
    hq, wq = q // W1, q % W1
    pc = jnp.arange(PW2)
    hp, wp = pc // RS2, pc % RS2
    sel1 = ((hq[:, None] == 2 * hp[None, :])
            & (wq[:, None] == 2 * wp[None, :])
            & (wp[None, :] < W2)).astype(f32)
    # sel2: padded 14x14 -> flat 7x7.
    q2 = jnp.arange(PW2)
    hq2, wq2 = q2 // RS2, q2 % RS2
    pc2 = jnp.arange(HW3)
    hp2, wp2 = pc2 // 7, pc2 % 7
    sel2 = ((hq2[:, None] == 2 * hp2[None, :])
            & (wq2[:, None] == 2 * wp2[None, :])).astype(f32)

    valid2 = (wp < W2).astype(f32).reshape(1, PW2)       # real cols of padded 14x14
    col = jnp.arange(HW1) % W1
    edge1 = jnp.stack([(col != 0), (col != W1 - 1)], axis=0).astype(f32)

    return {
        "w1": w1big.astype(BF16), "b1": stacked_bias(p["conv10_b"]),
        "sel1": sel1.astype(BF16),
        "w2": block_diag_taps(p["conv5_w"]), "b2": stacked_bias(p["conv5_b"]),
        "w3": block_diag_taps(p["conv16_w"]), "b3": stacked_bias(p["conv16_b"]),
        "valid2": valid2, "sel2": sel2.astype(BF16), "edge1": edge1,
        "fc1_w": p["fc1_w"].T.astype(BF16), "fc1_b": p["fc1_b"].reshape(1, -1),
        "fc2_w": p["fc2_w"].T.astype(BF16), "fc2_b": p["fc2_b"].reshape(1, -1),
        "fc3_w": p["fc3_w"].T.astype(BF16), "fc3_b": p["fc3_b"].reshape(1, -1),
    }


# --------------------------- pure-JAX reference ------------------------------

def _reference_forward(x, p):
    hp = jax.lax.Precision.HIGHEST

    def conv3x3(x, w, b):
        n, c, h, ww = x.shape
        o = w.shape[0]
        xp = jnp.pad(x, ((0, 0), (0, 0), (1, 1), (1, 1)))
        cols = jnp.stack([xp[:, :, dh:dh + h, dw:dw + ww]
                          for dh in range(3) for dw in range(3)], axis=2)
        cols = cols.reshape(n, c * 9, h, ww).transpose(0, 2, 3, 1).reshape(n * h * ww, c * 9)
        out = jnp.dot(cols, w.reshape(o, c * 9).T, precision=hp) + b
        return out.reshape(n, h, ww, o).transpose(0, 3, 1, 2)

    def pool(x):
        return jnp.maximum(jnp.maximum(x[:, :, 0::2, 0::2], x[:, :, 0::2, 1::2]),
                           jnp.maximum(x[:, :, 1::2, 0::2], x[:, :, 1::2, 1::2]))

    h = pool(jnp.maximum(conv3x3(x, p["conv10_w"], p["conv10_b"]), 0.0))
    h = jnp.maximum(conv3x3(h, p["conv5_w"], p["conv5_b"]), 0.0)
    h = pool(jnp.maximum(conv3x3(h, p["conv16_w"], p["conv16_b"]), 0.0))
    h = h.reshape(h.shape[0], -1)
    h = jnp.maximum(jnp.dot(h, p["fc1_w"].T, precision=hp) + p["fc1_b"], 0.0)
    h = jnp.maximum(jnp.dot(h, p["fc2_w"].T, precision=hp) + p["fc2_b"], 0.0)
    return jnp.dot(h, p["fc3_w"].T, precision=hp) + p["fc3_b"]


if __name__ == "__main__":
    key = jax.random.PRNGKey(0)
    pkey, xkey = jax.random.split(key)
    params = init_params(pkey)
    kparams = prepare_params(params)
    # 28x28 spatial size is required by fc1 (in_features = 16*7*7); small batch.
    x = jax.random.normal(xkey, (2, 1, 28, 28), jnp.float32)

    fwd = jax.jit(fmnist_cnn_forward)
    out = jax.block_until_ready(fwd(x, kparams))
    assert out.shape == (2, NB_CLASSES)
    assert out.dtype == jnp.float32

    ref = jax.block_until_ready(jax.jit(_reference_forward)(x, params))
    max_err = float(jnp.max(jnp.abs(out - ref)))
    assert max_err < 5e-2, f"kernel/reference mismatch: max abs err = {max_err}"

    print("KERNEL_OK")
</pallas_src>

<mosaic_0001>
module attributes {stable_mosaic.version = 11 : i64} {
  func.func @_trunk_kernel(%arg0: i32, %arg1: memref<8x784xf32, #tpu.memory_space<vmem>>, %arg2: memref<128x72xbf16, #tpu.memory_space<vmem>>, %arg3: memref<128x1xf32, #tpu.memory_space<vmem>>, %arg4: memref<784x224xbf16, #tpu.memory_space<vmem>>, %arg5: memref<9x128x128xbf16, #tpu.memory_space<vmem>>, %arg6: memref<128x1xf32, #tpu.memory_space<vmem>>, %arg7: memref<9x128x128xbf16, #tpu.memory_space<vmem>>, %arg8: memref<128x1xf32, #tpu.memory_space<vmem>>, %arg9: memref<1x224xf32, #tpu.memory_space<vmem>>, %arg10: memref<224x49xbf16, #tpu.memory_space<vmem>>, %arg11: memref<2x784xf32, #tpu.memory_space<vmem>>, %arg12: memref<128x49xf32, #tpu.memory_space<vmem>>, %arg13: memref<8x848xf32, #tpu.memory_space<vmem>>, %arg14: memref<72x784xf32, #tpu.memory_space<vmem>>, %arg15: memref<128x816xbf16, #tpu.memory_space<vmem>>, %arg16: memref<128x288xbf16, #tpu.memory_space<vmem>>, %arg17: memref<128x288xbf16, #tpu.memory_space<vmem>>, %arg18: memref<128x256xbf16, #tpu.memory_space<vmem>>) attributes {dimension_semantics = [#tpu.dimension_semantics<parallel>], iteration_bounds = array<i64: 1>, scalar_prefetch = 0 : i64, scratch_operands = 6 : i64, tpu.core_type = #tpu.core_type<tc>, window_params = [{transform_indices = @transform_0, window_bounds = array<i64: 8, 784>}, {pipeline_mode = #tpu.pipeline_mode<synchronous>, transform_indices = @transform_1, window_bounds = array<i64: 128, 72>}, {pipeline_mode = #tpu.pipeline_mode<synchronous>, transform_indices = @transform_2, window_bounds = array<i64: 128, 1>}, {pipeline_mode = #tpu.pipeline_mode<synchronous>, transform_indices = @transform_3, window_bounds = array<i64: 784, 224>}, {pipeline_mode = #tpu.pipeline_mode<synchronous>, transform_indices = @transform_4, window_bounds = array<i64: 9, 128, 128>}, {pipeline_mode = #tpu.pipeline_mode<synchronous>, transform_indices = @transform_5, window_bounds = array<i64: 128, 1>}, {pipeline_mode = #tpu.pipeline_mode<synchronous>, transform_indices = @transform_6, window_bounds = array<i64: 9, 128, 128>}, {pipeline_mode = #tpu.pipeline_mode<synchronous>, transform_indices = @transform_7, window_bounds = array<i64: 128, 1>}, {pipeline_mode = #tpu.pipeline_mode<synchronous>, transform_indices = @transform_8, window_bounds = array<i64: 1, 224>}, {pipeline_mode = #tpu.pipeline_mode<synchronous>, transform_indices = @transform_9, window_bounds = array<i64: 224, 49>}, {pipeline_mode = #tpu.pipeline_mode<synchronous>, transform_indices = @transform_10, window_bounds = array<i64: 2, 784>}, {transform_indices = @transform_11, window_bounds = array<i64: 128, 49>}]} {
    %cst = arith.constant 0.000000e+00 : f32
    %0 = vector.broadcast %cst : f32 to vector<8x32xf32>
    %c0 = arith.constant 0 : index
    %c0_0 = arith.constant 0 : index
    %1 = vector.load %arg13[%c0, %c0_0] : memref<8x848xf32, #tpu.memory_space<vmem>>, vector<8x32xf32>
    tpu.vector_store %arg13[%c0, %c0_0], %0 {strides = array<i32>} : memref<8x848xf32, #tpu.memory_space<vmem>>, vector<8x32xf32>,
    %cst_1 = arith.constant 0.000000e+00 : f32
    %2 = vector.broadcast %cst_1 : f32 to vector<8x32xf32>
    %c0_2 = arith.constant 0 : index
    %c816 = arith.constant 816 : index
    %3 = vector.load %arg13[%c0_2, %c816] : memref<8x848xf32, #tpu.memory_space<vmem>>, vector<8x32xf32>
    tpu.vector_store %arg13[%c0_2, %c816], %2 {strides = array<i32>} : memref<8x848xf32, #tpu.memory_space<vmem>>, vector<8x32xf32>,
    %cst_3 = arith.constant 0.000000e+00 : bf16
    %4 = vector.broadcast %cst_3 : bf16 to vector<128x32xbf16>
    %c0_4 = arith.constant 0 : index
    %c784 = arith.constant 784 : index
    %5 = vector.load %arg15[%c0_4, %c784] : memref<128x816xbf16, #tpu.memory_space<vmem>>, vector<128x32xbf16>
    tpu.vector_store %arg15[%c0_4, %c784], %4 {strides = array<i32>} : memref<128x816xbf16, #tpu.memory_space<vmem>>, vector<128x32xbf16>,
    %cst_5 = arith.constant 0.000000e+00 : bf16
    %6 = vector.broadcast %cst_5 : bf16 to vector<128x32xbf16>
    %c0_6 = arith.constant 0 : index
    %c0_7 = arith.constant 0 : index
    %7 = vector.load %arg16[%c0_6, %c0_7] : memref<128x288xbf16, #tpu.memory_space<vmem>>, vector<128x32xbf16>
    tpu.vector_store %arg16[%c0_6, %c0_7], %6 {strides = array<i32>} : memref<128x288xbf16, #tpu.memory_space<vmem>>, vector<128x32xbf16>,
    %cst_8 = arith.constant 0.000000e+00 : bf16
    %8 = vector.broadcast %cst_8 : bf16 to vector<128x32xbf16>
    %c0_9 = arith.constant 0 : index
    %c256 = arith.constant 256 : index
    %9 = vector.load %arg16[%c0_9, %c256] : memref<128x288xbf16, #tpu.memory_space<vmem>>, vector<128x32xbf16>
    tpu.vector_store %arg16[%c0_9, %c256], %8 {strides = array<i32>} : memref<128x288xbf16, #tpu.memory_space<vmem>>, vector<128x32xbf16>,
    %cst_10 = arith.constant 0.000000e+00 : bf16
    %10 = vector.broadcast %cst_10 : bf16 to vector<128x32xbf16>
    %c0_11 = arith.constant 0 : index
    %c0_12 = arith.constant 0 : index
    %11 = vector.load %arg17[%c0_11, %c0_12] : memref<128x288xbf16, #tpu.memory_space<vmem>>, vector<128x32xbf16>
    tpu.vector_store %arg17[%c0_11, %c0_12], %10 {strides = array<i32>} : memref<128x288xbf16, #tpu.memory_space<vmem>>, vector<128x32xbf16>,
    %cst_13 = arith.constant 0.000000e+00 : bf16
    %12 = vector.broadcast %cst_13 : bf16 to vector<128x32xbf16>
    %c0_14 = arith.constant 0 : index
    %c256_15 = arith.constant 256 : index
    %13 = vector.load %arg17[%c0_14, %c256_15] : memref<128x288xbf16, #tpu.memory_space<vmem>>, vector<128x32xbf16>
    tpu.vector_store %arg17[%c0_14, %c256_15], %12 {strides = array<i32>} : memref<128x288xbf16, #tpu.memory_space<vmem>>, vector<128x32xbf16>,
    %cst_16 = arith.constant 0.000000e+00 : bf16
    %14 = vector.broadcast %cst_16 : bf16 to vector<128x32xbf16>
    %c0_17 = arith.constant 0 : index
    %c224 = arith.constant 224 : index
    %15 = vector.load %arg18[%c0_17, %c224] : memref<128x256xbf16, #tpu.memory_space<vmem>>, vector<128x32xbf16>
    tpu.vector_store %arg18[%c0_17, %c224], %14 {strides = array<i32>} : memref<128x256xbf16, #tpu.memory_space<vmem>>, vector<128x32xbf16>,
    %c0_18 = arith.constant 0 : index
    %c0_19 = arith.constant 0 : index
    %16 = vector.load %arg1[%c0_18, %c0_19] : memref<8x784xf32, #tpu.memory_space<vmem>>, vector<8x784xf32>
    %c0_20 = arith.constant 0 : index
    %c32 = arith.constant 32 : index
    %17 = vector.load %arg13[%c0_20, %c32] : memref<8x848xf32, #tpu.memory_space<vmem>>, vector<8x784xf32>
    tpu.vector_store %arg13[%c0_20, %c32], %16 {strides = array<i32>} : memref<8x848xf32, #tpu.memory_space<vmem>>, vector<8x784xf32>,
    %c0_21 = arith.constant 0 : index
    %c3 = arith.constant 3 : index
    %18 = vector.load %arg13[%c0_21, %c3] : memref<8x848xf32, #tpu.memory_space<vmem>>, vector<8x784xf32>
    %c0_22 = arith.constant 0 : index
    %c0_23 = arith.constant 0 : index
    %19 = vector.load %arg11[%c0_22, %c0_23] : memref<2x784xf32, #tpu.memory_space<vmem>>, vector<1x784xf32>
    %20 = vector.broadcast %19 : vector<1x784xf32> to vector<8x784xf32>
    %21 = arith.mulf %18, %20 : vector<8x784xf32>
    %c0_24 = arith.constant 0 : index
    %c0_25 = arith.constant 0 : index
    %22 = vector.load %arg14[%c0_24, %c0_25] : memref<72x784xf32, #tpu.memory_space<vmem>>, vector<8x784xf32>
    tpu.vector_store %arg14[%c0_24, %c0_25], %21 {strides = array<i32>} : memref<72x784xf32, #tpu.memory_space<vmem>>, vector<8x784xf32>,
    %c0_26 = arith.constant 0 : index
    %c4 = arith.constant 4 : index
    %23 = vector.load %arg13[%c0_26, %c4] : memref<8x848xf32, #tpu.memory_space<vmem>>, vector<8x784xf32>
    %c8 = arith.constant 8 : index
    %c0_27 = arith.constant 0 : index
    %24 = vector.load %arg14[%c8, %c0_27] : memref<72x784xf32, #tpu.memory_space<vmem>>, vector<8x784xf32>
    tpu.vector_store %arg14[%c8, %c0_27], %23 {strides = array<i32>} : memref<72x784xf32, #tpu.memory_space<vmem>>, vector<8x784xf32>,
    %c0_28 = arith.constant 0 : index
    %c5 = arith.constant 5 : index
    %25 = vector.load %arg13[%c0_28, %c5] : memref<8x848xf32, #tpu.memory_space<vmem>>, vector<8x784xf32>
    %c1 = arith.constant 1 : index
    %c0_29 = arith.constant 0 : index
    %26 = vector.load %arg11[%c1, %c0_29] : memref<2x784xf32, #tpu.memory_space<vmem>>, vector<1x784xf32>
    %27 = vector.broadcast %26 : vector<1x784xf32> to vector<8x784xf32>
    %28 = arith.mulf %25, %27 : vector<8x784xf32>
    %c16 = arith.constant 16 : index
    %c0_30 = arith.constant 0 : index
    %29 = vector.load %arg14[%c16, %c0_30] : memref<72x784xf32, #tpu.memory_space<vmem>>, vector<8x784xf32>
    tpu.vector_store %arg14[%c16, %c0_30], %28 {strides = array<i32>} : memref<72x784xf32, #tpu.memory_space<vmem>>, vector<8x784xf32>,
    %c0_31 = arith.constant 0 : index
    %c31 = arith.constant 31 : index
    %30 = vector.load %arg13[%c0_31, %c31] : memref<8x848xf32, #tpu.memory_space<vmem>>, vector<8x784xf32>
    %c0_32 = arith.constant 0 : index
    %c0_33 = arith.constant 0 : index
    %31 = vector.load %arg11[%c0_32, %c0_33] : memref<2x784xf32, #tpu.memory_space<vmem>>, vector<1x784xf32>
    %32 = vector.broadcast %31 : vector<1x784xf32> to vector<8x784xf32>
    %33 = arith.mulf %30, %32 : vector<8x784xf32>
    %c24 = arith.constant 24 : index
    %c0_34 = arith.constant 0 : index
    %34 = vector.load %arg14[%c24, %c0_34] : memref<72x784xf32, #tpu.memory_space<vmem>>, vector<8x784xf32>
    tpu.vector_store %arg14[%c24, %c0_34], %33 {strides = array<i32>} : memref<72x784xf32, #tpu.memory_space<vmem>>, vector<8x784xf32>,
    %c0_35 = arith.constant 0 : index
    %c32_36 = arith.constant 32 : index
    %35 = vector.load %arg13[%c0_35, %c32_36] : memref<8x848xf32, #tpu.memory_space<vmem>>, vector<8x784xf32>
    %c32_37 = arith.constant 32 : index
    %c0_38 = arith.constant 0 : index
    %36 = vector.load %arg14[%c32_37, %c0_38] : memref<72x784xf32, #tpu.memory_space<vmem>>, vector<8x784xf32>
    tpu.vector_store %arg14[%c32_37, %c0_38], %35 {strides = array<i32>} : memref<72x784xf32, #tpu.memory_space<vmem>>, vector<8x784xf32>,
    %c0_39 = arith.constant 0 : index
    %c33 = arith.constant 33 : index
    %37 = vector.load %arg13[%c0_39, %c33] : memref<8x848xf32, #tpu.memory_space<vmem>>, vector<8x784xf32>
    %c1_40 = arith.constant 1 : index
    %c0_41 = arith.constant 0 : index
    %38 = vector.load %arg11[%c1_40, %c0_41] : memref<2x784xf32, #tpu.memory_space<vmem>>, vector<1x784xf32>
    %39 = vector.broadcast %38 : vector<1x784xf32> to vector<8x784xf32>
    %40 = arith.mulf %37, %39 : vector<8x784xf32>
    %c40 = arith.constant 40 : index
    %c0_42 = arith.constant 0 : index
    %41 = vector.load %arg14[%c40, %c0_42] : memref<72x784xf32, #tpu.memory_space<vmem>>, vector<8x784xf32>
    tpu.vector_store %arg14[%c40, %c0_42], %40 {strides = array<i32>} : memref<72x784xf32, #tpu.memory_space<vmem>>, vector<8x784xf32>,
    %c0_43 = arith.constant 0 : index
    %c59 = arith.constant 59 : index
    %42 = vector.load %arg13[%c0_43, %c59] : memref<8x848xf32, #tpu.memory_space<vmem>>, vector<8x784xf32>
    %c0_44 = arith.constant 0 : index
    %c0_45 = arith.constant 0 : index
    %43 = vector.load %arg11[%c0_44, %c0_45] : memref<2x784xf32, #tpu.memory_space<vmem>>, vector<1x784xf32>
    %44 = vector.broadcast %43 : vector<1x784xf32> to vector<8x784xf32>
    %45 = arith.mulf %42, %44 : vector<8x784xf32>
    %c48 = arith.constant 48 : index
    %c0_46 = arith.constant 0 : index
    %46 = vector.load %arg14[%c48, %c0_46] : memref<72x784xf32, #tpu.memory_space<vmem>>, vector<8x784xf32>
    tpu.vector_store %arg14[%c48, %c0_46], %45 {strides = array<i32>} : memref<72x784xf32, #tpu.memory_space<vmem>>, vector<8x784xf32>,
    %c0_47 = arith.constant 0 : index
    %c60 = arith.constant 60 : index
    %47 = vector.load %arg13[%c0_47, %c60] : memref<8x848xf32, #tpu.memory_space<vmem>>, vector<8x784xf32>
    %c56 = arith.constant 56 : index
    %c0_48 = arith.constant 0 : index
    %48 = vector.load %arg14[%c56, %c0_48] : memref<72x784xf32, #tpu.memory_space<vmem>>, vector<8x784xf32>
    tpu.vector_store %arg14[%c56, %c0_48], %47 {strides = array<i32>} : memref<72x784xf32, #tpu.memory_space<vmem>>, vector<8x784xf32>,
    %c0_49 = arith.constant 0 : index
    %c61 = arith.constant 61 : index
    %49 = vector.load %arg13[%c0_49, %c61] : memref<8x848xf32, #tpu.memory_space<vmem>>, vector<8x784xf32>
    %c1_50 = arith.constant 1 : index
    %c0_51 = arith.constant 0 : index
    %50 = vector.load %arg11[%c1_50, %c0_51] : memref<2x784xf32, #tpu.memory_space<vmem>>, vector<1x784xf32>
    %51 = vector.broadcast %50 : vector<1x784xf32> to vector<8x784xf32>
    %52 = arith.mulf %49, %51 : vector<8x784xf32>
    %c64 = arith.constant 64 : index
    %c0_52 = arith.constant 0 : index
    %53 = vector.load %arg14[%c64, %c0_52] : memref<72x784xf32, #tpu.memory_space<vmem>>, vector<8x784xf32>
    tpu.vector_store %arg14[%c64, %c0_52], %52 {strides = array<i32>} : memref<72x784xf32, #tpu.memory_space<vmem>>, vector<8x784xf32>,
    %c0_53 = arith.constant 0 : index
    %c0_54 = arith.constant 0 : index
    %54 = vector.load %arg2[%c0_53, %c0_54] : memref<128x72xbf16, #tpu.memory_space<vmem>>, vector<128x72xbf16>
    %c0_55 = arith.constant 0 : index
    %c0_56 = arith.constant 0 : index
    %55 = vector.load %arg14[%c0_55, %c0_56] : memref<72x784xf32, #tpu.memory_space<vmem>>, vector<72x784xf32>
    %56 = arith.truncf %55 : vector<72x784xf32> to vector<72x784xbf16>
    %cst_57 = arith.constant dense<0.000000e+00> : vector<128x784xf32>
    %57 = tpu.matmul %54, %56, %cst_57 {dimension_numbers = #tpu.dot_dimension_numbers<[1], [0], [0], [1], [0, 0, 1, 1], [], []>} : vector<128x72xbf16>, vector<72x784xbf16>, vector<128x784xf32> -> vector<128x784xf32>
    %c0_58 = arith.constant 0 : index
    %c0_59 = arith.constant 0 : index
    %58 = vector.load %arg3[%c0_58, %c0_59] : memref<128x1xf32, #tpu.memory_space<vmem>>, vector<128x1xf32>
    %59 = vector.broadcast %58 : vector<128x1xf32> to vector<128x784xf32>
    %60 = arith.addf %57, %59 : vector<128x784xf32>
    %cst_60 = arith.constant 0.000000e+00 : f32
    %61 = vector.broadcast %cst_60 : f32 to vector<128x784xf32>
    %62 = arith.maximumf %60, %61 : vector<128x784xf32>
    %63 = arith.truncf %62 : vector<128x784xf32> to vector<128x784xbf16>
    %c0_61 = arith.constant 0 : index
    %c0_62 = arith.constant 0 : index
    %64 = vector.load %arg15[%c0_61, %c0_62] : memref<128x816xbf16, #tpu.memory_space<vmem>>, vector<128x784xbf16>
    tpu.vector_store %arg15[%c0_61, %c0_62], %63 {strides = array<i32>} : memref<128x816xbf16, #tpu.memory_space<vmem>>, vector<128x784xbf16>,
    %c0_63 = arith.constant 0 : index
    %c0_64 = arith.constant 0 : index
    %65 = vector.load %arg15[%c0_63, %c0_64] : memref<128x816xbf16, #tpu.memory_space<vmem>>, vector<128x784xbf16>
    %c0_65 = arith.constant 0 : index
    %c1_66 = arith.constant 1 : index
    %66 = vector.load %arg15[%c0_65, %c1_66] : memref<128x816xbf16, #tpu.memory_space<vmem>>, vector<128x784xbf16>
    %67 = arith.maximumf %65, %66 : vector<128x784xbf16>
    %c0_67 = arith.constant 0 : index
    %c28 = arith.constant 28 : index
    %68 = vector.load %arg15[%c0_67, %c28] : memref<128x816xbf16, #tpu.memory_space<vmem>>, vector<128x784xbf16>
    %69 = arith.maximumf %67, %68 : vector<128x784xbf16>
    %c0_68 = arith.constant 0 : index
    %c29 = arith.constant 29 : index
    %70 = vector.load %arg15[%c0_68, %c29] : memref<128x816xbf16, #tpu.memory_space<vmem>>, vector<128x784xbf16>
    %71 = arith.maximumf %69, %70 : vector<128x784xbf16>
    %c0_69 = arith.constant 0 : index
    %c0_70 = arith.constant 0 : index
    %72 = vector.load %arg4[%c0_69, %c0_70] : memref<784x224xbf16, #tpu.memory_space<vmem>>, vector<784x224xbf16>
    %cst_71 = arith.constant dense<0.000000e+00> : vector<128x224xf32>
    %73 = tpu.matmul %71, %72, %cst_71 {dimension_numbers = #tpu.dot_dimension_numbers<[1], [0], [0], [1], [0, 0, 1, 1], [], []>} : vector<128x784xbf16>, vector<784x224xbf16>, vector<128x224xf32> -> vector<128x224xf32>
    %74 = arith.truncf %73 : vector<128x224xf32> to vector<128x224xbf16>
    %c0_72 = arith.constant 0 : index
    %c32_73 = arith.constant 32 : index
    %75 = vector.load %arg16[%c0_72, %c32_73] : memref<128x288xbf16, #tpu.memory_space<vmem>>, vector<128x224xbf16>
    tpu.vector_store %arg16[%c0_72, %c32_73], %74 {strides = array<i32>} : memref<128x288xbf16, #tpu.memory_space<vmem>>, vector<128x224xbf16>,
    %c0_74 = arith.constant 0 : index
    %c0_75 = arith.constant 0 : index
    %c0_76 = arith.constant 0 : index
    %76 = vector.load %arg5[%c0_74, %c0_75, %c0_76] : memref<9x128x128xbf16, #tpu.memory_space<vmem>>, vector<1x128x128xbf16>
    %77 = vector.shape_cast %76 : vector<1x128x128xbf16> to vector<128x128xbf16>
    %c0_77 = arith.constant 0 : index
    %c15 = arith.constant 15 : index
    %78 = vector.load %arg16[%c0_77, %c15] : memref<128x288xbf16, #tpu.memory_space<vmem>>, vector<128x224xbf16>
    %cst_78 = arith.constant dense<0.000000e+00> : vector<128x224xf32>
    %79 = tpu.matmul %77, %78, %cst_78 {dimension_numbers = #tpu.dot_dimension_numbers<[1], [0], [0], [1], [0, 0, 1, 1], [], []>} : vector<128x128xbf16>, vector<128x224xbf16>, vector<128x224xf32> -> vector<128x224xf32>
    %c1_79 = arith.constant 1 : index
    %c0_80 = arith.constant 0 : index
    %c0_81 = arith.constant 0 : index
    %80 = vector.load %arg5[%c1_79, %c0_80, %c0_81] : memref<9x128x128xbf16, #tpu.memory_space<vmem>>, vector<1x128x128xbf16>
    %81 = vector.shape_cast %80 : vector<1x128x128xbf16> to vector<128x128xbf16>
    %c0_82 = arith.constant 0 : index
    %c16_83 = arith.constant 16 : index
    %82 = vector.load %arg16[%c0_82, %c16_83] : memref<128x288xbf16, #tpu.memory_space<vmem>>, vector<128x224xbf16>
    %cst_84 = arith.constant dense<0.000000e+00> : vector<128x224xf32>
    %83 = tpu.matmul %81, %82, %cst_84 {dimension_numbers = #tpu.dot_dimension_numbers<[1], [0], [0], [1], [0, 0, 1, 1], [], []>} : vector<128x128xbf16>, vector<128x224xbf16>, vector<128x224xf32> -> vector<128x224xf32>
    %84 = arith.addf %79, %83 : vector<128x224xf32>
    %c2 = arith.constant 2 : index
    %c0_85 = arith.constant 0 : index
    %c0_86 = arith.constant 0 : index
    %85 = vector.load %arg5[%c2, %c0_85, %c0_86] : memref<9x128x128xbf16, #tpu.memory_space<vmem>>, vector<1x128x128xbf16>
    %86 = vector.shape_cast %85 : vector<1x128x128xbf16> to vector<128x128xbf16>
    %c0_87 = arith.constant 0 : index
    %c17 = arith.constant 17 : index
    %87 = vector.load %arg16[%c0_87, %c17] : memref<128x288xbf16, #tpu.memory_space<vmem>>, vector<128x224xbf16>
    %cst_88 = arith.constant dense<0.000000e+00> : vector<128x224xf32>
    %88 = tpu.matmul %86, %87, %cst_88 {dimension_numbers = #tpu.dot_dimension_numbers<[1], [0], [0], [1], [0, 0, 1, 1], [], []>} : vector<128x128xbf16>, vector<128x224xbf16>, vector<128x224xf32> -> vector<128x224xf32>
    %89 = arith.addf %84, %88 : vector<128x224xf32>
    %c3_89 = arith.constant 3 : index
    %c0_90 = arith.constant 0 : index
    %c0_91 = arith.constant 0 : index
    %90 = vector.load %arg5[%c3_89, %c0_90, %c0_91] : memref<9x128x128xbf16, #tpu.memory_space<vmem>>, vector<1x128x128xbf16>
    %91 = vector.shape_cast %90 : vector<1x128x128xbf16> to vector<128x128xbf16>
    %c0_92 = arith.constant 0 : index
    %c31_93 = arith.constant 31 : index
    %92 = vector.load %arg16[%c0_92, %c31_93] : memref<128x288xbf16, #tpu.memory_space<vmem>>, vector<128x224xbf16>
    %cst_94 = arith.constant dense<0.000000e+00> : vector<128x224xf32>
    %93 = tpu.matmul %91, %92, %cst_94 {dimension_numbers = #tpu.dot_dimension_numbers<[1], [0], [0], [1], [0, 0, 1, 1], [], []>} : vector<128x128xbf16>, vector<128x224xbf16>, vector<128x224xf32> -> vector<128x224xf32>
    %94 = arith.addf %89, %93 : vector<128x224xf32>
    %c4_95 = arith.constant 4 : index
    %c0_96 = arith.constant 0 : index
    %c0_97 = arith.constant 0 : index
    %95 = vector.load %arg5[%c4_95, %c0_96, %c0_97] : memref<9x128x128xbf16, #tpu.memory_space<vmem>>, vector<1x128x128xbf16>
    %96 = vector.shape_cast %95 : vector<1x128x128xbf16> to vector<128x128xbf16>
    %c0_98 = arith.constant 0 : index
    %c32_99 = arith.constant 32 : index
    %97 = vector.load %arg16[%c0_98, %c32_99] : memref<128x288xbf16, #tpu.memory_space<vmem>>, vector<128x224xbf16>
    %cst_100 = arith.constant dense<0.000000e+00> : vector<128x224xf32>
    %98 = tpu.matmul %96, %97, %cst_100 {dimension_numbers = #tpu.dot_dimension_numbers<[1], [0], [0], [1], [0, 0, 1, 1], [], []>} : vector<128x128xbf16>, vector<128x224xbf16>, vector<128x224xf32> -> vector<128x224xf32>
    %99 = arith.addf %94, %98 : vector<128x224xf32>
    %c5_101 = arith.constant 5 : index
    %c0_102 = arith.constant 0 : index
    %c0_103 = arith.constant 0 : index
    %100 = vector.load %arg5[%c5_101, %c0_102, %c0_103] : memref<9x128x128xbf16, #tpu.memory_space<vmem>>, vector<1x128x128xbf16>
    %101 = vector.shape_cast %100 : vector<1x128x128xbf16> to vector<128x128xbf16>
    %c0_104 = arith.constant 0 : index
    %c33_105 = arith.constant 33 : index
    %102 = vector.load %arg16[%c0_104, %c33_105] : memref<128x288xbf16, #tpu.memory_space<vmem>>, vector<128x224xbf16>
    %cst_106 = arith.constant dense<0.000000e+00> : vector<128x224xf32>
    %103 = tpu.matmul %101, %102, %cst_106 {dimension_numbers = #tpu.dot_dimension_numbers<[1], [0], [0], [1], [0, 0, 1, 1], [], []>} : vector<128x128xbf16>, vector<128x224xbf16>, vector<128x224xf32> -> vector<128x224xf32>
    %104 = arith.addf %99, %103 : vector<128x224xf32>
    %c6 = arith.constant 6 : index
    %c0_107 = arith.constant 0 : index
    %c0_108 = arith.constant 0 : index
    %105 = vector.load %arg5[%c6, %c0_107, %c0_108] : memref<9x128x128xbf16, #tpu.memory_space<vmem>>, vector<1x128x128xbf16>
    %106 = vector.shape_cast %105 : vector<1x128x128xbf16> to vector<128x128xbf16>
    %c0_109 = arith.constant 0 : index
    %c47 = arith.constant 47 : index
    %107 = vector.load %arg16[%c0_109, %c47] : memref<128x288xbf16, #tpu.memory_space<vmem>>, vector<128x224xbf16>
    %cst_110 = arith.constant dense<0.000000e+00> : vector<128x224xf32>
    %108 = tpu.matmul %106, %107, %cst_110 {dimension_numbers = #tpu.dot_dimension_numbers<[1], [0], [0], [1], [0, 0, 1, 1], [], []>} : vector<128x128xbf16>, vector<128x224xbf16>, vector<128x224xf32> -> vector<128x224xf32>
    %109 = arith.addf %104, %108 : vector<128x224xf32>
    %c7 = arith.constant 7 : index
    %c0_111 = arith.constant 0 : index
    %c0_112 = arith.constant 0 : index
    %110 = vector.load %arg5[%c7, %c0_111, %c0_112] : memref<9x128x128xbf16, #tpu.memory_space<vmem>>, vector<1x128x128xbf16>
    %111 = vector.shape_cast %110 : vector<1x128x128xbf16> to vector<128x128xbf16>
    %c0_113 = arith.constant 0 : index
    %c48_114 = arith.constant 48 : index
    %112 = vector.load %arg16[%c0_113, %c48_114] : memref<128x288xbf16, #tpu.memory_space<vmem>>, vector<128x224xbf16>
    %cst_115 = arith.constant dense<0.000000e+00> : vector<128x224xf32>
    %113 = tpu.matmul %111, %112, %cst_115 {dimension_numbers = #tpu.dot_dimension_numbers<[1], [0], [0], [1], [0, 0, 1, 1], [], []>} : vector<128x128xbf16>, vector<128x224xbf16>, vector<128x224xf32> -> vector<128x224xf32>
    %114 = arith.addf %109, %113 : vector<128x224xf32>
    %c8_116 = arith.constant 8 : index
    %c0_117 = arith.constant 0 : index
    %c0_118 = arith.constant 0 : index
    %115 = vector.load %arg5[%c8_116, %c0_117, %c0_118] : memref<9x128x128xbf16, #tpu.memory_space<vmem>>, vector<1x128x128xbf16>
    %116 = vector.shape_cast %115 : vector<1x128x128xbf16> to vector<128x128xbf16>
    %c0_119 = arith.constant 0 : index
    %c49 = arith.constant 49 : index
    %117 = vector.load %arg16[%c0_119, %c49] : memref<128x288xbf16, #tpu.memory_space<vmem>>, vector<128x224xbf16>
    %cst_120 = arith.constant dense<0.000000e+00> : vector<128x224xf32>
    %118 = tpu.matmul %116, %117, %cst_120 {dimension_numbers = #tpu.dot_dimension_numbers<[1], [0], [0], [1], [0, 0, 1, 1], [], []>} : vector<128x128xbf16>, vector<128x224xbf16>, vector<128x224xf32> -> vector<128x224xf32>
    %119 = arith.addf %114, %118 : vector<128x224xf32>
    %c0_121 = arith.constant 0 : index
    %c0_122 = arith.constant 0 : index
    %120 = vector.load %arg6[%c0_121, %c0_122] : memref<128x1xf32, #tpu.memory_space<vmem>>, vector<128x1xf32>
    %121 = vector.broadcast %120 : vector<128x1xf32> to vector<128x224xf32>
    %122 = arith.addf %119, %121 : vector<128x224xf32>
    %cst_123 = arith.constant 0.000000e+00 : f32
    %123 = vector.broadcast %cst_123 : f32 to vector<128x224xf32>
    %124 = arith.maximumf %122, %123 : vector<128x224xf32>
    %c0_124 = arith.constant 0 : index
    %c0_125 = arith.constant 0 : index
    %125 = vector.load %arg9[%c0_124, %c0_125] : memref<1x224xf32, #tpu.memory_space<vmem>>, vector<1x224xf32>
    %126 = vector.broadcast %125 : vector<1x224xf32> to vector<128x224xf32>
    %127 = arith.mulf %124, %126 : vector<128x224xf32>
    %128 = arith.truncf %127 : vector<128x224xf32> to vector<128x224xbf16>
    %c0_126 = arith.constant 0 : index
    %c32_127 = arith.constant 32 : index
    %129 = vector.load %arg17[%c0_126, %c32_127] : memref<128x288xbf16, #tpu.memory_space<vmem>>, vector<128x224xbf16>
    tpu.vector_store %arg17[%c0_126, %c32_127], %128 {strides = array<i32>} : memref<128x288xbf16, #tpu.memory_space<vmem>>, vector<128x224xbf16>,
    %c0_128 = arith.constant 0 : index
    %c0_129 = arith.constant 0 : index
    %c0_130 = arith.constant 0 : index
    %130 = vector.load %arg7[%c0_128, %c0_129, %c0_130] : memref<9x128x128xbf16, #tpu.memory_space<vmem>>, vector<1x128x128xbf16>
    %131 = vector.shape_cast %130 : vector<1x128x128xbf16> to vector<128x128xbf16>
    %c0_131 = arith.constant 0 : index
    %c15_132 = arith.constant 15 : index
    %132 = vector.load %arg17[%c0_131, %c15_132] : memref<128x288xbf16, #tpu.memory_space<vmem>>, vector<128x224xbf16>
    %cst_133 = arith.constant dense<0.000000e+00> : vector<128x224xf32>
    %133 = tpu.matmul %131, %132, %cst_133 {dimension_numbers = #tpu.dot_dimension_numbers<[1], [0], [0], [1], [0, 0, 1, 1], [], []>} : vector<128x128xbf16>, vector<128x224xbf16>, vector<128x224xf32> -> vector<128x224xf32>
    %c1_134 = arith.constant 1 : index
    %c0_135 = arith.constant 0 : index
    %c0_136 = arith.constant 0 : index
    %134 = vector.load %arg7[%c1_134, %c0_135, %c0_136] : memref<9x128x128xbf16, #tpu.memory_space<vmem>>, vector<1x128x128xbf16>
    %135 = vector.shape_cast %134 : vector<1x128x128xbf16> to vector<128x128xbf16>
    %c0_137 = arith.constant 0 : index
    %c16_138 = arith.constant 16 : index
    %136 = vector.load %arg17[%c0_137, %c16_138] : memref<128x288xbf16, #tpu.memory_space<vmem>>, vector<128x224xbf16>
    %cst_139 = arith.constant dense<0.000000e+00> : vector<128x224xf32>
    %137 = tpu.matmul %135, %136, %cst_139 {dimension_numbers = #tpu.dot_dimension_numbers<[1], [0], [0], [1], [0, 0, 1, 1], [], []>} : vector<128x128xbf16>, vector<128x224xbf16>, vector<128x224xf32> -> vector<128x224xf32>
    %138 = arith.addf %133, %137 : vector<128x224xf32>
    %c2_140 = arith.constant 2 : index
    %c0_141 = arith.constant 0 : index
    %c0_142 = arith.constant 0 : index
    %139 = vector.load %arg7[%c2_140, %c0_141, %c0_142] : memref<9x128x128xbf16, #tpu.memory_space<vmem>>, vector<1x128x128xbf16>
    %140 = vector.shape_cast %139 : vector<1x128x128xbf16> to vector<128x128xbf16>
    %c0_143 = arith.constant 0 : index
    %c17_144 = arith.constant 17 : index
    %141 = vector.load %arg17[%c0_143, %c17_144] : memref<128x288xbf16, #tpu.memory_space<vmem>>, vector<128x224xbf16>
    %cst_145 = arith.constant dense<0.000000e+00> : vector<128x224xf32>
    %142 = tpu.matmul %140, %141, %cst_145 {dimension_numbers = #tpu.dot_dimension_numbers<[1], [0], [0], [1], [0, 0, 1, 1], [], []>} : vector<128x128xbf16>, vector<128x224xbf16>, vector<128x224xf32> -> vector<128x224xf32>
    %143 = arith.addf %138, %142 : vector<128x224xf32>
    %c3_146 = arith.constant 3 : index
    %c0_147 = arith.constant 0 : index
    %c0_148 = arith.constant 0 : index
    %144 = vector.load %arg7[%c3_146, %c0_147, %c0_148] : memref<9x128x128xbf16, #tpu.memory_space<vmem>>, vector<1x128x128xbf16>
    %145 = vector.shape_cast %144 : vector<1x128x128xbf16> to vector<128x128xbf16>
    %c0_149 = arith.constant 0 : index
    %c31_150 = arith.constant 31 : index
    %146 = vector.load %arg17[%c0_149, %c31_150] : memref<128x288xbf16, #tpu.memory_space<vmem>>, vector<128x224xbf16>
    %cst_151 = arith.constant dense<0.000000e+00> : vector<128x224xf32>
    %147 = tpu.matmul %145, %146, %cst_151 {dimension_numbers = #tpu.dot_dimension_numbers<[1], [0], [0], [1], [0, 0, 1, 1], [], []>} : vector<128x128xbf16>, vector<128x224xbf16>, vector<128x224xf32> -> vector<128x224xf32>
    %148 = arith.addf %143, %147 : vector<128x224xf32>
    %c4_152 = arith.constant 4 : index
    %c0_153 = arith.constant 0 : index
    %c0_154 = arith.constant 0 : index
    %149 = vector.load %arg7[%c4_152, %c0_153, %c0_154] : memref<9x128x128xbf16, #tpu.memory_space<vmem>>, vector<1x128x128xbf16>
    %150 = vector.shape_cast %149 : vector<1x128x128xbf16> to vector<128x128xbf16>
    %c0_155 = arith.constant 0 : index
    %c32_156 = arith.constant 32 : index
    %151 = vector.load %arg17[%c0_155, %c32_156] : memref<128x288xbf16, #tpu.memory_space<vmem>>, vector<128x224xbf16>
    %cst_157 = arith.constant dense<0.000000e+00> : vector<128x224xf32>
    %152 = tpu.matmul %150, %151, %cst_157 {dimension_numbers = #tpu.dot_dimension_numbers<[1], [0], [0], [1], [0, 0, 1, 1], [], []>} : vector<128x128xbf16>, vector<128x224xbf16>, vector<128x224xf32> -> vector<128x224xf32>
    %153 = arith.addf %148, %152 : vector<128x224xf32>
    %c5_158 = arith.constant 5 : index
    %c0_159 = arith.constant 0 : index
    %c0_160 = arith.constant 0 : index
    %154 = vector.load %arg7[%c5_158, %c0_159, %c0_160] : memref<9x128x128xbf16, #tpu.memory_space<vmem>>, vector<1x128x128xbf16>
    %155 = vector.shape_cast %154 : vector<1x128x128xbf16> to vector<128x128xbf16>
    %c0_161 = arith.constant 0 : index
    %c33_162 = arith.constant 33 : index
    %156 = vector.load %arg17[%c0_161, %c33_162] : memref<128x288xbf16, #tpu.memory_space<vmem>>, vector<128x224xbf16>
    %cst_163 = arith.constant dense<0.000000e+00> : vector<128x224xf32>
    %157 = tpu.matmul %155, %156, %cst_163 {dimension_numbers = #tpu.dot_dimension_numbers<[1], [0], [0], [1], [0, 0, 1, 1], [], []>} : vector<128x128xbf16>, vector<128x224xbf16>, vector<128x224xf32> -> vector<128x224xf32>
    %158 = arith.addf %153, %157 : vector<128x224xf32>
    %c6_164 = arith.constant 6 : index
    %c0_165 = arith.constant 0 : index
    %c0_166 = arith.constant 0 : index
    %159 = vector.load %arg7[%c6_164, %c0_165, %c0_166] : memref<9x128x128xbf16, #tpu.memory_space<vmem>>, vector<1x128x128xbf16>
    %160 = vector.shape_cast %159 : vector<1x128x128xbf16> to vector<128x128xbf16>
    %c0_167 = arith.constant 0 : index
    %c47_168 = arith.constant 47 : index
    %161 = vector.load %arg17[%c0_167, %c47_168] : memref<128x288xbf16, #tpu.memory_space<vmem>>, vector<128x224xbf16>
    %cst_169 = arith.constant dense<0.000000e+00> : vector<128x224xf32>
    %162 = tpu.matmul %160, %161, %cst_169 {dimension_numbers = #tpu.dot_dimension_numbers<[1], [0], [0], [1], [0, 0, 1, 1], [], []>} : vector<128x128xbf16>, vector<128x224xbf16>, vector<128x224xf32> -> vector<128x224xf32>
    %163 = arith.addf %158, %162 : vector<128x224xf32>
    %c7_170 = arith.constant 7 : index
    %c0_171 = arith.constant 0 : index
    %c0_172 = arith.constant 0 : index
    %164 = vector.load %arg7[%c7_170, %c0_171, %c0_172] : memref<9x128x128xbf16, #tpu.memory_space<vmem>>, vector<1x128x128xbf16>
    %165 = vector.shape_cast %164 : vector<1x128x128xbf16> to vector<128x128xbf16>
    %c0_173 = arith.constant 0 : index
    %c48_174 = arith.constant 48 : index
    %166 = vector.load %arg17[%c0_173, %c48_174] : memref<128x288xbf16, #tpu.memory_space<vmem>>, vector<128x224xbf16>
    %cst_175 = arith.constant dense<0.000000e+00> : vector<128x224xf32>
    %167 = tpu.matmul %165, %166, %cst_175 {dimension_numbers = #tpu.dot_dimension_numbers<[1], [0], [0], [1], [0, 0, 1, 1], [], []>} : vector<128x128xbf16>, vector<128x224xbf16>, vector<128x224xf32> -> vector<128x224xf32>
    %168 = arith.addf %163, %167 : vector<128x224xf32>
    %c8_176 = arith.constant 8 : index
    %c0_177 = arith.constant 0 : index
    %c0_178 = arith.constant 0 : index
    %169 = vector.load %arg7[%c8_176, %c0_177, %c0_178] : memref<9x128x128xbf16, #tpu.memory_space<vmem>>, vector<1x128x128xbf16>
    %170 = vector.shape_cast %169 : vector<1x128x128xbf16> to vector<128x128xbf16>
    %c0_179 = arith.constant 0 : index
    %c49_180 = arith.constant 49 : index
    %171 = vector.load %arg17[%c0_179, %c49_180] : memref<128x288xbf16, #tpu.memory_space<vmem>>, vector<128x224xbf16>
    %cst_181 = arith.constant dense<0.000000e+00> : vector<128x224xf32>
    %172 = tpu.matmul %170, %171, %cst_181 {dimension_numbers = #tpu.dot_dimension_numbers<[1], [0], [0], [1], [0, 0, 1, 1], [], []>} : vector<128x128xbf16>, vector<128x224xbf16>, vector<128x224xf32> -> vector<128x224xf32>
    %173 = arith.addf %168, %172 : vector<128x224xf32>
    %c0_182 = arith.constant 0 : index
    %c0_183 = arith.constant 0 : index
    %174 = vector.load %arg8[%c0_182, %c0_183] : memref<128x1xf32, #tpu.memory_space<vmem>>, vector<128x1xf32>
    %175 = vector.broadcast %174 : vector<128x1xf32> to vector<128x224xf32>
    %176 = arith.addf %173, %175 : vector<128x224xf32>
    %cst_184 = arith.constant 0.000000e+00 : f32
    %177 = vector.broadcast %cst_184 : f32 to vector<128x224xf32>
    %178 = arith.maximumf %176, %177 : vector<128x224xf32>
    %179 = arith.truncf %178 : vector<128x224xf32> to vector<128x224xbf16>
    %c0_185 = arith.constant 0 : index
    %c0_186 = arith.constant 0 : index
    %180 = vector.load %arg18[%c0_185, %c0_186] : memref<128x256xbf16, #tpu.memory_space<vmem>>, vector<128x224xbf16>
    tpu.vector_store %arg18[%c0_185, %c0_186], %179 {strides = array<i32>} : memref<128x256xbf16, #tpu.memory_space<vmem>>, vector<128x224xbf16>,
    %c0_187 = arith.constant 0 : index
    %c0_188 = arith.constant 0 : index
    %181 = vector.load %arg18[%c0_187, %c0_188] : memref<128x256xbf16, #tpu.memory_space<vmem>>, vector<128x224xbf16>
    %c0_189 = arith.constant 0 : index
    %c1_190 = arith.constant 1 : index
    %182 = vector.load %arg18[%c0_189, %c1_190] : memref<128x256xbf16, #tpu.memory_space<vmem>>, vector<128x224xbf16>
    %183 = arith.maximumf %181, %182 : vector<128x224xbf16>
    %c0_191 = arith.constant 0 : index
    %c16_192 = arith.constant 16 : index
    %184 = vector.load %arg18[%c0_191, %c16_192] : memref<128x256xbf16, #tpu.memory_space<vmem>>, vector<128x224xbf16>
    %185 = arith.maximumf %183, %184 : vector<128x224xbf16>
    %c0_193 = arith.constant 0 : index
    %c17_194 = arith.constant 17 : index
    %186 = vector.load %arg18[%c0_193, %c17_194] : memref<128x256xbf16, #tpu.memory_space<vmem>>, vector<128x224xbf16>
    %187 = arith.maximumf %185, %186 : vector<128x224xbf16>
    %c0_195 = arith.constant 0 : index
    %c0_196 = arith.constant 0 : index
    %188 = vector.load %arg10[%c0_195, %c0_196] : memref<224x49xbf16, #tpu.memory_space<vmem>>, vector<224x49xbf16>
    %cst_197 = arith.constant dense<0.000000e+00> : vector<128x49xf32>
    %189 = tpu.matmul %187, %188, %cst_197 {dimension_numbers = #tpu.dot_dimension_numbers<[1], [0], [0], [1], [0, 0, 1, 1], [], []>} : vector<128x224xbf16>, vector<224x49xbf16>, vector<128x49xf32> -> vector<128x49xf32>
    %c0_198 = arith.constant 0 : index
    %c0_199 = arith.constant 0 : index
    %190 = vector.load %arg12[%c0_198, %c0_199] : memref<128x49xf32, #tpu.memory_space<vmem>>, vector<128x49xf32>
    tpu.vector_store %arg12[%c0_198, %c0_199], %189 {strides = array<i32>} : memref<128x49xf32, #tpu.memory_space<vmem>>, vector<128x49xf32>,
    return
  }
  func.func @transform_0(%arg0: i32) -> (i32, i32) {
    %c0_i32 = arith.constant 0 : i32
    %c0_i32_0 = arith.constant 0 : i32
    return %arg0, %c0_i32 : i32, i32
  }
  func.func @transform_1(%arg0: i32) -> (i32, i32) {
    %c0_i32 = arith.constant 0 : i32
    %c0_i32_0 = arith.constant 0 : i32
    %c0_i32_1 = arith.constant 0 : i32
    return %c0_i32, %c0_i32_0 : i32, i32
  }
  func.func @transform_2(%arg0: i32) -> (i32, i32) {
    %c0_i32 = arith.constant 0 : i32
    %c0_i32_0 = arith.constant 0 : i32
    %c0_i32_1 = arith.constant 0 : i32
    return %c0_i32, %c0_i32_0 : i32, i32
  }
  func.func @transform_3(%arg0: i32) -> (i32, i32) {
    %c0_i32 = arith.constant 0 : i32
    %c0_i32_0 = arith.constant 0 : i32
    %c0_i32_1 = arith.constant 0 : i32
    return %c0_i32, %c0_i32_0 : i32, i32
  }
  func.func @transform_4(%arg0: i32) -> (i32, i32, i32) {
    %c0_i32 = arith.constant 0 : i32
    %c0_i32_0 = arith.constant 0 : i32
    %c0_i32_1 = arith.constant 0 : i32
    %c0_i32_2 = arith.constant 0 : i32
    return %c0_i32, %c0_i32_0, %c0_i32_1 : i32, i32, i32
  }
  func.func @transform_5(%arg0: i32) -> (i32, i32) {
    %c0_i32 = arith.constant 0 : i32
    %c0_i32_0 = arith.constant 0 : i32
    %c0_i32_1 = arith.constant 0 : i32
    return %c0_i32, %c0_i32_0 : i32, i32
  }
  func.func @transform_6(%arg0: i32) -> (i32, i32, i32) {
    %c0_i32 = arith.constant 0 : i32
    %c0_i32_0 = arith.constant 0 : i32
    %c0_i32_1 = arith.constant 0 : i32
    %c0_i32_2 = arith.constant 0 : i32
    return %c0_i32, %c0_i32_0, %c0_i32_1 : i32, i32, i32
  }
  func.func @transform_7(%arg0: i32) -> (i32, i32) {
    %c0_i32 = arith.constant 0 : i32
    %c0_i32_0 = arith.constant 0 : i32
    %c0_i32_1 = arith.constant 0 : i32
    return %c0_i32, %c0_i32_0 : i32, i32
  }
  func.func @transform_8(%arg0: i32) -> (i32, i32) {
    %c0_i32 = arith.constant 0 : i32
    %c0_i32_0 = arith.constant 0 : i32
    %c0_i32_1 = arith.constant 0 : i32
    return %c0_i32, %c0_i32_0 : i32, i32
  }
  func.func @transform_9(%arg0: i32) -> (i32, i32) {
    %c0_i32 = arith.constant 0 : i32
    %c0_i32_0 = arith.constant 0 : i32
    %c0_i32_1 = arith.constant 0 : i32
    return %c0_i32, %c0_i32_0 : i32, i32
  }
  func.func @transform_10(%arg0: i32) -> (i32, i32) {
    %c0_i32 = arith.constant 0 : i32
    %c0_i32_0 = arith.constant 0 : i32
    %c0_i32_1 = arith.constant 0 : i32
    return %c0_i32, %c0_i32_0 : i32, i32
  }
  func.func @transform_11(%arg0: i32) -> (i32, i32) {
    %c0_i32 = arith.constant 0 : i32
    %c0_i32_0 = arith.constant 0 : i32
    return %arg0, %c0_i32 : i32, i32
  }
}

module attributes {stable_mosaic.version = 11 : i64} {
  func.func @_fc_kernel(%arg0: i32, %arg1: memref<8x784xf32, #tpu.memory_space<vmem>>, %arg2: memref<784x256xbf16, #tpu.memory_space<vmem>>, %arg3: memref<1x256xf32, #tpu.memory_space<vmem>>, %arg4: memref<256x64xbf16, #tpu.memory_space<vmem>>, %arg5: memref<1x64xf32, #tpu.memory_space<vmem>>, %arg6: memref<64x10xbf16, #tpu.memory_space<vmem>>, %arg7: memref<1x10xf32, #tpu.memory_space<vmem>>, %arg8: memref<8x10xf32, #tpu.memory_space<vmem>>) attributes {dimension_semantics = [#tpu.dimension_semantics<parallel>], iteration_bounds = array<i64: 1>, scalar_prefetch = 0 : i64, scratch_operands = 0 : i64, tpu.core_type = #tpu.core_type<tc>, window_params = [{transform_indices = @transform_0, window_bounds = array<i64: 8, 784>}, {pipeline_mode = #tpu.pipeline_mode<synchronous>, transform_indices = @transform_1, window_bounds = array<i64: 784, 256>}, {pipeline_mode = #tpu.pipeline_mode<synchronous>, transform_indices = @transform_2, window_bounds = array<i64: 1, 256>}, {pipeline_mode = #tpu.pipeline_mode<synchronous>, transform_indices = @transform_3, window_bounds = array<i64: 256, 64>}, {pipeline_mode = #tpu.pipeline_mode<synchronous>, transform_indices = @transform_4, window_bounds = array<i64: 1, 64>}, {pipeline_mode = #tpu.pipeline_mode<synchronous>, transform_indices = @transform_5, window_bounds = array<i64: 64, 10>}, {pipeline_mode = #tpu.pipeline_mode<synchronous>, transform_indices = @transform_6, window_bounds = array<i64: 1, 10>}, {transform_indices = @transform_7, window_bounds = array<i64: 8, 10>}]} {
    %c0 = arith.constant 0 : index
    %c0_0 = arith.constant 0 : index
    %0 = vector.load %arg1[%c0, %c0_0] : memref<8x784xf32, #tpu.memory_space<vmem>>, vector<8x784xf32>
    %1 = arith.truncf %0 : vector<8x784xf32> to vector<8x784xbf16>
    %c0_1 = arith.constant 0 : index
    %c0_2 = arith.constant 0 : index
    %2 = vector.load %arg2[%c0_1, %c0_2] : memref<784x256xbf16, #tpu.memory_space<vmem>>, vector<784x256xbf16>
    %cst = arith.constant dense<0.000000e+00> : vector<8x256xf32>
    %3 = tpu.matmul %1, %2, %cst {dimension_numbers = #tpu.dot_dimension_numbers<[1], [0], [0], [1], [0, 0, 1, 1], [], []>} : vector<8x784xbf16>, vector<784x256xbf16>, vector<8x256xf32> -> vector<8x256xf32>
    %c0_3 = arith.constant 0 : index
    %c0_4 = arith.constant 0 : index
    %4 = vector.load %arg3[%c0_3, %c0_4] : memref<1x256xf32, #tpu.memory_space<vmem>>, vector<1x256xf32>
    %5 = vector.broadcast %4 : vector<1x256xf32> to vector<8x256xf32>
    %6 = arith.addf %3, %5 : vector<8x256xf32>
    %cst_5 = arith.constant 0.000000e+00 : f32
    %7 = vector.broadcast %cst_5 : f32 to vector<8x256xf32>
    %8 = arith.maximumf %6, %7 : vector<8x256xf32>
    %9 = arith.truncf %8 : vector<8x256xf32> to vector<8x256xbf16>
    %c0_6 = arith.constant 0 : index
    %c0_7 = arith.constant 0 : index
    %10 = vector.load %arg4[%c0_6, %c0_7] : memref<256x64xbf16, #tpu.memory_space<vmem>>, vector<256x64xbf16>
    %cst_8 = arith.constant dense<0.000000e+00> : vector<8x64xf32>
    %11 = tpu.matmul %9, %10, %cst_8 {dimension_numbers = #tpu.dot_dimension_numbers<[1], [0], [0], [1], [0, 0, 1, 1], [], []>} : vector<8x256xbf16>, vector<256x64xbf16>, vector<8x64xf32> -> vector<8x64xf32>
    %c0_9 = arith.constant 0 : index
    %c0_10 = arith.constant 0 : index
    %12 = vector.load %arg5[%c0_9, %c0_10] : memref<1x64xf32, #tpu.memory_space<vmem>>, vector<1x64xf32>
    %13 = vector.broadcast %12 : vector<1x64xf32> to vector<8x64xf32>
    %14 = arith.addf %11, %13 : vector<8x64xf32>
    %cst_11 = arith.constant 0.000000e+00 : f32
    %15 = vector.broadcast %cst_11 : f32 to vector<8x64xf32>
    %16 = arith.maximumf %14, %15 : vector<8x64xf32>
    %17 = arith.truncf %16 : vector<8x64xf32> to vector<8x64xbf16>
    %c0_12 = arith.constant 0 : index
    %c0_13 = arith.constant 0 : index
    %18 = vector.load %arg6[%c0_12, %c0_13] : memref<64x10xbf16, #tpu.memory_space<vmem>>, vector<64x10xbf16>
    %cst_14 = arith.constant dense<0.000000e+00> : vector<8x10xf32>
    %19 = tpu.matmul %17, %18, %cst_14 {dimension_numbers = #tpu.dot_dimension_numbers<[1], [0], [0], [1], [0, 0, 1, 1], [], []>} : vector<8x64xbf16>, vector<64x10xbf16>, vector<8x10xf32> -> vector<8x10xf32>
    %c0_15 = arith.constant 0 : index
    %c0_16 = arith.constant 0 : index
    %20 = vector.load %arg7[%c0_15, %c0_16] : memref<1x10xf32, #tpu.memory_space<vmem>>, vector<1x10xf32>
    %21 = vector.broadcast %20 : vector<1x10xf32> to vector<8x10xf32>
    %22 = arith.addf %19, %21 : vector<8x10xf32>
    %c0_17 = arith.constant 0 : index
    %c0_18 = arith.constant 0 : index
    %23 = vector.load %arg8[%c0_17, %c0_18] : memref<8x10xf32, #tpu.memory_space<vmem>>, vector<8x10xf32>
    tpu.vector_store %arg8[%c0_17, %c0_18], %22 {strides = array<i32>} : memref<8x10xf32, #tpu.memory_space<vmem>>, vector<8x10xf32>,
    return
  }
  func.func @transform_0(%arg0: i32) -> (i32, i32) {
    %c0_i32 = arith.constant 0 : i32
    %c0_i32_0 = arith.constant 0 : i32
    return %arg0, %c0_i32 : i32, i32
  }
  func.func @transform_1(%arg0: i32) -> (i32, i32) {
    %c0_i32 = arith.constant 0 : i32
    %c0_i32_0 = arith.constant 0 : i32
    %c0_i32_1 = arith.constant 0 : i32
    return %c0_i32, %c0_i32_0 : i32, i32
  }
  func.func @transform_2(%arg0: i32) -> (i32, i32) {
    %c0_i32 = arith.constant 0 : i32
    %c0_i32_0 = arith.constant 0 : i32
    %c0_i32_1 = arith.constant 0 : i32
    return %c0_i32, %c0_i32_0 : i32, i32
  }
  func.func @transform_3(%arg0: i32) -> (i32, i32) {
    %c0_i32 = arith.constant 0 : i32
    %c0_i32_0 = arith.constant 0 : i32
    %c0_i32_1 = arith.constant 0 : i32
    return %c0_i32, %c0_i32_0 : i32, i32
  }
  func.func @transform_4(%arg0: i32) -> (i32, i32) {
    %c0_i32 = arith.constant 0 : i32
    %c0_i32_0 = arith.constant 0 : i32
    %c0_i32_1 = arith.constant 0 : i32
    return %c0_i32, %c0_i32_0 : i32, i32
  }
  func.func @transform_5(%arg0: i32) -> (i32, i32) {
    %c0_i32 = arith.constant 0 : i32
    %c0_i32_0 = arith.constant 0 : i32
    %c0_i32_1 = arith.constant 0 : i32
    return %c0_i32, %c0_i32_0 : i32, i32
  }
  func.func @transform_6(%arg0: i32) -> (i32, i32) {
    %c0_i32 = arith.constant 0 : i32
    %c0_i32_0 = arith.constant 0 : i32
    %c0_i32_1 = arith.constant 0 : i32
    return %c0_i32, %c0_i32_0 : i32, i32
  }
  func.func @transform_7(%arg0: i32) -> (i32, i32) {
    %c0_i32 = arith.constant 0 : i32
    %c0_i32_0 = arith.constant 0 : i32
    return %arg0, %c0_i32 : i32, i32
  }
}

</mosaic_0001>

<llo_original>
// kernel: fmnist_cnn_forward.3
$region0: #{fmnist_cnn_forward.3}
  #allocation0 [shape = 'u32[]', space=smem, size = 0x4, offset = 0x4, fixed_abs, tag = 'smem constant byte address 0x4 - core index']
  #allocation1 [shape = 'u32[144,128]{1,0:T(1,128)}', space=vmem, size = 0x12000, scoped, tag = 'internal scratch']
  %s0 = inlined_call_operand.vmem [shape: f32[8,784], index: 0, kind: input, shape index: {}]
  %s1 = inlined_call_operand.vmem [shape: bf16[784,256], index: 1, kind: input, shape index: {}]
  %s2 = inlined_call_operand.vmem [shape: f32[1,256], index: 2, kind: input, shape index: {}]
  %s3 = inlined_call_operand.vmem [shape: bf16[256,64], index: 3, kind: input, shape index: {}]
  %s4 = inlined_call_operand.vmem [shape: f32[1,64], index: 4, kind: input, shape index: {}]
  %s5 = inlined_call_operand.vmem [shape: bf16[64,10], index: 5, kind: input, shape index: {}]
  %s6 = inlined_call_operand.vmem [shape: f32[1,10], index: 6, kind: input, shape index: {}]
  %s7 = inlined_call_operand.vmem [shape: f32[8,10], index: 7, kind: output, shape index: {}]
  %s8 = sld [smem:[#allocation0]]
  $region38: #{fmnist_cnn_forward.3} parent=0
    _
  %s10 = ssub.s32 1, %s8
  %s11 = scalar_select 0, %s10, %s8
  // Predicated region
  $region2: #{fmnist_cnn_forward.3} parent=0 // pred_check
    _
  $region3: #{fmnist_cnn_forward.3} parent=0 // pred_check_branch
    %13 = sbr.rel (0) target = $region5
  $region4: #{fmnist_cnn_forward.3} parent=0 // pred_region
    _
  $region5: #{fmnist_cnn_forward.3} parent=0 // pred_fallthru
    _
  // Predicated region
  $region6: #{fmnist_cnn_forward.3} parent=0 // pred_check
    _
  $region7: #{fmnist_cnn_forward.3} parent=0 // pred_check_branch
    %15 = sbr.rel (0) target = $region9
  $region8: #{fmnist_cnn_forward.3} parent=0 // pred_region
    _
  $region9: #{fmnist_cnn_forward.3} parent=0 // pred_fallthru
    _
  // Predicated region
  $region10: #{fmnist_cnn_forward.3} parent=0 // pred_check
    _
  $region11: #{fmnist_cnn_forward.3} parent=0 // pred_check_branch
    %17 = sbr.rel (0) target = $region13
  $region12: #{fmnist_cnn_forward.3} parent=0 // pred_region
    _
  $region13: #{fmnist_cnn_forward.3} parent=0 // pred_fallthru
    _
  // Predicated region
  $region14: #{fmnist_cnn_forward.3} parent=0 // pred_check
    _
  $region15: #{fmnist_cnn_forward.3} parent=0 // pred_check_branch
    %19 = sbr.rel (0) target = $region17
  $region16: #{fmnist_cnn_forward.3} parent=0 // pred_region
    _
  $region17: #{fmnist_cnn_forward.3} parent=0 // pred_fallthru
    _
  // Predicated region
  $region18: #{fmnist_cnn_forward.3} parent=0 // pred_check
    _
  $region19: #{fmnist_cnn_forward.3} parent=0 // pred_check_branch
    %21 = sbr.rel (0) target = $region21
  $region20: #{fmnist_cnn_forward.3} parent=0 // pred_region
    _
  $region21: #{fmnist_cnn_forward.3} parent=0 // pred_fallthru
    _
  // Predicated region
  $region22: #{fmnist_cnn_forward.3} parent=0 // pred_check
    _
  $region23: #{fmnist_cnn_forward.3} parent=0 // pred_check_branch
    %23 = sbr.rel (0) target = $region25
  $region24: #{fmnist_cnn_forward.3} parent=0 // pred_region
    _
  $region25: #{fmnist_cnn_forward.3} parent=0 // pred_fallthru
    _
  // Predicated region
  $region26: #{fmnist_cnn_forward.3} parent=0 // pred_check
    _
  $region27: #{fmnist_cnn_forward.3} parent=0 // pred_check_branch
    %25 = sbr.rel (0) target = $region29
  $region28: #{fmnist_cnn_forward.3} parent=0 // pred_region
    _
  $region29: #{fmnist_cnn_forward.3} parent=0 // pred_fallthru
    _
  %v27 = vld [vmem:[%s0] sm:$0xff]
  %v28 = vld [vmem:[%s0 + $0x8] sm:$0xff]
  %v29 = vld [vmem:[%s0 + $0x10] sm:$0xff]
  %v30 = vld [vmem:[%s0 + $0x18] sm:$0xff]
  %v31 = vld [vmem:[%s0 + $0x20] sm:$0xff]
  %v32 = vld [vmem:[%s0 + $0x28] sm:$0xff]
  %v33 = vld [vmem:[%s0 + $0x30] sm:$0xff]
  %v34 = vpack.c.bf16 %v27, %v27
  %v35 = vpack.c.bf16 %v28, %v28
  %v36 = vpack.c.bf16 %v29, %v29
  %v37 = vpack.c.bf16 %v30, %v30
  %v38 = vpack.c.bf16 %v31, %v31
  %v39 = vpack.c.bf16 %v32, %v32
  %v40 = vpack.c.bf16 %v33, %v33
  %v41 = vld [vmem:[%s1] sm:$0xff]
  %v42 = vld [vmem:[%s1 + $0x8] sm:$0xff]
  %v43 = vld [vmem:[%s1 + $0x10] sm:$0xff]
  %v44 = vld [vmem:[%s1 + $0x18] sm:$0xff]
  %v45 = vld [vmem:[%s1 + $0x20] sm:$0xff]
  %v46 = vld [vmem:[%s1 + $0x28] sm:$0xff]
  %v47 = vld [vmem:[%s1 + $0x30] sm:$0xff]
  %v48 = vld [vmem:[%s1 + $0x38] sm:$0xff]
  %v49 = vld [vmem:[%s1 + $0x40] sm:$0xff]
  %v50 = vld [vmem:[%s1 + $0x48] sm:$0xff]
  %v51 = vld [vmem:[%s1 + $0x50] sm:$0xff]
  %v52 = vld [vmem:[%s1 + $0x58] sm:$0xff]
  %v53 = vld [vmem:[%s1 + $0x60] sm:$0xff]
  %v54 = vld [vmem:[%s1 + $0x68] sm:$0xff]
  %v55 = vld [vmem:[%s1 + $0x70] sm:$0xff]
  %v56 = vld [vmem:[%s1 + $0x78] sm:$0xff]
  %v57 = vld [vmem:[%s1 + $0x80] sm:$0xff]
  %v58 = vld [vmem:[%s1 + $0x88] sm:$0xff]
  %v59 = vld [vmem:[%s1 + $0x90] sm:$0xff]
  %v60 = vld [vmem:[%s1 + $0x98] sm:$0xff]
  %v61 = vld [vmem:[%s1 + $0xa0] sm:$0xff]
  %v62 = vld [vmem:[%s1 + $0xa8] sm:$0xff]
  %v63 = vld [vmem:[%s1 + $0xb0] sm:$0xff]
  %v64 = vld [vmem:[%s1 + $0xb8] sm:$0xff]
  %v65 = vld [vmem:[%s1 + $0xc0] sm:$0xff]
  %v66 = vld [vmem:[%s1 + $0xc8] sm:$0xff]
  %v67 = vld [vmem:[%s1 + $0xd0] sm:$0xff]
  %v68 = vld [vmem:[%s1 + $0xd8] sm:$0xff]
  %v69 = vld [vmem:[%s1 + $0xe0] sm:$0xff]
  %v70 = vld [vmem:[%s1 + $0xe8] sm:$0xff]
  %v71 = vld [vmem:[%s1 + $0xf0] sm:$0xff]
  %v72 = vld [vmem:[%s1 + $0xf8] sm:$0xff]
  %v73 = vld [vmem:[%s1 + $0x100] sm:$0xff]
  %v74 = vld [vmem:[%s1 + $0x108] sm:$0xff]
  %v75 = vld [vmem:[%s1 + $0x110] sm:$0xff]
  %v76 = vld [vmem:[%s1 + $0x118] sm:$0xff]
  %v77 = vld [vmem:[%s1 + $0x120] sm:$0xff]
  %v78 = vld [vmem:[%s1 + $0x128] sm:$0xff]
  %v79 = vld [vmem:[%s1 + $0x130] sm:$0xff]
  %v80 = vld [vmem:[%s1 + $0x138] sm:$0xff]
  %v81 = vld [vmem:[%s1 + $0x140] sm:$0xff]
  %v82 = vld [vmem:[%s1 + $0x148] sm:$0xff]
  %v83 = vld [vmem:[%s1 + $0x150] sm:$0xff]
  %v84 = vld [vmem:[%s1 + $0x158] sm:$0xff]
  %v85 = vld [vmem:[%s1 + $0x160] sm:$0xff]
  %v86 = vld [vmem:[%s1 + $0x168] sm:$0xff]
  %v87 = vld [vmem:[%s1 + $0x170] sm:$0xff]
  %v88 = vld [vmem:[%s1 + $0x178] sm:$0xff]
  %v89 = vld [vmem:[%s1 + $0x180] sm:$0xff]
  %v90 = vld [vmem:[%s1 + $0x188] sm:$0xff]
  %v91 = vld [vmem:[%s1 + $0x190] sm:$0xff]
  %v92 = vld [vmem:[%s1 + $0x198] sm:$0xff]
  %v93 = vld [vmem:[%s1 + $0x1a0] sm:$0xff]
  %v94 = vld [vmem:[%s1 + $0x1a8] sm:$0xff]
  %v95 = vld [vmem:[%s1 + $0x1b0] sm:$0xff]
  %v96 = vld [vmem:[%s1 + $0x1b8] sm:$0xff]
  %v97 = vld [vmem:[%s1 + $0x1c0] sm:$0xff]
  %v98 = vld [vmem:[%s1 + $0x1c8] sm:$0xff]
  %v99 = vld [vmem:[%s1 + $0x1d0] sm:$0xff]
  %v100 = vld [vmem:[%s1 + $0x1d8] sm:$0xff]
  %v101 = vld [vmem:[%s1 + $0x1e0] sm:$0xff]
  %v102 = vld [vmem:[%s1 + $0x1e8] sm:$0xff]
  %v103 = vld [vmem:[%s1 + $0x1f0] sm:$0xff]
  %v104 = vld [vmem:[%s1 + $0x1f8] sm:$0xff]
  %v105 = vld [vmem:[%s1 + $0x200] sm:$0xff]
  %v106 = vld [vmem:[%s1 + $0x208] sm:$0xff]
  %v107 = vld [vmem:[%s1 + $0x210] sm:$0xff]
  %v108 = vld [vmem:[%s1 + $0x218] sm:$0xff]
  %v109 = vld [vmem:[%s1 + $0x220] sm:$0xff]
  %v110 = vld [vmem:[%s1 + $0x228] sm:$0xff]
  %v111 = vld [vmem:[%s1 + $0x230] sm:$0xff]
  %v112 = vld [vmem:[%s1 + $0x238] sm:$0xff]
  %v113 = vld [vmem:[%s1 + $0x240] sm:$0xff]
  %v114 = vld [vmem:[%s1 + $0x248] sm:$0xff]
  %v115 = vld [vmem:[%s1 + $0x250] sm:$0xff]
  %v116 = vld [vmem:[%s1 + $0x258] sm:$0xff]
  %v117 = vld [vmem:[%s1 + $0x260] sm:$0xff]
  %v118 = vld [vmem:[%s1 + $0x268] sm:$0xff]
  %v119 = vld [vmem:[%s1 + $0x270] sm:$0xff]
  %v120 = vld [vmem:[%s1 + $0x278] sm:$0xff]
  %v121 = vld [vmem:[%s1 + $0x280] sm:$0xff]
  %v122 = vld [vmem:[%s1 + $0x288] sm:$0xff]
  %v123 = vld [vmem:[%s1 + $0x290] sm:$0xff]
  %v124 = vld [vmem:[%s1 + $0x298] sm:$0xff]
  %v125 = vld [vmem:[%s1 + $0x2a0] sm:$0xff]
  %v126 = vld [vmem:[%s1 + $0x2a8] sm:$0xff]
  %v127 = vld [vmem:[%s1 + $0x2b0] sm:$0xff]
  %v128 = vld [vmem:[%s1 + $0x2b8] sm:$0xff]
  %v129 = vld [vmem:[%s1 + $0x2c0] sm:$0xff]
  %v130 = vld [vmem:[%s1 + $0x2c8] sm:$0xff]
  %v131 = vld [vmem:[%s1 + $0x2d0] sm:$0xff]
  %v132 = vld [vmem:[%s1 + $0x2d8] sm:$0xff]
  %v133 = vld [vmem:[%s1 + $0x2e0] sm:$0xff]
  %v134 = vld [vmem:[%s1 + $0x2e8] sm:$0xff]
  %v135 = vld [vmem:[%s1 + $0x2f0] sm:$0xff]
  %v136 = vld [vmem:[%s1 + $0x2f8] sm:$0xff]
  %v137 = vld [vmem:[%s1 + $0x300] sm:$0xff]
  %v138 = vld [vmem:[%s1 + $0x308] sm:$0xff]
  %v139 = vld [vmem:[%s2] sm:$0x3]
  %v141 = vlaneseq
  %v142 = vshrl.u32 %v141, 7
  %v143 = vsub.s32 0, %v142
  %v144 = vrot.slane %v139, %v143
  %v145 = vlaneseq
  %v146 = vshrl.u32 %v145, 7
  %v147 = vsub.s32 1, %v146
  %v148 = vrot.slane %v139, %v147
  %v249 = vunpack.c.l.b16 %v41
  %v250 = vunpack.c.h.b16 %v41
  %v251 = vunpack.c.l.b16 %v42
  %v252 = vunpack.c.h.b16 %v42
  %v253 = vunpack.c.l.b16 %v43
  %v254 = vunpack.c.h.b16 %v43
  %v255 = vunpack.c.l.b16 %v44
  %v256 = vunpack.c.h.b16 %v44
  %v257 = vunpack.c.l.b16 %v45
  %v258 = vunpack.c.h.b16 %v45
  %v259 = vunpack.c.l.b16 %v46
  %v260 = vunpack.c.h.b16 %v46
  %v261 = vunpack.c.l.b16 %v47
  %v262 = vunpack.c.h.b16 %v47
  %v263 = vunpack.c.l.b16 %v48
  %v264 = vunpack.c.h.b16 %v48
  %v265 = vunpack.c.l.b16 %v49
  %v266 = vunpack.c.h.b16 %v49
  %v267 = vunpack.c.l.b16 %v50
  %v268 = vunpack.c.h.b16 %v50
  %v269 = vunpack.c.l.b16 %v51
  %v270 = vunpack.c.h.b16 %v51
  %v271 = vunpack.c.l.b16 %v52
  %v272 = vunpack.c.h.b16 %v52
  %v273 = vunpack.c.l.b16 %v53
  %v274 = vunpack.c.h.b16 %v53
  %v275 = vunpack.c.l.b16 %v54
  %v276 = vunpack.c.h.b16 %v54
  %v277 = vunpack.c.l.b16 %v55
  %v278 = vunpack.c.h.b16 %v55
  %v279 = vunpack.c.l.b16 %v56
  %v280 = vunpack.c.h.b16 %v56
  %v281 = vunpack.c.l.b16 %v57
  %v282 = vunpack.c.h.b16 %v57
  %v283 = vunpack.c.l.b16 %v58
  %v284 = vunpack.c.h.b16 %v58
  %v285 = vunpack.c.l.b16 %v59
  %v286 = vunpack.c.h.b16 %v59
  %v287 = vunpack.c.l.b16 %v60
  %v288 = vunpack.c.h.b16 %v60
  %v289 = vunpack.c.l.b16 %v61
  %v290 = vunpack.c.h.b16 %v61
  %v291 = vunpack.c.l.b16 %v62
  %v292 = vunpack.c.h.b16 %v62
  %v293 = vunpack.c.l.b16 %v63
  %v294 = vunpack.c.h.b16 %v63
  %v295 = vunpack.c.l.b16 %v64
  %v296 = vunpack.c.h.b16 %v64
  %v297 = vunpack.c.l.b16 %v65
  %v298 = vunpack.c.h.b16 %v65
  %v299 = vunpack.c.l.b16 %v66
  %v300 = vunpack.c.h.b16 %v66
  %v301 = vunpack.c.l.b16 %v67
  %v302 = vunpack.c.h.b16 %v67
  %v303 = vunpack.c.l.b16 %v68
  %v304 = vunpack.c.h.b16 %v68
  %v305 = vunpack.c.l.b16 %v69
  %v306 = vunpack.c.h.b16 %v69
  %v307 = vunpack.c.l.b16 %v70
  %v308 = vunpack.c.h.b16 %v70
  %v309 = vunpack.c.l.b16 %v71
  %v310 = vunpack.c.h.b16 %v71
  %v311 = vunpack.c.l.b16 %v72
  %v312 = vunpack.c.h.b16 %v72
  %v313 = vunpack.c.l.b16 %v73
  %v314 = vunpack.c.h.b16 %v73
  %v315 = vunpack.c.l.b16 %v74
  %v316 = vunpack.c.h.b16 %v74
  %v317 = vunpack.c.l.b16 %v75
  %v318 = vunpack.c.h.b16 %v75
  %v319 = vunpack.c.l.b16 %v76
  %v320 = vunpack.c.h.b16 %v76
  %v321 = vunpack.c.l.b16 %v77
  %v322 = vunpack.c.h.b16 %v77
  %v323 = vunpack.c.l.b16 %v78
  %v324 = vunpack.c.h.b16 %v78
  %v325 = vunpack.c.l.b16 %v79
  %v326 = vunpack.c.h.b16 %v79
  %v327 = vunpack.c.l.b16 %v80
  %v328 = vunpack.c.h.b16 %v80
  %v329 = vunpack.c.l.b16 %v81
  %v330 = vunpack.c.h.b16 %v81
  %v331 = vunpack.c.l.b16 %v82
  %v332 = vunpack.c.h.b16 %v82
  %v333 = vunpack.c.l.b16 %v83
  %v334 = vunpack.c.h.b16 %v83
  %v335 = vunpack.c.l.b16 %v84
  %v336 = vunpack.c.h.b16 %v84
  %v337 = vunpack.c.l.b16 %v85
  %v338 = vunpack.c.h.b16 %v85
  %v339 = vunpack.c.l.b16 %v86
  %v340 = vunpack.c.h.b16 %v86
  %v341 = vunpack.c.l.b16 %v87
  %v342 = vunpack.c.h.b16 %v87
  %v343 = vunpack.c.l.b16 %v88
  %v344 = vunpack.c.h.b16 %v88
  %v345 = vunpack.c.l.b16 %v89
  %v346 = vunpack.c.h.b16 %v89
  %v347 = vunpack.c.l.b16 %v90
  %v348 = vunpack.c.h.b16 %v90
  %v349 = vunpack.c.l.b16 %v91
  %v350 = vunpack.c.h.b16 %v91
  %v351 = vunpack.c.l.b16 %v92
  %v352 = vunpack.c.h.b16 %v92
  %v353 = vunpack.c.l.b16 %v93
  %v354 = vunpack.c.h.b16 %v93
  %v355 = vunpack.c.l.b16 %v94
  %v356 = vunpack.c.h.b16 %v94
  %v357 = vunpack.c.l.b16 %v95
  %v358 = vunpack.c.h.b16 %v95
  %v359 = vunpack.c.l.b16 %v96
  %v360 = vunpack.c.h.b16 %v96
  %v361 = vunpack.c.l.b16 %v97
  %v362 = vunpack.c.h.b16 %v97
  %v363 = vunpack.c.l.b16 %v98
  %v364 = vunpack.c.h.b16 %v98
  %v365 = vunpack.c.l.b16 %v99
  %v366 = vunpack.c.h.b16 %v99
  %v367 = vunpack.c.l.b16 %v100
  %v368 = vunpack.c.h.b16 %v100
  %v369 = vunpack.c.l.b16 %v101
  %v370 = vunpack.c.h.b16 %v101
  %v371 = vunpack.c.l.b16 %v102
  %v372 = vunpack.c.h.b16 %v102
  %v373 = vunpack.c.l.b16 %v103
  %v374 = vunpack.c.h.b16 %v103
  %v375 = vunpack.c.l.b16 %v104
  %v376 = vunpack.c.h.b16 %v104
  %v377 = vunpack.c.l.b16 %v105
  %v378 = vunpack.c.h.b16 %v105
  %v379 = vunpack.c.l.b16 %v106
  %v380 = vunpack.c.h.b16 %v106
  %v381 = vunpack.c.l.b16 %v107
  %v382 = vunpack.c.h.b16 %v107
  %v383 = vunpack.c.l.b16 %v108
  %v384 = vunpack.c.h.b16 %v108
  %v385 = vunpack.c.l.b16 %v109
  %v386 = vunpack.c.h.b16 %v109
  %v387 = vunpack.c.l.b16 %v110
  %v388 = vunpack.c.h.b16 %v110
  %v389 = vunpack.c.l.b16 %v111
  %v390 = vunpack.c.h.b16 %v111
  %v391 = vunpack.c.l.b16 %v112
  %v392 = vunpack.c.h.b16 %v112
  %v393 = vunpack.c.l.b16 %v113
  %v394 = vunpack.c.h.b16 %v113
  %v395 = vunpack.c.l.b16 %v114
  %v396 = vunpack.c.h.b16 %v114
  %v397 = vunpack.c.l.b16 %v115
  %v398 = vunpack.c.h.b16 %v115
  %v399 = vunpack.c.l.b16 %v116
  %v400 = vunpack.c.h.b16 %v116
  %v401 = vunpack.c.l.b16 %v117
  %v402 = vunpack.c.h.b16 %v117
  %v403 = vunpack.c.l.b16 %v118
  %v404 = vunpack.c.h.b16 %v118
  %v405 = vunpack.c.l.b16 %v119
  %v406 = vunpack.c.h.b16 %v119
  %v407 = vunpack.c.l.b16 %v120
  %v408 = vunpack.c.h.b16 %v120
  %v409 = vunpack.c.l.b16 %v121
  %v410 = vunpack.c.h.b16 %v121
  %v411 = vunpack.c.l.b16 %v122
  %v412 = vunpack.c.h.b16 %v122
  %v413 = vunpack.c.l.b16 %v123
  %v414 = vunpack.c.h.b16 %v123
  %v415 = vunpack.c.l.b16 %v124
  %v416 = vunpack.c.h.b16 %v124
  %v417 = vunpack.c.l.b16 %v125
  %v418 = vunpack.c.h.b16 %v125
  %v419 = vunpack.c.l.b16 %v126
  %v420 = vunpack.c.h.b16 %v126
  %v421 = vunpack.c.l.b16 %v127
  %v422 = vunpack.c.h.b16 %v127
  %v423 = vunpack.c.l.b16 %v128
  %v424 = vunpack.c.h.b16 %v128
  %v425 = vunpack.c.l.b16 %v129
  %v426 = vunpack.c.h.b16 %v129
  %v427 = vunpack.c.l.b16 %v130
  %v428 = vunpack.c.h.b16 %v130
  %v429 = vunpack.c.l.b16 %v131
  %v430 = vunpack.c.h.b16 %v131
  %v431 = vunpack.c.l.b16 %v132
  %v432 = vunpack.c.h.b16 %v132
  %v433 = vunpack.c.l.b16 %v133
  %v434 = vunpack.c.h.b16 %v133
  %v435 = vunpack.c.l.b16 %v134
  %v436 = vunpack.c.h.b16 %v134
  %v437 = vunpack.c.l.b16 %v135
  %v438 = vunpack.c.h.b16 %v135
  %v439 = vunpack.c.l.b16 %v136
  %v440 = vunpack.c.h.b16 %v136
  %v441 = vunpack.c.l.b16 %v137
  %v442 = vunpack.c.h.b16 %v137
  %v443 = vunpack.c.l.b16 %v138
  %v444 = vunpack.c.h.b16 %v138
  %v445 = vpack.c.b16 %v251, %v249
  %v446 = vpack.c.b16 %v252, %v250
  %v447 = vpack.c.b16 %v255, %v253
  %v448 = vpack.c.b16 %v256, %v254
  %v449 = vpack.c.b16 %v259, %v257
  %v450 = vpack.c.b16 %v260, %v258
  %v451 = vpack.c.b16 %v263, %v261
  %v452 = vpack.c.b16 %v264, %v262
  %v453 = vpack.c.b16 %v267, %v265
  %v454 = vpack.c.b16 %v268, %v266
  %v455 = vpack.c.b16 %v271, %v269
  %v456 = vpack.c.b16 %v272, %v270
  %v457 = vpack.c.b16 %v275, %v273
  %v458 = vpack.c.b16 %v276, %v274
  %v459 = vpack.c.b16 %v279, %v277
  %v460 = vpack.c.b16 %v280, %v278
  %v461 = vpack.c.b16 %v283, %v281
  %v462 = vpack.c.b16 %v284, %v282
  %v463 = vpack.c.b16 %v287, %v285
  %v464 = vpack.c.b16 %v288, %v286
  %v465 = vpack.c.b16 %v291, %v289
  %v466 = vpack.c.b16 %v292, %v290
  %v467 = vpack.c.b16 %v295, %v293
  %v468 = vpack.c.b16 %v296, %v294
  %v469 = vpack.c.b16 %v299, %v297
  %v470 = vpack.c.b16 %v300, %v298
  %v471 = vpack.c.b16 %v303, %v301
  %v472 = vpack.c.b16 %v304, %v302
  %v473 = vpack.c.b16 %v307, %v305
  %v474 = vpack.c.b16 %v308, %v306
  %v475 = vpack.c.b16 %v311, %v309
  %v476 = vpack.c.b16 %v312, %v310
  %v477 = vpack.c.b16 %v315, %v313
  %v478 = vpack.c.b16 %v316, %v314
  %v479 = vpack.c.b16 %v319, %v317
  %v480 = vpack.c.b16 %v320, %v318
  %v481 = vpack.c.b16 %v323, %v321
  %v482 = vpack.c.b16 %v324, %v322
  %v483 = vpack.c.b16 %v327, %v325
  %v484 = vpack.c.b16 %v328, %v326
  %v485 = vpack.c.b16 %v331, %v329
  %v486 = vpack.c.b16 %v332, %v330
  %v487 = vpack.c.b16 %v335, %v333
  %v488 = vpack.c.b16 %v336, %v334
  %v489 = vpack.c.b16 %v339, %v337
  %v490 = vpack.c.b16 %v340, %v338
  %v491 = vpack.c.b16 %v343, %v341
  %v492 = vpack.c.b16 %v344, %v342
  %v493 = vpack.c.b16 %v347, %v345
  %v494 = vpack.c.b16 %v348, %v346
  %v495 = vpack.c.b16 %v351, %v349
  %v496 = vpack.c.b16 %v352, %v350
  %v497 = vpack.c.b16 %v355, %v353
  %v498 = vpack.c.b16 %v356, %v354
  %v499 = vpack.c.b16 %v359, %v357
  %v500 = vpack.c.b16 %v360, %v358
  %v501 = vpack.c.b16 %v363, %v361
  %v502 = vpack.c.b16 %v364, %v362
  %v503 = vpack.c.b16 %v367, %v365
  %v504 = vpack.c.b16 %v368, %v366
  %v505 = vpack.c.b16 %v371, %v369
  %v506 = vpack.c.b16 %v372, %v370
  %v507 = vpack.c.b16 %v375, %v373
  %v508 = vpack.c.b16 %v376, %v374
  %v509 = vpack.c.b16 %v379, %v377
  %v510 = vpack.c.b16 %v380, %v378
  %v511 = vpack.c.b16 %v383, %v381
  %v512 = vpack.c.b16 %v384, %v382
  %v513 = vpack.c.b16 %v387, %v385
  %v514 = vpack.c.b16 %v388, %v386
  %v515 = vpack.c.b16 %v391, %v389
  %v516 = vpack.c.b16 %v392, %v390
  %v517 = vpack.c.b16 %v395, %v393
  %v518 = vpack.c.b16 %v396, %v394
  %v519 = vpack.c.b16 %v399, %v397
  %v520 = vpack.c.b16 %v400, %v398
  %v521 = vpack.c.b16 %v403, %v401
  %v522 = vpack.c.b16 %v404, %v402
  %v523 = vpack.c.b16 %v407, %v405
  %v524 = vpack.c.b16 %v408, %v406
  %v525 = vpack.c.b16 %v411, %v409
  %v526 = vpack.c.b16 %v412, %v410
  %v527 = vpack.c.b16 %v415, %v413
  %v528 = vpack.c.b16 %v416, %v414
  %v529 = vpack.c.b16 %v419, %v417
  %v530 = vpack.c.b16 %v420, %v418
  %v531 = vpack.c.b16 %v423, %v421
  %v532 = vpack.c.b16 %v424, %v422
  %v533 = vpack.c.b16 %v427, %v425
  %v534 = vpack.c.b16 %v428, %v426
  %v535 = vpack.c.b16 %v431, %v429
  %v536 = vpack.c.b16 %v432, %v430
  %v537 = vpack.c.b16 %v435, %v433
  %v538 = vpack.c.b16 %v436, %v434
  %v539 = vpack.c.b16 %v439, %v437
  %v540 = vpack.c.b16 %v440, %v438
  %v541 = vpack.c.b16 %v443, %v441
  %v542 = vpack.c.b16 %v444, %v442
  %vm641 = vcmask 130048
  %v643 = vsel %vm641, %v40, 0
  %645 = vmatprep.subr.bf16.mxu0 %v446
  %646 = vmatpush1.bf16.msra.mxu0 %v445
  %647 = vmatprep.subr.bf16.mxu0 %v448
  %648 = vmatpush1.bf16.msra.mxu0 %v447
  %649 = vmatprep.subr.bf16.mxu0 %v450
  %650 = vmatpush1.bf16.msra.mxu0 %v449
  %651 = vmatprep.subr.bf16.mxu0 %v452
  %652 = vmatpush1.bf16.msra.mxu0 %v451
  %653 = vmatprep.subr.bf16.mxu0 %v454
  %654 = vmatpush1.bf16.msra.mxu0 %v453
  %655 = vmatprep.subr.bf16.mxu0 %v456
  %656 = vmatpush1.bf16.msra.mxu0 %v455
  %657 = vmatprep.subr.bf16.mxu0 %v458
  %658 = vmatpush1.bf16.msra.mxu0 %v457
  %659 = vmatprep.subr.bf16.mxu0 %v460
  %660 = vmatpush1.bf16.msra.mxu0 %v459
  %661 = vmatprep.subr.bf16.mxu0 %v462
  %662 = vmatpush1.bf16.msra.mxu0 %v461
  %663 = vmatprep.subr.bf16.mxu0 %v464
  %664 = vmatpush1.bf16.msra.mxu0 %v463
  %665 = vmatprep.subr.bf16.mxu0 %v466
  %666 = vmatpush1.bf16.msra.mxu0 %v465
  %667 = vmatprep.subr.bf16.mxu0 %v468
  %668 = vmatpush1.bf16.msra.mxu0 %v467
  %669 = vmatprep.subr.bf16.mxu0 %v470
  %670 = vmatpush1.bf16.msra.mxu0 %v469
  %671 = vmatprep.subr.bf16.mxu0 %v472
  %672 = vmatpush1.bf16.msra.mxu0 %v471
  %673 = vmatprep.subr.bf16.mxu0 %v474
  %674 = vmatpush1.bf16.msra.mxu0 %v473
  %675 = vmatprep.subr.bf16.mxu0 %v476
  %676 = vmatpush1.bf16.msra.mxu0 %v475
  %677 = vmatprep.mubr.bf16.mxu0 %v35
  %678 = vmatmul.mubr.bf16.gmra.mrb[0].mxu0 %v34
  %v679 = vpop.f32.mrb[0].mxu0
  %v680 = vadd.f32 %v144, %v679
  %v681 = vpop.f32.mrb[0].mxu0
  %v682 = vadd.f32 %v148, %v681
  %v683 = vpop.f32.mrb[0].mxu0
  %v684 = vpop.f32.mrb[0].mxu0
  %685 = vdwg.mxu0
  %686 = vmatprep.subr.bf16.mxu0 %v478
  %687 = vmatpush1.bf16.msra.mxu0 %v477
  %688 = vmatprep.subr.bf16.mxu0 %v480
  %689 = vmatpush1.bf16.msra.mxu0 %v479
  %690 = vmatprep.subr.bf16.mxu0 %v482
  %691 = vmatpush1.bf16.msra.mxu0 %v481
  %692 = vmatprep.subr.bf16.mxu0 %v484
  %693 = vmatpush1.bf16.msra.mxu0 %v483
  %694 = vmatprep.subr.bf16.mxu0 %v486
  %695 = vmatpush1.bf16.msra.mxu0 %v485
  %696 = vmatprep.subr.bf16.mxu0 %v488
  %697 = vmatpush1.bf16.msra.mxu0 %v487
  %698 = vmatprep.subr.bf16.mxu0 %v490
  %699 = vmatpush1.bf16.msra.mxu0 %v489
  %700 = vmatprep.subr.bf16.mxu0 %v492
  %701 = vmatpush1.bf16.msra.mxu0 %v491
  %702 = vmatprep.subr.bf16.mxu0 %v494
  %703 = vmatpush1.bf16.msra.mxu0 %v493
  %704 = vmatprep.subr.bf16.mxu0 %v496
  %705 = vmatpush1.bf16.msra.mxu0 %v495
  %706 = vmatprep.subr.bf16.mxu0 %v498
  %707 = vmatpush1.bf16.msra.mxu0 %v497
  %708 = vmatprep.subr.bf16.mxu0 %v500
  %709 = vmatpush1.bf16.msra.mxu0 %v499
  %710 = vmatprep.subr.bf16.mxu0 %v502
  %711 = vmatpush1.bf16.msra.mxu0 %v501
  %712 = vmatprep.subr.bf16.mxu0 %v504
  %713 = vmatpush1.bf16.msra.mxu0 %v503
  %714 = vmatprep.subr.bf16.mxu0 %v506
  %715 = vmatpush1.bf16.msra.mxu0 %v505
  %716 = vmatprep.subr.bf16.mxu0 %v508
  %717 = vmatpush1.bf16.msra.mxu0 %v507
  %718 = vmatprep.mubr.bf16.mxu0 %v37
  %719 = vmatmul.mubr.bf16.gmra.mrb[0].mxu0 %v36
  %v720 = vpop.f32.mrb[0].mxu0
  %v721 = vadd.f32 %v680, %v720
  %v722 = vpop.f32.mrb[0].mxu0
  %v723 = vadd.f32 %v682, %v722
  %v724 = vpop.f32.mrb[0].mxu0
  %v725 = vpop.f32.mrb[0].mxu0
  %726 = vdwg.mxu0
  %727 = vmatprep.subr.bf16.mxu0 %v510
  %728 = vmatpush1.bf16.msra.mxu0 %v509
  %729 = vmatprep.subr.bf16.mxu0 %v512
  %730 = vmatpush1.bf16.msra.mxu0 %v511
  %731 = vmatprep.subr.bf16.mxu0 %v514
  %732 = vmatpush1.bf16.msra.mxu0 %v513
  %733 = vmatprep.subr.bf16.mxu0 %v516
  %734 = vmatpush1.bf16.msra.mxu0 %v515
  %735 = vmatprep.subr.bf16.mxu0 %v518
  %736 = vmatpush1.bf16.msra.mxu0 %v517
  %737 = vmatprep.subr.bf16.mxu0 %v520
  %738 = vmatpush1.bf16.msra.mxu0 %v519
  %739 = vmatprep.subr.bf16.mxu0 %v522
  %740 = vmatpush1.bf16.msra.mxu0 %v521
  %741 = vmatprep.subr.bf16.mxu0 %v524
  %742 = vmatpush1.bf16.msra.mxu0 %v523
  %743 = vmatprep.subr.bf16.mxu0 %v526
  %744 = vmatpush1.bf16.msra.mxu0 %v525
  %745 = vmatprep.subr.bf16.mxu0 %v528
  %746 = vmatpush1.bf16.msra.mxu0 %v527
  %747 = vmatprep.subr.bf16.mxu0 %v530
  %748 = vmatpush1.bf16.msra.mxu0 %v529
  %749 = vmatprep.subr.bf16.mxu0 %v532
  %750 = vmatpush1.bf16.msra.mxu0 %v531
  %751 = vmatprep.subr.bf16.mxu0 %v534
  %752 = vmatpush1.bf16.msra.mxu0 %v533
  %753 = vmatprep.subr.bf16.mxu0 %v536
  %754 = vmatpush1.bf16.msra.mxu0 %v535
  %755 = vmatprep.subr.bf16.mxu0 %v538
  %756 = vmatpush1.bf16.msra.mxu0 %v537
  %757 = vmatprep.subr.bf16.mxu0 %v540
  %758 = vmatpush1.bf16.msra.mxu0 %v539
  %759 = vmatprep.mubr.bf16.mxu0 %v39
  %760 = vmatmul.mubr.bf16.gmra.mrb[0].mxu0 %v38
  %v761 = vpop.f32.mrb[0].mxu0
  %v762 = vadd.f32 %v721, %v761
  %v763 = vpop.f32.mrb[0].mxu0
  %v764 = vadd.f32 %v723, %v763
  %v765 = vpop.f32.mrb[0].mxu0
  %v766 = vpop.f32.mrb[0].mxu0
  %767 = vdwg.mxu0
  %768 = vmatprep.subr.bf16.mxu0 %v542
  %769 = vmatpush1.bf16.msra.mxu0 %v541
  %770 = vmatprep.subr.bf16.mxu0 0
  %771 = vmatpush1.bf16.msra.mxu0 0
  %772 = vmatprep.subr.bf16.mxu0 0
  %773 = vmatpush1.bf16.msra.mxu0 0
  %774 = vmatprep.subr.bf16.mxu0 0
  %775 = vmatpush1.bf16.msra.mxu0 0
  %776 = vmatprep.subr.bf16.mxu0 0
  %777 = vmatpush1.bf16.msra.mxu0 0
  %778 = vmatprep.subr.bf16.mxu0 0
  %779 = vmatpush1.bf16.msra.mxu0 0
  %780 = vmatprep.subr.bf16.mxu0 0
  %781 = vmatpush1.bf16.msra.mxu0 0
  %782 = vmatprep.subr.bf16.mxu0 0
  %783 = vmatpush1.bf16.msra.mxu0 0
  %784 = vmatprep.subr.bf16.mxu0 0
  %785 = vmatpush1.bf16.msra.mxu0 0
  %786 = vmatprep.subr.bf16.mxu0 0
  %787 = vmatpush1.bf16.msra.mxu0 0
  %788 = vmatprep.subr.bf16.mxu0 0
  %789 = vmatpush1.bf16.msra.mxu0 0
  %790 = vmatprep.subr.bf16.mxu0 0
  %791 = vmatpush1.bf16.msra.mxu0 0
  %792 = vmatprep.subr.bf16.mxu0 0
  %793 = vmatpush1.bf16.msra.mxu0 0
  %794 = vmatprep.subr.bf16.mxu0 0
  %795 = vmatpush1.bf16.msra.mxu0 0
  %796 = vmatprep.subr.bf16.mxu0 0
  %797 = vmatpush1.bf16.msra.mxu0 0
  %798 = vmatprep.subr.bf16.mxu0 0
  %799 = vmatpush1.bf16.msra.mxu0 0
  %800 = vmatprep.mubr.bf16.mxu0 0
  %801 = vmatmul.mubr.bf16.gmra.mrb[0].mxu0 %v643
  %v802 = vpop.f32.mrb[0].mxu0
  %v803 = vadd.f32 %v762, %v802
  %v804 = vpop.f32.mrb[0].mxu0
  %v805 = vadd.f32 %v764, %v804
  %v806 = vpop.f32.mrb[0].mxu0
  %v807 = vpop.f32.mrb[0].mxu0
  %808 = vdwg.mxu0
  %v809 = vmax.f32 %v803, 0.0
  %v810 = vmax.f32 %v805, 0.0
  %v811 = vpack.c.bf16 %v809, %v809
  %v812 = vpack.c.bf16 %v810, %v810
  %v813 = vld [vmem:[%s3] sm:$0xf]
  %v814 = vld [vmem:[%s3 + $0x4] sm:$0xf]
  %v815 = vld [vmem:[%s3 + $0x8] sm:$0xf]
  %v816 = vld [vmem:[%s3 + $0xc] sm:$0xf]
  %v817 = vld [vmem:[%s3 + $0x10] sm:$0xf]
  %v818 = vld [vmem:[%s3 + $0x14] sm:$0xf]
  %v819 = vld [vmem:[%s3 + $0x18] sm:$0xf]
  %v820 = vld [vmem:[%s3 + $0x1c] sm:$0xf]
  %v821 = vld [vmem:[%s3 + $0x20] sm:$0xf]
  %v822 = vld [vmem:[%s3 + $0x24] sm:$0xf]
  %v823 = vld [vmem:[%s3 + $0x28] sm:$0xf]
  %v824 = vld [vmem:[%s3 + $0x2c] sm:$0xf]
  %v825 = vld [vmem:[%s3 + $0x30] sm:$0xf]
  %v826 = vld [vmem:[%s3 + $0x34] sm:$0xf]
  %v827 = vld [vmem:[%s3 + $0x38] sm:$0xf]
  %v828 = vld [vmem:[%s3 + $0x3c] sm:$0xf]
  %v829 = vld [vmem:[%s3 + $0x40] sm:$0xf]
  %v830 = vld [vmem:[%s3 + $0x44] sm:$0xf]
  %v831 = vld [vmem:[%s3 + $0x48] sm:$0xf]
  %v832 = vld [vmem:[%s3 + $0x4c] sm:$0xf]
  %v833 = vld [vmem:[%s3 + $0x50] sm:$0xf]
  %v834 = vld [vmem:[%s3 + $0x54] sm:$0xf]
  %v835 = vld [vmem:[%s3 + $0x58] sm:$0xf]
  %v836 = vld [vmem:[%s3 + $0x5c] sm:$0xf]
  %v837 = vld [vmem:[%s3 + $0x60] sm:$0xf]
  %v838 = vld [vmem:[%s3 + $0x64] sm:$0xf]
  %v839 = vld [vmem:[%s3 + $0x68] sm:$0xf]
  %v840 = vld [vmem:[%s3 + $0x6c] sm:$0xf]
  %v841 = vld [vmem:[%s3 + $0x70] sm:$0xf]
  %v842 = vld [vmem:[%s3 + $0x74] sm:$0xf]
  %v843 = vld [vmem:[%s3 + $0x78] sm:$0xf]
  %v844 = vld [vmem:[%s3 + $0x7c] sm:$0xf]
  %v845 = vld [vmem:[%s4] sm:$0x1]
  %v847 = vlaneseq
  %v848 = vshrl.u32 %v847, 7
  %v849 = vsub.s32 0, %v848
  %v850 = vrot.slane %v845, %v849
  %v884 = vunpack.c.l.b16 %v813
  %v885 = vunpack.c.l.b16 %v814
  %v886 = vunpack.c.l.b16 %v815
  %v887 = vunpack.c.l.b16 %v816
  %v888 = vunpack.c.l.b16 %v817
  %v889 = vunpack.c.l.b16 %v818
  %v890 = vunpack.c.l.b16 %v819
  %v891 = vunpack.c.l.b16 %v820
  %v892 = vunpack.c.l.b16 %v821
  %v893 = vunpack.c.l.b16 %v822
  %v894 = vunpack.c.l.b16 %v823
  %v895 = vunpack.c.l.b16 %v824
  %v896 = vunpack.c.l.b16 %v825
  %v897 = vunpack.c.l.b16 %v826
  %v898 = vunpack.c.l.b16 %v827
  %v899 = vunpack.c.l.b16 %v828
  %v900 = vunpack.c.l.b16 %v829
  %v901 = vunpack.c.l.b16 %v830
  %v902 = vunpack.c.l.b16 %v831
  %v903 = vunpack.c.l.b16 %v832
  %v904 = vunpack.c.l.b16 %v833
  %v905 = vunpack.c.l.b16 %v834
  %v906 = vunpack.c.l.b16 %v835
  %v907 = vunpack.c.l.b16 %v836
  %v908 = vunpack.c.l.b16 %v837
  %v909 = vunpack.c.l.b16 %v838
  %v910 = vunpack.c.l.b16 %v839
  %v911 = vunpack.c.l.b16 %v840
  %v912 = vunpack.c.l.b16 %v841
  %v913 = vunpack.c.l.b16 %v842
  %v914 = vunpack.c.l.b16 %v843
  %v915 = vunpack.c.l.b16 %v844
  %v916 = vpack.c.b16 %v885, %v884
  %v917 = vpack.c.b16 %v887, %v886
  %v918 = vpack.c.b16 %v889, %v888
  %v919 = vpack.c.b16 %v891, %v890
  %v920 = vpack.c.b16 %v893, %v892
  %v921 = vpack.c.b16 %v895, %v894
  %v922 = vpack.c.b16 %v897, %v896
  %v923 = vpack.c.b16 %v899, %v898
  %v924 = vpack.c.b16 %v901, %v900
  %v925 = vpack.c.b16 %v903, %v902
  %v926 = vpack.c.b16 %v905, %v904
  %v927 = vpack.c.b16 %v907, %v906
  %v928 = vpack.c.b16 %v909, %v908
  %v929 = vpack.c.b16 %v911, %v910
  %v930 = vpack.c.b16 %v913, %v912
  %v931 = vpack.c.b16 %v915, %v914
  %948 = vmatprep.subr.bf16.mxu0 0
  %949 = vmatpush1.bf16.msra.mxu0 %v916
  %950 = vmatprep.subr.bf16.mxu0 0
  %951 = vmatpush1.bf16.msra.mxu0 %v917
  %952 = vmatprep.subr.bf16.mxu0 0
  %953 = vmatpush1.bf16.msra.mxu0 %v918
  %954 = vmatprep.subr.bf16.mxu0 0
  %955 = vmatpush1.bf16.msra.mxu0 %v919
  %956 = vmatprep.subr.bf16.mxu0 0
  %957 = vmatpush1.bf16.msra.mxu0 %v920
  %958 = vmatprep.subr.bf16.mxu0 0
  %959 = vmatpush1.bf16.msra.mxu0 %v921
  %960 = vmatprep.subr.bf16.mxu0 0
  %961 = vmatpush1.bf16.msra.mxu0 %v922
  %962 = vmatprep.subr.bf16.mxu0 0
  %963 = vmatpush1.bf16.msra.mxu0 %v923
  %964 = vmatprep.subr.bf16.mxu0 0
  %965 = vmatpush1.bf16.msra.mxu0 %v924
  %966 = vmatprep.subr.bf16.mxu0 0
  %967 = vmatpush1.bf16.msra.mxu0 %v925
  %968 = vmatprep.subr.bf16.mxu0 0
  %969 = vmatpush1.bf16.msra.mxu0 %v926
  %970 = vmatprep.subr.bf16.mxu0 0
  %971 = vmatpush1.bf16.msra.mxu0 %v927
  %972 = vmatprep.subr.bf16.mxu0 0
  %973 = vmatpush1.bf16.msra.mxu0 %v928
  %974 = vmatprep.subr.bf16.mxu0 0
  %975 = vmatpush1.bf16.msra.mxu0 %v929
  %976 = vmatprep.subr.bf16.mxu0 0
  %977 = vmatpush1.bf16.msra.mxu0 %v930
  %978 = vmatprep.subr.bf16.mxu0 0
  %979 = vmatpush1.bf16.msra.mxu0 %v931
  %980 = vmatprep.mubr.bf16.mxu0 %v812
  %981 = vmatmul.mubr.bf16.gmra.mrb[0].mxu0 %v811
  %v982 = vpop.f32.mrb[0].mxu0
  %v983 = vadd.f32 %v850, %v982
  %v984 = vpop.f32.mrb[0].mxu0
  %v985 = vpop.f32.mrb[0].mxu0
  %v986 = vpop.f32.mrb[0].mxu0
  %987 = vdwg.mxu0
  %v988 = vmax.f32 %v983, 0.0
  %v989 = vpack.c.bf16 %v988, %v988
  %v990 = vld [vmem:[%s5] sm:$0xf]
  %v991 = vld [vmem:[%s5 + $0x4] sm:$0xf]
  %v992 = vld [vmem:[%s5 + $0x8] sm:$0xf]
  %v993 = vld [vmem:[%s5 + $0xc] sm:$0xf]
  %v994 = vld [vmem:[%s5 + $0x10] sm:$0xf]
  %v995 = vld [vmem:[%s5 + $0x14] sm:$0xf]
  %v996 = vld [vmem:[%s5 + $0x18] sm:$0xf]
  %v997 = vld [vmem:[%s5 + $0x1c] sm:$0xf]
  %v998 = vld [vmem:[%s6] sm:$0x1]
  %v1000 = vlaneseq
  %v1001 = vshrl.u32 %v1000, 7
  %v1002 = vsub.s32 0, %v1001
  %v1003 = vrot.slane %v998, %v1002
  %v1013 = vunpack.c.l.b16 %v990
  %v1014 = vunpack.c.l.b16 %v991
  %v1015 = vunpack.c.l.b16 %v992
  %v1016 = vunpack.c.l.b16 %v993
  %v1017 = vunpack.c.l.b16 %v994
  %v1018 = vunpack.c.l.b16 %v995
  %v1019 = vunpack.c.l.b16 %v996
  %v1020 = vunpack.c.l.b16 %v997
  %v1021 = vpack.c.b16 %v1014, %v1013
  %v1022 = vpack.c.b16 %v1016, %v1015
  %v1023 = vpack.c.b16 %v1018, %v1017
  %v1024 = vpack.c.b16 %v1020, %v1019
  %vm1029 = vcmask 523264
  %v1031 = vsel %vm1029, %v989, 0
  %1033 = vmatprep.subr.bf16.mxu0 0
  %1034 = vmatpush1.bf16.msra.mxu0 %v1021
  %1035 = vmatprep.subr.bf16.mxu0 0
  %1036 = vmatpush1.bf16.msra.mxu0 %v1022
  %1037 = vmatprep.subr.bf16.mxu0 0
  %1038 = vmatpush1.bf16.msra.mxu0 %v1023
  %1039 = vmatprep.subr.bf16.mxu0 0
  %1040 = vmatpush1.bf16.msra.mxu0 %v1024
  %1041 = vmatprep.subr.bf16.mxu0 0
  %1042 = vmatpush1.bf16.msra.mxu0 0
  %1043 = vmatprep.subr.bf16.mxu0 0
  %1044 = vmatpush1.bf16.msra.mxu0 0
  %1045 = vmatprep.subr.bf16.mxu0 0
  %1046 = vmatpush1.bf16.msra.mxu0 0
  %1047 = vmatprep.subr.bf16.mxu0 0
  %1048 = vmatpush1.bf16.msra.mxu0 0
  %1049 = vmatprep.subr.bf16.mxu0 0
  %1050 = vmatpush1.bf16.msra.mxu0 0
  %1051 = vmatprep.subr.bf16.mxu0 0
  %1052 = vmatpush1.bf16.msra.mxu0 0
  %1053 = vmatprep.subr.bf16.mxu0 0
  %1054 = vmatpush1.bf16.msra.mxu0 0
  %1055 = vmatprep.subr.bf16.mxu0 0
  %1056 = vmatpush1.bf16.msra.mxu0 0
  %1057 = vmatprep.subr.bf16.mxu0 0
  %1058 = vmatpush1.bf16.msra.mxu0 0
  %1059 = vmatprep.subr.bf16.mxu0 0
  %1060 = vmatpush1.bf16.msra.mxu0 0
  %1061 = vmatprep.subr.bf16.mxu0 0
  %1062 = vmatpush1.bf16.msra.mxu0 0
  %1063 = vmatprep.subr.bf16.mxu0 0
  %1064 = vmatpush1.bf16.msra.mxu0 0
  %1065 = vmatprep.mubr.bf16.mxu0 0
  %1066 = vmatmul.mubr.bf16.gmra.mrb[0].mxu0 %v1031
  %v1067 = vpop.f32.mrb[0].mxu0
  %v1068 = vadd.f32 %v1003, %v1067
  %v1069 = vpop.f32.mrb[0].mxu0
  %v1070 = vpop.f32.mrb[0].mxu0
  %v1071 = vpop.f32.mrb[0].mxu0
  %1072 = vdwg.mxu0
  %vm1073 = vcmask 80896
  %1074 = vst.msk [vmem:[%s7] sm:$0xff] %vm1073, %v1068
  // Predicated region
  $region30: #{fmnist_cnn_forward.3} parent=0 // pred_check
    _
  $region31: #{fmnist_cnn_forward.3} parent=0 // pred_check_branch
    %1076 = sbr.rel (0) target = $region33
  $region32: #{fmnist_cnn_forward.3} parent=0 // pred_region
    _
  $region33: #{fmnist_cnn_forward.3} parent=0 // pred_fallthru
    _
  // Predicated region
  $region34: #{fmnist_cnn_forward.3} parent=0 // pred_check
    _
  $region35: #{fmnist_cnn_forward.3} parent=0 // pred_check_branch
    %1078 = sbr.rel (0) target = $region37
  $region36: #{fmnist_cnn_forward.3} parent=0 // pred_region
    _
  $region37: #{fmnist_cnn_forward.3} parent=0 // pred_fallthru
    _

// kernel: fmnist_cnn_forward.2
$region0: #{fmnist_cnn_forward.2}
  #allocation0 [shape = 'u32[]', space=smem, size = 0x4, offset = 0x4, fixed_abs, tag = 'smem constant byte address 0x4 - core index']
  #allocation1 [shape = 'u32[144,128]{1,0:T(1,128)}', space=vmem, size = 0x12000, scoped, tag = 'internal scratch']
  #allocation2 [shape = 'f32[8,848]{1,0:T(8,128)}', space=vmem, size = 0x7000, scoped, tag = 'scratch operand']
  #allocation3 [shape = 'f32[72,784]{1,0:T(8,128)}', space=vmem, size = 0x3f000, scoped, tag = 'scratch operand']
  #allocation4 [shape = 'bf16[128,816]{1,0:T(16,128)(2,1)}', space=vmem, size = 0x38000, scoped, tag = 'scratch operand']
  #allocation5 [shape = 'bf16[128,288]{1,0:T(16,128)(2,1)}', space=vmem, size = 0x18000, scoped, tag = 'scratch operand']
  #allocation6 [shape = 'bf16[128,288]{1,0:T(16,128)(2,1)}', space=vmem, size = 0x18000, scoped, tag = 'scratch operand']
  #allocation7 [shape = 'bf16[128,256]{1,0:T(16,128)(2,1)}', space=vmem, size = 0x10000, scoped, tag = 'scratch operand']
  %s0 = inlined_call_operand.vmem [shape: f32[8,784], index: 0, kind: input, shape index: {}]
  %s1 = inlined_call_operand.vmem [shape: bf16[128,72], index: 1, kind: input, shape index: {}]
  %s2 = inlined_call_operand.vmem [shape: f32[128,1], index: 2, kind: input, shape index: {}]
  %s3 = inlined_call_operand.vmem [shape: bf16[784,224], index: 3, kind: input, shape index: {}]
  %s4 = inlined_call_operand.hbm [shape: bf16[9,128,128], index: 4, kind: input, shape index: {}]
  %s5 = inlined_call_operand.vmem [shape: f32[128,1], index: 5, kind: input, shape index: {}]
  %s6 = inlined_call_operand.hbm [shape: bf16[9,128,128], index: 6, kind: input, shape index: {}]
  %s7 = inlined_call_operand.vmem [shape: f32[128,1], index: 7, kind: input, shape index: {}]
  %s8 = inlined_call_operand.vmem [shape: f32[1,224], index: 8, kind: input, shape index: {}]
  %s9 = inlined_call_operand.vmem [shape: bf16[224,49], index: 9, kind: input, shape index: {}]
  %s10 = inlined_call_operand.vmem [shape: f32[2,784], index: 10, kind: input, shape index: {}]
  %s11 = inlined_call_operand.vmem [shape: f32[128,49], index: 11, kind: output, shape index: {}]
  %s12 = sld [smem:[#allocation0]]
  $region62: #{fmnist_cnn_forward.2} parent=0
    _
  %s14 = ssub.s32 1, %s12
  %s15 = scalar_select 0, %s14, %s12
  $region1: #{fmnist_cnn_forward.2} parent=0
    #allocation8 [shape = 'u8[294912]{0}', space=vmem, size = 0x48000, scoped, tag = 'input window, operand 4, single buffered']
    #allocation9 [shape = 's32[1]{0}', space=sflag, size = 0x4, scoped, tag = 'scoped memory for fmnist_cnn_forward.2']
    #allocation10 [shape = 'u8[294912]{0}', space=vmem, size = 0x48000, scoped, tag = 'input window, operand 6, single buffered']
    #allocation11 [shape = 's32[1]{0}', space=sflag, size = 0x4, scoped, tag = 'scoped memory for fmnist_cnn_forward.2']
    %16 = vsyncpa [#allocation9], 0
    %17 = vsyncpa [#allocation11], 0
    // Predicated region
    $region2: #{fmnist_cnn_forward.2} parent=1 // pred_check
      _
    $region3: #{fmnist_cnn_forward.2} parent=1 // pred_check_branch
      %19 = sbr.rel (0) target = $region5
    $region4: #{fmnist_cnn_forward.2} parent=1 // pred_region
      _
    $region5: #{fmnist_cnn_forward.2} parent=1 // pred_fallthru
      _
    // Predicated region
    $region6: #{fmnist_cnn_forward.2} parent=1 // pred_check
      _
    $region7: #{fmnist_cnn_forward.2} parent=1 // pred_check_branch
      %21 = sbr.rel (0) target = $region9
    $region8: #{fmnist_cnn_forward.2} parent=1 // pred_region
      _
    $region9: #{fmnist_cnn_forward.2} parent=1 // pred_fallthru
      _
    // Predicated region
    $region10: #{fmnist_cnn_forward.2} parent=1 // pred_check
      _
    $region11: #{fmnist_cnn_forward.2} parent=1 // pred_check_branch
      %23 = sbr.rel (0) target = $region13
    $region12: #{fmnist_cnn_forward.2} parent=1 // pred_region
      _
    $region13: #{fmnist_cnn_forward.2} parent=1 // pred_fallthru
      _
    // Predicated region
    $region14: #{fmnist_cnn_forward.2} parent=1 // pred_check
      _
    $region15: #{fmnist_cnn_forward.2} parent=1 // pred_check_branch
      %25 = sbr.rel (0) target = $region17
    $region16: #{fmnist_cnn_forward.2} parent=1 // pred_region
      _
    $region17: #{fmnist_cnn_forward.2} parent=1 // pred_fallthru
      _
    // Predicated region
    $region18: #{fmnist_cnn_forward.2} parent=1 // pred_check
      _
    $region19: #{fmnist_cnn_forward.2} parent=1 // pred_check_branch
      %27 = sbr.rel (0) target = $region21
    $region20: #{fmnist_cnn_forward.2} parent=1 // pred_region
      %s29 = ssub.s32 9216, 9216
      %30 = vsyncadd [#allocation9], %s29
      %s31 = sshll.u32 [#allocation8], 4
      %s32 = int_to_ptr.vmem [resolvable:$true] %s31
      %37 = dma.hbm_to_vmem [thread:$0]  %s4, 9216, %s32, [#allocation9], 64, 64, 4
    $region21: #{fmnist_cnn_forward.2} parent=1 // pred_fallthru
      _
    // Predicated region
    $region22: #{fmnist_cnn_forward.2} parent=1 // pred_check
      _
    $region23: #{fmnist_cnn_forward.2} parent=1 // pred_check_branch
      %39 = sbr.rel (0) target = $region25
    $region24: #{fmnist_cnn_forward.2} parent=1 // pred_region
      _
    $region25: #{fmnist_cnn_forward.2} parent=1 // pred_fallthru
      _
    // Predicated region
    $region26: #{fmnist_cnn_forward.2} parent=1 // pred_check
      _
    $region27: #{fmnist_cnn_forward.2} parent=1 // pred_check_branch
      %41 = sbr.rel (0) target = $region29
    $region28: #{fmnist_cnn_forward.2} parent=1 // pred_region
      %s43 = ssub.s32 9216, 9216
      %44 = vsyncadd [#allocation11], %s43
      %s45 = sshll.u32 [#allocation10], 4
      %s46 = int_to_ptr.vmem [resolvable:$true] %s45
      %51 = dma.hbm_to_vmem [thread:$0]  %s6, 9216, %s46, [#allocation11], 64, 64, 4
    $region29: #{fmnist_cnn_forward.2} parent=1 // pred_fallthru
      _
    // Predicated region
    $region30: #{fmnist_cnn_forward.2} parent=1 // pred_check
      _
    $region31: #{fmnist_cnn_forward.2} parent=1 // pred_check_branch
      %53 = sbr.rel (0) target = $region33
    $region32: #{fmnist_cnn_forward.2} parent=1 // pred_region
      _
    $region33: #{fmnist_cnn_forward.2} parent=1 // pred_fallthru
      _
    // Predicated region
    $region34: #{fmnist_cnn_forward.2} parent=1 // pred_check
      _
    $region35: #{fmnist_cnn_forward.2} parent=1 // pred_check_branch
      %55 = sbr.rel (0) target = $region37
    $region36: #{fmnist_cnn_forward.2} parent=1 // pred_region
      _
    $region37: #{fmnist_cnn_forward.2} parent=1 // pred_fallthru
      _
    // Predicated region
    $region38: #{fmnist_cnn_forward.2} parent=1 // pred_check
      _
    $region39: #{fmnist_cnn_forward.2} parent=1 // pred_check_branch
      %57 = sbr.rel (0) target = $region41
    $region40: #{fmnist_cnn_forward.2} parent=1 // pred_region
      _
    $region41: #{fmnist_cnn_forward.2} parent=1 // pred_fallthru
      _
    // Predicated region
    $region42: #{fmnist_cnn_forward.2} parent=1 // pred_check
      _
    $region43: #{fmnist_cnn_forward.2} parent=1 // pred_check_branch
      %59 = sbr.rel (0) target = $region45
    $region44: #{fmnist_cnn_forward.2} parent=1 // pred_region
      _
    $region45: #{fmnist_cnn_forward.2} parent=1 // pred_fallthru
      _
    // Predicated region
    $region46: #{fmnist_cnn_forward.2} parent=1 // pred_check
      _
    $region47: #{fmnist_cnn_forward.2} parent=1 // pred_check_branch
      %61 = sbr.rel (0) target = $region49
    $region48: #{fmnist_cnn_forward.2} parent=1 // pred_region
      %62 = dma.done [#allocation9], 9216
    $region49: #{fmnist_cnn_forward.2} parent=1 // pred_fallthru
      _
    // Predicated region
    $region50: #{fmnist_cnn_forward.2} parent=1 // pred_check
      _
    $region51: #{fmnist_cnn_forward.2} parent=1 // pred_check_branch
      %64 = sbr.rel (0) target = $region53
    $region52: #{fmnist_cnn_forward.2} parent=1 // pred_region
      %65 = dma.done [#allocation11], 9216
    $region53: #{fmnist_cnn_forward.2} parent=1 // pred_fallthru
      _
    %vm67 = vcmask 261120
    %68 = vst.msk [vmem:[#allocation2] sm:$0xff] %vm67, 0.0
    %vm69 = vcmask 654720
    %70 = vst.msk [vmem:[#allocation2 + $0x30] sm:$0xff] %vm69, 0.0
    %vm71 = vcmask 392320
    %72 = vst.msk [vmem:[#allocation4 + $0x30] sm:$0xff] %vm71, 0
    %73 = vst.msk [vmem:[#allocation4 + $0x68] sm:$0xff] %vm71, 0
    %74 = vst.msk [vmem:[#allocation4 + $0xa0] sm:$0xff] %vm71, 0
    %75 = vst.msk [vmem:[#allocation4 + $0xd8] sm:$0xff] %vm71, 0
    %76 = vst.msk [vmem:[#allocation4 + $0x110] sm:$0xff] %vm71, 0
    %77 = vst.msk [vmem:[#allocation4 + $0x148] sm:$0xff] %vm71, 0
    %78 = vst.msk [vmem:[#allocation4 + $0x180] sm:$0xff] %vm71, 0
    %79 = vst.msk [vmem:[#allocation4 + $0x1b8] sm:$0xff] %vm71, 0
    %80 = vst.msk [vmem:[#allocation5] sm:$0xff] %vm67, 0
    %81 = vst.msk [vmem:[#allocation5 + $0x18] sm:$0xff] %vm67, 0
    %82 = vst.msk [vmem:[#allocation5 + $0x30] sm:$0xff] %vm67, 0
    %83 = vst.msk [vmem:[#allocation5 + $0x48] sm:$0xff] %vm67, 0
    %84 = vst.msk [vmem:[#allocation5 + $0x60] sm:$0xff] %vm67, 0
    %85 = vst.msk [vmem:[#allocation5 + $0x78] sm:$0xff] %vm67, 0
    %86 = vst.msk [vmem:[#allocation5 + $0x90] sm:$0xff] %vm67, 0
    %87 = vst.msk [vmem:[#allocation5 + $0xa8] sm:$0xff] %vm67, 0
    %88 = vst.msk [vmem:[#allocation5 + $0x10] sm:$0xff] %vm67, 0
    %89 = vst.msk [vmem:[#allocation5 + $0x28] sm:$0xff] %vm67, 0
    %90 = vst.msk [vmem:[#allocation5 + $0x40] sm:$0xff] %vm67, 0
    %91 = vst.msk [vmem:[#allocation5 + $0x58] sm:$0xff] %vm67, 0
    %92 = vst.msk [vmem:[#allocation5 + $0x70] sm:$0xff] %vm67, 0
    %93 = vst.msk [vmem:[#allocation5 + $0x88] sm:$0xff] %vm67, 0
    %94 = vst.msk [vmem:[#allocation5 + $0xa0] sm:$0xff] %vm67, 0
    %95 = vst.msk [vmem:[#allocation5 + $0xb8] sm:$0xff] %vm67, 0
    %96 = vst.msk [vmem:[#allocation6] sm:$0xff] %vm67, 0
    %97 = vst.msk [vmem:[#allocation6 + $0x18] sm:$0xff] %vm67, 0
    %98 = vst.msk [vmem:[#allocation6 + $0x30] sm:$0xff] %vm67, 0
    %99 = vst.msk [vmem:[#allocation6 + $0x48] sm:$0xff] %vm67, 0
    %100 = vst.msk [vmem:[#allocation6 + $0x60] sm:$0xff] %vm67, 0
    %101 = vst.msk [vmem:[#allocation6 + $0x78] sm:$0xff] %vm67, 0
    %102 = vst.msk [vmem:[#allocation6 + $0x90] sm:$0xff] %vm67, 0
    %103 = vst.msk [vmem:[#allocation6 + $0xa8] sm:$0xff] %vm67, 0
    %104 = vst.msk [vmem:[#allocation6 + $0x10] sm:$0xff] %vm67, 0
    %105 = vst.msk [vmem:[#allocation6 + $0x28] sm:$0xff] %vm67, 0
    %106 = vst.msk [vmem:[#allocation6 + $0x40] sm:$0xff] %vm67, 0
    %107 = vst.msk [vmem:[#allocation6 + $0x58] sm:$0xff] %vm67, 0
    %108 = vst.msk [vmem:[#allocation6 + $0x70] sm:$0xff] %vm67, 0
    %109 = vst.msk [vmem:[#allocation6 + $0x88] sm:$0xff] %vm67, 0
    %110 = vst.msk [vmem:[#allocation6 + $0xa0] sm:$0xff] %vm67, 0
    %111 = vst.msk [vmem:[#allocation6 + $0xb8] sm:$0xff] %vm67, 0
    %vm112 = vcmask 1048320
    %113 = vst.msk [vmem:[#allocation7 + $0x8] sm:$0xff] %vm112, 0
    %114 = vst.msk [vmem:[#allocation7 + $0x18] sm:$0xff] %vm112, 0
    %115 = vst.msk [vmem:[#allocation7 + $0x28] sm:$0xff] %vm112, 0
    %116 = vst.msk [vmem:[#allocation7 + $0x38] sm:$0xff] %vm112, 0
    %117 = vst.msk [vmem:[#allocation7 + $0x48] sm:$0xff] %vm112, 0
    %118 = vst.msk [vmem:[#allocation7 + $0x58] sm:$0xff] %vm112, 0
    %119 = vst.msk [vmem:[#allocation7 + $0x68] sm:$0xff] %vm112, 0
    %120 = vst.msk [vmem:[#allocation7 + $0x78] sm:$0xff] %vm112, 0
    %v121 = vld [vmem:[%s0] sm:$0xff]
    %v122 = vld [vmem:[%s0 + $0x8] sm:$0xff]
    %v123 = vld [vmem:[%s0 + $0x10] sm:$0xff]
    %v124 = vld [vmem:[%s0 + $0x18] sm:$0xff]
    %v125 = vld [vmem:[%s0 + $0x20] sm:$0xff]
    %v126 = vld [vmem:[%s0 + $0x28] sm:$0xff]
    %v127 = vld [vmem:[%s0 + $0x30] sm:$0xff]
    %135 = vrot.lane.b32.xlu0 %v121, 32
    %v136 = vpop.permute.xlu0 %135
    %137 = vrot.lane.b32.xlu0 %v122, 32
    %v138 = vpop.permute.xlu0 %137
    %139 = vrot.lane.b32.xlu0 %v123, 32
    %v140 = vpop.permute.xlu0 %139
    %141 = vrot.lane.b32.xlu0 %v124, 32
    %v142 = vpop.permute.xlu0 %141
    %143 = vrot.lane.b32.xlu0 %v125, 32
    %v144 = vpop.permute.xlu0 %143
    %145 = vrot.lane.b32.xlu0 %v126, 32
    %v146 = vpop.permute.xlu0 %145
    %147 = vrot.lane.b32.xlu0 %v127, 32
    %v148 = vpop.permute.xlu0 %147
    %v149 = vsel %vm67, %v136, %v138
    %v150 = vsel %vm67, %v138, %v140
    %v151 = vsel %vm67, %v140, %v142
    %v152 = vsel %vm67, %v142, %v144
    %v153 = vsel %vm67, %v144, %v146
    %v154 = vsel %vm67, %v146, %v148
    %vm162 = vcmask 1047808
    %163 = vst.msk [vmem:[#allocation2] sm:$0xff] %vm162, %v136
    %164 = vst [vmem:[#allocation2 + $0x8] sm:$0xff] %v149
    %165 = vst [vmem:[#allocation2 + $0x10] sm:$0xff] %v150
    %166 = vst [vmem:[#allocation2 + $0x18] sm:$0xff] %v151
    %167 = vst [vmem:[#allocation2 + $0x20] sm:$0xff] %v152
    %168 = vst [vmem:[#allocation2 + $0x28] sm:$0xff] %v153
    %vm169 = vcmask 392192
    %170 = vst.msk [vmem:[#allocation2 + $0x30] sm:$0xff] %vm169, %v154
    %v171 = vld [vmem:[#allocation2] sm:$0xff]
    %v172 = vld [vmem:[#allocation2 + $0x8] sm:$0xff]
    %v173 = vld [vmem:[#allocation2 + $0x10] sm:$0xff]
    %v174 = vld [vmem:[#allocation2 + $0x18] sm:$0xff]
    %v175 = vld [vmem:[#allocation2 + $0x20] sm:$0xff]
    %v176 = vld [vmem:[#allocation2 + $0x28] sm:$0xff]
    %v177 = vld [vmem:[#allocation2 + $0x30] sm:$0xff]
    %v178 = vld [vmem:[%s10] ss:$2 sm:$0x7f]
    %v180 = vlaneseq
    %v181 = vshrl.u32 %v180, 7
    %v182 = vsub.s32 0, %v181
    %v183 = vrot.slane %v178, %v182
    %v184 = vlaneseq
    %v185 = vshrl.u32 %v184, 7
    %v186 = vsub.s32 1, %v185
    %v187 = vrot.slane %v178, %v186
    %v188 = vlaneseq
    %v189 = vshrl.u32 %v188, 7
    %v190 = vsub.s32 2, %v189
    %v191 = vrot.slane %v178, %v190
    %v192 = vlaneseq
    %v193 = vshrl.u32 %v192, 7
    %v194 = vsub.s32 3, %v193
    %v195 = vrot.slane %v178, %v194
    %v196 = vlaneseq
    %v197 = vshrl.u32 %v196, 7
    %v198 = vsub.s32 4, %v197
    %v199 = vrot.slane %v178, %v198
    %v200 = vlaneseq
    %v201 = vshrl.u32 %v200, 7
    %v202 = vsub.s32 5, %v201
    %v203 = vrot.slane %v178, %v202
    %v204 = vlaneseq
    %v205 = vshrl.u32 %v204, 7
    %v206 = vsub.s32 6, %v205
    %v207 = vrot.slane %v178, %v206
    %208 = vrot.lane.b32.xlu0 %v183, 3
    %v209 = vpop.permute.xlu0 %208
    %210 = vrot.lane.b32.xlu0 %v187, 3
    %v211 = vpop.permute.xlu0 %210
    %212 = vrot.lane.b32.xlu0 %v191, 3
    %v213 = vpop.permute.xlu0 %212
    %214 = vrot.lane.b32.xlu0 %v195, 3
    %v215 = vpop.permute.xlu0 %214
    %216 = vrot.lane.b32.xlu0 %v199, 3
    %v217 = vpop.permute.xlu0 %216
    %218 = vrot.lane.b32.xlu0 %v203, 3
    %v219 = vpop.permute.xlu0 %218
    %220 = vrot.lane.b32.xlu0 %v207, 3
    %v221 = vpop.permute.xlu0 %220
    %vm222 = vcmask 23552
    %v223 = vsel %vm222, %v209, %v211
    %v224 = vsel %vm222, %v211, %v213
    %v225 = vsel %vm222, %v213, %v215
    %v226 = vsel %vm222, %v215, %v217
    %v227 = vsel %vm222, %v217, %v219
    %v228 = vsel %vm222, %v219, %v221
    %v236 = vmul.f32 %v171, %v209
    %v237 = vmul.f32 %v172, %v223
    %v238 = vmul.f32 %v173, %v224
    %v239 = vmul.f32 %v174, %v225
    %v240 = vmul.f32 %v175, %v226
    %v241 = vmul.f32 %v176, %v227
    %v242 = vmul.f32 %v177, %v228
    %250 = vrot.lane.b32.xlu0 %v236, 125
    %v251 = vpop.permute.xlu0 %250
    %252 = vrot.lane.b32.xlu0 %v237, 125
    %v253 = vpop.permute.xlu0 %252
    %254 = vrot.lane.b32.xlu0 %v238, 125
    %v255 = vpop.permute.xlu0 %254
    %256 = vrot.lane.b32.xlu0 %v239, 125
    %v257 = vpop.permute.xlu0 %256
    %258 = vrot.lane.b32.xlu0 %v240, 125
    %v259 = vpop.permute.xlu0 %258
    %260 = vrot.lane.b32.xlu0 %v241, 125
    %v261 = vpop.permute.xlu0 %260
    %262 = vrot.lane.b32.xlu0 %v242, 125
    %v263 = vpop.permute.xlu0 %262
    %vm264 = vcmask 1022976
    %v265 = vsel %vm264, %v251, %v253
    %v266 = vsel %vm264, %v253, %v255
    %v267 = vsel %vm264, %v255, %v257
    %v268 = vsel %vm264, %v257, %v259
    %v269 = vsel %vm264, %v259, %v261
    %v270 = vsel %vm264, %v261, %v263
    %278 = vst [vmem:[#allocation3] sm:$0xff] %v265
    %279 = vst [vmem:[#allocation3 + $0x8] sm:$0xff] %v266
    %280 = vst [vmem:[#allocation3 + $0x10] sm:$0xff] %v267
    %281 = vst [vmem:[#allocation3 + $0x18] sm:$0xff] %v268
    %282 = vst [vmem:[#allocation3 + $0x20] sm:$0xff] %v269
    %283 = vst [vmem:[#allocation3 + $0x28] sm:$0xff] %v270
    %vm284 = vcmask 130048
    %285 = vst.msk [vmem:[#allocation3 + $0x30] sm:$0xff] %vm284, %v263
    %v286 = vld [vmem:[#allocation2] sm:$0xff]
    %v287 = vld [vmem:[#allocation2 + $0x8] sm:$0xff]
    %v288 = vld [vmem:[#allocation2 + $0x10] sm:$0xff]
    %v289 = vld [vmem:[#allocation2 + $0x18] sm:$0xff]
    %v290 = vld [vmem:[#allocation2 + $0x20] sm:$0xff]
    %v291 = vld [vmem:[#allocation2 + $0x28] sm:$0xff]
    %v292 = vld [vmem:[#allocation2 + $0x30] sm:$0xff]
    %300 = vrot.lane.b32.xlu0 %v286, 124
    %v301 = vpop.permute.xlu0 %300
    %302 = vrot.lane.b32.xlu0 %v287, 124
    %v303 = vpop.permute.xlu0 %302
    %304 = vrot.lane.b32.xlu0 %v288, 124
    %v305 = vpop.permute.xlu0 %304
    %306 = vrot.lane.b32.xlu0 %v289, 124
    %v307 = vpop.permute.xlu0 %306
    %308 = vrot.lane.b32.xlu0 %v290, 124
    %v309 = vpop.permute.xlu0 %308
    %310 = vrot.lane.b32.xlu0 %v291, 124
    %v311 = vpop.permute.xlu0 %310
    %312 = vrot.lane.b32.xlu0 %v292, 124
    %v313 = vpop.permute.xlu0 %312
    %vm314 = vcmask 1014784
    %v315 = vsel %vm314, %v301, %v303
    %v316 = vsel %vm314, %v303, %v305
    %v317 = vsel %vm314, %v305, %v307
    %v318 = vsel %vm314, %v307, %v309
    %v319 = vsel %vm314, %v309, %v311
    %v320 = vsel %vm314, %v311, %v313
    %328 = vst [vmem:[#allocation3 + $0x38] sm:$0xff] %v315
    %329 = vst [vmem:[#allocation3 + $0x40] sm:$0xff] %v316
    %330 = vst [vmem:[#allocation3 + $0x48] sm:$0xff] %v317
    %331 = vst [vmem:[#allocation3 + $0x50] sm:$0xff] %v318
    %332 = vst [vmem:[#allocation3 + $0x58] sm:$0xff] %v319
    %333 = vst [vmem:[#allocation3 + $0x60] sm:$0xff] %v320
    %334 = vst.msk [vmem:[#allocation3 + $0x68] sm:$0xff] %vm284, %v313
    %v335 = vld [vmem:[#allocation2] sm:$0xff]
    %v336 = vld [vmem:[#allocation2 + $0x8] sm:$0xff]
    %v337 = vld [vmem:[#allocation2 + $0x10] sm:$0xff]
    %v338 = vld [vmem:[#allocation2 + $0x18] sm:$0xff]
    %v339 = vld [vmem:[#allocation2 + $0x20] sm:$0xff]
    %v340 = vld [vmem:[#allocation2 + $0x28] sm:$0xff]
    %v341 = vld [vmem:[#allocation2 + $0x30] sm:$0xff]
    %s342 = scalar_lea.vmem %s10, 1
    %v343 = vld [vmem:[%s342] ss:$2 sm:$0x7f]
    %v345 = vlaneseq
    %v346 = vshrl.u32 %v345, 7
    %v347 = vsub.s32 0, %v346
    %v348 = vrot.slane %v343, %v347
    %v349 = vlaneseq
    %v350 = vshrl.u32 %v349, 7
    %v351 = vsub.s32 1, %v350
    %v352 = vrot.slane %v343, %v351
    %v353 = vlaneseq
    %v354 = vshrl.u32 %v353, 7
    %v355 = vsub.s32 2, %v354
    %v356 = vrot.slane %v343, %v355
    %v357 = vlaneseq
    %v358 = vshrl.u32 %v357, 7
    %v359 = vsub.s32 3, %v358
    %v360 = vrot.slane %v343, %v359
    %v361 = vlaneseq
    %v362 = vshrl.u32 %v361, 7
    %v363 = vsub.s32 4, %v362
    %v364 = vrot.slane %v343, %v363
    %v365 = vlaneseq
    %v366 = vshrl.u32 %v365, 7
    %v367 = vsub.s32 5, %v366
    %v368 = vrot.slane %v343, %v367
    %v369 = vlaneseq
    %v370 = vshrl.u32 %v369, 7
    %v371 = vsub.s32 6, %v370
    %v372 = vrot.slane %v343, %v371
    %373 = vrot.lane.b32.xlu0 %v348, 5
    %v374 = vpop.permute.xlu0 %373
    %375 = vrot.lane.b32.xlu0 %v352, 5
    %v376 = vpop.permute.xlu0 %375
    %377 = vrot.lane.b32.xlu0 %v356, 5
    %v378 = vpop.permute.xlu0 %377
    %379 = vrot.lane.b32.xlu0 %v360, 5
    %v380 = vpop.permute.xlu0 %379
    %381 = vrot.lane.b32.xlu0 %v364, 5
    %v382 = vpop.permute.xlu0 %381
    %383 = vrot.lane.b32.xlu0 %v368, 5
    %v384 = vpop.permute.xlu0 %383
    %385 = vrot.lane.b32.xlu0 %v372, 5
    %v386 = vpop.permute.xlu0 %385
    %vm387 = vcmask 39936
    %v388 = vsel %vm387, %v374, %v376
    %v389 = vsel %vm387, %v376, %v378
    %v390 = vsel %vm387, %v378, %v380
    %v391 = vsel %vm387, %v380, %v382
    %v392 = vsel %vm387, %v382, %v384
    %v393 = vsel %vm387, %v384, %v386
    %v401 = vmul.f32 %v335, %v374
    %v402 = vmul.f32 %v336, %v388
    %v403 = vmul.f32 %v337, %v389
    %v404 = vmul.f32 %v338, %v390
    %v405 = vmul.f32 %v339, %v391
    %v406 = vmul.f32 %v340, %v392
    %v407 = vmul.f32 %v341, %v393
    %415 = vrot.lane.b32.xlu0 %v401, 123
    %v416 = vpop.permute.xlu0 %415
    %417 = vrot.lane.b32.xlu0 %v402, 123
    %v418 = vpop.permute.xlu0 %417
    %419 = vrot.lane.b32.xlu0 %v403, 123
    %v420 = vpop.permute.xlu0 %419
    %421 = vrot.lane.b32.xlu0 %v404, 123
    %v422 = vpop.permute.xlu0 %421
    %423 = vrot.lane.b32.xlu0 %v405, 123
    %v424 = vpop.permute.xlu0 %423
    %425 = vrot.lane.b32.xlu0 %v406, 123
    %v426 = vpop.permute.xlu0 %425
    %427 = vrot.lane.b32.xlu0 %v407, 123
    %v428 = vpop.permute.xlu0 %427
    %vm429 = vcmask 1006592
    %v430 = vsel %vm429, %v416, %v418
    %v431 = vsel %vm429, %v418, %v420
    %v432 = vsel %vm429, %v420, %v422
    %v433 = vsel %vm429, %v422, %v424
    %v434 = vsel %vm429, %v424, %v426
    %v435 = vsel %vm429, %v426, %v428
    %443 = vst [vmem:[#allocation3 + $0x70] sm:$0xff] %v430
    %444 = vst [vmem:[#allocation3 + $0x78] sm:$0xff] %v431
    %445 = vst [vmem:[#allocation3 + $0x80] sm:$0xff] %v432
    %446 = vst [vmem:[#allocation3 + $0x88] sm:$0xff] %v433
    %447 = vst [vmem:[#allocation3 + $0x90] sm:$0xff] %v434
    %448 = vst [vmem:[#allocation3 + $0x98] sm:$0xff] %v435
    %449 = vst.msk [vmem:[#allocation3 + $0xa0] sm:$0xff] %vm284, %v428
    %v450 = vld [vmem:[#allocation2] sm:$0xff]
    %v451 = vld [vmem:[#allocation2 + $0x8] sm:$0xff]
    %v452 = vld [vmem:[#allocation2 + $0x10] sm:$0xff]
    %v453 = vld [vmem:[#allocation2 + $0x18] sm:$0xff]
    %v454 = vld [vmem:[#allocation2 + $0x20] sm:$0xff]
    %v455 = vld [vmem:[#allocation2 + $0x28] sm:$0xff]
    %v456 = vld [vmem:[#allocation2 + $0x30] sm:$0xff]
    %v457 = vld [vmem:[%s10] ss:$2 sm:$0x7f]
    %v459 = vlaneseq
    %v460 = vshrl.u32 %v459, 7
    %v461 = vsub.s32 0, %v460
    %v462 = vrot.slane %v457, %v461
    %v463 = vlaneseq
    %v464 = vshrl.u32 %v463, 7
    %v465 = vsub.s32 1, %v464
    %v466 = vrot.slane %v457, %v465
    %v467 = vlaneseq
    %v468 = vshrl.u32 %v467, 7
    %v469 = vsub.s32 2, %v468
    %v470 = vrot.slane %v457, %v469
    %v471 = vlaneseq
    %v472 = vshrl.u32 %v471, 7
    %v473 = vsub.s32 3, %v472
    %v474 = vrot.slane %v457, %v473
    %v475 = vlaneseq
    %v476 = vshrl.u32 %v475, 7
    %v477 = vsub.s32 4, %v476
    %v478 = vrot.slane %v457, %v477
    %v479 = vlaneseq
    %v480 = vshrl.u32 %v479, 7
    %v481 = vsub.s32 5, %v480
    %v482 = vrot.slane %v457, %v481
    %v483 = vlaneseq
    %v484 = vshrl.u32 %v483, 7
    %v485 = vsub.s32 6, %v484
    %v486 = vrot.slane %v457, %v485
    %487 = vrot.lane.b32.xlu0 %v462, 31
    %v488 = vpop.permute.xlu0 %487
    %489 = vrot.lane.b32.xlu0 %v466, 31
    %v490 = vpop.permute.xlu0 %489
    %491 = vrot.lane.b32.xlu0 %v470, 31
    %v492 = vpop.permute.xlu0 %491
    %493 = vrot.lane.b32.xlu0 %v474, 31
    %v494 = vpop.permute.xlu0 %493
    %495 = vrot.lane.b32.xlu0 %v478, 31
    %v496 = vpop.permute.xlu0 %495
    %497 = vrot.lane.b32.xlu0 %v482, 31
    %v498 = vpop.permute.xlu0 %497
    %499 = vrot.lane.b32.xlu0 %v486, 31
    %v500 = vpop.permute.xlu0 %499
    %vm501 = vcmask 252928
    %v502 = vsel %vm501, %v488, %v490
    %v503 = vsel %vm501, %v490, %v492
    %v504 = vsel %vm501, %v492, %v494
    %v505 = vsel %vm501, %v494, %v496
    %v506 = vsel %vm501, %v496, %v498
    %v507 = vsel %vm501, %v498, %v500
    %v515 = vmul.f32 %v450, %v488
    %v516 = vmul.f32 %v451, %v502
    %v517 = vmul.f32 %v452, %v503
    %v518 = vmul.f32 %v453, %v504
    %v519 = vmul.f32 %v454, %v505
    %v520 = vmul.f32 %v455, %v506
    %v521 = vmul.f32 %v456, %v507
    %529 = vrot.lane.b32.xlu0 %v515, 97
    %v530 = vpop.permute.xlu0 %529
    %531 = vrot.lane.b32.xlu0 %v516, 97
    %v532 = vpop.permute.xlu0 %531
    %533 = vrot.lane.b32.xlu0 %v517, 97
    %v534 = vpop.permute.xlu0 %533
    %535 = vrot.lane.b32.xlu0 %v518, 97
    %v536 = vpop.permute.xlu0 %535
    %537 = vrot.lane.b32.xlu0 %v519, 97
    %v538 = vpop.permute.xlu0 %537
    %539 = vrot.lane.b32.xlu0 %v520, 97
    %v540 = vpop.permute.xlu0 %539
    %541 = vrot.lane.b32.xlu0 %v521, 97
    %v542 = vpop.permute.xlu0 %541
    %vm543 = vcmask 793600
    %v544 = vsel %vm543, %v530, %v532
    %v545 = vsel %vm543, %v532, %v534
    %v546 = vsel %vm543, %v534, %v536
    %v547 = vsel %vm543, %v536, %v538
    %v548 = vsel %vm543, %v538, %v540
    %v549 = vsel %vm543, %v540, %v542
    %557 = vst [vmem:[#allocation3 + $0xa8] sm:$0xff] %v544
    %558 = vst [vmem:[#allocation3 + $0xb0] sm:$0xff] %v545
    %559 = vst [vmem:[#allocation3 + $0xb8] sm:$0xff] %v546
    %560 = vst [vmem:[#allocation3 + $0xc0] sm:$0xff] %v547
    %561 = vst [vmem:[#allocation3 + $0xc8] sm:$0xff] %v548
    %562 = vst [vmem:[#allocation3 + $0xd0] sm:$0xff] %v549
    %563 = vst.msk [vmem:[#allocation3 + $0xd8] sm:$0xff] %vm284, %v542
    %v564 = vld [vmem:[#allocation2] sm:$0xff]
    %v565 = vld [vmem:[#allocation2 + $0x8] sm:$0xff]
    %v566 = vld [vmem:[#allocation2 + $0x10] sm:$0xff]
    %v567 = vld [vmem:[#allocation2 + $0x18] sm:$0xff]
    %v568 = vld [vmem:[#allocation2 + $0x20] sm:$0xff]
    %v569 = vld [vmem:[#allocation2 + $0x28] sm:$0xff]
    %v570 = vld [vmem:[#allocation2 + $0x30] sm:$0xff]
    %578 = vrot.lane.b32.xlu0 %v564, 96
    %v579 = vpop.permute.xlu0 %578
    %580 = vrot.lane.b32.xlu0 %v565, 96
    %v581 = vpop.permute.xlu0 %580
    %582 = vrot.lane.b32.xlu0 %v566, 96
    %v583 = vpop.permute.xlu0 %582
    %584 = vrot.lane.b32.xlu0 %v567, 96
    %v585 = vpop.permute.xlu0 %584
    %586 = vrot.lane.b32.xlu0 %v568, 96
    %v587 = vpop.permute.xlu0 %586
    %588 = vrot.lane.b32.xlu0 %v569, 96
    %v589 = vpop.permute.xlu0 %588
    %590 = vrot.lane.b32.xlu0 %v570, 96
    %v591 = vpop.permute.xlu0 %590
    %vm592 = vcmask 785408
    %v593 = vsel %vm592, %v579, %v581
    %v594 = vsel %vm592, %v581, %v583
    %v595 = vsel %vm592, %v583, %v585
    %v596 = vsel %vm592, %v585, %v587
    %v597 = vsel %vm592, %v587, %v589
    %v598 = vsel %vm592, %v589, %v591
    %606 = vst [vmem:[#allocation3 + $0xe0] sm:$0xff] %v593
    %607 = vst [vmem:[#allocation3 + $0xe8] sm:$0xff] %v594
    %608 = vst [vmem:[#allocation3 + $0xf0] sm:$0xff] %v595
    %609 = vst [vmem:[#allocation3 + $0xf8] sm:$0xff] %v596
    %610 = vst [vmem:[#allocation3 + $0x100] sm:$0xff] %v597
    %611 = vst [vmem:[#allocation3 + $0x108] sm:$0xff] %v598
    %612 = vst.msk [vmem:[#allocation3 + $0x110] sm:$0xff] %vm284, %v591
    %v613 = vld [vmem:[#allocation2] sm:$0xff]
    %v614 = vld [vmem:[#allocation2 + $0x8] sm:$0xff]
    %v615 = vld [vmem:[#allocation2 + $0x10] sm:$0xff]
    %v616 = vld [vmem:[#allocation2 + $0x18] sm:$0xff]
    %v617 = vld [vmem:[#allocation2 + $0x20] sm:$0xff]
    %v618 = vld [vmem:[#allocation2 + $0x28] sm:$0xff]
    %v619 = vld [vmem:[#allocation2 + $0x30] sm:$0xff]
    %v620 = vld [vmem:[%s342] ss:$2 sm:$0x7f]
    %v622 = vlaneseq
    %v623 = vshrl.u32 %v622, 7
    %v624 = vsub.s32 0, %v623
    %v625 = vrot.slane %v620, %v624
    %v626 = vlaneseq
    %v627 = vshrl.u32 %v626, 7
    %v628 = vsub.s32 1, %v627
    %v629 = vrot.slane %v620, %v628
    %v630 = vlaneseq
    %v631 = vshrl.u32 %v630, 7
    %v632 = vsub.s32 2, %v631
    %v633 = vrot.slane %v620, %v632
    %v634 = vlaneseq
    %v635 = vshrl.u32 %v634, 7
    %v636 = vsub.s32 3, %v635
    %v637 = vrot.slane %v620, %v636
    %v638 = vlaneseq
    %v639 = vshrl.u32 %v638, 7
    %v640 = vsub.s32 4, %v639
    %v641 = vrot.slane %v620, %v640
    %v642 = vlaneseq
    %v643 = vshrl.u32 %v642, 7
    %v644 = vsub.s32 5, %v643
    %v645 = vrot.slane %v620, %v644
    %v646 = vlaneseq
    %v647 = vshrl.u32 %v646, 7
    %v648 = vsub.s32 6, %v647
    %v649 = vrot.slane %v620, %v648
    %650 = vrot.lane.b32.xlu0 %v625, 33
    %v651 = vpop.permute.xlu0 %650
    %652 = vrot.lane.b32.xlu0 %v629, 33
    %v653 = vpop.permute.xlu0 %652
    %654 = vrot.lane.b32.xlu0 %v633, 33
    %v655 = vpop.permute.xlu0 %654
    %656 = vrot.lane.b32.xlu0 %v637, 33
    %v657 = vpop.permute.xlu0 %656
    %658 = vrot.lane.b32.xlu0 %v641, 33
    %v659 = vpop.permute.xlu0 %658
    %660 = vrot.lane.b32.xlu0 %v645, 33
    %v661 = vpop.permute.xlu0 %660
    %662 = vrot.lane.b32.xlu0 %v649, 33
    %v663 = vpop.permute.xlu0 %662
    %vm664 = vcmask 269312
    %v665 = vsel %vm664, %v651, %v653
    %v666 = vsel %vm664, %v653, %v655
    %v667 = vsel %vm664, %v655, %v657
    %v668 = vsel %vm664, %v657, %v659
    %v669 = vsel %vm664, %v659, %v661
    %v670 = vsel %vm664, %v661, %v663
    %v678 = vmul.f32 %v613, %v651
    %v679 = vmul.f32 %v614, %v665
    %v680 = vmul.f32 %v615, %v666
    %v681 = vmul.f32 %v616, %v667
    %v682 = vmul.f32 %v617, %v668
    %v683 = vmul.f32 %v618, %v669
    %v684 = vmul.f32 %v619, %v670
    %692 = vrot.lane.b32.xlu0 %v678, 95
    %v693 = vpop.permute.xlu0 %692
    %694 = vrot.lane.b32.xlu0 %v679, 95
    %v695 = vpop.permute.xlu0 %694
    %696 = vrot.lane.b32.xlu0 %v680, 95
    %v697 = vpop.permute.xlu0 %696
    %698 = vrot.lane.b32.xlu0 %v681, 95
    %v699 = vpop.permute.xlu0 %698
    %700 = vrot.lane.b32.xlu0 %v682, 95
    %v701 = vpop.permute.xlu0 %700
    %702 = vrot.lane.b32.xlu0 %v683, 95
    %v703 = vpop.permute.xlu0 %702
    %704 = vrot.lane.b32.xlu0 %v684, 95
    %v705 = vpop.permute.xlu0 %704
    %vm706 = vcmask 777216
    %v707 = vsel %vm706, %v693, %v695
    %v708 = vsel %vm706, %v695, %v697
    %v709 = vsel %vm706, %v697, %v699
    %v710 = vsel %vm706, %v699, %v701
    %v711 = vsel %vm706, %v701, %v703
    %v712 = vsel %vm706, %v703, %v705
    %720 = vst [vmem:[#allocation3 + $0x118] sm:$0xff] %v707
    %721 = vst [vmem:[#allocation3 + $0x120] sm:$0xff] %v708
    %722 = vst [vmem:[#allocation3 + $0x128] sm:$0xff] %v709
    %723 = vst [vmem:[#allocation3 + $0x130] sm:$0xff] %v710
    %724 = vst [vmem:[#allocation3 + $0x138] sm:$0xff] %v711
    %725 = vst [vmem:[#allocation3 + $0x140] sm:$0xff] %v712
    %726 = vst.msk [vmem:[#allocation3 + $0x148] sm:$0xff] %vm284, %v705
    %v727 = vld [vmem:[#allocation2] sm:$0xff]
    %v728 = vld [vmem:[#allocation2 + $0x8] sm:$0xff]
    %v729 = vld [vmem:[#allocation2 + $0x10] sm:$0xff]
    %v730 = vld [vmem:[#allocation2 + $0x18] sm:$0xff]
    %v731 = vld [vmem:[#allocation2 + $0x20] sm:$0xff]
    %v732 = vld [vmem:[#allocation2 + $0x28] sm:$0xff]
    %v733 = vld [vmem:[#allocation2 + $0x30] sm:$0xff]
    %v734 = vld [vmem:[%s10] ss:$2 sm:$0x7f]
    %v736 = vlaneseq
    %v737 = vshrl.u32 %v736, 7
    %v738 = vsub.s32 0, %v737
    %v739 = vrot.slane %v734, %v738
    %v740 = vlaneseq
    %v741 = vshrl.u32 %v740, 7
    %v742 = vsub.s32 1, %v741
    %v743 = vrot.slane %v734, %v742
    %v744 = vlaneseq
    %v745 = vshrl.u32 %v744, 7
    %v746 = vsub.s32 2, %v745
    %v747 = vrot.slane %v734, %v746
    %v748 = vlaneseq
    %v749 = vshrl.u32 %v748, 7
    %v750 = vsub.s32 3, %v749
    %v751 = vrot.slane %v734, %v750
    %v752 = vlaneseq
    %v753 = vshrl.u32 %v752, 7
    %v754 = vsub.s32 4, %v753
    %v755 = vrot.slane %v734, %v754
    %v756 = vlaneseq
    %v757 = vshrl.u32 %v756, 7
    %v758 = vsub.s32 5, %v757
    %v759 = vrot.slane %v734, %v758
    %v760 = vlaneseq
    %v761 = vshrl.u32 %v760, 7
    %v762 = vsub.s32 6, %v761
    %v763 = vrot.slane %v734, %v762
    %764 = vrot.lane.b32.xlu0 %v739, 59
    %v765 = vpop.permute.xlu0 %764
    %766 = vrot.lane.b32.xlu0 %v743, 59
    %v767 = vpop.permute.xlu0 %766
    %768 = vrot.lane.b32.xlu0 %v747, 59
    %v769 = vpop.permute.xlu0 %768
    %770 = vrot.lane.b32.xlu0 %v751, 59
    %v771 = vpop.permute.xlu0 %770
    %772 = vrot.lane.b32.xlu0 %v755, 59
    %v773 = vpop.permute.xlu0 %772
    %774 = vrot.lane.b32.xlu0 %v759, 59
    %v775 = vpop.permute.xlu0 %774
    %776 = vrot.lane.b32.xlu0 %v763, 59
    %v777 = vpop.permute.xlu0 %776
    %vm778 = vcmask 482304
    %v779 = vsel %vm778, %v765, %v767
    %v780 = vsel %vm778, %v767, %v769
    %v781 = vsel %vm778, %v769, %v771
    %v782 = vsel %vm778, %v771, %v773
    %v783 = vsel %vm778, %v773, %v775
    %v784 = vsel %vm778, %v775, %v777
    %v792 = vmul.f32 %v727, %v765
    %v793 = vmul.f32 %v728, %v779
    %v794 = vmul.f32 %v729, %v780
    %v795 = vmul.f32 %v730, %v781
    %v796 = vmul.f32 %v731, %v782
    %v797 = vmul.f32 %v732, %v783
    %v798 = vmul.f32 %v733, %v784
    %806 = vrot.lane.b32.xlu0 %v792, 69
    %v807 = vpop.permute.xlu0 %806
    %808 = vrot.lane.b32.xlu0 %v793, 69
    %v809 = vpop.permute.xlu0 %808
    %810 = vrot.lane.b32.xlu0 %v794, 69
    %v811 = vpop.permute.xlu0 %810
    %812 = vrot.lane.b32.xlu0 %v795, 69
    %v813 = vpop.permute.xlu0 %812
    %814 = vrot.lane.b32.xlu0 %v796, 69
    %v815 = vpop.permute.xlu0 %814
    %816 = vrot.lane.b32.xlu0 %v797, 69
    %v817 = vpop.permute.xlu0 %816
    %818 = vrot.lane.b32.xlu0 %v798, 69
    %v819 = vpop.permute.xlu0 %818
    %vm820 = vcmask 564224
    %v821 = vsel %vm820, %v807, %v809
    %v822 = vsel %vm820, %v809, %v811
    %v823 = vsel %vm820, %v811, %v813
    %v824 = vsel %vm820, %v813, %v815
    %v825 = vsel %vm820, %v815, %v817
    %v826 = vsel %vm820, %v817, %v819
    %834 = vst [vmem:[#allocation3 + $0x150] sm:$0xff] %v821
    %835 = vst [vmem:[#allocation3 + $0x158] sm:$0xff] %v822
    %836 = vst [vmem:[#allocation3 + $0x160] sm:$0xff] %v823
    %837 = vst [vmem:[#allocation3 + $0x168] sm:$0xff] %v824
    %838 = vst [vmem:[#allocation3 + $0x170] sm:$0xff] %v825
    %839 = vst [vmem:[#allocation3 + $0x178] sm:$0xff] %v826
    %840 = vst.msk [vmem:[#allocation3 + $0x180] sm:$0xff] %vm284, %v819
    %v841 = vld [vmem:[#allocation2] sm:$0xff]
    %v842 = vld [vmem:[#allocation2 + $0x8] sm:$0xff]
    %v843 = vld [vmem:[#allocation2 + $0x10] sm:$0xff]
    %v844 = vld [vmem:[#allocation2 + $0x18] sm:$0xff]
    %v845 = vld [vmem:[#allocation2 + $0x20] sm:$0xff]
    %v846 = vld [vmem:[#allocation2 + $0x28] sm:$0xff]
    %v847 = vld [vmem:[#allocation2 + $0x30] sm:$0xff]
    %855 = vrot.lane.b32.xlu0 %v841, 68
    %v856 = vpop.permute.xlu0 %855
    %857 = vrot.lane.b32.xlu0 %v842, 68
    %v858 = vpop.permute.xlu0 %857
    %859 = vrot.lane.b32.xlu0 %v843, 68
    %v860 = vpop.permute.xlu0 %859
    %861 = vrot.lane.b32.xlu0 %v844, 68
    %v862 = vpop.permute.xlu0 %861
    %863 = vrot.lane.b32.xlu0 %v845, 68
    %v864 = vpop.permute.xlu0 %863
    %865 = vrot.lane.b32.xlu0 %v846, 68
    %v866 = vpop.permute.xlu0 %865
    %867 = vrot.lane.b32.xlu0 %v847, 68
    %v868 = vpop.permute.xlu0 %867
    %vm869 = vcmask 556032
    %v870 = vsel %vm869, %v856, %v858
    %v871 = vsel %vm869, %v858, %v860
    %v872 = vsel %vm869, %v860, %v862
    %v873 = vsel %vm869, %v862, %v864
    %v874 = vsel %vm869, %v864, %v866
    %v875 = vsel %vm869, %v866, %v868
    %883 = vst [vmem:[#allocation3 + $0x188] sm:$0xff] %v870
    %884 = vst [vmem:[#allocation3 + $0x190] sm:$0xff] %v871
    %885 = vst [vmem:[#allocation3 + $0x198] sm:$0xff] %v872
    %886 = vst [vmem:[#allocation3 + $0x1a0] sm:$0xff] %v873
    %887 = vst [vmem:[#allocation3 + $0x1a8] sm:$0xff] %v874
    %888 = vst [vmem:[#allocation3 + $0x1b0] sm:$0xff] %v875
    %889 = vst.msk [vmem:[#allocation3 + $0x1b8] sm:$0xff] %vm284, %v868
    %v890 = vld [vmem:[#allocation2] sm:$0xff]
    %v891 = vld [vmem:[#allocation2 + $0x8] sm:$0xff]
    %v892 = vld [vmem:[#allocation2 + $0x10] sm:$0xff]
    %v893 = vld [vmem:[#allocation2 + $0x18] sm:$0xff]
    %v894 = vld [vmem:[#allocation2 + $0x20] sm:$0xff]
    %v895 = vld [vmem:[#allocation2 + $0x28] sm:$0xff]
    %v896 = vld [vmem:[#allocation2 + $0x30] sm:$0xff]
    %v897 = vld [vmem:[%s342] ss:$2 sm:$0x7f]
    %v899 = vlaneseq
    %v900 = vshrl.u32 %v899, 7
    %v901 = vsub.s32 0, %v900
    %v902 = vrot.slane %v897, %v901
    %v903 = vlaneseq
    %v904 = vshrl.u32 %v903, 7
    %v905 = vsub.s32 1, %v904
    %v906 = vrot.slane %v897, %v905
    %v907 = vlaneseq
    %v908 = vshrl.u32 %v907, 7
    %v909 = vsub.s32 2, %v908
    %v910 = vrot.slane %v897, %v909
    %v911 = vlaneseq
    %v912 = vshrl.u32 %v911, 7
    %v913 = vsub.s32 3, %v912
    %v914 = vrot.slane %v897, %v913
    %v915 = vlaneseq
    %v916 = vshrl.u32 %v915, 7
    %v917 = vsub.s32 4, %v916
    %v918 = vrot.slane %v897, %v917
    %v919 = vlaneseq
    %v920 = vshrl.u32 %v919, 7
    %v921 = vsub.s32 5, %v920
    %v922 = vrot.slane %v897, %v921
    %v923 = vlaneseq
    %v924 = vshrl.u32 %v923, 7
    %v925 = vsub.s32 6, %v924
    %v926 = vrot.slane %v897, %v925
    %927 = vrot.lane.b32.xlu0 %v902, 61
    %v928 = vpop.permute.xlu0 %927
    %929 = vrot.lane.b32.xlu0 %v906, 61
    %v930 = vpop.permute.xlu0 %929
    %931 = vrot.lane.b32.xlu0 %v910, 61
    %v932 = vpop.permute.xlu0 %931
    %933 = vrot.lane.b32.xlu0 %v914, 61
    %v934 = vpop.permute.xlu0 %933
    %935 = vrot.lane.b32.xlu0 %v918, 61
    %v936 = vpop.permute.xlu0 %935
    %937 = vrot.lane.b32.xlu0 %v922, 61
    %v938 = vpop.permute.xlu0 %937
    %939 = vrot.lane.b32.xlu0 %v926, 61
    %v940 = vpop.permute.xlu0 %939
    %vm941 = vcmask 498688
    %v942 = vsel %vm941, %v928, %v930
    %v943 = vsel %vm941, %v930, %v932
    %v944 = vsel %vm941, %v932, %v934
    %v945 = vsel %vm941, %v934, %v936
    %v946 = vsel %vm941, %v936, %v938
    %v947 = vsel %vm941, %v938, %v940
    %v955 = vmul.f32 %v890, %v928
    %v956 = vmul.f32 %v891, %v942
    %v957 = vmul.f32 %v892, %v943
    %v958 = vmul.f32 %v893, %v944
    %v959 = vmul.f32 %v894, %v945
    %v960 = vmul.f32 %v895, %v946
    %v961 = vmul.f32 %v896, %v947
    %969 = vrot.lane.b32.xlu0 %v955, 67
    %v970 = vpop.permute.xlu0 %969
    %971 = vrot.lane.b32.xlu0 %v956, 67
    %v972 = vpop.permute.xlu0 %971
    %973 = vrot.lane.b32.xlu0 %v957, 67
    %v974 = vpop.permute.xlu0 %973
    %975 = vrot.lane.b32.xlu0 %v958, 67
    %v976 = vpop.permute.xlu0 %975
    %977 = vrot.lane.b32.xlu0 %v959, 67
    %v978 = vpop.permute.xlu0 %977
    %979 = vrot.lane.b32.xlu0 %v960, 67
    %v980 = vpop.permute.xlu0 %979
    %981 = vrot.lane.b32.xlu0 %v961, 67
    %v982 = vpop.permute.xlu0 %981
    %vm983 = vcmask 547840
    %v984 = vsel %vm983, %v970, %v972
    %v985 = vsel %vm983, %v972, %v974
    %v986 = vsel %vm983, %v974, %v976
    %v987 = vsel %vm983, %v976, %v978
    %v988 = vsel %vm983, %v978, %v980
    %v989 = vsel %vm983, %v980, %v982
    %997 = vst [vmem:[#allocation3 + $0x1c0] sm:$0xff] %v984
    %998 = vst [vmem:[#allocation3 + $0x1c8] sm:$0xff] %v985
    %999 = vst [vmem:[#allocation3 + $0x1d0] sm:$0xff] %v986
    %1000 = vst [vmem:[#allocation3 + $0x1d8] sm:$0xff] %v987
    %1001 = vst [vmem:[#allocation3 + $0x1e0] sm:$0xff] %v988
    %1002 = vst [vmem:[#allocation3 + $0x1e8] sm:$0xff] %v989
    %1003 = vst.msk [vmem:[#allocation3 + $0x1f0] sm:$0xff] %vm284, %v982
    %v1004 = vld [vmem:[%s1] sm:$0xf]
    %v1005 = vld [vmem:[%s1 + $0x4] sm:$0xf]
    %v1006 = vld [vmem:[%s1 + $0x8] sm:$0xf]
    %v1007 = vld [vmem:[%s1 + $0xc] sm:$0xf]
    %v1008 = vld [vmem:[%s1 + $0x10] sm:$0xf]
    %v1009 = vld [vmem:[%s1 + $0x14] sm:$0xf]
    %v1010 = vld [vmem:[%s1 + $0x18] sm:$0xf]
    %v1011 = vld [vmem:[%s1 + $0x1c] sm:$0xf]
    %v1012 = vld [vmem:[%s1 + $0x20] sm:$0xf]
    %v1013 = vld [vmem:[%s1 + $0x24] sm:$0xf]
    %v1014 = vld [vmem:[%s1 + $0x28] sm:$0xf]
    %v1015 = vld [vmem:[%s1 + $0x2c] sm:$0xf]
    %v1016 = vld [vmem:[%s1 + $0x30] sm:$0xf]
    %v1017 = vld [vmem:[%s1 + $0x34] sm:$0xf]
    %v1018 = vld [vmem:[%s1 + $0x38] sm:$0xf]
    %v1019 = vld [vmem:[%s1 + $0x3c] sm:$0xf]
    %v1020 = vld [vmem:[#allocation3] sm:$0xff]
    %v1021 = vld [vmem:[#allocation3 + $0x8] sm:$0xff]
    %v1022 = vld [vmem:[#allocation3 + $0x10] sm:$0xff]
    %v1023 = vld [vmem:[#allocation3 + $0x18] sm:$0xff]
    %v1024 = vld [vmem:[#allocation3 + $0x20] sm:$0xff]
    %v1025 = vld [vmem:[#allocation3 + $0x28] sm:$0xff]
    %v1026 = vld [vmem:[#allocation3 + $0x30] sm:$0xff]
    %v1027 = vld [vmem:[#allocation3 + $0x38] sm:$0xff]
    %v1028 = vld [vmem:[#allocation3 + $0x40] sm:$0xff]
    %v1029 = vld [vmem:[#allocation3 + $0x48] sm:$0xff]
    %v1030 = vld [vmem:[#allocation3 + $0x50] sm:$0xff]
    %v1031 = vld [vmem:[#allocation3 + $0x58] sm:$0xff]
    %v1032 = vld [vmem:[#allocation3 + $0x60] sm:$0xff]
    %v1033 = vld [vmem:[#allocation3 + $0x68] sm:$0xff]
    %v1034 = vld [vmem:[#allocation3 + $0x70] sm:$0xff]
    %v1035 = vld [vmem:[#allocation3 + $0x78] sm:$0xff]
    %v1036 = vld [vmem:[#allocation3 + $0x80] sm:$0xff]
    %v1037 = vld [vmem:[#allocation3 + $0x88] sm:$0xff]
    %v1038 = vld [vmem:[#allocation3 + $0x90] sm:$0xff]
    %v1039 = vld [vmem:[#allocation3 + $0x98] sm:$0xff]
    %v1040 = vld [vmem:[#allocation3 + $0xa0] sm:$0xff]
    %v1041 = vld [vmem:[#allocation3 + $0xa8] sm:$0xff]
    %v1042 = vld [vmem:[#allocation3 + $0xb0] sm:$0xff]
    %v1043 = vld [vmem:[#allocation3 + $0xb8] sm:$0xff]
    %v1044 = vld [vmem:[#allocation3 + $0xc0] sm:$0xff]
    %v1045 = vld [vmem:[#allocation3 + $0xc8] sm:$0xff]
    %v1046 = vld [vmem:[#allocation3 + $0xd0] sm:$0xff]
    %v1047 = vld [vmem:[#allocation3 + $0xd8] sm:$0xff]
    %v1048 = vld [vmem:[#allocation3 + $0xe0] sm:$0xff]
    %v1049 = vld [vmem:[#allocation3 + $0xe8] sm:$0xff]
    %v1050 = vld [vmem:[#allocation3 + $0xf0] sm:$0xff]
    %v1051 = vld [vmem:[#allocation3 + $0xf8] sm:$0xff]
    %v1052 = vld [vmem:[#allocation3 + $0x100] sm:$0xff]
    %v1053 = vld [vmem:[#allocation3 + $0x108] sm:$0xff]
    %v1054 = vld [vmem:[#allocation3 + $0x110] sm:$0xff]
    %v1055 = vld [vmem:[#allocation3 + $0x118] sm:$0xff]
    %v1056 = vld [vmem:[#allocation3 + $0x120] sm:$0xff]
    %v1057 = vld [vmem:[#allocation3 + $0x128] sm:$0xff]
    %v1058 = vld [vmem:[#allocation3 + $0x130] sm:$0xff]
    %v1059 = vld [vmem:[#allocation3 + $0x138] sm:$0xff]
    %v1060 = vld [vmem:[#allocation3 + $0x140] sm:$0xff]
    %v1061 = vld [vmem:[#allocation3 + $0x148] sm:$0xff]
    %v1062 = vld [vmem:[#allocation3 + $0x150] sm:$0xff]
    %v1063 = vld [vmem:[#allocation3 + $0x158] sm:$0xff]
    %v1064 = vld [vmem:[#allocation3 + $0x160] sm:$0xff]
    %v1065 = vld [vmem:[#allocation3 + $0x168] sm:$0xff]
    %v1066 = vld [vmem:[#allocation3 + $0x170] sm:$0xff]
    %v1067 = vld [vmem:[#allocation3 + $0x178] sm:$0xff]
    %v1068 = vld [vmem:[#allocation3 + $0x180] sm:$0xff]
    %v1069 = vld [vmem:[#allocation3 + $0x188] sm:$0xff]
    %v1070 = vld [vmem:[#allocation3 + $0x190] sm:$0xff]
    %v1071 = vld [vmem:[#allocation3 + $0x198] sm:$0xff]
    %v1072 = vld [vmem:[#allocation3 + $0x1a0] sm:$0xff]
    %v1073 = vld [vmem:[#allocation3 + $0x1a8] sm:$0xff]
    %v1074 = vld [vmem:[#allocation3 + $0x1b0] sm:$0xff]
    %v1075 = vld [vmem:[#allocation3 + $0x1b8] sm:$0xff]
    %v1076 = vld [vmem:[#allocation3 + $0x1c0] sm:$0xff]
    %v1077 = vld [vmem:[#allocation3 + $0x1c8] sm:$0xff]
    %v1078 = vld [vmem:[#allocation3 + $0x1d0] sm:$0xff]
    %v1079 = vld [vmem:[#allocation3 + $0x1d8] sm:$0xff]
    %v1080 = vld [vmem:[#allocation3 + $0x1e0] sm:$0xff]
    %v1081 = vld [vmem:[#allocation3 + $0x1e8] sm:$0xff]
    %v1082 = vld [vmem:[#allocation3 + $0x1f0] sm:$0xff]
    %v1083 = vpack.c.bf16 %v1027, %v1020
    %v1084 = vpack.c.bf16 %v1028, %v1021
    %v1085 = vpack.c.bf16 %v1029, %v1022
    %v1086 = vpack.c.bf16 %v1030, %v1023
    %v1087 = vpack.c.bf16 %v1031, %v1024
    %v1088 = vpack.c.bf16 %v1032, %v1025
    %v1089 = vpack.c.bf16 %v1033, %v1026
    %v1090 = vpack.c.bf16 %v1041, %v1034
    %v1091 = vpack.c.bf16 %v1042, %v1035
    %v1092 = vpack.c.bf16 %v1043, %v1036
    %v1093 = vpack.c.bf16 %v1044, %v1037
    %v1094 = vpack.c.bf16 %v1045, %v1038
    %v1095 = vpack.c.bf16 %v1046, %v1039
    %v1096 = vpack.c.bf16 %v1047, %v1040
    %v1097 = vpack.c.bf16 %v1055, %v1048
    %v1098 = vpack.c.bf16 %v1056, %v1049
    %v1099 = vpack.c.bf16 %v1057, %v1050
    %v1100 = vpack.c.bf16 %v1058, %v1051
    %v1101 = vpack.c.bf16 %v1059, %v1052
    %v1102 = vpack.c.bf16 %v1060, %v1053
    %v1103 = vpack.c.bf16 %v1061, %v1054
    %v1104 = vpack.c.bf16 %v1069, %v1062
    %v1105 = vpack.c.bf16 %v1070, %v1063
    %v1106 = vpack.c.bf16 %v1071, %v1064
    %v1107 = vpack.c.bf16 %v1072, %v1065
    %v1108 = vpack.c.bf16 %v1073, %v1066
    %v1109 = vpack.c.bf16 %v1074, %v1067
    %v1110 = vpack.c.bf16 %v1075, %v1068
    %v1111 = vpack.c.bf16 %v1076, %v1076
    %v1112 = vpack.c.bf16 %v1077, %v1077
    %v1113 = vpack.c.bf16 %v1078, %v1078
    %v1114 = vpack.c.bf16 %v1079, %v1079
    %v1115 = vpack.c.bf16 %v1080, %v1080
    %v1116 = vpack.c.bf16 %v1081, %v1081
    %v1117 = vpack.c.bf16 %v1082, %v1082
    %v1118 = vld [vmem:[%s2] sm:$0xff]
    %v1119 = vld [vmem:[%s2 + $0x8] sm:$0xff]
    %v1120 = vld [vmem:[%s2 + $0x10] sm:$0xff]
    %v1121 = vld [vmem:[%s2 + $0x18] sm:$0xff]
    %v1122 = vld [vmem:[%s2 + $0x20] sm:$0xff]
    %v1123 = vld [vmem:[%s2 + $0x28] sm:$0xff]
    %v1124 = vld [vmem:[%s2 + $0x30] sm:$0xff]
    %v1125 = vld [vmem:[%s2 + $0x38] sm:$0xff]
    %v1126 = vld [vmem:[%s2 + $0x40] sm:$0xff]
    %v1127 = vld [vmem:[%s2 + $0x48] sm:$0xff]
    %v1128 = vld [vmem:[%s2 + $0x50] sm:$0xff]
    %v1129 = vld [vmem:[%s2 + $0x58] sm:$0xff]
    %v1130 = vld [vmem:[%s2 + $0x60] sm:$0xff]
    %v1131 = vld [vmem:[%s2 + $0x68] sm:$0xff]
    %v1132 = vld [vmem:[%s2 + $0x70] sm:$0xff]
    %v1133 = vld [vmem:[%s2 + $0x78] sm:$0xff]
    %1135 = vset.pattern.permute.xlu0 0
    %1136 = vperm.xlu0 %1135, %v1118
    %v1137 = vpop.permute.xlu0 %1136
    %1140 = vset.pattern.permute.xlu0 0
    %1141 = vperm.xlu0 %1140, %v1119
    %v1142 = vpop.permute.xlu0 %1141
    %1145 = vset.pattern.permute.xlu0 0
    %1146 = vperm.xlu0 %1145, %v1120
    %v1147 = vpop.permute.xlu0 %1146
    %1150 = vset.pattern.permute.xlu0 0
    %1151 = vperm.xlu0 %1150, %v1121
    %v1152 = vpop.permute.xlu0 %1151
    %1155 = vset.pattern.permute.xlu0 0
    %1156 = vperm.xlu0 %1155, %v1122
    %v1157 = vpop.permute.xlu0 %1156
    %1160 = vset.pattern.permute.xlu0 0
    %1161 = vperm.xlu0 %1160, %v1123
    %v1162 = vpop.permute.xlu0 %1161
    %1165 = vset.pattern.permute.xlu0 0
    %1166 = vperm.xlu0 %1165, %v1124
    %v1167 = vpop.permute.xlu0 %1166
    %1170 = vset.pattern.permute.xlu0 0
    %1171 = vperm.xlu0 %1170, %v1125
    %v1172 = vpop.permute.xlu0 %1171
    %1175 = vset.pattern.permute.xlu0 0
    %1176 = vperm.xlu0 %1175, %v1126
    %v1177 = vpop.permute.xlu0 %1176
    %1180 = vset.pattern.permute.xlu0 0
    %1181 = vperm.xlu0 %1180, %v1127
    %v1182 = vpop.permute.xlu0 %1181
    %1185 = vset.pattern.permute.xlu0 0
    %1186 = vperm.xlu0 %1185, %v1128
    %v1187 = vpop.permute.xlu0 %1186
    %1190 = vset.pattern.permute.xlu0 0
    %1191 = vperm.xlu0 %1190, %v1129
    %v1192 = vpop.permute.xlu0 %1191
    %1195 = vset.pattern.permute.xlu0 0
    %1196 = vperm.xlu0 %1195, %v1130
    %v1197 = vpop.permute.xlu0 %1196
    %1200 = vset.pattern.permute.xlu0 0
    %1201 = vperm.xlu0 %1200, %v1131
    %v1202 = vpop.permute.xlu0 %1201
    %1205 = vset.pattern.permute.xlu0 0
    %1206 = vperm.xlu0 %1205, %v1132
    %v1207 = vpop.permute.xlu0 %1206
    %1210 = vset.pattern.permute.xlu0 0
    %1211 = vperm.xlu0 %1210, %v1133
    %v1212 = vpop.permute.xlu0 %1211
    %v1230 = vunpack.c.l.b16 %v1004
    %v1231 = vunpack.c.l.b16 %v1005
    %v1232 = vunpack.c.l.b16 %v1006
    %v1233 = vunpack.c.l.b16 %v1007
    %v1234 = vunpack.c.l.b16 %v1008
    %v1235 = vunpack.c.l.b16 %v1009
    %v1236 = vunpack.c.l.b16 %v1010
    %v1237 = vunpack.c.l.b16 %v1011
    %v1238 = vunpack.c.l.b16 %v1012
    %v1239 = vunpack.c.l.b16 %v1013
    %v1240 = vunpack.c.l.b16 %v1014
    %v1241 = vunpack.c.l.b16 %v1015
    %v1242 = vunpack.c.l.b16 %v1016
    %v1243 = vunpack.c.l.b16 %v1017
    %v1244 = vunpack.c.l.b16 %v1018
    %v1245 = vunpack.c.l.b16 %v1019
    %v1246 = vpack.c.b16 %v1231, %v1230
    %v1247 = vpack.c.b16 %v1233, %v1232
    %v1248 = vpack.c.b16 %v1235, %v1234
    %v1249 = vpack.c.b16 %v1237, %v1236
    %v1250 = vpack.c.b16 %v1239, %v1238
    %v1251 = vpack.c.b16 %v1241, %v1240
    %v1252 = vpack.c.b16 %v1243, %v1242
    %v1253 = vpack.c.b16 %v1245, %v1244
    %vm1254 = vcmask 588800
    %v1256 = vsel %vm1254, %v1246, 0
    %v1259 = vsel %vm1254, %v1247, 0
    %v1262 = vsel %vm1254, %v1248, 0
    %v1265 = vsel %vm1254, %v1249, 0
    %v1268 = vsel %vm1254, %v1250, 0
    %v1271 = vsel %vm1254, %v1251, 0
    %v1274 = vsel %vm1254, %v1252, 0
    %v1277 = vsel %vm1254, %v1253, 0
    %vm1279 = vcmask 1043456
    %v1281 = vsel %vm1279, %v1111, 0
    %v1284 = vsel %vm1279, %v1112, 0
    %v1287 = vsel %vm1279, %v1113, 0
    %v1290 = vsel %vm1279, %v1114, 0
    %v1293 = vsel %vm1279, %v1115, 0
    %v1296 = vsel %vm1279, %v1116, 0
    %v1299 = vsel %vm1279, %v1117, 0
    %1301 = vmatprep.subr.bf16.mxu0 %v1084
    %1302 = vmatpush1.bf16.msra.mxu0 %v1083
    %1303 = vmatprep.subr.bf16.mxu0 %v1091
    %1304 = vmatpush1.bf16.msra.mxu0 %v1090
    %1305 = vmatprep.subr.bf16.mxu0 %v1098
    %1306 = vmatpush1.bf16.msra.mxu0 %v1097
    %1307 = vmatprep.subr.bf16.mxu0 %v1105
    %1308 = vmatpush1.bf16.msra.mxu0 %v1104
    %1309 = vmatprep.subr.bf16.mxu0 %v1284
    %1310 = vmatpush1.bf16.msra.mxu0 %v1281
    %1311 = vmatprep.subr.bf16.mxu0 0
    %1312 = vmatpush1.bf16.msra.mxu0 0
    %1313 = vmatprep.subr.bf16.mxu0 0
    %1314 = vmatpush1.bf16.msra.mxu0 0
    %1315 = vmatprep.subr.bf16.mxu0 0
    %1316 = vmatpush1.bf16.msra.mxu0 0
    %1317 = vmatprep.subr.bf16.mxu0 0
    %1318 = vmatpush1.bf16.msra.mxu0 0
    %1319 = vmatprep.subr.bf16.mxu0 0
    %1320 = vmatpush1.bf16.msra.mxu0 0
    %1321 = vmatprep.subr.bf16.mxu0 0
    %1322 = vmatpush1.bf16.msra.mxu0 0
    %1323 = vmatprep.subr.bf16.mxu0 0
    %1324 = vmatpush1.bf16.msra.mxu0 0
    %1325 = vmatprep.subr.bf16.mxu0 0
    %1326 = vmatpush1.bf16.msra.mxu0 0
    %1327 = vmatprep.subr.bf16.mxu0 0
    %1328 = vmatpush1.bf16.msra.mxu0 0
    %1329 = vmatprep.subr.bf16.mxu0 0
    %1330 = vmatpush1.bf16.msra.mxu0 0
    %1331 = vmatprep.subr.bf16.mxu0 0
    %1332 = vmatpush1.bf16.msra.mxu0 0
    %1333 = vmatprep.mubr.bf16.mxu0 0
    %1334 = vmatmul.mubr.bf16.gmra.mrb[0].mxu0 %v1256
    %v1335 = vpop.f32.mrb[0].mxu0
    %v1336 = vadd.f32 %v1137, %v1335
    %v1337 = vpop.f32.mrb[0].mxu0
    %v1338 = vadd.f32 %v1137, %v1337
    %v1339 = vpop.f32.mrb[0].mxu0
    %v1340 = vadd.f32 %v1142, %v1339
    %v1341 = vpop.f32.mrb[0].mxu0
    %v1342 = vadd.f32 %v1142, %v1341
    %1343 = vmatprep.mubr.bf16.mxu0 0
    %1344 = vmatmul.mubr.bf16.gmra.mrb[0].mxu0 %v1259
    %v1345 = vpop.f32.mrb[0].mxu0
    %v1346 = vadd.f32 %v1147, %v1345
    %v1347 = vpop.f32.mrb[0].mxu0
    %v1348 = vadd.f32 %v1147, %v1347
    %v1349 = vpop.f32.mrb[0].mxu0
    %v1350 = vadd.f32 %v1152, %v1349
    %v1351 = vpop.f32.mrb[0].mxu0
    %v1352 = vadd.f32 %v1152, %v1351
    %1353 = vmatprep.mubr.bf16.mxu0 0
    %1354 = vmatmul.mubr.bf16.gmra.mrb[0].mxu0 %v1262
    %v1355 = vpop.f32.mrb[0].mxu0
    %v1356 = vadd.f32 %v1157, %v1355
    %v1357 = vpop.f32.mrb[0].mxu0
    %v1358 = vadd.f32 %v1157, %v1357
    %v1359 = vpop.f32.mrb[0].mxu0
    %v1360 = vadd.f32 %v1162, %v1359
    %v1361 = vpop.f32.mrb[0].mxu0
    %v1362 = vadd.f32 %v1162, %v1361
    %1363 = vmatprep.mubr.bf16.mxu0 0
    %1364 = vmatmul.mubr.bf16.gmra.mrb[0].mxu0 %v1265
    %v1365 = vpop.f32.mrb[0].mxu0
    %v1366 = vadd.f32 %v1167, %v1365
    %v1367 = vpop.f32.mrb[0].mxu0
    %v1368 = vadd.f32 %v1167, %v1367
    %v1369 = vpop.f32.mrb[0].mxu0
    %v1370 = vadd.f32 %v1172, %v1369
    %v1371 = vpop.f32.mrb[0].mxu0
    %v1372 = vadd.f32 %v1172, %v1371
    %1373 = vmatprep.mubr.bf16.mxu0 0
    %1374 = vmatmul.mubr.bf16.gmra.mrb[0].mxu0 %v1268
    %v1375 = vpop.f32.mrb[0].mxu0
    %v1376 = vadd.f32 %v1177, %v1375
    %v1377 = vpop.f32.mrb[0].mxu0
    %v1378 = vadd.f32 %v1177, %v1377
    %v1379 = vpop.f32.mrb[0].mxu0
    %v1380 = vadd.f32 %v1182, %v1379
    %v1381 = vpop.f32.mrb[0].mxu0
    %v1382 = vadd.f32 %v1182, %v1381
    %1383 = vmatprep.mubr.bf16.mxu0 0
    %1384 = vmatmul.mubr.bf16.gmra.mrb[0].mxu0 %v1271
    %v1385 = vpop.f32.mrb[0].mxu0
    %v1386 = vadd.f32 %v1187, %v1385
    %v1387 = vpop.f32.mrb[0].mxu0
    %v1388 = vadd.f32 %v1187, %v1387
    %v1389 = vpop.f32.mrb[0].mxu0
    %v1390 = vadd.f32 %v1192, %v1389
    %v1391 = vpop.f32.mrb[0].mxu0
    %v1392 = vadd.f32 %v1192, %v1391
    %1393 = vmatprep.mubr.bf16.mxu0 0
    %1394 = vmatmul.mubr.bf16.gmra.mrb[0].mxu0 %v1274
    %v1395 = vpop.f32.mrb[0].mxu0
    %v1396 = vadd.f32 %v1197, %v1395
    %v1397 = vpop.f32.mrb[0].mxu0
    %v1398 = vadd.f32 %v1197, %v1397
    %v1399 = vpop.f32.mrb[0].mxu0
    %v1400 = vadd.f32 %v1202, %v1399
    %v1401 = vpop.f32.mrb[0].mxu0
    %v1402 = vadd.f32 %v1202, %v1401
    %1403 = vmatprep.mubr.bf16.mxu0 0
    %1404 = vmatmul.mubr.bf16.gmra.mrb[0].mxu0 %v1277
    %v1405 = vpop.f32.mrb[0].mxu0
    %v1406 = vadd.f32 %v1207, %v1405
    %v1407 = vpop.f32.mrb[0].mxu0
    %v1408 = vadd.f32 %v1207, %v1407
    %v1409 = vpop.f32.mrb[0].mxu0
    %v1410 = vadd.f32 %v1212, %v1409
    %v1411 = vpop.f32.mrb[0].mxu0
    %v1412 = vadd.f32 %v1212, %v1411
    %1413 = vdwg.mxu0
    %1414 = vmatprep.subr.bf16.mxu0 %v1086
    %1415 = vmatpush1.bf16.msra.mxu0 %v1085
    %1416 = vmatprep.subr.bf16.mxu0 %v1093
    %1417 = vmatpush1.bf16.msra.mxu0 %v1092
    %1418 = vmatprep.subr.bf16.mxu0 %v1100
    %1419 = vmatpush1.bf16.msra.mxu0 %v1099
    %1420 = vmatprep.subr.bf16.mxu0 %v1107
    %1421 = vmatpush1.bf16.msra.mxu0 %v1106
    %1422 = vmatprep.subr.bf16.mxu0 %v1290
    %1423 = vmatpush1.bf16.msra.mxu0 %v1287
    %1424 = vmatprep.subr.bf16.mxu0 0
    %1425 = vmatpush1.bf16.msra.mxu0 0
    %1426 = vmatprep.subr.bf16.mxu0 0
    %1427 = vmatpush1.bf16.msra.mxu0 0
    %1428 = vmatprep.subr.bf16.mxu0 0
    %1429 = vmatpush1.bf16.msra.mxu0 0
    %1430 = vmatprep.subr.bf16.mxu0 0
    %1431 = vmatpush1.bf16.msra.mxu0 0
    %1432 = vmatprep.subr.bf16.mxu0 0
    %1433 = vmatpush1.bf16.msra.mxu0 0
    %1434 = vmatprep.subr.bf16.mxu0 0
    %1435 = vmatpush1.bf16.msra.mxu0 0
    %1436 = vmatprep.subr.bf16.mxu0 0
    %1437 = vmatpush1.bf16.msra.mxu0 0
    %1438 = vmatprep.subr.bf16.mxu0 0
    %1439 = vmatpush1.bf16.msra.mxu0 0
    %1440 = vmatprep.subr.bf16.mxu0 0
    %1441 = vmatpush1.bf16.msra.mxu0 0
    %1442 = vmatprep.subr.bf16.mxu0 0
    %1443 = vmatpush1.bf16.msra.mxu0 0
    %1444 = vmatprep.subr.bf16.mxu0 0
    %1445 = vmatpush1.bf16.msra.mxu0 0
    %1446 = vmatprep.mubr.bf16.mxu0 0
    %1447 = vmatmul.mubr.bf16.gmra.mrb[0].mxu0 %v1256
    %v1448 = vpop.f32.mrb[0].mxu0
    %v1449 = vadd.f32 %v1137, %v1448
    %v1450 = vpop.f32.mrb[0].mxu0
    %v1451 = vadd.f32 %v1137, %v1450
    %v1452 = vpop.f32.mrb[0].mxu0
    %v1453 = vadd.f32 %v1142, %v1452
    %v1454 = vpop.f32.mrb[0].mxu0
    %v1455 = vadd.f32 %v1142, %v1454
    %1456 = vmatprep.mubr.bf16.mxu0 0
    %1457 = vmatmul.mubr.bf16.gmra.mrb[0].mxu0 %v1259
    %v1458 = vpop.f32.mrb[0].mxu0
    %v1459 = vadd.f32 %v1147, %v1458
    %v1460 = vpop.f32.mrb[0].mxu0
    %v1461 = vadd.f32 %v1147, %v1460
    %v1462 = vpop.f32.mrb[0].mxu0
    %v1463 = vadd.f32 %v1152, %v1462
    %v1464 = vpop.f32.mrb[0].mxu0
    %v1465 = vadd.f32 %v1152, %v1464
    %1466 = vmatprep.mubr.bf16.mxu0 0
    %1467 = vmatmul.mubr.bf16.gmra.mrb[0].mxu0 %v1262
    %v1468 = vpop.f32.mrb[0].mxu0
    %v1469 = vadd.f32 %v1157, %v1468
    %v1470 = vpop.f32.mrb[0].mxu0
    %v1471 = vadd.f32 %v1157, %v1470
    %v1472 = vpop.f32.mrb[0].mxu0
    %v1473 = vadd.f32 %v1162, %v1472
    %v1474 = vpop.f32.mrb[0].mxu0
    %v1475 = vadd.f32 %v1162, %v1474
    %1476 = vmatprep.mubr.bf16.mxu0 0
    %1477 = vmatmul.mubr.bf16.gmra.mrb[0].mxu0 %v1265
    %v1478 = vpop.f32.mrb[0].mxu0
    %v1479 = vadd.f32 %v1167, %v1478
    %v1480 = vpop.f32.mrb[0].mxu0
    %v1481 = vadd.f32 %v1167, %v1480
    %v1482 = vpop.f32.mrb[0].mxu0
    %v1483 = vadd.f32 %v1172, %v1482
    %v1484 = vpop.f32.mrb[0].mxu0
    %v1485 = vadd.f32 %v1172, %v1484
    %1486 = vmatprep.mubr.bf16.mxu0 0
    %1487 = vmatmul.mubr.bf16.gmra.mrb[0].mxu0 %v1268
    %v1488 = vpop.f32.mrb[0].mxu0
    %v1489 = vadd.f32 %v1177, %v1488
    %v1490 = vpop.f32.mrb[0].mxu0
    %v1491 = vadd.f32 %v1177, %v1490
    %v1492 = vpop.f32.mrb[0].mxu0
    %v1493 = vadd.f32 %v1182, %v1492
    %v1494 = vpop.f32.mrb[0].mxu0
    %v1495 = vadd.f32 %v1182, %v1494
    %1496 = vmatprep.mubr.bf16.mxu0 0
    %1497 = vmatmul.mubr.bf16.gmra.mrb[0].mxu0 %v1271
    %v1498 = vpop.f32.mrb[0].mxu0
    %v1499 = vadd.f32 %v1187, %v1498
    %v1500 = vpop.f32.mrb[0].mxu0
    %v1501 = vadd.f32 %v1187, %v1500
    %v1502 = vpop.f32.mrb[0].mxu0
    %v1503 = vadd.f32 %v1192, %v1502
    %v1504 = vpop.f32.mrb[0].mxu0
    %v1505 = vadd.f32 %v1192, %v1504
    %1506 = vmatprep.mubr.bf16.mxu0 0
    %1507 = vmatmul.mubr.bf16.gmra.mrb[0].mxu0 %v1274
    %v1508 = vpop.f32.mrb[0].mxu0
    %v1509 = vadd.f32 %v1197, %v1508
    %v1510 = vpop.f32.mrb[0].mxu0
    %v1511 = vadd.f32 %v1197, %v1510
    %v1512 = vpop.f32.mrb[0].mxu0
    %v1513 = vadd.f32 %v1202, %v1512
    %v1514 = vpop.f32.mrb[0].mxu0
    %v1515 = vadd.f32 %v1202, %v1514
    %1516 = vmatprep.mubr.bf16.mxu0 0
    %1517 = vmatmul.mubr.bf16.gmra.mrb[0].mxu0 %v1277
    %v1518 = vpop.f32.mrb[0].mxu0
    %v1519 = vadd.f32 %v1207, %v1518
    %v1520 = vpop.f32.mrb[0].mxu0
    %v1521 = vadd.f32 %v1207, %v1520
    %v1522 = vpop.f32.mrb[0].mxu0
    %v1523 = vadd.f32 %v1212, %v1522
    %v1524 = vpop.f32.mrb[0].mxu0
    %v1525 = vadd.f32 %v1212, %v1524
    %1526 = vdwg.mxu0
    %1527 = vmatprep.subr.bf16.mxu0 %v1088
    %1528 = vmatpush1.bf16.msra.mxu0 %v1087
    %1529 = vmatprep.subr.bf16.mxu0 %v1095
    %1530 = vmatpush1.bf16.msra.mxu0 %v1094
    %1531 = vmatprep.subr.bf16.mxu0 %v1102
    %1532 = vmatpush1.bf16.msra.mxu0 %v1101
    %1533 = vmatprep.subr.bf16.mxu0 %v1109
    %1534 = vmatpush1.bf16.msra.mxu0 %v1108
    %1535 = vmatprep.subr.bf16.mxu0 %v1296
    %1536 = vmatpush1.bf16.msra.mxu0 %v1293
    %1537 = vmatprep.subr.bf16.mxu0 0
    %1538 = vmatpush1.bf16.msra.mxu0 0
    %1539 = vmatprep.subr.bf16.mxu0 0
    %1540 = vmatpush1.bf16.msra.mxu0 0
    %1541 = vmatprep.subr.bf16.mxu0 0
    %1542 = vmatpush1.bf16.msra.mxu0 0
    %1543 = vmatprep.subr.bf16.mxu0 0
    %1544 = vmatpush1.bf16.msra.mxu0 0
    %1545 = vmatprep.subr.bf16.mxu0 0
    %1546 = vmatpush1.bf16.msra.mxu0 0
    %1547 = vmatprep.subr.bf16.mxu0 0
    %1548 = vmatpush1.bf16.msra.mxu0 0
    %1549 = vmatprep.subr.bf16.mxu0 0
    %1550 = vmatpush1.bf16.msra.mxu0 0
    %1551 = vmatprep.subr.bf16.mxu0 0
    %1552 = vmatpush1.bf16.msra.mxu0 0
    %1553 = vmatprep.subr.bf16.mxu0 0
    %1554 = vmatpush1.bf16.msra.mxu0 0
    %1555 = vmatprep.subr.bf16.mxu0 0
    %1556 = vmatpush1.bf16.msra.mxu0 0
    %1557 = vmatprep.subr.bf16.mxu0 0
    %1558 = vmatpush1.bf16.msra.mxu0 0
    %1559 = vmatprep.mubr.bf16.mxu0 0
    %1560 = vmatmul.mubr.bf16.gmra.mrb[0].mxu0 %v1256
    %v1561 = vpop.f32.mrb[0].mxu0
    %v1562 = vadd.f32 %v1137, %v1561
    %v1563 = vpop.f32.mrb[0].mxu0
    %v1564 = vadd.f32 %v1137, %v1563
    %v1565 = vpop.f32.mrb[0].mxu0
    %v1566 = vadd.f32 %v1142, %v1565
    %v1567 = vpop.f32.mrb[0].mxu0
    %v1568 = vadd.f32 %v1142, %v1567
    %1569 = vmatprep.mubr.bf16.mxu0 0
    %1570 = vmatmul.mubr.bf16.gmra.mrb[0].mxu0 %v1259
    %v1571 = vpop.f32.mrb[0].mxu0
    %v1572 = vadd.f32 %v1147, %v1571
    %v1573 = vpop.f32.mrb[0].mxu0
    %v1574 = vadd.f32 %v1147, %v1573
    %v1575 = vpop.f32.mrb[0].mxu0
    %v1576 = vadd.f32 %v1152, %v1575
    %v1577 = vpop.f32.mrb[0].mxu0
    %v1578 = vadd.f32 %v1152, %v1577
    %1579 = vmatprep.mubr.bf16.mxu0 0
    %1580 = vmatmul.mubr.bf16.gmra.mrb[0].mxu0 %v1262
    %v1581 = vpop.f32.mrb[0].mxu0
    %v1582 = vadd.f32 %v1157, %v1581
    %v1583 = vpop.f32.mrb[0].mxu0
    %v1584 = vadd.f32 %v1157, %v1583
    %v1585 = vpop.f32.mrb[0].mxu0
    %v1586 = vadd.f32 %v1162, %v1585
    %v1587 = vpop.f32.mrb[0].mxu0
    %v1588 = vadd.f32 %v1162, %v1587
    %1589 = vmatprep.mubr.bf16.mxu0 0
    %1590 = vmatmul.mubr.bf16.gmra.mrb[0].mxu0 %v1265
    %v1591 = vpop.f32.mrb[0].mxu0
    %v1592 = vadd.f32 %v1167, %v1591
    %v1593 = vpop.f32.mrb[0].mxu0
    %v1594 = vadd.f32 %v1167, %v1593
    %v1595 = vpop.f32.mrb[0].mxu0
    %v1596 = vadd.f32 %v1172, %v1595
    %v1597 = vpop.f32.mrb[0].mxu0
    %v1598 = vadd.f32 %v1172, %v1597
    %1599 = vmatprep.mubr.bf16.mxu0 0
    %1600 = vmatmul.mubr.bf16.gmra.mrb[0].mxu0 %v1268
    %v1601 = vpop.f32.mrb[0].mxu0
    %v1602 = vadd.f32 %v1177, %v1601
    %v1603 = vpop.f32.mrb[0].mxu0
    %v1604 = vadd.f32 %v1177, %v1603
    %v1605 = vpop.f32.mrb[0].mxu0
    %v1606 = vadd.f32 %v1182, %v1605
    %v1607 = vpop.f32.mrb[0].mxu0
    %v1608 = vadd.f32 %v1182, %v1607
    %1609 = vmatprep.mubr.bf16.mxu0 0
    %1610 = vmatmul.mubr.bf16.gmra.mrb[0].mxu0 %v1271
    %v1611 = vpop.f32.mrb[0].mxu0
    %v1612 = vadd.f32 %v1187, %v1611
    %v1613 = vpop.f32.mrb[0].mxu0
    %v1614 = vadd.f32 %v1187, %v1613
    %v1615 = vpop.f32.mrb[0].mxu0
    %v1616 = vadd.f32 %v1192, %v1615
    %v1617 = vpop.f32.mrb[0].mxu0
    %v1618 = vadd.f32 %v1192, %v1617
    %1619 = vmatprep.mubr.bf16.mxu0 0
    %1620 = vmatmul.mubr.bf16.gmra.mrb[0].mxu0 %v1274
    %v1621 = vpop.f32.mrb[0].mxu0
    %v1622 = vadd.f32 %v1197, %v1621
    %v1623 = vpop.f32.mrb[0].mxu0
    %v1624 = vadd.f32 %v1197, %v1623
    %v1625 = vpop.f32.mrb[0].mxu0
    %v1626 = vadd.f32 %v1202, %v1625
    %v1627 = vpop.f32.mrb[0].mxu0
    %v1628 = vadd.f32 %v1202, %v1627
    %1629 = vmatprep.mubr.bf16.mxu0 0
    %1630 = vmatmul.mubr.bf16.gmra.mrb[0].mxu0 %v1277
    %v1631 = vpop.f32.mrb[0].mxu0
    %v1632 = vadd.f32 %v1207, %v1631
    %v1633 = vpop.f32.mrb[0].mxu0
    %v1634 = vadd.f32 %v1207, %v1633
    %v1635 = vpop.f32.mrb[0].mxu0
    %v1636 = vadd.f32 %v1212, %v1635
    %v1637 = vpop.f32.mrb[0].mxu0
    %v1638 = vadd.f32 %v1212, %v1637
    %1639 = vdwg.mxu0
    %1640 = vmatprep.subr.bf16.mxu0 0
    %1641 = vmatpush1.bf16.msra.mxu0 %v1089
    %1642 = vmatprep.subr.bf16.mxu0 0
    %1643 = vmatpush1.bf16.msra.mxu0 %v1096
    %1644 = vmatprep.subr.bf16.mxu0 0
    %1645 = vmatpush1.bf16.msra.mxu0 %v1103
    %1646 = vmatprep.subr.bf16.mxu0 0
    %1647 = vmatpush1.bf16.msra.mxu0 %v1110
    %1648 = vmatprep.subr.bf16.mxu0 0
    %1649 = vmatpush1.bf16.msra.mxu0 %v1299
    %1650 = vmatprep.subr.bf16.mxu0 0
    %1651 = vmatpush1.bf16.msra.mxu0 0
    %1652 = vmatprep.subr.bf16.mxu0 0
    %1653 = vmatpush1.bf16.msra.mxu0 0
    %1654 = vmatprep.subr.bf16.mxu0 0
    %1655 = vmatpush1.bf16.msra.mxu0 0
    %1656 = vmatprep.subr.bf16.mxu0 0
    %1657 = vmatpush1.bf16.msra.mxu0 0
    %1658 = vmatprep.subr.bf16.mxu0 0
    %1659 = vmatpush1.bf16.msra.mxu0 0
    %1660 = vmatprep.subr.bf16.mxu0 0
    %1661 = vmatpush1.bf16.msra.mxu0 0
    %1662 = vmatprep.subr.bf16.mxu0 0
    %1663 = vmatpush1.bf16.msra.mxu0 0
    %1664 = vmatprep.subr.bf16.mxu0 0
    %1665 = vmatpush1.bf16.msra.mxu0 0
    %1666 = vmatprep.subr.bf16.mxu0 0
    %1667 = vmatpush1.bf16.msra.mxu0 0
    %1668 = vmatprep.subr.bf16.mxu0 0
    %1669 = vmatpush1.bf16.msra.mxu0 0
    %1670 = vmatprep.subr.bf16.mxu0 0
    %1671 = vmatpush1.bf16.msra.mxu0 0
    %1672 = vmatprep.mubr.bf16.mxu0 0
    %1673 = vmatmul.mubr.bf16.gmra.mrb[0].mxu0 %v1256
    %v1674 = vpop.f32.mrb[0].mxu0
    %v1675 = vadd.f32 %v1137, %v1674
    %v1676 = vpop.f32.mrb[0].mxu0
    %v1677 = vpop.f32.mrb[0].mxu0
    %v1678 = vadd.f32 %v1142, %v1677
    %v1679 = vpop.f32.mrb[0].mxu0
    %1680 = vmatprep.mubr.bf16.mxu0 0
    %1681 = vmatmul.mubr.bf16.gmra.mrb[0].mxu0 %v1259
    %v1682 = vpop.f32.mrb[0].mxu0
    %v1683 = vadd.f32 %v1147, %v1682
    %v1684 = vpop.f32.mrb[0].mxu0
    %v1685 = vpop.f32.mrb[0].mxu0
    %v1686 = vadd.f32 %v1152, %v1685
    %v1687 = vpop.f32.mrb[0].mxu0
    %1688 = vmatprep.mubr.bf16.mxu0 0
    %1689 = vmatmul.mubr.bf16.gmra.mrb[0].mxu0 %v1262
    %v1690 = vpop.f32.mrb[0].mxu0
    %v1691 = vadd.f32 %v1157, %v1690
    %v1692 = vpop.f32.mrb[0].mxu0
    %v1693 = vpop.f32.mrb[0].mxu0
    %v1694 = vadd.f32 %v1162, %v1693
    %v1695 = vpop.f32.mrb[0].mxu0
    %1696 = vmatprep.mubr.bf16.mxu0 0
    %1697 = vmatmul.mubr.bf16.gmra.mrb[0].mxu0 %v1265
    %v1698 = vpop.f32.mrb[0].mxu0
    %v1699 = vadd.f32 %v1167, %v1698
    %v1700 = vpop.f32.mrb[0].mxu0
    %v1701 = vpop.f32.mrb[0].mxu0
    %v1702 = vadd.f32 %v1172, %v1701
    %v1703 = vpop.f32.mrb[0].mxu0
    %1704 = vmatprep.mubr.bf16.mxu0 0
    %1705 = vmatmul.mubr.bf16.gmra.mrb[0].mxu0 %v1268
    %v1706 = vpop.f32.mrb[0].mxu0
    %v1707 = vadd.f32 %v1177, %v1706
    %v1708 = vpop.f32.mrb[0].mxu0
    %v1709 = vpop.f32.mrb[0].mxu0
    %v1710 = vadd.f32 %v1182, %v1709
    %v1711 = vpop.f32.mrb[0].mxu0
    %1712 = vmatprep.mubr.bf16.mxu0 0
    %1713 = vmatmul.mubr.bf16.gmra.mrb[0].mxu0 %v1271
    %v1714 = vpop.f32.mrb[0].mxu0
    %v1715 = vadd.f32 %v1187, %v1714
    %v1716 = vpop.f32.mrb[0].mxu0
    %v1717 = vpop.f32.mrb[0].mxu0
    %v1718 = vadd.f32 %v1192, %v1717
    %v1719 = vpop.f32.mrb[0].mxu0
    %1720 = vmatprep.mubr.bf16.mxu0 0
    %1721 = vmatmul.mubr.bf16.gmra.mrb[0].mxu0 %v1274
    %v1722 = vpop.f32.mrb[0].mxu0
    %v1723 = vadd.f32 %v1197, %v1722
    %v1724 = vpop.f32.mrb[0].mxu0
    %v1725 = vpop.f32.mrb[0].mxu0
    %v1726 = vadd.f32 %v1202, %v1725
    %v1727 = vpop.f32.mrb[0].mxu0
    %1728 = vmatprep.mubr.bf16.mxu0 0
    %1729 = vmatmul.mubr.bf16.gmra.mrb[0].mxu0 %v1277
    %v1730 = vpop.f32.mrb[0].mxu0
    %v1731 = vadd.f32 %v1207, %v1730
    %v1732 = vpop.f32.mrb[0].mxu0
    %v1733 = vpop.f32.mrb[0].mxu0
    %v1734 = vadd.f32 %v1212, %v1733
    %v1735 = vpop.f32.mrb[0].mxu0
    %1736 = vdwg.mxu0
    %v1737 = vmax.f32 %v1336, 0.0
    %v1738 = vmax.f32 %v1338, 0.0
    %v1739 = vmax.f32 %v1449, 0.0
    %v1740 = vmax.f32 %v1451, 0.0
    %v1741 = vmax.f32 %v1562, 0.0
    %v1742 = vmax.f32 %v1564, 0.0
    %v1743 = vmax.f32 %v1675, 0.0
    %v1744 = vmax.f32 %v1340, 0.0
    %v1745 = vmax.f32 %v1342, 0.0
    %v1746 = vmax.f32 %v1453, 0.0
    %v1747 = vmax.f32 %v1455, 0.0
    %v1748 = vmax.f32 %v1566, 0.0
    %v1749 = vmax.f32 %v1568, 0.0
    %v1750 = vmax.f32 %v1678, 0.0
    %v1751 = vmax.f32 %v1346, 0.0
    %v1752 = vmax.f32 %v1348, 0.0
    %v1753 = vmax.f32 %v1459, 0.0
    %v1754 = vmax.f32 %v1461, 0.0
    %v1755 = vmax.f32 %v1572, 0.0
    %v1756 = vmax.f32 %v1574, 0.0
    %v1757 = vmax.f32 %v1683, 0.0
    %v1758 = vmax.f32 %v1350, 0.0
    %v1759 = vmax.f32 %v1352, 0.0
    %v1760 = vmax.f32 %v1463, 0.0
    %v1761 = vmax.f32 %v1465, 0.0
    %v1762 = vmax.f32 %v1576, 0.0
    %v1763 = vmax.f32 %v1578, 0.0
    %v1764 = vmax.f32 %v1686, 0.0
    %v1765 = vmax.f32 %v1356, 0.0
    %v1766 = vmax.f32 %v1358, 0.0
    %v1767 = vmax.f32 %v1469, 0.0
    %v1768 = vmax.f32 %v1471, 0.0
    %v1769 = vmax.f32 %v1582, 0.0
    %v1770 = vmax.f32 %v1584, 0.0
    %v1771 = vmax.f32 %v1691, 0.0
    %v1772 = vmax.f32 %v1360, 0.0
    %v1773 = vmax.f32 %v1362, 0.0
    %v1774 = vmax.f32 %v1473, 0.0
    %v1775 = vmax.f32 %v1475, 0.0
    %v1776 = vmax.f32 %v1586, 0.0
    %v1777 = vmax.f32 %v1588, 0.0
    %v1778 = vmax.f32 %v1694, 0.0
    %v1779 = vmax.f32 %v1366, 0.0
    %v1780 = vmax.f32 %v1368, 0.0
    %v1781 = vmax.f32 %v1479, 0.0
    %v1782 = vmax.f32 %v1481, 0.0
    %v1783 = vmax.f32 %v1592, 0.0
    %v1784 = vmax.f32 %v1594, 0.0
    %v1785 = vmax.f32 %v1699, 0.0
    %v1786 = vmax.f32 %v1370, 0.0
    %v1787 = vmax.f32 %v1372, 0.0
    %v1788 = vmax.f32 %v1483, 0.0
    %v1789 = vmax.f32 %v1485, 0.0
    %v1790 = vmax.f32 %v1596, 0.0
    %v1791 = vmax.f32 %v1598, 0.0
    %v1792 = vmax.f32 %v1702, 0.0
    %v1793 = vmax.f32 %v1376, 0.0
    %v1794 = vmax.f32 %v1378, 0.0
    %v1795 = vmax.f32 %v1489, 0.0
    %v1796 = vmax.f32 %v1491, 0.0
    %v1797 = vmax.f32 %v1602, 0.0
    %v1798 = vmax.f32 %v1604, 0.0
    %v1799 = vmax.f32 %v1707, 0.0
    %v1800 = vmax.f32 %v1380, 0.0
    %v1801 = vmax.f32 %v1382, 0.0
    %v1802 = vmax.f32 %v1493, 0.0
    %v1803 = vmax.f32 %v1495, 0.0
    %v1804 = vmax.f32 %v1606, 0.0
    %v1805 = vmax.f32 %v1608, 0.0
    %v1806 = vmax.f32 %v1710, 0.0
    %v1807 = vmax.f32 %v1386, 0.0
    %v1808 = vmax.f32 %v1388, 0.0
    %v1809 = vmax.f32 %v1499, 0.0
    %v1810 = vmax.f32 %v1501, 0.0
    %v1811 = vmax.f32 %v1612, 0.0
    %v1812 = vmax.f32 %v1614, 0.0
    %v1813 = vmax.f32 %v1715, 0.0
    %v1814 = vmax.f32 %v1390, 0.0
    %v1815 = vmax.f32 %v1392, 0.0
    %v1816 = vmax.f32 %v1503, 0.0
    %v1817 = vmax.f32 %v1505, 0.0
    %v1818 = vmax.f32 %v1616, 0.0
    %v1819 = vmax.f32 %v1618, 0.0
    %v1820 = vmax.f32 %v1718, 0.0
    %v1821 = vmax.f32 %v1396, 0.0
    %v1822 = vmax.f32 %v1398, 0.0
    %v1823 = vmax.f32 %v1509, 0.0
    %v1824 = vmax.f32 %v1511, 0.0
    %v1825 = vmax.f32 %v1622, 0.0
    %v1826 = vmax.f32 %v1624, 0.0
    %v1827 = vmax.f32 %v1723, 0.0
    %v1828 = vmax.f32 %v1400, 0.0
    %v1829 = vmax.f32 %v1402, 0.0
    %v1830 = vmax.f32 %v1513, 0.0
    %v1831 = vmax.f32 %v1515, 0.0
    %v1832 = vmax.f32 %v1626, 0.0
    %v1833 = vmax.f32 %v1628, 0.0
    %v1834 = vmax.f32 %v1726, 0.0
    %v1835 = vmax.f32 %v1406, 0.0
    %v1836 = vmax.f32 %v1408, 0.0
    %v1837 = vmax.f32 %v1519, 0.0
    %v1838 = vmax.f32 %v1521, 0.0
    %v1839 = vmax.f32 %v1632, 0.0
    %v1840 = vmax.f32 %v1634, 0.0
    %v1841 = vmax.f32 %v1731, 0.0
    %v1842 = vmax.f32 %v1410, 0.0
    %v1843 = vmax.f32 %v1412, 0.0
    %v1844 = vmax.f32 %v1523, 0.0
    %v1845 = vmax.f32 %v1525, 0.0
    %v1846 = vmax.f32 %v1636, 0.0
    %v1847 = vmax.f32 %v1638, 0.0
    %v1848 = vmax.f32 %v1734, 0.0
    %v1849 = vpack.c.bf16 %v1744, %v1737
    %v1850 = vpack.c.bf16 %v1745, %v1738
    %v1851 = vpack.c.bf16 %v1746, %v1739
    %v1852 = vpack.c.bf16 %v1747, %v1740
    %v1853 = vpack.c.bf16 %v1748, %v1741
    %v1854 = vpack.c.bf16 %v1749, %v1742
    %v1855 = vpack.c.bf16 %v1750, %v1743
    %v1856 = vpack.c.bf16 %v1758, %v1751
    %v1857 = vpack.c.bf16 %v1759, %v1752
    %v1858 = vpack.c.bf16 %v1760, %v1753
    %v1859 = vpack.c.bf16 %v1761, %v1754
    %v1860 = vpack.c.bf16 %v1762, %v1755
    %v1861 = vpack.c.bf16 %v1763, %v1756
    %v1862 = vpack.c.bf16 %v1764, %v1757
    %v1863 = vpack.c.bf16 %v1772, %v1765
    %v1864 = vpack.c.bf16 %v1773, %v1766
    %v1865 = vpack.c.bf16 %v1774, %v1767
    %v1866 = vpack.c.bf16 %v1775, %v1768
    %v1867 = vpack.c.bf16 %v1776, %v1769
    %v1868 = vpack.c.bf16 %v1777, %v1770
    %v1869 = vpack.c.bf16 %v1778, %v1771
    %v1870 = vpack.c.bf16 %v1786, %v1779
    %v1871 = vpack.c.bf16 %v1787, %v1780
    %v1872 = vpack.c.bf16 %v1788, %v1781
    %v1873 = vpack.c.bf16 %v1789, %v1782
    %v1874 = vpack.c.bf16 %v1790, %v1783
    %v1875 = vpack.c.bf16 %v1791, %v1784
    %v1876 = vpack.c.bf16 %v1792, %v1785
    %v1877 = vpack.c.bf16 %v1800, %v1793
    %v1878 = vpack.c.bf16 %v1801, %v1794
    %v1879 = vpack.c.bf16 %v1802, %v1795
    %v1880 = vpack.c.bf16 %v1803, %v1796
    %v1881 = vpack.c.bf16 %v1804, %v1797
    %v1882 = vpack.c.bf16 %v1805, %v1798
    %v1883 = vpack.c.bf16 %v1806, %v1799
    %v1884 = vpack.c.bf16 %v1814, %v1807
    %v1885 = vpack.c.bf16 %v1815, %v1808
    %v1886 = vpack.c.bf16 %v1816, %v1809
    %v1887 = vpack.c.bf16 %v1817, %v1810
    %v1888 = vpack.c.bf16 %v1818, %v1811
    %v1889 = vpack.c.bf16 %v1819, %v1812
    %v1890 = vpack.c.bf16 %v1820, %v1813
    %v1891 = vpack.c.bf16 %v1828, %v1821
    %v1892 = vpack.c.bf16 %v1829, %v1822
    %v1893 = vpack.c.bf16 %v1830, %v1823
    %v1894 = vpack.c.bf16 %v1831, %v1824
    %v1895 = vpack.c.bf16 %v1832, %v1825
    %v1896 = vpack.c.bf16 %v1833, %v1826
    %v1897 = vpack.c.bf16 %v1834, %v1827
    %v1898 = vpack.c.bf16 %v1842, %v1835
    %v1899 = vpack.c.bf16 %v1843, %v1836
    %v1900 = vpack.c.bf16 %v1844, %v1837
    %v1901 = vpack.c.bf16 %v1845, %v1838
    %v1902 = vpack.c.bf16 %v1846, %v1839
    %v1903 = vpack.c.bf16 %v1847, %v1840
    %v1904 = vpack.c.bf16 %v1848, %v1841
    %1905 = vst [vmem:[#allocation4] sm:$0xff] %v1849
    %1906 = vst [vmem:[#allocation4 + $0x8] sm:$0xff] %v1850
    %1907 = vst [vmem:[#allocation4 + $0x10] sm:$0xff] %v1851
    %1908 = vst [vmem:[#allocation4 + $0x18] sm:$0xff] %v1852
    %1909 = vst [vmem:[#allocation4 + $0x20] sm:$0xff] %v1853
    %1910 = vst [vmem:[#allocation4 + $0x28] sm:$0xff] %v1854
    %1911 = vst.msk [vmem:[#allocation4 + $0x30] sm:$0xff] %vm284, %v1855
    %1912 = vst [vmem:[#allocation4 + $0x38] sm:$0xff] %v1856
    %1913 = vst [vmem:[#allocation4 + $0x40] sm:$0xff] %v1857
    %1914 = vst [vmem:[#allocation4 + $0x48] sm:$0xff] %v1858
    %1915 = vst [vmem:[#allocation4 + $0x50] sm:$0xff] %v1859
    %1916 = vst [vmem:[#allocation4 + $0x58] sm:$0xff] %v1860
    %1917 = vst [vmem:[#allocation4 + $0x60] sm:$0xff] %v1861
    %1918 = vst.msk [vmem:[#allocation4 + $0x68] sm:$0xff] %vm284, %v1862
    %1919 = vst [vmem:[#allocation4 + $0x70] sm:$0xff] %v1863
    %1920 = vst [vmem:[#allocation4 + $0x78] sm:$0xff] %v1864
    %1921 = vst [vmem:[#allocation4 + $0x80] sm:$0xff] %v1865
    %1922 = vst [vmem:[#allocation4 + $0x88] sm:$0xff] %v1866
    %1923 = vst [vmem:[#allocation4 + $0x90] sm:$0xff] %v1867
    %1924 = vst [vmem:[#allocation4 + $0x98] sm:$0xff] %v1868
    %1925 = vst.msk [vmem:[#allocation4 + $0xa0] sm:$0xff] %vm284, %v1869
    %1926 = vst [vmem:[#allocation4 + $0xa8] sm:$0xff] %v1870
    %1927 = vst [vmem:[#allocation4 + $0xb0] sm:$0xff] %v1871
    %1928 = vst [vmem:[#allocation4 + $0xb8] sm:$0xff] %v1872
    %1929 = vst [vmem:[#allocation4 + $0xc0] sm:$0xff] %v1873
    %1930 = vst [vmem:[#allocation4 + $0xc8] sm:$0xff] %v1874
    %1931 = vst [vmem:[#allocation4 + $0xd0] sm:$0xff] %v1875
    %1932 = vst.msk [vmem:[#allocation4 + $0xd8] sm:$0xff] %vm284, %v1876
    %1933 = vst [vmem:[#allocation4 + $0xe0] sm:$0xff] %v1877
    %1934 = vst [vmem:[#allocation4 + $0xe8] sm:$0xff] %v1878
    %1935 = vst [vmem:[#allocation4 + $0xf0] sm:$0xff] %v1879
    %1936 = vst [vmem:[#allocation4 + $0xf8] sm:$0xff] %v1880
    %1937 = vst [vmem:[#allocation4 + $0x100] sm:$0xff] %v1881
    %1938 = vst [vmem:[#allocation4 + $0x108] sm:$0xff] %v1882
    %1939 = vst.msk [vmem:[#allocation4 + $0x110] sm:$0xff] %vm284, %v1883
    %1940 = vst [vmem:[#allocation4 + $0x118] sm:$0xff] %v1884
    %1941 = vst [vmem:[#allocation4 + $0x120] sm:$0xff] %v1885
    %1942 = vst [vmem:[#allocation4 + $0x128] sm:$0xff] %v1886
    %1943 = vst [vmem:[#allocation4 + $0x130] sm:$0xff] %v1887
    %1944 = vst [vmem:[#allocation4 + $0x138] sm:$0xff] %v1888
    %1945 = vst [vmem:[#allocation4 + $0x140] sm:$0xff] %v1889
    %1946 = vst.msk [vmem:[#allocation4 + $0x148] sm:$0xff] %vm284, %v1890
    %1947 = vst [vmem:[#allocation4 + $0x150] sm:$0xff] %v1891
    %1948 = vst [vmem:[#allocation4 + $0x158] sm:$0xff] %v1892
    %1949 = vst [vmem:[#allocation4 + $0x160] sm:$0xff] %v1893
    %1950 = vst [vmem:[#allocation4 + $0x168] sm:$0xff] %v1894
    %1951 = vst [vmem:[#allocation4 + $0x170] sm:$0xff] %v1895
    %1952 = vst [vmem:[#allocation4 + $0x178] sm:$0xff] %v1896
    %1953 = vst.msk [vmem:[#allocation4 + $0x180] sm:$0xff] %vm284, %v1897
    %1954 = vst [vmem:[#allocation4 + $0x188] sm:$0xff] %v1898
    %1955 = vst [vmem:[#allocation4 + $0x190] sm:$0xff] %v1899
    %1956 = vst [vmem:[#allocation4 + $0x198] sm:$0xff] %v1900
    %1957 = vst [vmem:[#allocation4 + $0x1a0] sm:$0xff] %v1901
    %1958 = vst [vmem:[#allocation4 + $0x1a8] sm:$0xff] %v1902
    %1959 = vst [vmem:[#allocation4 + $0x1b0] sm:$0xff] %v1903
    %1960 = vst.msk [vmem:[#allocation4 + $0x1b8] sm:$0xff] %vm284, %v1904
    %v1961 = vld [vmem:[#allocation4] sm:$0xff]
    %v1962 = vld [vmem:[#allocation4 + $0x8] sm:$0xff]
    %v1963 = vld [vmem:[#allocation4 + $0x10] sm:$0xff]
    %v1964 = vld [vmem:[#allocation4 + $0x18] sm:$0xff]
    %v1965 = vld [vmem:[#allocation4 + $0x20] sm:$0xff]
    %v1966 = vld [vmem:[#allocation4 + $0x28] sm:$0xff]
    %v1967 = vld [vmem:[#allocation4 + $0x30] sm:$0xff]
    %v1968 = vld [vmem:[#allocation4 + $0x38] sm:$0xff]
    %v1969 = vld [vmem:[#allocation4 + $0x40] sm:$0xff]
    %v1970 = vld [vmem:[#allocation4 + $0x48] sm:$0xff]
    %v1971 = vld [vmem:[#allocation4 + $0x50] sm:$0xff]
    %v1972 = vld [vmem:[#allocation4 + $0x58] sm:$0xff]
    %v1973 = vld [vmem:[#allocation4 + $0x60] sm:$0xff]
    %v1974 = vld [vmem:[#allocation4 + $0x68] sm:$0xff]
    %v1975 = vld [vmem:[#allocation4 + $0x70] sm:$0xff]
    %v1976 = vld [vmem:[#allocation4 + $0x78] sm:$0xff]
    %v1977 = vld [vmem:[#allocation4 + $0x80] sm:$0xff]
    %v1978 = vld [vmem:[#allocation4 + $0x88] sm:$0xff]
    %v1979 = vld [vmem:[#allocation4 + $0x90] sm:$0xff]
    %v1980 = vld [vmem:[#allocation4 + $0x98] sm:$0xff]
    %v1981 = vld [vmem:[#allocation4 + $0xa0] sm:$0xff]
    %v1982 = vld [vmem:[#allocation4 + $0xa8] sm:$0xff]
    %v1983 = vld [vmem:[#allocation4 + $0xb0] sm:$0xff]
    %v1984 = vld [vmem:[#allocation4 + $0xb8] sm:$0xff]
    %v1985 = vld [vmem:[#allocation4 + $0xc0] sm:$0xff]
    %v1986 = vld [vmem:[#allocation4 + $0xc8] sm:$0xff]
    %v1987 = vld [vmem:[#allocation4 + $0xd0] sm:$0xff]
    %v1988 = vld [vmem:[#allocation4 + $0xd8] sm:$0xff]
    %v1989 = vld [vmem:[#allocation4 + $0xe0] sm:$0xff]
    %v1990 = vld [vmem:[#allocation4 + $0xe8] sm:$0xff]
    %v1991 = vld [vmem:[#allocation4 + $0xf0] sm:$0xff]
    %v1992 = vld [vmem:[#allocation4 + $0xf8] sm:$0xff]
    %v1993 = vld [vmem:[#allocation4 + $0x100] sm:$0xff]
    %v1994 = vld [vmem:[#allocation4 + $0x108] sm:$0xff]
    %v1995 = vld [vmem:[#allocation4 + $0x110] sm:$0xff]
    %v1996 = vld [vmem:[#allocation4 + $0x118] sm:$0xff]
    %v1997 = vld [vmem:[#allocation4 + $0x120] sm:$0xff]
    %v1998 = vld [vmem:[#allocation4 + $0x128] sm:$0xff]
    %v1999 = vld [vmem:[#allocation4 + $0x130] sm:$0xff]
    %v2000 = vld [vmem:[#allocation4 + $0x138] sm:$0xff]
    %v2001 = vld [vmem:[#allocation4 + $0x140] sm:$0xff]
    %v2002 = vld [vmem:[#allocation4 + $0x148] sm:$0xff]
    %v2003 = vld [vmem:[#allocation4 + $0x150] sm:$0xff]
    %v2004 = vld [vmem:[#allocation4 + $0x158] sm:$0xff]
    %v2005 = vld [vmem:[#allocation4 + $0x160] sm:$0xff]
    %v2006 = vld [vmem:[#allocation4 + $0x168] sm:$0xff]
    %v2007 = vld [vmem:[#allocation4 + $0x170] sm:$0xff]
    %v2008 = vld [vmem:[#allocation4 + $0x178] sm:$0xff]
    %v2009 = vld [vmem:[#allocation4 + $0x180] sm:$0xff]
    %v2010 = vld [vmem:[#allocation4 + $0x188] sm:$0xff]
    %v2011 = vld [vmem:[#allocation4 + $0x190] sm:$0xff]
    %v2012 = vld [vmem:[#allocation4 + $0x198] sm:$0xff]
    %v2013 = vld [vmem:[#allocation4 + $0x1a0] sm:$0xff]
    %v2014 = vld [vmem:[#allocation4 + $0x1a8] sm:$0xff]
    %v2015 = vld [vmem:[#allocation4 + $0x1b0] sm:$0xff]
    %v2016 = vld [vmem:[#allocation4 + $0x1b8] sm:$0xff]
    %2073 = vrot.lane.b32.xlu0 %v1961, 127
    %v2074 = vpop.permute.xlu0 %2073
    %2075 = vrot.lane.b32.xlu0 %v1962, 127
    %v2076 = vpop.permute.xlu0 %2075
    %2077 = vrot.lane.b32.xlu0 %v1963, 127
    %v2078 = vpop.permute.xlu0 %2077
    %2079 = vrot.lane.b32.xlu0 %v1964, 127
    %v2080 = vpop.permute.xlu0 %2079
    %2081 = vrot.lane.b32.xlu0 %v1965, 127
    %v2082 = vpop.permute.xlu0 %2081
    %2083 = vrot.lane.b32.xlu0 %v1966, 127
    %v2084 = vpop.permute.xlu0 %2083
    %2085 = vrot.lane.b32.xlu0 %v1967, 127
    %v2086 = vpop.permute.xlu0 %2085
    %2087 = vrot.lane.b32.xlu0 %v1968, 127
    %v2088 = vpop.permute.xlu0 %2087
    %2089 = vrot.lane.b32.xlu0 %v1969, 127
    %v2090 = vpop.permute.xlu0 %2089
    %2091 = vrot.lane.b32.xlu0 %v1970, 127
    %v2092 = vpop.permute.xlu0 %2091
    %2093 = vrot.lane.b32.xlu0 %v1971, 127
    %v2094 = vpop.permute.xlu0 %2093
    %2095 = vrot.lane.b32.xlu0 %v1972, 127
    %v2096 = vpop.permute.xlu0 %2095
    %2097 = vrot.lane.b32.xlu0 %v1973, 127
    %v2098 = vpop.permute.xlu0 %2097
    %2099 = vrot.lane.b32.xlu0 %v1974, 127
    %v2100 = vpop.permute.xlu0 %2099
    %2101 = vrot.lane.b32.xlu0 %v1975, 127
    %v2102 = vpop.permute.xlu0 %2101
    %2103 = vrot.lane.b32.xlu0 %v1976, 127
    %v2104 = vpop.permute.xlu0 %2103
    %2105 = vrot.lane.b32.xlu0 %v1977, 127
    %v2106 = vpop.permute.xlu0 %2105
    %2107 = vrot.lane.b32.xlu0 %v1978, 127
    %v2108 = vpop.permute.xlu0 %2107
    %2109 = vrot.lane.b32.xlu0 %v1979, 127
    %v2110 = vpop.permute.xlu0 %2109
    %2111 = vrot.lane.b32.xlu0 %v1980, 127
    %v2112 = vpop.permute.xlu0 %2111
    %2113 = vrot.lane.b32.xlu0 %v1981, 127
    %v2114 = vpop.permute.xlu0 %2113
    %2115 = vrot.lane.b32.xlu0 %v1982, 127
    %v2116 = vpop.permute.xlu0 %2115
    %2117 = vrot.lane.b32.xlu0 %v1983, 127
    %v2118 = vpop.permute.xlu0 %2117
    %2119 = vrot.lane.b32.xlu0 %v1984, 127
    %v2120 = vpop.permute.xlu0 %2119
    %2121 = vrot.lane.b32.xlu0 %v1985, 127
    %v2122 = vpop.permute.xlu0 %2121
    %2123 = vrot.lane.b32.xlu0 %v1986, 127
    %v2124 = vpop.permute.xlu0 %2123
    %2125 = vrot.lane.b32.xlu0 %v1987, 127
    %v2126 = vpop.permute.xlu0 %2125
    %2127 = vrot.lane.b32.xlu0 %v1988, 127
    %v2128 = vpop.permute.xlu0 %2127
    %2129 = vrot.lane.b32.xlu0 %v1989, 127
    %v2130 = vpop.permute.xlu0 %2129
    %2131 = vrot.lane.b32.xlu0 %v1990, 127
    %v2132 = vpop.permute.xlu0 %2131
    %2133 = vrot.lane.b32.xlu0 %v1991, 127
    %v2134 = vpop.permute.xlu0 %2133
    %2135 = vrot.lane.b32.xlu0 %v1992, 127
    %v2136 = vpop.permute.xlu0 %2135
    %2137 = vrot.lane.b32.xlu0 %v1993, 127
    %v2138 = vpop.permute.xlu0 %2137
    %2139 = vrot.lane.b32.xlu0 %v1994, 127
    %v2140 = vpop.permute.xlu0 %2139
    %2141 = vrot.lane.b32.xlu0 %v1995, 127
    %v2142 = vpop.permute.xlu0 %2141
    %2143 = vrot.lane.b32.xlu0 %v1996, 127
    %v2144 = vpop.permute.xlu0 %2143
    %2145 = vrot.lane.b32.xlu0 %v1997, 127
    %v2146 = vpop.permute.xlu0 %2145
    %2147 = vrot.lane.b32.xlu0 %v1998, 127
    %v2148 = vpop.permute.xlu0 %2147
    %2149 = vrot.lane.b32.xlu0 %v1999, 127
    %v2150 = vpop.permute.xlu0 %2149
    %2151 = vrot.lane.b32.xlu0 %v2000, 127
    %v2152 = vpop.permute.xlu0 %2151
    %2153 = vrot.lane.b32.xlu0 %v2001, 127
    %v2154 = vpop.permute.xlu0 %2153
    %2155 = vrot.lane.b32.xlu0 %v2002, 127
    %v2156 = vpop.permute.xlu0 %2155
    %2157 = vrot.lane.b32.xlu0 %v2003, 127
    %v2158 = vpop.permute.xlu0 %2157
    %2159 = vrot.lane.b32.xlu0 %v2004, 127
    %v2160 = vpop.permute.xlu0 %2159
    %2161 = vrot.lane.b32.xlu0 %v2005, 127
    %v2162 = vpop.permute.xlu0 %2161
    %2163 = vrot.lane.b32.xlu0 %v2006, 127
    %v2164 = vpop.permute.xlu0 %2163
    %2165 = vrot.lane.b32.xlu0 %v2007, 127
    %v2166 = vpop.permute.xlu0 %2165
    %2167 = vrot.lane.b32.xlu0 %v2008, 127
    %v2168 = vpop.permute.xlu0 %2167
    %2169 = vrot.lane.b32.xlu0 %v2009, 127
    %v2170 = vpop.permute.xlu0 %2169
    %2171 = vrot.lane.b32.xlu0 %v2010, 127
    %v2172 = vpop.permute.xlu0 %2171
    %2173 = vrot.lane.b32.xlu0 %v2011, 127
    %v2174 = vpop.permute.xlu0 %2173
    %2175 = vrot.lane.b32.xlu0 %v2012, 127
    %v2176 = vpop.permute.xlu0 %2175
    %2177 = vrot.lane.b32.xlu0 %v2013, 127
    %v2178 = vpop.permute.xlu0 %2177
    %2179 = vrot.lane.b32.xlu0 %v2014, 127
    %v2180 = vpop.permute.xlu0 %2179
    %2181 = vrot.lane.b32.xlu0 %v2015, 127
    %v2182 = vpop.permute.xlu0 %2181
    %2183 = vrot.lane.b32.xlu0 %v2016, 127
    %v2184 = vpop.permute.xlu0 %2183
    %vm2185 = vcmask 1039360
    %v2186 = vsel %vm2185, %v2074, %v2076
    %v2187 = vsel %vm2185, %v2076, %v2078
    %v2188 = vsel %vm2185, %v2078, %v2080
    %v2189 = vsel %vm2185, %v2080, %v2082
    %v2190 = vsel %vm2185, %v2082, %v2084
    %v2191 = vsel %vm2185, %v2084, %v2086
    %v2192 = vsel %vm2185, %v2088, %v2090
    %v2193 = vsel %vm2185, %v2090, %v2092
    %v2194 = vsel %vm2185, %v2092, %v2094
    %v2195 = vsel %vm2185, %v2094, %v2096
    %v2196 = vsel %vm2185, %v2096, %v2098
    %v2197 = vsel %vm2185, %v2098, %v2100
    %v2198 = vsel %vm2185, %v2102, %v2104
    %v2199 = vsel %vm2185, %v2104, %v2106
    %v2200 = vsel %vm2185, %v2106, %v2108
    %v2201 = vsel %vm2185, %v2108, %v2110
    %v2202 = vsel %vm2185, %v2110, %v2112
    %v2203 = vsel %vm2185, %v2112, %v2114
    %v2204 = vsel %vm2185, %v2116, %v2118
    %v2205 = vsel %vm2185, %v2118, %v2120
    %v2206 = vsel %vm2185, %v2120, %v2122
    %v2207 = vsel %vm2185, %v2122, %v2124
    %v2208 = vsel %vm2185, %v2124, %v2126
    %v2209 = vsel %vm2185, %v2126, %v2128
    %v2210 = vsel %vm2185, %v2130, %v2132
    %v2211 = vsel %vm2185, %v2132, %v2134
    %v2212 = vsel %vm2185, %v2134, %v2136
    %v2213 = vsel %vm2185, %v2136, %v2138
    %v2214 = vsel %vm2185, %v2138, %v2140
    %v2215 = vsel %vm2185, %v2140, %v2142
    %v2216 = vsel %vm2185, %v2144, %v2146
    %v2217 = vsel %vm2185, %v2146, %v2148
    %v2218 = vsel %vm2185, %v2148, %v2150
    %v2219 = vsel %vm2185, %v2150, %v2152
    %v2220 = vsel %vm2185, %v2152, %v2154
    %v2221 = vsel %vm2185, %v2154, %v2156
    %v2222 = vsel %vm2185, %v2158, %v2160
    %v2223 = vsel %vm2185, %v2160, %v2162
    %v2224 = vsel %vm2185, %v2162, %v2164
    %v2225 = vsel %vm2185, %v2164, %v2166
    %v2226 = vsel %vm2185, %v2166, %v2168
    %v2227 = vsel %vm2185, %v2168, %v2170
    %v2228 = vsel %vm2185, %v2172, %v2174
    %v2229 = vsel %vm2185, %v2174, %v2176
    %v2230 = vsel %vm2185, %v2176, %v2178
    %v2231 = vsel %vm2185, %v2178, %v2180
    %v2232 = vsel %vm2185, %v2180, %v2182
    %v2233 = vsel %vm2185, %v2182, %v2184
    %v2290 = vmax.bf16 %v1961, %v2186
    %v2291 = vmax.bf16 %v1962, %v2187
    %v2292 = vmax.bf16 %v1963, %v2188
    %v2293 = vmax.bf16 %v1964, %v2189
    %v2294 = vmax.bf16 %v1965, %v2190
    %v2295 = vmax.bf16 %v1966, %v2191
    %v2296 = vmax.bf16 %v1967, %v2086
    %v2297 = vmax.bf16 %v1968, %v2192
    %v2298 = vmax.bf16 %v1969, %v2193
    %v2299 = vmax.bf16 %v1970, %v2194
    %v2300 = vmax.bf16 %v1971, %v2195
    %v2301 = vmax.bf16 %v1972, %v2196
    %v2302 = vmax.bf16 %v1973, %v2197
    %v2303 = vmax.bf16 %v1974, %v2100
    %v2304 = vmax.bf16 %v1975, %v2198
    %v2305 = vmax.bf16 %v1976, %v2199
    %v2306 = vmax.bf16 %v1977, %v2200
    %v2307 = vmax.bf16 %v1978, %v2201
    %v2308 = vmax.bf16 %v1979, %v2202
    %v2309 = vmax.bf16 %v1980, %v2203
    %v2310 = vmax.bf16 %v1981, %v2114
    %v2311 = vmax.bf16 %v1982, %v2204
    %v2312 = vmax.bf16 %v1983, %v2205
    %v2313 = vmax.bf16 %v1984, %v2206
    %v2314 = vmax.bf16 %v1985, %v2207
    %v2315 = vmax.bf16 %v1986, %v2208
    %v2316 = vmax.bf16 %v1987, %v2209
    %v2317 = vmax.bf16 %v1988, %v2128
    %v2318 = vmax.bf16 %v1989, %v2210
    %v2319 = vmax.bf16 %v1990, %v2211
    %v2320 = vmax.bf16 %v1991, %v2212
    %v2321 = vmax.bf16 %v1992, %v2213
    %v2322 = vmax.bf16 %v1993, %v2214
    %v2323 = vmax.bf16 %v1994, %v2215
    %v2324 = vmax.bf16 %v1995, %v2142
    %v2325 = vmax.bf16 %v1996, %v2216
    %v2326 = vmax.bf16 %v1997, %v2217
    %v2327 = vmax.bf16 %v1998, %v2218
    %v2328 = vmax.bf16 %v1999, %v2219
    %v2329 = vmax.bf16 %v2000, %v2220
    %v2330 = vmax.bf16 %v2001, %v2221
    %v2331 = vmax.bf16 %v2002, %v2156
    %v2332 = vmax.bf16 %v2003, %v2222
    %v2333 = vmax.bf16 %v2004, %v2223
    %v2334 = vmax.bf16 %v2005, %v2224
    %v2335 = vmax.bf16 %v2006, %v2225
    %v2336 = vmax.bf16 %v2007, %v2226
    %v2337 = vmax.bf16 %v2008, %v2227
    %v2338 = vmax.bf16 %v2009, %v2170
    %v2339 = vmax.bf16 %v2010, %v2228
    %v2340 = vmax.bf16 %v2011, %v2229
    %v2341 = vmax.bf16 %v2012, %v2230
    %v2342 = vmax.bf16 %v2013, %v2231
    %v2343 = vmax.bf16 %v2014, %v2232
    %v2344 = vmax.bf16 %v2015, %v2233
    %v2345 = vmax.bf16 %v2016, %v2184
    %2346 = vrot.lane.b32.xlu0 %v1961, 100
    %v2347 = vpop.permute.xlu0 %2346
    %2348 = vrot.lane.b32.xlu0 %v1962, 100
    %v2349 = vpop.permute.xlu0 %2348
    %2350 = vrot.lane.b32.xlu0 %v1963, 100
    %v2351 = vpop.permute.xlu0 %2350
    %2352 = vrot.lane.b32.xlu0 %v1964, 100
    %v2353 = vpop.permute.xlu0 %2352
    %2354 = vrot.lane.b32.xlu0 %v1965, 100
    %v2355 = vpop.permute.xlu0 %2354
    %2356 = vrot.lane.b32.xlu0 %v1966, 100
    %v2357 = vpop.permute.xlu0 %2356
    %2358 = vrot.lane.b32.xlu0 %v1967, 100
    %v2359 = vpop.permute.xlu0 %2358
    %2360 = vrot.lane.b32.xlu0 %v1968, 100
    %v2361 = vpop.permute.xlu0 %2360
    %2362 = vrot.lane.b32.xlu0 %v1969, 100
    %v2363 = vpop.permute.xlu0 %2362
    %2364 = vrot.lane.b32.xlu0 %v1970, 100
    %v2365 = vpop.permute.xlu0 %2364
    %2366 = vrot.lane.b32.xlu0 %v1971, 100
    %v2367 = vpop.permute.xlu0 %2366
    %2368 = vrot.lane.b32.xlu0 %v1972, 100
    %v2369 = vpop.permute.xlu0 %2368
    %2370 = vrot.lane.b32.xlu0 %v1973, 100
    %v2371 = vpop.permute.xlu0 %2370
    %2372 = vrot.lane.b32.xlu0 %v1974, 100
    %v2373 = vpop.permute.xlu0 %2372
    %2374 = vrot.lane.b32.xlu0 %v1975, 100
    %v2375 = vpop.permute.xlu0 %2374
    %2376 = vrot.lane.b32.xlu0 %v1976, 100
    %v2377 = vpop.permute.xlu0 %2376
    %2378 = vrot.lane.b32.xlu0 %v1977, 100
    %v2379 = vpop.permute.xlu0 %2378
    %2380 = vrot.lane.b32.xlu0 %v1978, 100
    %v2381 = vpop.permute.xlu0 %2380
    %2382 = vrot.lane.b32.xlu0 %v1979, 100
    %v2383 = vpop.permute.xlu0 %2382
    %2384 = vrot.lane.b32.xlu0 %v1980, 100
    %v2385 = vpop.permute.xlu0 %2384
    %2386 = vrot.lane.b32.xlu0 %v1981, 100
    %v2387 = vpop.permute.xlu0 %2386
    %2388 = vrot.lane.b32.xlu0 %v1982, 100
    %v2389 = vpop.permute.xlu0 %2388
    %2390 = vrot.lane.b32.xlu0 %v1983, 100
    %v2391 = vpop.permute.xlu0 %2390
    %2392 = vrot.lane.b32.xlu0 %v1984, 100
    %v2393 = vpop.permute.xlu0 %2392
    %2394 = vrot.lane.b32.xlu0 %v1985, 100
    %v2395 = vpop.permute.xlu0 %2394
    %2396 = vrot.lane.b32.xlu0 %v1986, 100
    %v2397 = vpop.permute.xlu0 %2396
    %2398 = vrot.lane.b32.xlu0 %v1987, 100
    %v2399 = vpop.permute.xlu0 %2398
    %2400 = vrot.lane.b32.xlu0 %v1988, 100
    %v2401 = vpop.permute.xlu0 %2400
    %2402 = vrot.lane.b32.xlu0 %v1989, 100
    %v2403 = vpop.permute.xlu0 %2402
    %2404 = vrot.lane.b32.xlu0 %v1990, 100
    %v2405 = vpop.permute.xlu0 %2404
    %2406 = vrot.lane.b32.xlu0 %v1991, 100
    %v2407 = vpop.permute.xlu0 %2406
    %2408 = vrot.lane.b32.xlu0 %v1992, 100
    %v2409 = vpop.permute.xlu0 %2408
    %2410 = vrot.lane.b32.xlu0 %v1993, 100
    %v2411 = vpop.permute.xlu0 %2410
    %2412 = vrot.lane.b32.xlu0 %v1994, 100
    %v2413 = vpop.permute.xlu0 %2412
    %2414 = vrot.lane.b32.xlu0 %v1995, 100
    %v2415 = vpop.permute.xlu0 %2414
    %2416 = vrot.lane.b32.xlu0 %v1996, 100
    %v2417 = vpop.permute.xlu0 %2416
    %2418 = vrot.lane.b32.xlu0 %v1997, 100
    %v2419 = vpop.permute.xlu0 %2418
    %2420 = vrot.lane.b32.xlu0 %v1998, 100
    %v2421 = vpop.permute.xlu0 %2420
    %2422 = vrot.lane.b32.xlu0 %v1999, 100
    %v2423 = vpop.permute.xlu0 %2422
    %2424 = vrot.lane.b32.xlu0 %v2000, 100
    %v2425 = vpop.permute.xlu0 %2424
    %2426 = vrot.lane.b32.xlu0 %v2001, 100
    %v2427 = vpop.permute.xlu0 %2426
    %2428 = vrot.lane.b32.xlu0 %v2002, 100
    %v2429 = vpop.permute.xlu0 %2428
    %2430 = vrot.lane.b32.xlu0 %v2003, 100
    %v2431 = vpop.permute.xlu0 %2430
    %2432 = vrot.lane.b32.xlu0 %v2004, 100
    %v2433 = vpop.permute.xlu0 %2432
    %2434 = vrot.lane.b32.xlu0 %v2005, 100
    %v2435 = vpop.permute.xlu0 %2434
    %2436 = vrot.lane.b32.xlu0 %v2006, 100
    %v2437 = vpop.permute.xlu0 %2436
    %2438 = vrot.lane.b32.xlu0 %v2007, 100
    %v2439 = vpop.permute.xlu0 %2438
    %2440 = vrot.lane.b32.xlu0 %v2008, 100
    %v2441 = vpop.permute.xlu0 %2440
    %2442 = vrot.lane.b32.xlu0 %v2009, 100
    %v2443 = vpop.permute.xlu0 %2442
    %2444 = vrot.lane.b32.xlu0 %v2010, 100
    %v2445 = vpop.permute.xlu0 %2444
    %2446 = vrot.lane.b32.xlu0 %v2011, 100
    %v2447 = vpop.permute.xlu0 %2446
    %2448 = vrot.lane.b32.xlu0 %v2012, 100
    %v2449 = vpop.permute.xlu0 %2448
    %2450 = vrot.lane.b32.xlu0 %v2013, 100
    %v2451 = vpop.permute.xlu0 %2450
    %2452 = vrot.lane.b32.xlu0 %v2014, 100
    %v2453 = vpop.permute.xlu0 %2452
    %2454 = vrot.lane.b32.xlu0 %v2015, 100
    %v2455 = vpop.permute.xlu0 %2454
    %2456 = vrot.lane.b32.xlu0 %v2016, 100
    %v2457 = vpop.permute.xlu0 %2456
    %vm2458 = vcmask 818176
    %v2459 = vsel %vm2458, %v2347, %v2349
    %v2460 = vsel %vm2458, %v2349, %v2351
    %v2461 = vsel %vm2458, %v2351, %v2353
    %v2462 = vsel %vm2458, %v2353, %v2355
    %v2463 = vsel %vm2458, %v2355, %v2357
    %v2464 = vsel %vm2458, %v2357, %v2359
    %v2465 = vsel %vm2458, %v2361, %v2363
    %v2466 = vsel %vm2458, %v2363, %v2365
    %v2467 = vsel %vm2458, %v2365, %v2367
    %v2468 = vsel %vm2458, %v2367, %v2369
    %v2469 = vsel %vm2458, %v2369, %v2371
    %v2470 = vsel %vm2458, %v2371, %v2373
    %v2471 = vsel %vm2458, %v2375, %v2377
    %v2472 = vsel %vm2458, %v2377, %v2379
    %v2473 = vsel %vm2458, %v2379, %v2381
    %v2474 = vsel %vm2458, %v2381, %v2383
    %v2475 = vsel %vm2458, %v2383, %v2385
    %v2476 = vsel %vm2458, %v2385, %v2387
    %v2477 = vsel %vm2458, %v2389, %v2391
    %v2478 = vsel %vm2458, %v2391, %v2393
    %v2479 = vsel %vm2458, %v2393, %v2395
    %v2480 = vsel %vm2458, %v2395, %v2397
    %v2481 = vsel %vm2458, %v2397, %v2399
    %v2482 = vsel %vm2458, %v2399, %v2401
    %v2483 = vsel %vm2458, %v2403, %v2405
    %v2484 = vsel %vm2458, %v2405, %v2407
    %v2485 = vsel %vm2458, %v2407, %v2409
    %v2486 = vsel %vm2458, %v2409, %v2411
    %v2487 = vsel %vm2458, %v2411, %v2413
    %v2488 = vsel %vm2458, %v2413, %v2415
    %v2489 = vsel %vm2458, %v2417, %v2419
    %v2490 = vsel %vm2458, %v2419, %v2421
    %v2491 = vsel %vm2458, %v2421, %v2423
    %v2492 = vsel %vm2458, %v2423, %v2425
    %v2493 = vsel %vm2458, %v2425, %v2427
    %v2494 = vsel %vm2458, %v2427, %v2429
    %v2495 = vsel %vm2458, %v2431, %v2433
    %v2496 = vsel %vm2458, %v2433, %v2435
    %v2497 = vsel %vm2458, %v2435, %v2437
    %v2498 = vsel %vm2458, %v2437, %v2439
    %v2499 = vsel %vm2458, %v2439, %v2441
    %v2500 = vsel %vm2458, %v2441, %v2443
    %v2501 = vsel %vm2458, %v2445, %v2447
    %v2502 = vsel %vm2458, %v2447, %v2449
    %v2503 = vsel %vm2458, %v2449, %v2451
    %v2504 = vsel %vm2458, %v2451, %v2453
    %v2505 = vsel %vm2458, %v2453, %v2455
    %v2506 = vsel %vm2458, %v2455, %v2457
    %v2563 = vmax.bf16 %v2290, %v2459
    %v2564 = vmax.bf16 %v2291, %v2460
    %v2565 = vmax.bf16 %v2292, %v2461
    %v2566 = vmax.bf16 %v2293, %v2462
    %v2567 = vmax.bf16 %v2294, %v2463
    %v2568 = vmax.bf16 %v2295, %v2464
    %v2569 = vmax.bf16 %v2296, %v2359
    %v2570 = vmax.bf16 %v2297, %v2465
    %v2571 = vmax.bf16 %v2298, %v2466
    %v2572 = vmax.bf16 %v2299, %v2467
    %v2573 = vmax.bf16 %v2300, %v2468
    %v2574 = vmax.bf16 %v2301, %v2469
    %v2575 = vmax.bf16 %v2302, %v2470
    %v2576 = vmax.bf16 %v2303, %v2373
    %v2577 = vmax.bf16 %v2304, %v2471
    %v2578 = vmax.bf16 %v2305, %v2472
    %v2579 = vmax.bf16 %v2306, %v2473
    %v2580 = vmax.bf16 %v2307, %v2474
    %v2581 = vmax.bf16 %v2308, %v2475
    %v2582 = vmax.bf16 %v2309, %v2476
    %v2583 = vmax.bf16 %v2310, %v2387
    %v2584 = vmax.bf16 %v2311, %v2477
    %v2585 = vmax.bf16 %v2312, %v2478
    %v2586 = vmax.bf16 %v2313, %v2479
    %v2587 = vmax.bf16 %v2314, %v2480
    %v2588 = vmax.bf16 %v2315, %v2481
    %v2589 = vmax.bf16 %v2316, %v2482
    %v2590 = vmax.bf16 %v2317, %v2401
    %v2591 = vmax.bf16 %v2318, %v2483
    %v2592 = vmax.bf16 %v2319, %v2484
    %v2593 = vmax.bf16 %v2320, %v2485
    %v2594 = vmax.bf16 %v2321, %v2486
    %v2595 = vmax.bf16 %v2322, %v2487
    %v2596 = vmax.bf16 %v2323, %v2488
    %v2597 = vmax.bf16 %v2324, %v2415
    %v2598 = vmax.bf16 %v2325, %v2489
    %v2599 = vmax.bf16 %v2326, %v2490
    %v2600 = vmax.bf16 %v2327, %v2491
    %v2601 = vmax.bf16 %v2328, %v2492
    %v2602 = vmax.bf16 %v2329, %v2493
    %v2603 = vmax.bf16 %v2330, %v2494
    %v2604 = vmax.bf16 %v2331, %v2429
    %v2605 = vmax.bf16 %v2332, %v2495
    %v2606 = vmax.bf16 %v2333, %v2496
    %v2607 = vmax.bf16 %v2334, %v2497
    %v2608 = vmax.bf16 %v2335, %v2498
    %v2609 = vmax.bf16 %v2336, %v2499
    %v2610 = vmax.bf16 %v2337, %v2500
    %v2611 = vmax.bf16 %v2338, %v2443
    %v2612 = vmax.bf16 %v2339, %v2501
    %v2613 = vmax.bf16 %v2340, %v2502
    %v2614 = vmax.bf16 %v2341, %v2503
    %v2615 = vmax.bf16 %v2342, %v2504
    %v2616 = vmax.bf16 %v2343, %v2505
    %v2617 = vmax.bf16 %v2344, %v2506
    %v2618 = vmax.bf16 %v2345, %v2457
    %2619 = vrot.lane.b32.xlu0 %v1961, 99
    %v2620 = vpop.permute.xlu0 %2619
    %2621 = vrot.lane.b32.xlu0 %v1962, 99
    %v2622 = vpop.permute.xlu0 %2621
    %2623 = vrot.lane.b32.xlu0 %v1963, 99
    %v2624 = vpop.permute.xlu0 %2623
    %2625 = vrot.lane.b32.xlu0 %v1964, 99
    %v2626 = vpop.permute.xlu0 %2625
    %2627 = vrot.lane.b32.xlu0 %v1965, 99
    %v2628 = vpop.permute.xlu0 %2627
    %2629 = vrot.lane.b32.xlu0 %v1966, 99
    %v2630 = vpop.permute.xlu0 %2629
    %2631 = vrot.lane.b32.xlu0 %v1967, 99
    %v2632 = vpop.permute.xlu0 %2631
    %2633 = vrot.lane.b32.xlu0 %v1968, 99
    %v2634 = vpop.permute.xlu0 %2633
    %2635 = vrot.lane.b32.xlu0 %v1969, 99
    %v2636 = vpop.permute.xlu0 %2635
    %2637 = vrot.lane.b32.xlu0 %v1970, 99
    %v2638 = vpop.permute.xlu0 %2637
    %2639 = vrot.lane.b32.xlu0 %v1971, 99
    %v2640 = vpop.permute.xlu0 %2639
    %2641 = vrot.lane.b32.xlu0 %v1972, 99
    %v2642 = vpop.permute.xlu0 %2641
    %2643 = vrot.lane.b32.xlu0 %v1973, 99
    %v2644 = vpop.permute.xlu0 %2643
    %2645 = vrot.lane.b32.xlu0 %v1974, 99
    %v2646 = vpop.permute.xlu0 %2645
    %2647 = vrot.lane.b32.xlu0 %v1975, 99
    %v2648 = vpop.permute.xlu0 %2647
    %2649 = vrot.lane.b32.xlu0 %v1976, 99
    %v2650 = vpop.permute.xlu0 %2649
    %2651 = vrot.lane.b32.xlu0 %v1977, 99
    %v2652 = vpop.permute.xlu0 %2651
    %2653 = vrot.lane.b32.xlu0 %v1978, 99
    %v2654 = vpop.permute.xlu0 %2653
    %2655 = vrot.lane.b32.xlu0 %v1979, 99
    %v2656 = vpop.permute.xlu0 %2655
    %2657 = vrot.lane.b32.xlu0 %v1980, 99
    %v2658 = vpop.permute.xlu0 %2657
    %2659 = vrot.lane.b32.xlu0 %v1981, 99
    %v2660 = vpop.permute.xlu0 %2659
    %2661 = vrot.lane.b32.xlu0 %v1982, 99
    %v2662 = vpop.permute.xlu0 %2661
    %2663 = vrot.lane.b32.xlu0 %v1983, 99
    %v2664 = vpop.permute.xlu0 %2663
    %2665 = vrot.lane.b32.xlu0 %v1984, 99
    %v2666 = vpop.permute.xlu0 %2665
    %2667 = vrot.lane.b32.xlu0 %v1985, 99
    %v2668 = vpop.permute.xlu0 %2667
    %2669 = vrot.lane.b32.xlu0 %v1986, 99
    %v2670 = vpop.permute.xlu0 %2669
    %2671 = vrot.lane.b32.xlu0 %v1987, 99
    %v2672 = vpop.permute.xlu0 %2671
    %2673 = vrot.lane.b32.xlu0 %v1988, 99
    %v2674 = vpop.permute.xlu0 %2673
    %2675 = vrot.lane.b32.xlu0 %v1989, 99
    %v2676 = vpop.permute.xlu0 %2675
    %2677 = vrot.lane.b32.xlu0 %v1990, 99
    %v2678 = vpop.permute.xlu0 %2677
    %2679 = vrot.lane.b32.xlu0 %v1991, 99
    %v2680 = vpop.permute.xlu0 %2679
    %2681 = vrot.lane.b32.xlu0 %v1992, 99
    %v2682 = vpop.permute.xlu0 %2681
    %2683 = vrot.lane.b32.xlu0 %v1993, 99
    %v2684 = vpop.permute.xlu0 %2683
    %2685 = vrot.lane.b32.xlu0 %v1994, 99
    %v2686 = vpop.permute.xlu0 %2685
    %2687 = vrot.lane.b32.xlu0 %v1995, 99
    %v2688 = vpop.permute.xlu0 %2687
    %2689 = vrot.lane.b32.xlu0 %v1996, 99
    %v2690 = vpop.permute.xlu0 %2689
    %2691 = vrot.lane.b32.xlu0 %v1997, 99
    %v2692 = vpop.permute.xlu0 %2691
    %2693 = vrot.lane.b32.xlu0 %v1998, 99
    %v2694 = vpop.permute.xlu0 %2693
    %2695 = vrot.lane.b32.xlu0 %v1999, 99
    %v2696 = vpop.permute.xlu0 %2695
    %2697 = vrot.lane.b32.xlu0 %v2000, 99
    %v2698 = vpop.permute.xlu0 %2697
    %2699 = vrot.lane.b32.xlu0 %v2001, 99
    %v2700 = vpop.permute.xlu0 %2699
    %2701 = vrot.lane.b32.xlu0 %v2002, 99
    %v2702 = vpop.permute.xlu0 %2701
    %2703 = vrot.lane.b32.xlu0 %v2003, 99
    %v2704 = vpop.permute.xlu0 %2703
    %2705 = vrot.lane.b32.xlu0 %v2004, 99
    %v2706 = vpop.permute.xlu0 %2705
    %2707 = vrot.lane.b32.xlu0 %v2005, 99
    %v2708 = vpop.permute.xlu0 %2707
    %2709 = vrot.lane.b32.xlu0 %v2006, 99
    %v2710 = vpop.permute.xlu0 %2709
    %2711 = vrot.lane.b32.xlu0 %v2007, 99
    %v2712 = vpop.permute.xlu0 %2711
    %2713 = vrot.lane.b32.xlu0 %v2008, 99
    %v2714 = vpop.permute.xlu0 %2713
    %2715 = vrot.lane.b32.xlu0 %v2009, 99
    %v2716 = vpop.permute.xlu0 %2715
    %2717 = vrot.lane.b32.xlu0 %v2010, 99
    %v2718 = vpop.permute.xlu0 %2717
    %2719 = vrot.lane.b32.xlu0 %v2011, 99
    %v2720 = vpop.permute.xlu0 %2719
    %2721 = vrot.lane.b32.xlu0 %v2012, 99
    %v2722 = vpop.permute.xlu0 %2721
    %2723 = vrot.lane.b32.xlu0 %v2013, 99
    %v2724 = vpop.permute.xlu0 %2723
    %2725 = vrot.lane.b32.xlu0 %v2014, 99
    %v2726 = vpop.permute.xlu0 %2725
    %2727 = vrot.lane.b32.xlu0 %v2015, 99
    %v2728 = vpop.permute.xlu0 %2727
    %2729 = vrot.lane.b32.xlu0 %v2016, 99
    %v2730 = vpop.permute.xlu0 %2729
    %vm2731 = vcmask 809984
    %v2732 = vsel %vm2731, %v2620, %v2622
    %v2733 = vsel %vm2731, %v2622, %v2624
    %v2734 = vsel %vm2731, %v2624, %v2626
    %v2735 = vsel %vm2731, %v2626, %v2628
    %v2736 = vsel %vm2731, %v2628, %v2630
    %v2737 = vsel %vm2731, %v2630, %v2632
    %v2738 = vsel %vm2731, %v2634, %v2636
    %v2739 = vsel %vm2731, %v2636, %v2638
    %v2740 = vsel %vm2731, %v2638, %v2640
    %v2741 = vsel %vm2731, %v2640, %v2642
    %v2742 = vsel %vm2731, %v2642, %v2644
    %v2743 = vsel %vm2731, %v2644, %v2646
    %v2744 = vsel %vm2731, %v2648, %v2650
    %v2745 = vsel %vm2731, %v2650, %v2652
    %v2746 = vsel %vm2731, %v2652, %v2654
    %v2747 = vsel %vm2731, %v2654, %v2656
    %v2748 = vsel %vm2731, %v2656, %v2658
    %v2749 = vsel %vm2731, %v2658, %v2660
    %v2750 = vsel %vm2731, %v2662, %v2664
    %v2751 = vsel %vm2731, %v2664, %v2666
    %v2752 = vsel %vm2731, %v2666, %v2668
    %v2753 = vsel %vm2731, %v2668, %v2670
    %v2754 = vsel %vm2731, %v2670, %v2672
    %v2755 = vsel %vm2731, %v2672, %v2674
    %v2756 = vsel %vm2731, %v2676, %v2678
    %v2757 = vsel %vm2731, %v2678, %v2680
    %v2758 = vsel %vm2731, %v2680, %v2682
    %v2759 = vsel %vm2731, %v2682, %v2684
    %v2760 = vsel %vm2731, %v2684, %v2686
    %v2761 = vsel %vm2731, %v2686, %v2688
    %v2762 = vsel %vm2731, %v2690, %v2692
    %v2763 = vsel %vm2731, %v2692, %v2694
    %v2764 = vsel %vm2731, %v2694, %v2696
    %v2765 = vsel %vm2731, %v2696, %v2698
    %v2766 = vsel %vm2731, %v2698, %v2700
    %v2767 = vsel %vm2731, %v2700, %v2702
    %v2768 = vsel %vm2731, %v2704, %v2706
    %v2769 = vsel %vm2731, %v2706, %v2708
    %v2770 = vsel %vm2731, %v2708, %v2710
    %v2771 = vsel %vm2731, %v2710, %v2712
    %v2772 = vsel %vm2731, %v2712, %v2714
    %v2773 = vsel %vm2731, %v2714, %v2716
    %v2774 = vsel %vm2731, %v2718, %v2720
    %v2775 = vsel %vm2731, %v2720, %v2722
    %v2776 = vsel %vm2731, %v2722, %v2724
    %v2777 = vsel %vm2731, %v2724, %v2726
    %v2778 = vsel %vm2731, %v2726, %v2728
    %v2779 = vsel %vm2731, %v2728, %v2730
    %v2836 = vmax.bf16 %v2563, %v2732
    %v2837 = vmax.bf16 %v2564, %v2733
    %v2838 = vmax.bf16 %v2565, %v2734
    %v2839 = vmax.bf16 %v2566, %v2735
    %v2840 = vmax.bf16 %v2567, %v2736
    %v2841 = vmax.bf16 %v2568, %v2737
    %v2842 = vmax.bf16 %v2569, %v2632
    %v2843 = vmax.bf16 %v2570, %v2738
    %v2844 = vmax.bf16 %v2571, %v2739
    %v2845 = vmax.bf16 %v2572, %v2740
    %v2846 = vmax.bf16 %v2573, %v2741
    %v2847 = vmax.bf16 %v2574, %v2742
    %v2848 = vmax.bf16 %v2575, %v2743
    %v2849 = vmax.bf16 %v2576, %v2646
    %v2850 = vmax.bf16 %v2577, %v2744
    %v2851 = vmax.bf16 %v2578, %v2745
    %v2852 = vmax.bf16 %v2579, %v2746
    %v2853 = vmax.bf16 %v2580, %v2747
    %v2854 = vmax.bf16 %v2581, %v2748
    %v2855 = vmax.bf16 %v2582, %v2749
    %v2856 = vmax.bf16 %v2583, %v2660
    %v2857 = vmax.bf16 %v2584, %v2750
    %v2858 = vmax.bf16 %v2585, %v2751
    %v2859 = vmax.bf16 %v2586, %v2752
    %v2860 = vmax.bf16 %v2587, %v2753
    %v2861 = vmax.bf16 %v2588, %v2754
    %v2862 = vmax.bf16 %v2589, %v2755
    %v2863 = vmax.bf16 %v2590, %v2674
    %v2864 = vmax.bf16 %v2591, %v2756
    %v2865 = vmax.bf16 %v2592, %v2757
    %v2866 = vmax.bf16 %v2593, %v2758
    %v2867 = vmax.bf16 %v2594, %v2759
    %v2868 = vmax.bf16 %v2595, %v2760
    %v2869 = vmax.bf16 %v2596, %v2761
    %v2870 = vmax.bf16 %v2597, %v2688
    %v2871 = vmax.bf16 %v2598, %v2762
    %v2872 = vmax.bf16 %v2599, %v2763
    %v2873 = vmax.bf16 %v2600, %v2764
    %v2874 = vmax.bf16 %v2601, %v2765
    %v2875 = vmax.bf16 %v2602, %v2766
    %v2876 = vmax.bf16 %v2603, %v2767
    %v2877 = vmax.bf16 %v2604, %v2702
    %v2878 = vmax.bf16 %v2605, %v2768
    %v2879 = vmax.bf16 %v2606, %v2769
    %v2880 = vmax.bf16 %v2607, %v2770
    %v2881 = vmax.bf16 %v2608, %v2771
    %v2882 = vmax.bf16 %v2609, %v2772
    %v2883 = vmax.bf16 %v2610, %v2773
    %v2884 = vmax.bf16 %v2611, %v2716
    %v2885 = vmax.bf16 %v2612, %v2774
    %v2886 = vmax.bf16 %v2613, %v2775
    %v2887 = vmax.bf16 %v2614, %v2776
    %v2888 = vmax.bf16 %v2615, %v2777
    %v2889 = vmax.bf16 %v2616, %v2778
    %v2890 = vmax.bf16 %v2617, %v2779
    %v2891 = vmax.bf16 %v2618, %v2730
    %v2892 = vld [vmem:[%s3] sm:$0xff]
    %v2893 = vld [vmem:[%s3 + $0x8] sm:$0xff]
    %v2894 = vld [vmem:[%s3 + $0x10] sm:$0xff]
    %v2895 = vld [vmem:[%s3 + $0x18] sm:$0xff]
    %v2896 = vld [vmem:[%s3 + $0x20] sm:$0xff]
    %v2897 = vld [vmem:[%s3 + $0x28] sm:$0xff]
    %v2898 = vld [vmem:[%s3 + $0x30] sm:$0xff]
    %v2899 = vld [vmem:[%s3 + $0x38] sm:$0xff]
    %v2900 = vld [vmem:[%s3 + $0x40] sm:$0xff]
    %v2901 = vld [vmem:[%s3 + $0x48] sm:$0xff]
    %v2902 = vld [vmem:[%s3 + $0x50] sm:$0xff]
    %v2903 = vld [vmem:[%s3 + $0x58] sm:$0xff]
    %v2904 = vld [vmem:[%s3 + $0x60] sm:$0xff]
    %v2905 = vld [vmem:[%s3 + $0x68] sm:$0xff]
    %v2906 = vld [vmem:[%s3 + $0x70] sm:$0xff]
    %v2907 = vld [vmem:[%s3 + $0x78] sm:$0xff]
    %v2908 = vld [vmem:[%s3 + $0x80] sm:$0xff]
    %v2909 = vld [vmem:[%s3 + $0x88] sm:$0xff]
    %v2910 = vld [vmem:[%s3 + $0x90] sm:$0xff]
    %v2911 = vld [vmem:[%s3 + $0x98] sm:$0xff]
    %v2912 = vld [vmem:[%s3 + $0xa0] sm:$0xff]
    %v2913 = vld [vmem:[%s3 + $0xa8] sm:$0xff]
    %v2914 = vld [vmem:[%s3 + $0xb0] sm:$0xff]
    %v2915 = vld [vmem:[%s3 + $0xb8] sm:$0xff]
    %v2916 = vld [vmem:[%s3 + $0xc0] sm:$0xff]
    %v2917 = vld [vmem:[%s3 + $0xc8] sm:$0xff]
    %v2918 = vld [vmem:[%s3 + $0xd0] sm:$0xff]
    %v2919 = vld [vmem:[%s3 + $0xd8] sm:$0xff]
    %v2920 = vld [vmem:[%s3 + $0xe0] sm:$0xff]
    %v2921 = vld [vmem:[%s3 + $0xe8] sm:$0xff]
    %v2922 = vld [vmem:[%s3 + $0xf0] sm:$0xff]
    %v2923 = vld [vmem:[%s3 + $0xf8] sm:$0xff]
    %v2924 = vld [vmem:[%s3 + $0x100] sm:$0xff]
    %v2925 = vld [vmem:[%s3 + $0x108] sm:$0xff]
    %v2926 = vld [vmem:[%s3 + $0x110] sm:$0xff]
    %v2927 = vld [vmem:[%s3 + $0x118] sm:$0xff]
    %v2928 = vld [vmem:[%s3 + $0x120] sm:$0xff]
    %v2929 = vld [vmem:[%s3 + $0x128] sm:$0xff]
    %v2930 = vld [vmem:[%s3 + $0x130] sm:$0xff]
    %v2931 = vld [vmem:[%s3 + $0x138] sm:$0xff]
    %v2932 = vld [vmem:[%s3 + $0x140] sm:$0xff]
    %v2933 = vld [vmem:[%s3 + $0x148] sm:$0xff]
    %v2934 = vld [vmem:[%s3 + $0x150] sm:$0xff]
    %v2935 = vld [vmem:[%s3 + $0x158] sm:$0xff]
    %v2936 = vld [vmem:[%s3 + $0x160] sm:$0xff]
    %v2937 = vld [vmem:[%s3 + $0x168] sm:$0xff]
    %v2938 = vld [vmem:[%s3 + $0x170] sm:$0xff]
    %v2939 = vld [vmem:[%s3 + $0x178] sm:$0xff]
    %v2940 = vld [vmem:[%s3 + $0x180] sm:$0xff]
    %v2941 = vld [vmem:[%s3 + $0x188] sm:$0xff]
    %v2942 = vld [vmem:[%s3 + $0x190] sm:$0xff]
    %v2943 = vld [vmem:[%s3 + $0x198] sm:$0xff]
    %v2944 = vld [vmem:[%s3 + $0x1a0] sm:$0xff]
    %v2945 = vld [vmem:[%s3 + $0x1a8] sm:$0xff]
    %v2946 = vld [vmem:[%s3 + $0x1b0] sm:$0xff]
    %v2947 = vld [vmem:[%s3 + $0x1b8] sm:$0xff]
    %v2948 = vld [vmem:[%s3 + $0x1c0] sm:$0xff]
    %v2949 = vld [vmem:[%s3 + $0x1c8] sm:$0xff]
    %v2950 = vld [vmem:[%s3 + $0x1d0] sm:$0xff]
    %v2951 = vld [vmem:[%s3 + $0x1d8] sm:$0xff]
    %v2952 = vld [vmem:[%s3 + $0x1e0] sm:$0xff]
    %v2953 = vld [vmem:[%s3 + $0x1e8] sm:$0xff]
    %v2954 = vld [vmem:[%s3 + $0x1f0] sm:$0xff]
    %v2955 = vld [vmem:[%s3 + $0x1f8] sm:$0xff]
    %v2956 = vld [vmem:[%s3 + $0x200] sm:$0xff]
    %v2957 = vld [vmem:[%s3 + $0x208] sm:$0xff]
    %v2958 = vld [vmem:[%s3 + $0x210] sm:$0xff]
    %v2959 = vld [vmem:[%s3 + $0x218] sm:$0xff]
    %v2960 = vld [vmem:[%s3 + $0x220] sm:$0xff]
    %v2961 = vld [vmem:[%s3 + $0x228] sm:$0xff]
    %v2962 = vld [vmem:[%s3 + $0x230] sm:$0xff]
    %v2963 = vld [vmem:[%s3 + $0x238] sm:$0xff]
    %v2964 = vld [vmem:[%s3 + $0x240] sm:$0xff]
    %v2965 = vld [vmem:[%s3 + $0x248] sm:$0xff]
    %v2966 = vld [vmem:[%s3 + $0x250] sm:$0xff]
    %v2967 = vld [vmem:[%s3 + $0x258] sm:$0xff]
    %v2968 = vld [vmem:[%s3 + $0x260] sm:$0xff]
    %v2969 = vld [vmem:[%s3 + $0x268] sm:$0xff]
    %v2970 = vld [vmem:[%s3 + $0x270] sm:$0xff]
    %v2971 = vld [vmem:[%s3 + $0x278] sm:$0xff]
    %v2972 = vld [vmem:[%s3 + $0x280] sm:$0xff]
    %v2973 = vld [vmem:[%s3 + $0x288] sm:$0xff]
    %v2974 = vld [vmem:[%s3 + $0x290] sm:$0xff]
    %v2975 = vld [vmem:[%s3 + $0x298] sm:$0xff]
    %v2976 = vld [vmem:[%s3 + $0x2a0] sm:$0xff]
    %v2977 = vld [vmem:[%s3 + $0x2a8] sm:$0xff]
    %v2978 = vld [vmem:[%s3 + $0x2b0] sm:$0xff]
    %v2979 = vld [vmem:[%s3 + $0x2b8] sm:$0xff]
    %v2980 = vld [vmem:[%s3 + $0x2c0] sm:$0xff]
    %v2981 = vld [vmem:[%s3 + $0x2c8] sm:$0xff]
    %v2982 = vld [vmem:[%s3 + $0x2d0] sm:$0xff]
    %v2983 = vld [vmem:[%s3 + $0x2d8] sm:$0xff]
    %v2984 = vld [vmem:[%s3 + $0x2e0] sm:$0xff]
    %v2985 = vld [vmem:[%s3 + $0x2e8] sm:$0xff]
    %v2986 = vld [vmem:[%s3 + $0x2f0] sm:$0xff]
    %v2987 = vld [vmem:[%s3 + $0x2f8] sm:$0xff]
    %v2988 = vld [vmem:[%s3 + $0x300] sm:$0xff]
    %v2989 = vld [vmem:[%s3 + $0x308] sm:$0xff]
    %v3088 = vunpack.c.l.b16 %v2892
    %v3089 = vunpack.c.h.b16 %v2892
    %v3090 = vunpack.c.l.b16 %v2893
    %v3091 = vunpack.c.h.b16 %v2893
    %v3092 = vunpack.c.l.b16 %v2894
    %v3093 = vunpack.c.h.b16 %v2894
    %v3094 = vunpack.c.l.b16 %v2895
    %v3095 = vunpack.c.h.b16 %v2895
    %v3096 = vunpack.c.l.b16 %v2896
    %v3097 = vunpack.c.h.b16 %v2896
    %v3098 = vunpack.c.l.b16 %v2897
    %v3099 = vunpack.c.h.b16 %v2897
    %v3100 = vunpack.c.l.b16 %v2898
    %v3101 = vunpack.c.h.b16 %v2898
    %v3102 = vunpack.c.l.b16 %v2899
    %v3103 = vunpack.c.h.b16 %v2899
    %v3104 = vunpack.c.l.b16 %v2900
    %v3105 = vunpack.c.h.b16 %v2900
    %v3106 = vunpack.c.l.b16 %v2901
    %v3107 = vunpack.c.h.b16 %v2901
    %v3108 = vunpack.c.l.b16 %v2902
    %v3109 = vunpack.c.h.b16 %v2902
    %v3110 = vunpack.c.l.b16 %v2903
    %v3111 = vunpack.c.h.b16 %v2903
    %v3112 = vunpack.c.l.b16 %v2904
    %v3113 = vunpack.c.h.b16 %v2904
    %v3114 = vunpack.c.l.b16 %v2905
    %v3115 = vunpack.c.h.b16 %v2905
    %v3116 = vunpack.c.l.b16 %v2906
    %v3117 = vunpack.c.h.b16 %v2906
    %v3118 = vunpack.c.l.b16 %v2907
    %v3119 = vunpack.c.h.b16 %v2907
    %v3120 = vunpack.c.l.b16 %v2908
    %v3121 = vunpack.c.h.b16 %v2908
    %v3122 = vunpack.c.l.b16 %v2909
    %v3123 = vunpack.c.h.b16 %v2909
    %v3124 = vunpack.c.l.b16 %v2910
    %v3125 = vunpack.c.h.b16 %v2910
    %v3126 = vunpack.c.l.b16 %v2911
    %v3127 = vunpack.c.h.b16 %v2911
    %v3128 = vunpack.c.l.b16 %v2912
    %v3129 = vunpack.c.h.b16 %v2912
    %v3130 = vunpack.c.l.b16 %v2913
    %v3131 = vunpack.c.h.b16 %v2913
    %v3132 = vunpack.c.l.b16 %v2914
    %v3133 = vunpack.c.h.b16 %v2914
    %v3134 = vunpack.c.l.b16 %v2915
    %v3135 = vunpack.c.h.b16 %v2915
    %v3136 = vunpack.c.l.b16 %v2916
    %v3137 = vunpack.c.h.b16 %v2916
    %v3138 = vunpack.c.l.b16 %v2917
    %v3139 = vunpack.c.h.b16 %v2917
    %v3140 = vunpack.c.l.b16 %v2918
    %v3141 = vunpack.c.h.b16 %v2918
    %v3142 = vunpack.c.l.b16 %v2919
    %v3143 = vunpack.c.h.b16 %v2919
    %v3144 = vunpack.c.l.b16 %v2920
    %v3145 = vunpack.c.h.b16 %v2920
    %v3146 = vunpack.c.l.b16 %v2921
    %v3147 = vunpack.c.h.b16 %v2921
    %v3148 = vunpack.c.l.b16 %v2922
    %v3149 = vunpack.c.h.b16 %v2922
    %v3150 = vunpack.c.l.b16 %v2923
    %v3151 = vunpack.c.h.b16 %v2923
    %v3152 = vunpack.c.l.b16 %v2924
    %v3153 = vunpack.c.h.b16 %v2924
    %v3154 = vunpack.c.l.b16 %v2925
    %v3155 = vunpack.c.h.b16 %v2925
    %v3156 = vunpack.c.l.b16 %v2926
    %v3157 = vunpack.c.h.b16 %v2926
    %v3158 = vunpack.c.l.b16 %v2927
    %v3159 = vunpack.c.h.b16 %v2927
    %v3160 = vunpack.c.l.b16 %v2928
    %v3161 = vunpack.c.h.b16 %v2928
    %v3162 = vunpack.c.l.b16 %v2929
    %v3163 = vunpack.c.h.b16 %v2929
    %v3164 = vunpack.c.l.b16 %v2930
    %v3165 = vunpack.c.h.b16 %v2930
    %v3166 = vunpack.c.l.b16 %v2931
    %v3167 = vunpack.c.h.b16 %v2931
    %v3168 = vunpack.c.l.b16 %v2932
    %v3169 = vunpack.c.h.b16 %v2932
    %v3170 = vunpack.c.l.b16 %v2933
    %v3171 = vunpack.c.h.b16 %v2933
    %v3172 = vunpack.c.l.b16 %v2934
    %v3173 = vunpack.c.h.b16 %v2934
    %v3174 = vunpack.c.l.b16 %v2935
    %v3175 = vunpack.c.h.b16 %v2935
    %v3176 = vunpack.c.l.b16 %v2936
    %v3177 = vunpack.c.h.b16 %v2936
    %v3178 = vunpack.c.l.b16 %v2937
    %v3179 = vunpack.c.h.b16 %v2937
    %v3180 = vunpack.c.l.b16 %v2938
    %v3181 = vunpack.c.h.b16 %v2938
    %v3182 = vunpack.c.l.b16 %v2939
    %v3183 = vunpack.c.h.b16 %v2939
    %v3184 = vunpack.c.l.b16 %v2940
    %v3185 = vunpack.c.h.b16 %v2940
    %v3186 = vunpack.c.l.b16 %v2941
    %v3187 = vunpack.c.h.b16 %v2941
    %v3188 = vunpack.c.l.b16 %v2942
    %v3189 = vunpack.c.h.b16 %v2942
    %v3190 = vunpack.c.l.b16 %v2943
    %v3191 = vunpack.c.h.b16 %v2943
    %v3192 = vunpack.c.l.b16 %v2944
    %v3193 = vunpack.c.h.b16 %v2944
    %v3194 = vunpack.c.l.b16 %v2945
    %v3195 = vunpack.c.h.b16 %v2945
    %v3196 = vunpack.c.l.b16 %v2946
    %v3197 = vunpack.c.h.b16 %v2946
    %v3198 = vunpack.c.l.b16 %v2947
    %v3199 = vunpack.c.h.b16 %v2947
    %v3200 = vunpack.c.l.b16 %v2948
    %v3201 = vunpack.c.h.b16 %v2948
    %v3202 = vunpack.c.l.b16 %v2949
    %v3203 = vunpack.c.h.b16 %v2949
    %v3204 = vunpack.c.l.b16 %v2950
    %v3205 = vunpack.c.h.b16 %v2950
    %v3206 = vunpack.c.l.b16 %v2951
    %v3207 = vunpack.c.h.b16 %v2951
    %v3208 = vunpack.c.l.b16 %v2952
    %v3209 = vunpack.c.h.b16 %v2952
    %v3210 = vunpack.c.l.b16 %v2953
    %v3211 = vunpack.c.h.b16 %v2953
    %v3212 = vunpack.c.l.b16 %v2954
    %v3213 = vunpack.c.h.b16 %v2954
    %v3214 = vunpack.c.l.b16 %v2955
    %v3215 = vunpack.c.h.b16 %v2955
    %v3216 = vunpack.c.l.b16 %v2956
    %v3217 = vunpack.c.h.b16 %v2956
    %v3218 = vunpack.c.l.b16 %v2957
    %v3219 = vunpack.c.h.b16 %v2957
    %v3220 = vunpack.c.l.b16 %v2958
    %v3221 = vunpack.c.h.b16 %v2958
    %v3222 = vunpack.c.l.b16 %v2959
    %v3223 = vunpack.c.h.b16 %v2959
    %v3224 = vunpack.c.l.b16 %v2960
    %v3225 = vunpack.c.h.b16 %v2960
    %v3226 = vunpack.c.l.b16 %v2961
    %v3227 = vunpack.c.h.b16 %v2961
    %v3228 = vunpack.c.l.b16 %v2962
    %v3229 = vunpack.c.h.b16 %v2962
    %v3230 = vunpack.c.l.b16 %v2963
    %v3231 = vunpack.c.h.b16 %v2963
    %v3232 = vunpack.c.l.b16 %v2964
    %v3233 = vunpack.c.h.b16 %v2964
    %v3234 = vunpack.c.l.b16 %v2965
    %v3235 = vunpack.c.h.b16 %v2965
    %v3236 = vunpack.c.l.b16 %v2966
    %v3237 = vunpack.c.h.b16 %v2966
    %v3238 = vunpack.c.l.b16 %v2967
    %v3239 = vunpack.c.h.b16 %v2967
    %v3240 = vunpack.c.l.b16 %v2968
    %v3241 = vunpack.c.h.b16 %v2968
    %v3242 = vunpack.c.l.b16 %v2969
    %v3243 = vunpack.c.h.b16 %v2969
    %v3244 = vunpack.c.l.b16 %v2970
    %v3245 = vunpack.c.h.b16 %v2970
    %v3246 = vunpack.c.l.b16 %v2971
    %v3247 = vunpack.c.h.b16 %v2971
    %v3248 = vunpack.c.l.b16 %v2972
    %v3249 = vunpack.c.h.b16 %v2972
    %v3250 = vunpack.c.l.b16 %v2973
    %v3251 = vunpack.c.h.b16 %v2973
    %v3252 = vunpack.c.l.b16 %v2974
    %v3253 = vunpack.c.h.b16 %v2974
    %v3254 = vunpack.c.l.b16 %v2975
    %v3255 = vunpack.c.h.b16 %v2975
    %v3256 = vunpack.c.l.b16 %v2976
    %v3257 = vunpack.c.h.b16 %v2976
    %v3258 = vunpack.c.l.b16 %v2977
    %v3259 = vunpack.c.h.b16 %v2977
    %v3260 = vunpack.c.l.b16 %v2978
    %v3261 = vunpack.c.h.b16 %v2978
    %v3262 = vunpack.c.l.b16 %v2979
    %v3263 = vunpack.c.h.b16 %v2979
    %v3264 = vunpack.c.l.b16 %v2980
    %v3265 = vunpack.c.h.b16 %v2980
    %v3266 = vunpack.c.l.b16 %v2981
    %v3267 = vunpack.c.h.b16 %v2981
    %v3268 = vunpack.c.l.b16 %v2982
    %v3269 = vunpack.c.h.b16 %v2982
    %v3270 = vunpack.c.l.b16 %v2983
    %v3271 = vunpack.c.h.b16 %v2983
    %v3272 = vunpack.c.l.b16 %v2984
    %v3273 = vunpack.c.h.b16 %v2984
    %v3274 = vunpack.c.l.b16 %v2985
    %v3275 = vunpack.c.h.b16 %v2985
    %v3276 = vunpack.c.l.b16 %v2986
    %v3277 = vunpack.c.h.b16 %v2986
    %v3278 = vunpack.c.l.b16 %v2987
    %v3279 = vunpack.c.h.b16 %v2987
    %v3280 = vunpack.c.l.b16 %v2988
    %v3281 = vunpack.c.h.b16 %v2988
    %v3282 = vunpack.c.l.b16 %v2989
    %v3283 = vunpack.c.h.b16 %v2989
    %v3284 = vpack.c.b16 %v3090, %v3088
    %v3285 = vpack.c.b16 %v3091, %v3089
    %v3286 = vpack.c.b16 %v3094, %v3092
    %v3287 = vpack.c.b16 %v3095, %v3093
    %v3288 = vpack.c.b16 %v3098, %v3096
    %v3289 = vpack.c.b16 %v3099, %v3097
    %v3290 = vpack.c.b16 %v3102, %v3100
    %v3291 = vpack.c.b16 %v3103, %v3101
    %v3292 = vpack.c.b16 %v3106, %v3104
    %v3293 = vpack.c.b16 %v3107, %v3105
    %v3294 = vpack.c.b16 %v3110, %v3108
    %v3295 = vpack.c.b16 %v3111, %v3109
    %v3296 = vpack.c.b16 %v3114, %v3112
    %v3297 = vpack.c.b16 %v3115, %v3113
    %v3298 = vpack.c.b16 %v3118, %v3116
    %v3299 = vpack.c.b16 %v3119, %v3117
    %v3300 = vpack.c.b16 %v3122, %v3120
    %v3301 = vpack.c.b16 %v3123, %v3121
    %v3302 = vpack.c.b16 %v3126, %v3124
    %v3303 = vpack.c.b16 %v3127, %v3125
    %v3304 = vpack.c.b16 %v3130, %v3128
    %v3305 = vpack.c.b16 %v3131, %v3129
    %v3306 = vpack.c.b16 %v3134, %v3132
    %v3307 = vpack.c.b16 %v3135, %v3133
    %v3308 = vpack.c.b16 %v3138, %v3136
    %v3309 = vpack.c.b16 %v3139, %v3137
    %v3310 = vpack.c.b16 %v3142, %v3140
    %v3311 = vpack.c.b16 %v3143, %v3141
    %v3312 = vpack.c.b16 %v3146, %v3144
    %v3313 = vpack.c.b16 %v3147, %v3145
    %v3314 = vpack.c.b16 %v3150, %v3148
    %v3315 = vpack.c.b16 %v3151, %v3149
    %v3316 = vpack.c.b16 %v3154, %v3152
    %v3317 = vpack.c.b16 %v3155, %v3153
    %v3318 = vpack.c.b16 %v3158, %v3156
    %v3319 = vpack.c.b16 %v3159, %v3157
    %v3320 = vpack.c.b16 %v3162, %v3160
    %v3321 = vpack.c.b16 %v3163, %v3161
    %v3322 = vpack.c.b16 %v3166, %v3164
    %v3323 = vpack.c.b16 %v3167, %v3165
    %v3324 = vpack.c.b16 %v3170, %v3168
    %v3325 = vpack.c.b16 %v3171, %v3169
    %v3326 = vpack.c.b16 %v3174, %v3172
    %v3327 = vpack.c.b16 %v3175, %v3173
    %v3328 = vpack.c.b16 %v3178, %v3176
    %v3329 = vpack.c.b16 %v3179, %v3177
    %v3330 = vpack.c.b16 %v3182, %v3180
    %v3331 = vpack.c.b16 %v3183, %v3181
    %v3332 = vpack.c.b16 %v3186, %v3184
    %v3333 = vpack.c.b16 %v3187, %v3185
    %v3334 = vpack.c.b16 %v3190, %v3188
    %v3335 = vpack.c.b16 %v3191, %v3189
    %v3336 = vpack.c.b16 %v3194, %v3192
    %v3337 = vpack.c.b16 %v3195, %v3193
    %v3338 = vpack.c.b16 %v3198, %v3196
    %v3339 = vpack.c.b16 %v3199, %v3197
    %v3340 = vpack.c.b16 %v3202, %v3200
    %v3341 = vpack.c.b16 %v3203, %v3201
    %v3342 = vpack.c.b16 %v3206, %v3204
    %v3343 = vpack.c.b16 %v3207, %v3205
    %v3344 = vpack.c.b16 %v3210, %v3208
    %v3345 = vpack.c.b16 %v3211, %v3209
    %v3346 = vpack.c.b16 %v3214, %v3212
    %v3347 = vpack.c.b16 %v3215, %v3213
    %v3348 = vpack.c.b16 %v3218, %v3216
    %v3349 = vpack.c.b16 %v3219, %v3217
    %v3350 = vpack.c.b16 %v3222, %v3220
    %v3351 = vpack.c.b16 %v3223, %v3221
    %v3352 = vpack.c.b16 %v3226, %v3224
    %v3353 = vpack.c.b16 %v3227, %v3225
    %v3354 = vpack.c.b16 %v3230, %v3228
    %v3355 = vpack.c.b16 %v3231, %v3229
    %v3356 = vpack.c.b16 %v3234, %v3232
    %v3357 = vpack.c.b16 %v3235, %v3233
    %v3358 = vpack.c.b16 %v3238, %v3236
    %v3359 = vpack.c.b16 %v3239, %v3237
    %v3360 = vpack.c.b16 %v3242, %v3240
    %v3361 = vpack.c.b16 %v3243, %v3241
    %v3362 = vpack.c.b16 %v3246, %v3244
    %v3363 = vpack.c.b16 %v3247, %v3245
    %v3364 = vpack.c.b16 %v3250, %v3248
    %v3365 = vpack.c.b16 %v3251, %v3249
    %v3366 = vpack.c.b16 %v3254, %v3252
    %v3367 = vpack.c.b16 %v3255, %v3253
    %v3368 = vpack.c.b16 %v3258, %v3256
    %v3369 = vpack.c.b16 %v3259, %v3257
    %v3370 = vpack.c.b16 %v3262, %v3260
    %v3371 = vpack.c.b16 %v3263, %v3261
    %v3372 = vpack.c.b16 %v3266, %v3264
    %v3373 = vpack.c.b16 %v3267, %v3265
    %v3374 = vpack.c.b16 %v3270, %v3268
    %v3375 = vpack.c.b16 %v3271, %v3269
    %v3376 = vpack.c.b16 %v3274, %v3272
    %v3377 = vpack.c.b16 %v3275, %v3273
    %v3378 = vpack.c.b16 %v3278, %v3276
    %v3379 = vpack.c.b16 %v3279, %v3277
    %v3380 = vpack.c.b16 %v3282, %v3280
    %v3381 = vpack.c.b16 %v3283, %v3281
    %v3481 = vsel %vm284, %v2842, 0
    %v3484 = vsel %vm284, %v2849, 0
    %v3487 = vsel %vm284, %v2856, 0
    %v3490 = vsel %vm284, %v2863, 0
    %v3493 = vsel %vm284, %v2870, 0
    %v3496 = vsel %vm284, %v2877, 0
    %v3499 = vsel %vm284, %v2884, 0
    %v3502 = vsel %vm284, %v2891, 0
    %3504 = vmatprep.subr.bf16.mxu0 %v3285
    %3505 = vmatpush1.bf16.msra.mxu0 %v3284
    %3506 = vmatprep.subr.bf16.mxu0 %v3287
    %3507 = vmatpush1.bf16.msra.mxu0 %v3286
    %3508 = vmatprep.subr.bf16.mxu0 %v3289
    %3509 = vmatpush1.bf16.msra.mxu0 %v3288
    %3510 = vmatprep.subr.bf16.mxu0 %v3291
    %3511 = vmatpush1.bf16.msra.mxu0 %v3290
    %3512 = vmatprep.subr.bf16.mxu0 %v3293
    %3513 = vmatpush1.bf16.msra.mxu0 %v3292
    %3514 = vmatprep.subr.bf16.mxu0 %v3295
    %3515 = vmatpush1.bf16.msra.mxu0 %v3294
    %3516 = vmatprep.subr.bf16.mxu0 %v3297
    %3517 = vmatpush1.bf16.msra.mxu0 %v3296
    %3518 = vmatprep.subr.bf16.mxu0 %v3299
    %3519 = vmatpush1.bf16.msra.mxu0 %v3298
    %3520 = vmatprep.subr.bf16.mxu0 %v3301
    %3521 = vmatpush1.bf16.msra.mxu0 %v3300
    %3522 = vmatprep.subr.bf16.mxu0 %v3303
    %3523 = vmatpush1.bf16.msra.mxu0 %v3302
    %3524 = vmatprep.subr.bf16.mxu0 %v3305
    %3525 = vmatpush1.bf16.msra.mxu0 %v3304
    %3526 = vmatprep.subr.bf16.mxu0 %v3307
    %3527 = vmatpush1.bf16.msra.mxu0 %v3306
    %3528 = vmatprep.subr.bf16.mxu0 %v3309
    %3529 = vmatpush1.bf16.msra.mxu0 %v3308
    %3530 = vmatprep.subr.bf16.mxu0 %v3311
    %3531 = vmatpush1.bf16.msra.mxu0 %v3310
    %3532 = vmatprep.subr.bf16.mxu0 %v3313
    %3533 = vmatpush1.bf16.msra.mxu0 %v3312
    %3534 = vmatprep.subr.bf16.mxu0 %v3315
    %3535 = vmatpush1.bf16.msra.mxu0 %v3314
    %3536 = vmatprep.mubr.bf16.mxu0 %v2837
    %3537 = vmatmul.mubr.bf16.gmra.mrb[0].mxu0 %v2836
    %v3538 = vpop.f32.mrb[0].mxu0
    %v3539 = vadd.f32 0.0, %v3538
    %v3540 = vpop.f32.mrb[0].mxu0
    %v3541 = vadd.f32 0.0, %v3540
    %v3542 = vpop.f32.mrb[0].mxu0
    %v3543 = vadd.f32 0.0, %v3542
    %v3544 = vpop.f32.mrb[0].mxu0
    %v3545 = vadd.f32 0.0, %v3544
    %3546 = vmatprep.mubr.bf16.mxu0 %v2844
    %3547 = vmatmul.mubr.bf16.gmra.mrb[0].mxu0 %v2843
    %v3548 = vpop.f32.mrb[0].mxu0
    %v3549 = vadd.f32 0.0, %v3548
    %v3550 = vpop.f32.mrb[0].mxu0
    %v3551 = vadd.f32 0.0, %v3550
    %v3552 = vpop.f32.mrb[0].mxu0
    %v3553 = vadd.f32 0.0, %v3552
    %v3554 = vpop.f32.mrb[0].mxu0
    %v3555 = vadd.f32 0.0, %v3554
    %3556 = vmatprep.mubr.bf16.mxu0 %v2851
    %3557 = vmatmul.mubr.bf16.gmra.mrb[0].mxu0 %v2850
    %v3558 = vpop.f32.mrb[0].mxu0
    %v3559 = vadd.f32 0.0, %v3558
    %v3560 = vpop.f32.mrb[0].mxu0
    %v3561 = vadd.f32 0.0, %v3560
    %v3562 = vpop.f32.mrb[0].mxu0
    %v3563 = vadd.f32 0.0, %v3562
    %v3564 = vpop.f32.mrb[0].mxu0
    %v3565 = vadd.f32 0.0, %v3564
    %3566 = vmatprep.mubr.bf16.mxu0 %v2858
    %3567 = vmatmul.mubr.bf16.gmra.mrb[0].mxu0 %v2857
    %v3568 = vpop.f32.mrb[0].mxu0
    %v3569 = vadd.f32 0.0, %v3568
    %v3570 = vpop.f32.mrb[0].mxu0
    %v3571 = vadd.f32 0.0, %v3570
    %v3572 = vpop.f32.mrb[0].mxu0
    %v3573 = vadd.f32 0.0, %v3572
    %v3574 = vpop.f32.mrb[0].mxu0
    %v3575 = vadd.f32 0.0, %v3574
    %3576 = vmatprep.mubr.bf16.mxu0 %v2865
    %3577 = vmatmul.mubr.bf16.gmra.mrb[0].mxu0 %v2864
    %v3578 = vpop.f32.mrb[0].mxu0
    %v3579 = vadd.f32 0.0, %v3578
    %v3580 = vpop.f32.mrb[0].mxu0
    %v3581 = vadd.f32 0.0, %v3580
    %v3582 = vpop.f32.mrb[0].mxu0
    %v3583 = vadd.f32 0.0, %v3582
    %v3584 = vpop.f32.mrb[0].mxu0
    %v3585 = vadd.f32 0.0, %v3584
    %3586 = vmatprep.mubr.bf16.mxu0 %v2872
    %3587 = vmatmul.mubr.bf16.gmra.mrb[0].mxu0 %v2871
    %v3588 = vpop.f32.mrb[0].mxu0
    %v3589 = vadd.f32 0.0, %v3588
    %v3590 = vpop.f32.mrb[0].mxu0
    %v3591 = vadd.f32 0.0, %v3590
    %v3592 = vpop.f32.mrb[0].mxu0
    %v3593 = vadd.f32 0.0, %v3592
    %v3594 = vpop.f32.mrb[0].mxu0
    %v3595 = vadd.f32 0.0, %v3594
    %3596 = vmatprep.mubr.bf16.mxu0 %v2879
    %3597 = vmatmul.mubr.bf16.gmra.mrb[0].mxu0 %v2878
    %v3598 = vpop.f32.mrb[0].mxu0
    %v3599 = vadd.f32 0.0, %v3598
    %v3600 = vpop.f32.mrb[0].mxu0
    %v3601 = vadd.f32 0.0, %v3600
    %v3602 = vpop.f32.mrb[0].mxu0
    %v3603 = vadd.f32 0.0, %v3602
    %v3604 = vpop.f32.mrb[0].mxu0
    %v3605 = vadd.f32 0.0, %v3604
    %3606 = vmatprep.mubr.bf16.mxu0 %v2886
    %3607 = vmatmul.mubr.bf16.gmra.mrb[0].mxu0 %v2885
    %v3608 = vpop.f32.mrb[0].mxu0
    %v3609 = vadd.f32 0.0, %v3608
    %v3610 = vpop.f32.mrb[0].mxu0
    %v3611 = vadd.f32 0.0, %v3610
    %v3612 = vpop.f32.mrb[0].mxu0
    %v3613 = vadd.f32 0.0, %v3612
    %v3614 = vpop.f32.mrb[0].mxu0
    %v3615 = vadd.f32 0.0, %v3614
    %3616 = vdwg.mxu0
    %3617 = vmatprep.subr.bf16.mxu0 %v3317
    %3618 = vmatpush1.bf16.msra.mxu0 %v3316
    %3619 = vmatprep.subr.bf16.mxu0 %v3319
    %3620 = vmatpush1.bf16.msra.mxu0 %v3318
    %3621 = vmatprep.subr.bf16.mxu0 %v3321
    %3622 = vmatpush1.bf16.msra.mxu0 %v3320
    %3623 = vmatprep.subr.bf16.mxu0 %v3323
    %3624 = vmatpush1.bf16.msra.mxu0 %v3322
    %3625 = vmatprep.subr.bf16.mxu0 %v3325
    %3626 = vmatpush1.bf16.msra.mxu0 %v3324
    %3627 = vmatprep.subr.bf16.mxu0 %v3327
    %3628 = vmatpush1.bf16.msra.mxu0 %v3326
    %3629 = vmatprep.subr.bf16.mxu0 %v3329
    %3630 = vmatpush1.bf16.msra.mxu0 %v3328
    %3631 = vmatprep.subr.bf16.mxu0 %v3331
    %3632 = vmatpush1.bf16.msra.mxu0 %v3330
    %3633 = vmatprep.subr.bf16.mxu0 %v3333
    %3634 = vmatpush1.bf16.msra.mxu0 %v3332
    %3635 = vmatprep.subr.bf16.mxu0 %v3335
    %3636 = vmatpush1.bf16.msra.mxu0 %v3334
    %3637 = vmatprep.subr.bf16.mxu0 %v3337
    %3638 = vmatpush1.bf16.msra.mxu0 %v3336
    %3639 = vmatprep.subr.bf16.mxu0 %v3339
    %3640 = vmatpush1.bf16.msra.mxu0 %v3338
    %3641 = vmatprep.subr.bf16.mxu0 %v3341
    %3642 = vmatpush1.bf16.msra.mxu0 %v3340
    %3643 = vmatprep.subr.bf16.mxu0 %v3343
    %3644 = vmatpush1.bf16.msra.mxu0 %v3342
    %3645 = vmatprep.subr.bf16.mxu0 %v3345
    %3646 = vmatpush1.bf16.msra.mxu0 %v3344
    %3647 = vmatprep.subr.bf16.mxu0 %v3347
    %3648 = vmatpush1.bf16.msra.mxu0 %v3346
    %3649 = vmatprep.mubr.bf16.mxu0 %v2839
    %3650 = vmatmul.mubr.bf16.gmra.mrb[0].mxu0 %v2838
    %v3651 = vpop.f32.mrb[0].mxu0
    %v3652 = vadd.f32 %v3539, %v3651
    %v3653 = vpop.f32.mrb[0].mxu0
    %v3654 = vadd.f32 %v3541, %v3653
    %v3655 = vpop.f32.mrb[0].mxu0
    %v3656 = vadd.f32 %v3543, %v3655
    %v3657 = vpop.f32.mrb[0].mxu0
    %v3658 = vadd.f32 %v3545, %v3657
    %3659 = vmatprep.mubr.bf16.mxu0 %v2846
    %3660 = vmatmul.mubr.bf16.gmra.mrb[0].mxu0 %v2845
    %v3661 = vpop.f32.mrb[0].mxu0
    %v3662 = vadd.f32 %v3549, %v3661
    %v3663 = vpop.f32.mrb[0].mxu0
    %v3664 = vadd.f32 %v3551, %v3663
    %v3665 = vpop.f32.mrb[0].mxu0
    %v3666 = vadd.f32 %v3553, %v3665
    %v3667 = vpop.f32.mrb[0].mxu0
    %v3668 = vadd.f32 %v3555, %v3667
    %3669 = vmatprep.mubr.bf16.mxu0 %v2853
    %3670 = vmatmul.mubr.bf16.gmra.mrb[0].mxu0 %v2852
    %v3671 = vpop.f32.mrb[0].mxu0
    %v3672 = vadd.f32 %v3559, %v3671
    %v3673 = vpop.f32.mrb[0].mxu0
    %v3674 = vadd.f32 %v3561, %v3673
    %v3675 = vpop.f32.mrb[0].mxu0
    %v3676 = vadd.f32 %v3563, %v3675
    %v3677 = vpop.f32.mrb[0].mxu0
    %v3678 = vadd.f32 %v3565, %v3677
    %3679 = vmatprep.mubr.bf16.mxu0 %v2860
    %3680 = vmatmul.mubr.bf16.gmra.mrb[0].mxu0 %v2859
    %v3681 = vpop.f32.mrb[0].mxu0
    %v3682 = vadd.f32 %v3569, %v3681
    %v3683 = vpop.f32.mrb[0].mxu0
    %v3684 = vadd.f32 %v3571, %v3683
    %v3685 = vpop.f32.mrb[0].mxu0
    %v3686 = vadd.f32 %v3573, %v3685
    %v3687 = vpop.f32.mrb[0].mxu0
    %v3688 = vadd.f32 %v3575, %v3687
    %3689 = vmatprep.mubr.bf16.mxu0 %v2867
    %3690 = vmatmul.mubr.bf16.gmra.mrb[0].mxu0 %v2866
    %v3691 = vpop.f32.mrb[0].mxu0
    %v3692 = vadd.f32 %v3579, %v3691
    %v3693 = vpop.f32.mrb[0].mxu0
    %v3694 = vadd.f32 %v3581, %v3693
    %v3695 = vpop.f32.mrb[0].mxu0
    %v3696 = vadd.f32 %v3583, %v3695
    %v3697 = vpop.f32.mrb[0].mxu0
    %v3698 = vadd.f32 %v3585, %v3697
    %3699 = vmatprep.mubr.bf16.mxu0 %v2874
    %3700 = vmatmul.mubr.bf16.gmra.mrb[0].mxu0 %v2873
    %v3701 = vpop.f32.mrb[0].mxu0
    %v3702 = vadd.f32 %v3589, %v3701
    %v3703 = vpop.f32.mrb[0].mxu0
    %v3704 = vadd.f32 %v3591, %v3703
    %v3705 = vpop.f32.mrb[0].mxu0
    %v3706 = vadd.f32 %v3593, %v3705
    %v3707 = vpop.f32.mrb[0].mxu0
    %v3708 = vadd.f32 %v3595, %v3707
    %3709 = vmatprep.mubr.bf16.mxu0 %v2881
    %3710 = vmatmul.mubr.bf16.gmra.mrb[0].mxu0 %v2880
    %v3711 = vpop.f32.mrb[0].mxu0
    %v3712 = vadd.f32 %v3599, %v3711
    %v3713 = vpop.f32.mrb[0].mxu0
    %v3714 = vadd.f32 %v3601, %v3713
    %v3715 = vpop.f32.mrb[0].mxu0
    %v3716 = vadd.f32 %v3603, %v3715
    %v3717 = vpop.f32.mrb[0].mxu0
    %v3718 = vadd.f32 %v3605, %v3717
    %3719 = vmatprep.mubr.bf16.mxu0 %v2888
    %3720 = vmatmul.mubr.bf16.gmra.mrb[0].mxu0 %v2887
    %v3721 = vpop.f32.mrb[0].mxu0
    %v3722 = vadd.f32 %v3609, %v3721
    %v3723 = vpop.f32.mrb[0].mxu0
    %v3724 = vadd.f32 %v3611, %v3723
    %v3725 = vpop.f32.mrb[0].mxu0
    %v3726 = vadd.f32 %v3613, %v3725
    %v3727 = vpop.f32.mrb[0].mxu0
    %v3728 = vadd.f32 %v3615, %v3727
    %3729 = vdwg.mxu0
    %3730 = vmatprep.subr.bf16.mxu0 %v3349
    %3731 = vmatpush1.bf16.msra.mxu0 %v3348
    %3732 = vmatprep.subr.bf16.mxu0 %v3351
    %3733 = vmatpush1.bf16.msra.mxu0 %v3350
    %3734 = vmatprep.subr.bf16.mxu0 %v3353
    %3735 = vmatpush1.bf16.msra.mxu0 %v3352
    %3736 = vmatprep.subr.bf16.mxu0 %v3355
    %3737 = vmatpush1.bf16.msra.mxu0 %v3354
    %3738 = vmatprep.subr.bf16.mxu0 %v3357
    %3739 = vmatpush1.bf16.msra.mxu0 %v3356
    %3740 = vmatprep.subr.bf16.mxu0 %v3359
    %3741 = vmatpush1.bf16.msra.mxu0 %v3358
    %3742 = vmatprep.subr.bf16.mxu0 %v3361
    %3743 = vmatpush1.bf16.msra.mxu0 %v3360
    %3744 = vmatprep.subr.bf16.mxu0 %v3363
    %3745 = vmatpush1.bf16.msra.mxu0 %v3362
    %3746 = vmatprep.subr.bf16.mxu0 %v3365
    %3747 = vmatpush1.bf16.msra.mxu0 %v3364
    %3748 = vmatprep.subr.bf16.mxu0 %v3367
    %3749 = vmatpush1.bf16.msra.mxu0 %v3366
    %3750 = vmatprep.subr.bf16.mxu0 %v3369
    %3751 = vmatpush1.bf16.msra.mxu0 %v3368
    %3752 = vmatprep.subr.bf16.mxu0 %v3371
    %3753 = vmatpush1.bf16.msra.mxu0 %v3370
    %3754 = vmatprep.subr.bf16.mxu0 %v3373
    %3755 = vmatpush1.bf16.msra.mxu0 %v3372
    %3756 = vmatprep.subr.bf16.mxu0 %v3375
    %3757 = vmatpush1.bf16.msra.mxu0 %v3374
    %3758 = vmatprep.subr.bf16.mxu0 %v3377
    %3759 = vmatpush1.bf16.msra.mxu0 %v3376
    %3760 = vmatprep.subr.bf16.mxu0 %v3379
    %3761 = vmatpush1.bf16.msra.mxu0 %v3378
    %3762 = vmatprep.mubr.bf16.mxu0 %v2841
    %3763 = vmatmul.mubr.bf16.gmra.mrb[0].mxu0 %v2840
    %v3764 = vpop.f32.mrb[0].mxu0
    %v3765 = vadd.f32 %v3652, %v3764
    %v3766 = vpop.f32.mrb[0].mxu0
    %v3767 = vadd.f32 %v3654, %v3766
    %v3768 = vpop.f32.mrb[0].mxu0
    %v3769 = vadd.f32 %v3656, %v3768
    %v3770 = vpop.f32.mrb[0].mxu0
    %v3771 = vadd.f32 %v3658, %v3770
    %3772 = vmatprep.mubr.bf16.mxu0 %v2848
    %3773 = vmatmul.mubr.bf16.gmra.mrb[0].mxu0 %v2847
    %v3774 = vpop.f32.mrb[0].mxu0
    %v3775 = vadd.f32 %v3662, %v3774
    %v3776 = vpop.f32.mrb[0].mxu0
    %v3777 = vadd.f32 %v3664, %v3776
    %v3778 = vpop.f32.mrb[0].mxu0
    %v3779 = vadd.f32 %v3666, %v3778
    %v3780 = vpop.f32.mrb[0].mxu0
    %v3781 = vadd.f32 %v3668, %v3780
    %3782 = vmatprep.mubr.bf16.mxu0 %v2855
    %3783 = vmatmul.mubr.bf16.gmra.mrb[0].mxu0 %v2854
    %v3784 = vpop.f32.mrb[0].mxu0
    %v3785 = vadd.f32 %v3672, %v3784
    %v3786 = vpop.f32.mrb[0].mxu0
    %v3787 = vadd.f32 %v3674, %v3786
    %v3788 = vpop.f32.mrb[0].mxu0
    %v3789 = vadd.f32 %v3676, %v3788
    %v3790 = vpop.f32.mrb[0].mxu0
    %v3791 = vadd.f32 %v3678, %v3790
    %3792 = vmatprep.mubr.bf16.mxu0 %v2862
    %3793 = vmatmul.mubr.bf16.gmra.mrb[0].mxu0 %v2861
    %v3794 = vpop.f32.mrb[0].mxu0
    %v3795 = vadd.f32 %v3682, %v3794
    %v3796 = vpop.f32.mrb[0].mxu0
    %v3797 = vadd.f32 %v3684, %v3796
    %v3798 = vpop.f32.mrb[0].mxu0
    %v3799 = vadd.f32 %v3686, %v3798
    %v3800 = vpop.f32.mrb[0].mxu0
    %v3801 = vadd.f32 %v3688, %v3800
    %3802 = vmatprep.mubr.bf16.mxu0 %v2869
    %3803 = vmatmul.mubr.bf16.gmra.mrb[0].mxu0 %v2868
    %v3804 = vpop.f32.mrb[0].mxu0
    %v3805 = vadd.f32 %v3692, %v3804
    %v3806 = vpop.f32.mrb[0].mxu0
    %v3807 = vadd.f32 %v3694, %v3806
    %v3808 = vpop.f32.mrb[0].mxu0
    %v3809 = vadd.f32 %v3696, %v3808
    %v3810 = vpop.f32.mrb[0].mxu0
    %v3811 = vadd.f32 %v3698, %v3810
    %3812 = vmatprep.mubr.bf16.mxu0 %v2876
    %3813 = vmatmul.mubr.bf16.gmra.mrb[0].mxu0 %v2875
    %v3814 = vpop.f32.mrb[0].mxu0
    %v3815 = vadd.f32 %v3702, %v3814
    %v3816 = vpop.f32.mrb[0].mxu0
    %v3817 = vadd.f32 %v3704, %v3816
    %v3818 = vpop.f32.mrb[0].mxu0
    %v3819 = vadd.f32 %v3706, %v3818
    %v3820 = vpop.f32.mrb[0].mxu0
    %v3821 = vadd.f32 %v3708, %v3820
    %3822 = vmatprep.mubr.bf16.mxu0 %v2883
    %3823 = vmatmul.mubr.bf16.gmra.mrb[0].mxu0 %v2882
    %v3824 = vpop.f32.mrb[0].mxu0
    %v3825 = vadd.f32 %v3712, %v3824
    %v3826 = vpop.f32.mrb[0].mxu0
    %v3827 = vadd.f32 %v3714, %v3826
    %v3828 = vpop.f32.mrb[0].mxu0
    %v3829 = vadd.f32 %v3716, %v3828
    %v3830 = vpop.f32.mrb[0].mxu0
    %v3831 = vadd.f32 %v3718, %v3830
    %3832 = vmatprep.mubr.bf16.mxu0 %v2890
    %3833 = vmatmul.mubr.bf16.gmra.mrb[0].mxu0 %v2889
    %v3834 = vpop.f32.mrb[0].mxu0
    %v3835 = vadd.f32 %v3722, %v3834
    %v3836 = vpop.f32.mrb[0].mxu0
    %v3837 = vadd.f32 %v3724, %v3836
    %v3838 = vpop.f32.mrb[0].mxu0
    %v3839 = vadd.f32 %v3726, %v3838
    %v3840 = vpop.f32.mrb[0].mxu0
    %v3841 = vadd.f32 %v3728, %v3840
    %3842 = vdwg.mxu0
    %3843 = vmatprep.subr.bf16.mxu0 %v3381
    %3844 = vmatpush1.bf16.msra.mxu0 %v3380
    %3845 = vmatprep.subr.bf16.mxu0 0
    %3846 = vmatpush1.bf16.msra.mxu0 0
    %3847 = vmatprep.subr.bf16.mxu0 0
    %3848 = vmatpush1.bf16.msra.mxu0 0
    %3849 = vmatprep.subr.bf16.mxu0 0
    %3850 = vmatpush1.bf16.msra.mxu0 0
    %3851 = vmatprep.subr.bf16.mxu0 0
    %3852 = vmatpush1.bf16.msra.mxu0 0
    %3853 = vmatprep.subr.bf16.mxu0 0
    %3854 = vmatpush1.bf16.msra.mxu0 0
    %3855 = vmatprep.subr.bf16.mxu0 0
    %3856 = vmatpush1.bf16.msra.mxu0 0
    %3857 = vmatprep.subr.bf16.mxu0 0
    %3858 = vmatpush1.bf16.msra.mxu0 0
    %3859 = vmatprep.subr.bf16.mxu0 0
    %3860 = vmatpush1.bf16.msra.mxu0 0
    %3861 = vmatprep.subr.bf16.mxu0 0
    %3862 = vmatpush1.bf16.msra.mxu0 0
    %3863 = vmatprep.subr.bf16.mxu0 0
    %3864 = vmatpush1.bf16.msra.mxu0 0
    %3865 = vmatprep.subr.bf16.mxu0 0
    %3866 = vmatpush1.bf16.msra.mxu0 0
    %3867 = vmatprep.subr.bf16.mxu0 0
    %3868 = vmatpush1.bf16.msra.mxu0 0
    %3869 = vmatprep.subr.bf16.mxu0 0
    %3870 = vmatpush1.bf16.msra.mxu0 0
    %3871 = vmatprep.subr.bf16.mxu0 0
    %3872 = vmatpush1.bf16.msra.mxu0 0
    %3873 = vmatprep.subr.bf16.mxu0 0
    %3874 = vmatpush1.bf16.msra.mxu0 0
    %3875 = vmatprep.mubr.bf16.mxu0 0
    %3876 = vmatmul.mubr.bf16.gmra.mrb[0].mxu0 %v3481
    %v3877 = vpop.f32.mrb[0].mxu0
    %v3878 = vadd.f32 %v3765, %v3877
    %v3879 = vpop.f32.mrb[0].mxu0
    %v3880 = vadd.f32 %v3767, %v3879
    %v3881 = vpop.f32.mrb[0].mxu0
    %v3882 = vadd.f32 %v3769, %v3881
    %v3883 = vpop.f32.mrb[0].mxu0
    %v3884 = vadd.f32 %v3771, %v3883
    %3885 = vmatprep.mubr.bf16.mxu0 0
    %3886 = vmatmul.mubr.bf16.gmra.mrb[0].mxu0 %v3484
    %v3887 = vpop.f32.mrb[0].mxu0
    %v3888 = vadd.f32 %v3775, %v3887
    %v3889 = vpop.f32.mrb[0].mxu0
    %v3890 = vadd.f32 %v3777, %v3889
    %v3891 = vpop.f32.mrb[0].mxu0
    %v3892 = vadd.f32 %v3779, %v3891
    %v3893 = vpop.f32.mrb[0].mxu0
    %v3894 = vadd.f32 %v3781, %v3893
    %3895 = vmatprep.mubr.bf16.mxu0 0
    %3896 = vmatmul.mubr.bf16.gmra.mrb[0].mxu0 %v3487
    %v3897 = vpop.f32.mrb[0].mxu0
    %v3898 = vadd.f32 %v3785, %v3897
    %v3899 = vpop.f32.mrb[0].mxu0
    %v3900 = vadd.f32 %v3787, %v3899
    %v3901 = vpop.f32.mrb[0].mxu0
    %v3902 = vadd.f32 %v3789, %v3901
    %v3903 = vpop.f32.mrb[0].mxu0
    %v3904 = vadd.f32 %v3791, %v3903
    %3905 = vmatprep.mubr.bf16.mxu0 0
    %3906 = vmatmul.mubr.bf16.gmra.mrb[0].mxu0 %v3490
    %v3907 = vpop.f32.mrb[0].mxu0
    %v3908 = vadd.f32 %v3795, %v3907
    %v3909 = vpop.f32.mrb[0].mxu0
    %v3910 = vadd.f32 %v3797, %v3909
    %v3911 = vpop.f32.mrb[0].mxu0
    %v3912 = vadd.f32 %v3799, %v3911
    %v3913 = vpop.f32.mrb[0].mxu0
    %v3914 = vadd.f32 %v3801, %v3913
    %3915 = vmatprep.mubr.bf16.mxu0 0
    %3916 = vmatmul.mubr.bf16.gmra.mrb[0].mxu0 %v3493
    %v3917 = vpop.f32.mrb[0].mxu0
    %v3918 = vadd.f32 %v3805, %v3917
    %v3919 = vpop.f32.mrb[0].mxu0
    %v3920 = vadd.f32 %v3807, %v3919
    %v3921 = vpop.f32.mrb[0].mxu0
    %v3922 = vadd.f32 %v3809, %v3921
    %v3923 = vpop.f32.mrb[0].mxu0
    %v3924 = vadd.f32 %v3811, %v3923
    %3925 = vmatprep.mubr.bf16.mxu0 0
    %3926 = vmatmul.mubr.bf16.gmra.mrb[0].mxu0 %v3496
    %v3927 = vpop.f32.mrb[0].mxu0
    %v3928 = vadd.f32 %v3815, %v3927
    %v3929 = vpop.f32.mrb[0].mxu0
    %v3930 = vadd.f32 %v3817, %v3929
    %v3931 = vpop.f32.mrb[0].mxu0
    %v3932 = vadd.f32 %v3819, %v3931
    %v3933 = vpop.f32.mrb[0].mxu0
    %v3934 = vadd.f32 %v3821, %v3933
    %3935 = vmatprep.mubr.bf16.mxu0 0
    %3936 = vmatmul.mubr.bf16.gmra.mrb[0].mxu0 %v3499
    %v3937 = vpop.f32.mrb[0].mxu0
    %v3938 = vadd.f32 %v3825, %v3937
    %v3939 = vpop.f32.mrb[0].mxu0
    %v3940 = vadd.f32 %v3827, %v3939
    %v3941 = vpop.f32.mrb[0].mxu0
    %v3942 = vadd.f32 %v3829, %v3941
    %v3943 = vpop.f32.mrb[0].mxu0
    %v3944 = vadd.f32 %v3831, %v3943
    %3945 = vmatprep.mubr.bf16.mxu0 0
    %3946 = vmatmul.mubr.bf16.gmra.mrb[0].mxu0 %v3502
    %v3947 = vpop.f32.mrb[0].mxu0
    %v3948 = vadd.f32 %v3835, %v3947
    %v3949 = vpop.f32.mrb[0].mxu0
    %v3950 = vadd.f32 %v3837, %v3949
    %v3951 = vpop.f32.mrb[0].mxu0
    %v3952 = vadd.f32 %v3839, %v3951
    %v3953 = vpop.f32.mrb[0].mxu0
    %v3954 = vadd.f32 %v3841, %v3953
    %3955 = vdwg.mxu0
    %v3956 = vpack.c.bf16 %v3882, %v3878
    %v3957 = vpack.c.bf16 %v3884, %v3880
    %v3958 = vpack.c.bf16 %v3892, %v3888
    %v3959 = vpack.c.bf16 %v3894, %v3890
    %v3960 = vpack.c.bf16 %v3902, %v3898
    %v3961 = vpack.c.bf16 %v3904, %v3900
    %v3962 = vpack.c.bf16 %v3912, %v3908
    %v3963 = vpack.c.bf16 %v3914, %v3910
    %v3964 = vpack.c.bf16 %v3922, %v3918
    %v3965 = vpack.c.bf16 %v3924, %v3920
    %v3966 = vpack.c.bf16 %v3932, %v3928
    %v3967 = vpack.c.bf16 %v3934, %v3930
    %v3968 = vpack.c.bf16 %v3942, %v3938
    %v3969 = vpack.c.bf16 %v3944, %v3940
    %v3970 = vpack.c.bf16 %v3952, %v3948
    %v3971 = vpack.c.bf16 %v3954, %v3950
    %3988 = vrot.lane.b32.xlu0 %v3956, 32
    %v3989 = vpop.permute.xlu0 %3988
    %3990 = vrot.lane.b32.xlu0 %v3957, 32
    %v3991 = vpop.permute.xlu0 %3990
    %3992 = vrot.lane.b32.xlu0 %v3958, 32
    %v3993 = vpop.permute.xlu0 %3992
    %3994 = vrot.lane.b32.xlu0 %v3959, 32
    %v3995 = vpop.permute.xlu0 %3994
    %3996 = vrot.lane.b32.xlu0 %v3960, 32
    %v3997 = vpop.permute.xlu0 %3996
    %3998 = vrot.lane.b32.xlu0 %v3961, 32
    %v3999 = vpop.permute.xlu0 %3998
    %4000 = vrot.lane.b32.xlu0 %v3962, 32
    %v4001 = vpop.permute.xlu0 %4000
    %4002 = vrot.lane.b32.xlu0 %v3963, 32
    %v4003 = vpop.permute.xlu0 %4002
    %4004 = vrot.lane.b32.xlu0 %v3964, 32
    %v4005 = vpop.permute.xlu0 %4004
    %4006 = vrot.lane.b32.xlu0 %v3965, 32
    %v4007 = vpop.permute.xlu0 %4006
    %4008 = vrot.lane.b32.xlu0 %v3966, 32
    %v4009 = vpop.permute.xlu0 %4008
    %4010 = vrot.lane.b32.xlu0 %v3967, 32
    %v4011 = vpop.permute.xlu0 %4010
    %4012 = vrot.lane.b32.xlu0 %v3968, 32
    %v4013 = vpop.permute.xlu0 %4012
    %4014 = vrot.lane.b32.xlu0 %v3969, 32
    %v4015 = vpop.permute.xlu0 %4014
    %4016 = vrot.lane.b32.xlu0 %v3970, 32
    %v4017 = vpop.permute.xlu0 %4016
    %4018 = vrot.lane.b32.xlu0 %v3971, 32
    %v4019 = vpop.permute.xlu0 %4018
    %vm4020 = vcmask 261120
    %v4021 = vsel %vm4020, %v3989, %v3991
    %v4022 = vsel %vm4020, %v3993, %v3995
    %v4023 = vsel %vm4020, %v3997, %v3999
    %v4024 = vsel %vm4020, %v4001, %v4003
    %v4025 = vsel %vm4020, %v4005, %v4007
    %v4026 = vsel %vm4020, %v4009, %v4011
    %v4027 = vsel %vm4020, %v4013, %v4015
    %v4028 = vsel %vm4020, %v4017, %v4019
    %4045 = vst.msk [vmem:[#allocation5] sm:$0xff] %vm162, %v3989
    %4046 = vst [vmem:[#allocation5 + $0x8] sm:$0xff] %v4021
    %4047 = vst.msk [vmem:[#allocation5 + $0x18] sm:$0xff] %vm162, %v3993
    %4048 = vst [vmem:[#allocation5 + $0x20] sm:$0xff] %v4022
    %4049 = vst.msk [vmem:[#allocation5 + $0x30] sm:$0xff] %vm162, %v3997
    %4050 = vst [vmem:[#allocation5 + $0x38] sm:$0xff] %v4023
    %4051 = vst.msk [vmem:[#allocation5 + $0x48] sm:$0xff] %vm162, %v4001
    %4052 = vst [vmem:[#allocation5 + $0x50] sm:$0xff] %v4024
    %4053 = vst.msk [vmem:[#allocation5 + $0x60] sm:$0xff] %vm162, %v4005
    %4054 = vst [vmem:[#allocation5 + $0x68] sm:$0xff] %v4025
    %4055 = vst.msk [vmem:[#allocation5 + $0x78] sm:$0xff] %vm162, %v4009
    %4056 = vst [vmem:[#allocation5 + $0x80] sm:$0xff] %v4026
    %4057 = vst.msk [vmem:[#allocation5 + $0x90] sm:$0xff] %vm162, %v4013
    %4058 = vst [vmem:[#allocation5 + $0x98] sm:$0xff] %v4027
    %4059 = vst.msk [vmem:[#allocation5 + $0xa8] sm:$0xff] %vm162, %v4017
    %4060 = vst [vmem:[#allocation5 + $0xb0] sm:$0xff] %v4028
    %v4061 = vld [vmem:[#allocation8] sm:$0xf]
    %v4062 = vld [vmem:[#allocation8 + $0x4] sm:$0xf]
    %v4063 = vld [vmem:[#allocation8 + $0x8] sm:$0xf]
    %v4064 = vld [vmem:[#allocation8 + $0xc] sm:$0xf]
    %v4065 = vld [vmem:[#allocation8 + $0x10] sm:$0xf]
    %v4066 = vld [vmem:[#allocation8 + $0x14] sm:$0xf]
    %v4067 = vld [vmem:[#allocation8 + $0x18] sm:$0xf]
    %v4068 = vld [vmem:[#allocation8 + $0x1c] sm:$0xf]
    %v4069 = vld [vmem:[#allocation8 + $0x20] sm:$0xf]
    %v4070 = vld [vmem:[#allocation8 + $0x24] sm:$0xf]
    %v4071 = vld [vmem:[#allocation8 + $0x28] sm:$0xf]
    %v4072 = vld [vmem:[#allocation8 + $0x2c] sm:$0xf]
    %v4073 = vld [vmem:[#allocation8 + $0x30] sm:$0xf]
    %v4074 = vld [vmem:[#allocation8 + $0x34] sm:$0xf]
    %v4075 = vld [vmem:[#allocation8 + $0x38] sm:$0xf]
    %v4076 = vld [vmem:[#allocation8 + $0x3c] sm:$0xf]
    %v4077 = vld [vmem:[#allocation5] sm:$0xff]
    %v4078 = vld [vmem:[#allocation5 + $0x8] sm:$0xff]
    %v4079 = vld [vmem:[#allocation5 + $0x18] sm:$0xff]
    %v4080 = vld [vmem:[#allocation5 + $0x20] sm:$0xff]
    %v4081 = vld [vmem:[#allocation5 + $0x30] sm:$0xff]
    %v4082 = vld [vmem:[#allocation5 + $0x38] sm:$0xff]
    %v4083 = vld [vmem:[#allocation5 + $0x48] sm:$0xff]
    %v4084 = vld [vmem:[#allocation5 + $0x50] sm:$0xff]
    %v4085 = vld [vmem:[#allocation5 + $0x60] sm:$0xff]
    %v4086 = vld [vmem:[#allocation5 + $0x68] sm:$0xff]
    %v4087 = vld [vmem:[#allocation5 + $0x78] sm:$0xff]
    %v4088 = vld [vmem:[#allocation5 + $0x80] sm:$0xff]
    %v4089 = vld [vmem:[#allocation5 + $0x90] sm:$0xff]
    %v4090 = vld [vmem:[#allocation5 + $0x98] sm:$0xff]
    %v4091 = vld [vmem:[#allocation5 + $0xa8] sm:$0xff]
    %v4092 = vld [vmem:[#allocation5 + $0xb0] sm:$0xff]
    %s4093 = scalar_lea.vmem [#allocation8], 64
    %v4094 = vld [vmem:[%s4093] sm:$0xf]
    %v4095 = vld [vmem:[%s4093 + $0x4] sm:$0xf]
    %v4096 = vld [vmem:[%s4093 + $0x8] sm:$0xf]
    %v4097 = vld [vmem:[%s4093 + $0xc] sm:$0xf]
    %v4098 = vld [vmem:[%s4093 + $0x10] sm:$0xf]
    %v4099 = vld [vmem:[%s4093 + $0x14] sm:$0xf]
    %v4100 = vld [vmem:[%s4093 + $0x18] sm:$0xf]
    %v4101 = vld [vmem:[%s4093 + $0x1c] sm:$0xf]
    %v4102 = vld [vmem:[%s4093 + $0x20] sm:$0xf]
    %v4103 = vld [vmem:[%s4093 + $0x24] sm:$0xf]
    %v4104 = vld [vmem:[%s4093 + $0x28] sm:$0xf]
    %v4105 = vld [vmem:[%s4093 + $0x2c] sm:$0xf]
    %v4106 = vld [vmem:[%s4093 + $0x30] sm:$0xf]
    %v4107 = vld [vmem:[%s4093 + $0x34] sm:$0xf]
    %v4108 = vld [vmem:[%s4093 + $0x38] sm:$0xf]
    %v4109 = vld [vmem:[%s4093 + $0x3c] sm:$0xf]
    %v4126 = vunpack.c.l.b16 %v4094
    %v4127 = vunpack.c.l.b16 %v4095
    %v4128 = vunpack.c.l.b16 %v4096
    %v4129 = vunpack.c.l.b16 %v4097
    %v4130 = vunpack.c.l.b16 %v4098
    %v4131 = vunpack.c.l.b16 %v4099
    %v4132 = vunpack.c.l.b16 %v4100
    %v4133 = vunpack.c.l.b16 %v4101
    %v4134 = vunpack.c.l.b16 %v4102
    %v4135 = vunpack.c.l.b16 %v4103
    %v4136 = vunpack.c.l.b16 %v4104
    %v4137 = vunpack.c.l.b16 %v4105
    %v4138 = vunpack.c.l.b16 %v4106
    %v4139 = vunpack.c.l.b16 %v4107
    %v4140 = vunpack.c.l.b16 %v4108
    %v4141 = vunpack.c.l.b16 %v4109
    %v4142 = vpack.c.b16 %v4127, %v4126
    %v4143 = vpack.c.b16 %v4129, %v4128
    %v4144 = vpack.c.b16 %v4131, %v4130
    %v4145 = vpack.c.b16 %v4133, %v4132
    %v4146 = vpack.c.b16 %v4135, %v4134
    %v4147 = vpack.c.b16 %v4137, %v4136
    %v4148 = vpack.c.b16 %v4139, %v4138
    %v4149 = vpack.c.b16 %v4141, %v4140
    %4174 = vrot.lane.b32.xlu0 %v4077, 112
    %v4175 = vpop.permute.xlu0 %4174
    %4176 = vrot.lane.b32.xlu0 %v4078, 112
    %v4177 = vpop.permute.xlu0 %4176
    %4178 = vrot.lane.b32.xlu0 %v4079, 112
    %v4179 = vpop.permute.xlu0 %4178
    %4180 = vrot.lane.b32.xlu0 %v4080, 112
    %v4181 = vpop.permute.xlu0 %4180
    %4182 = vrot.lane.b32.xlu0 %v4081, 112
    %v4183 = vpop.permute.xlu0 %4182
    %4184 = vrot.lane.b32.xlu0 %v4082, 112
    %v4185 = vpop.permute.xlu0 %4184
    %4186 = vrot.lane.b32.xlu0 %v4083, 112
    %v4187 = vpop.permute.xlu0 %4186
    %4188 = vrot.lane.b32.xlu0 %v4084, 112
    %v4189 = vpop.permute.xlu0 %4188
    %4190 = vrot.lane.b32.xlu0 %v4085, 112
    %v4191 = vpop.permute.xlu0 %4190
    %4192 = vrot.lane.b32.xlu0 %v4086, 112
    %v4193 = vpop.permute.xlu0 %4192
    %4194 = vrot.lane.b32.xlu0 %v4087, 112
    %v4195 = vpop.permute.xlu0 %4194
    %4196 = vrot.lane.b32.xlu0 %v4088, 112
    %v4197 = vpop.permute.xlu0 %4196
    %4198 = vrot.lane.b32.xlu0 %v4089, 112
    %v4199 = vpop.permute.xlu0 %4198
    %4200 = vrot.lane.b32.xlu0 %v4090, 112
    %v4201 = vpop.permute.xlu0 %4200
    %4202 = vrot.lane.b32.xlu0 %v4091, 112
    %v4203 = vpop.permute.xlu0 %4202
    %4204 = vrot.lane.b32.xlu0 %v4092, 112
    %v4205 = vpop.permute.xlu0 %4204
    %vm4206 = vcmask 916480
    %v4207 = vsel %vm4206, %v4175, %v4177
    %v4208 = vsel %vm4206, %v4179, %v4181
    %v4209 = vsel %vm4206, %v4183, %v4185
    %v4210 = vsel %vm4206, %v4187, %v4189
    %v4211 = vsel %vm4206, %v4191, %v4193
    %v4212 = vsel %vm4206, %v4195, %v4197
    %v4213 = vsel %vm4206, %v4199, %v4201
    %v4214 = vsel %vm4206, %v4203, %v4205
    %4231 = vmatprep.subr.bf16.mxu0 %v4177
    %4232 = vmatpush1.bf16.msra.mxu0 %v4207
    %4233 = vmatprep.subr.bf16.mxu0 %v4181
    %4234 = vmatpush1.bf16.msra.mxu0 %v4208
    %4235 = vmatprep.subr.bf16.mxu0 %v4185
    %4236 = vmatpush1.bf16.msra.mxu0 %v4209
    %4237 = vmatprep.subr.bf16.mxu0 %v4189
    %4238 = vmatpush1.bf16.msra.mxu0 %v4210
    %4239 = vmatprep.subr.bf16.mxu0 %v4193
    %4240 = vmatpush1.bf16.msra.mxu0 %v4211
    %4241 = vmatprep.subr.bf16.mxu0 %v4197
    %4242 = vmatpush1.bf16.msra.mxu0 %v4212
    %4243 = vmatprep.subr.bf16.mxu0 %v4201
    %4244 = vmatpush1.bf16.msra.mxu0 %v4213
    %4245 = vmatprep.subr.bf16.mxu0 %v4205
    %4246 = vmatpush1.bf16.msra.mxu0 %v4214
    %4247 = vmatprep.subr.bf16.mxu0 0
    %4248 = vmatpush1.bf16.msra.mxu0 0
    %4249 = vmatprep.subr.bf16.mxu0 0
    %4250 = vmatpush1.bf16.msra.mxu0 0
    %4251 = vmatprep.subr.bf16.mxu0 0
    %4252 = vmatpush1.bf16.msra.mxu0 0
    %4253 = vmatprep.subr.bf16.mxu0 0
    %4254 = vmatpush1.bf16.msra.mxu0 0
    %4255 = vmatprep.subr.bf16.mxu0 0
    %4256 = vmatpush1.bf16.msra.mxu0 0
    %4257 = vmatprep.subr.bf16.mxu0 0
    %4258 = vmatpush1.bf16.msra.mxu0 0
    %4259 = vmatprep.subr.bf16.mxu0 0
    %4260 = vmatpush1.bf16.msra.mxu0 0
    %4261 = vmatprep.subr.bf16.mxu0 0
    %4262 = vmatpush1.bf16.msra.mxu0 0
    %4263 = vmatprep.mubr.bf16.mxu0 0
    %4264 = vmatmul.mubr.bf16.gmra.mrb[0].mxu0 %v4142
    %v4265 = vpop.f32.mrb[0].mxu0
    %v4266 = vadd.f32 0.0, %v4265
    %v4267 = vpop.f32.mrb[0].mxu0
    %v4268 = vadd.f32 0.0, %v4267
    %v4269 = vpop.f32.mrb[0].mxu0
    %v4270 = vadd.f32 0.0, %v4269
    %v4271 = vpop.f32.mrb[0].mxu0
    %v4272 = vadd.f32 0.0, %v4271
    %4273 = vmatprep.mubr.bf16.mxu0 0
    %4274 = vmatmul.mubr.bf16.gmra.mrb[0].mxu0 %v4143
    %v4275 = vpop.f32.mrb[0].mxu0
    %v4276 = vadd.f32 0.0, %v4275
    %v4277 = vpop.f32.mrb[0].mxu0
    %v4278 = vadd.f32 0.0, %v4277
    %v4279 = vpop.f32.mrb[0].mxu0
    %v4280 = vadd.f32 0.0, %v4279
    %v4281 = vpop.f32.mrb[0].mxu0
    %v4282 = vadd.f32 0.0, %v4281
    %4283 = vmatprep.mubr.bf16.mxu0 0
    %4284 = vmatmul.mubr.bf16.gmra.mrb[0].mxu0 %v4144
    %v4285 = vpop.f32.mrb[0].mxu0
    %v4286 = vadd.f32 0.0, %v4285
    %v4287 = vpop.f32.mrb[0].mxu0
    %v4288 = vadd.f32 0.0, %v4287
    %v4289 = vpop.f32.mrb[0].mxu0
    %v4290 = vadd.f32 0.0, %v4289
    %v4291 = vpop.f32.mrb[0].mxu0
    %v4292 = vadd.f32 0.0, %v4291
    %4293 = vmatprep.mubr.bf16.mxu0 0
    %4294 = vmatmul.mubr.bf16.gmra.mrb[0].mxu0 %v4145
    %v4295 = vpop.f32.mrb[0].mxu0
    %v4296 = vadd.f32 0.0, %v4295
    %v4297 = vpop.f32.mrb[0].mxu0
    %v4298 = vadd.f32 0.0, %v4297
    %v4299 = vpop.f32.mrb[0].mxu0
    %v4300 = vadd.f32 0.0, %v4299
    %v4301 = vpop.f32.mrb[0].mxu0
    %v4302 = vadd.f32 0.0, %v4301
    %4303 = vmatprep.mubr.bf16.mxu0 0
    %4304 = vmatmul.mubr.bf16.gmra.mrb[0].mxu0 %v4146
    %v4305 = vpop.f32.mrb[0].mxu0
    %v4306 = vadd.f32 0.0, %v4305
    %v4307 = vpop.f32.mrb[0].mxu0
    %v4308 = vadd.f32 0.0, %v4307
    %v4309 = vpop.f32.mrb[0].mxu0
    %v4310 = vadd.f32 0.0, %v4309
    %v4311 = vpop.f32.mrb[0].mxu0
    %v4312 = vadd.f32 0.0, %v4311
    %4313 = vmatprep.mubr.bf16.mxu0 0
    %4314 = vmatmul.mubr.bf16.gmra.mrb[0].mxu0 %v4147
    %v4315 = vpop.f32.mrb[0].mxu0
    %v4316 = vadd.f32 0.0, %v4315
    %v4317 = vpop.f32.mrb[0].mxu0
    %v4318 = vadd.f32 0.0, %v4317
    %v4319 = vpop.f32.mrb[0].mxu0
    %v4320 = vadd.f32 0.0, %v4319
    %v4321 = vpop.f32.mrb[0].mxu0
    %v4322 = vadd.f32 0.0, %v4321
    %4323 = vmatprep.mubr.bf16.mxu0 0
    %4324 = vmatmul.mubr.bf16.gmra.mrb[0].mxu0 %v4148
    %v4325 = vpop.f32.mrb[0].mxu0
    %v4326 = vadd.f32 0.0, %v4325
    %v4327 = vpop.f32.mrb[0].mxu0
    %v4328 = vadd.f32 0.0, %v4327
    %v4329 = vpop.f32.mrb[0].mxu0
    %v4330 = vadd.f32 0.0, %v4329
    %v4331 = vpop.f32.mrb[0].mxu0
    %v4332 = vadd.f32 0.0, %v4331
    %4333 = vmatprep.mubr.bf16.mxu0 0
    %4334 = vmatmul.mubr.bf16.gmra.mrb[0].mxu0 %v4149
    %v4335 = vpop.f32.mrb[0].mxu0
    %v4336 = vadd.f32 0.0, %v4335
    %v4337 = vpop.f32.mrb[0].mxu0
    %v4338 = vadd.f32 0.0, %v4337
    %v4339 = vpop.f32.mrb[0].mxu0
    %v4340 = vadd.f32 0.0, %v4339
    %v4341 = vpop.f32.mrb[0].mxu0
    %v4342 = vadd.f32 0.0, %v4341
    %4343 = vdwg.mxu0
    %v4360 = vunpack.c.l.b16 %v4061
    %v4361 = vunpack.c.l.b16 %v4062
    %v4362 = vunpack.c.l.b16 %v4063
    %v4363 = vunpack.c.l.b16 %v4064
    %v4364 = vunpack.c.l.b16 %v4065
    %v4365 = vunpack.c.l.b16 %v4066
    %v4366 = vunpack.c.l.b16 %v4067
    %v4367 = vunpack.c.l.b16 %v4068
    %v4368 = vunpack.c.l.b16 %v4069
    %v4369 = vunpack.c.l.b16 %v4070
    %v4370 = vunpack.c.l.b16 %v4071
    %v4371 = vunpack.c.l.b16 %v4072
    %v4372 = vunpack.c.l.b16 %v4073
    %v4373 = vunpack.c.l.b16 %v4074
    %v4374 = vunpack.c.l.b16 %v4075
    %v4375 = vunpack.c.l.b16 %v4076
    %v4376 = vpack.c.b16 %v4361, %v4360
    %v4377 = vpack.c.b16 %v4363, %v4362
    %v4378 = vpack.c.b16 %v4365, %v4364
    %v4379 = vpack.c.b16 %v4367, %v4366
    %v4380 = vpack.c.b16 %v4369, %v4368
    %v4381 = vpack.c.b16 %v4371, %v4370
    %v4382 = vpack.c.b16 %v4373, %v4372
    %v4383 = vpack.c.b16 %v4375, %v4374
    %4392 = vrot.lane.b32.xlu0 %v4077, 113
    %v4393 = vpop.permute.xlu0 %4392
    %4394 = vrot.lane.b32.xlu0 %v4078, 113
    %v4395 = vpop.permute.xlu0 %4394
    %4396 = vrot.lane.b32.xlu0 %v4079, 113
    %v4397 = vpop.permute.xlu0 %4396
    %4398 = vrot.lane.b32.xlu0 %v4080, 113
    %v4399 = vpop.permute.xlu0 %4398
    %4400 = vrot.lane.b32.xlu0 %v4081, 113
    %v4401 = vpop.permute.xlu0 %4400
    %4402 = vrot.lane.b32.xlu0 %v4082, 113
    %v4403 = vpop.permute.xlu0 %4402
    %4404 = vrot.lane.b32.xlu0 %v4083, 113
    %v4405 = vpop.permute.xlu0 %4404
    %4406 = vrot.lane.b32.xlu0 %v4084, 113
    %v4407 = vpop.permute.xlu0 %4406
    %4408 = vrot.lane.b32.xlu0 %v4085, 113
    %v4409 = vpop.permute.xlu0 %4408
    %4410 = vrot.lane.b32.xlu0 %v4086, 113
    %v4411 = vpop.permute.xlu0 %4410
    %4412 = vrot.lane.b32.xlu0 %v4087, 113
    %v4413 = vpop.permute.xlu0 %4412
    %4414 = vrot.lane.b32.xlu0 %v4088, 113
    %v4415 = vpop.permute.xlu0 %4414
    %4416 = vrot.lane.b32.xlu0 %v4089, 113
    %v4417 = vpop.permute.xlu0 %4416
    %4418 = vrot.lane.b32.xlu0 %v4090, 113
    %v4419 = vpop.permute.xlu0 %4418
    %4420 = vrot.lane.b32.xlu0 %v4091, 113
    %v4421 = vpop.permute.xlu0 %4420
    %4422 = vrot.lane.b32.xlu0 %v4092, 113
    %v4423 = vpop.permute.xlu0 %4422
    %vm4424 = vcmask 924672
    %v4425 = vsel %vm4424, %v4393, %v4395
    %v4426 = vsel %vm4424, %v4397, %v4399
    %v4427 = vsel %vm4424, %v4401, %v4403
    %v4428 = vsel %vm4424, %v4405, %v4407
    %v4429 = vsel %vm4424, %v4409, %v4411
    %v4430 = vsel %vm4424, %v4413, %v4415
    %v4431 = vsel %vm4424, %v4417, %v4419
    %v4432 = vsel %vm4424, %v4421, %v4423
    %4449 = vmatprep.subr.bf16.mxu0 %v4395
    %4450 = vmatpush1.bf16.msra.mxu0 %v4425
    %4451 = vmatprep.subr.bf16.mxu0 %v4399
    %4452 = vmatpush1.bf16.msra.mxu0 %v4426
    %4453 = vmatprep.subr.bf16.mxu0 %v4403
    %4454 = vmatpush1.bf16.msra.mxu0 %v4427
    %4455 = vmatprep.subr.bf16.mxu0 %v4407
    %4456 = vmatpush1.bf16.msra.mxu0 %v4428
    %4457 = vmatprep.subr.bf16.mxu0 %v4411
    %4458 = vmatpush1.bf16.msra.mxu0 %v4429
    %4459 = vmatprep.subr.bf16.mxu0 %v4415
    %4460 = vmatpush1.bf16.msra.mxu0 %v4430
    %4461 = vmatprep.subr.bf16.mxu0 %v4419
    %4462 = vmatpush1.bf16.msra.mxu0 %v4431
    %4463 = vmatprep.subr.bf16.mxu0 %v4423
    %4464 = vmatpush1.bf16.msra.mxu0 %v4432
    %4465 = vmatprep.subr.bf16.mxu0 0
    %4466 = vmatpush1.bf16.msra.mxu0 0
    %4467 = vmatprep.subr.bf16.mxu0 0
    %4468 = vmatpush1.bf16.msra.mxu0 0
    %4469 = vmatprep.subr.bf16.mxu0 0
    %4470 = vmatpush1.bf16.msra.mxu0 0
    %4471 = vmatprep.subr.bf16.mxu0 0
    %4472 = vmatpush1.bf16.msra.mxu0 0
    %4473 = vmatprep.subr.bf16.mxu0 0
    %4474 = vmatpush1.bf16.msra.mxu0 0
    %4475 = vmatprep.subr.bf16.mxu0 0
    %4476 = vmatpush1.bf16.msra.mxu0 0
    %4477 = vmatprep.subr.bf16.mxu0 0
    %4478 = vmatpush1.bf16.msra.mxu0 0
    %4479 = vmatprep.subr.bf16.mxu0 0
    %4480 = vmatpush1.bf16.msra.mxu0 0
    %4481 = vmatprep.mubr.bf16.mxu0 0
    %4482 = vmatmul.mubr.bf16.gmra.mrb[0].mxu0 %v4376
    %v4483 = vpop.f32.mrb[0].mxu0
    %v4484 = vadd.f32 %v4266, %v4483
    %v4485 = vpop.f32.mrb[0].mxu0
    %v4486 = vadd.f32 %v4268, %v4485
    %v4487 = vpop.f32.mrb[0].mxu0
    %v4488 = vadd.f32 %v4270, %v4487
    %v4489 = vpop.f32.mrb[0].mxu0
    %v4490 = vadd.f32 %v4272, %v4489
    %4491 = vmatprep.mubr.bf16.mxu0 0
    %4492 = vmatmul.mubr.bf16.gmra.mrb[0].mxu0 %v4377
    %v4493 = vpop.f32.mrb[0].mxu0
    %v4494 = vadd.f32 %v4276, %v4493
    %v4495 = vpop.f32.mrb[0].mxu0
    %v4496 = vadd.f32 %v4278, %v4495
    %v4497 = vpop.f32.mrb[0].mxu0
    %v4498 = vadd.f32 %v4280, %v4497
    %v4499 = vpop.f32.mrb[0].mxu0
    %v4500 = vadd.f32 %v4282, %v4499
    %4501 = vmatprep.mubr.bf16.mxu0 0
    %4502 = vmatmul.mubr.bf16.gmra.mrb[0].mxu0 %v4378
    %v4503 = vpop.f32.mrb[0].mxu0
    %v4504 = vadd.f32 %v4286, %v4503
    %v4505 = vpop.f32.mrb[0].mxu0
    %v4506 = vadd.f32 %v4288, %v4505
    %v4507 = vpop.f32.mrb[0].mxu0
    %v4508 = vadd.f32 %v4290, %v4507
    %v4509 = vpop.f32.mrb[0].mxu0
    %v4510 = vadd.f32 %v4292, %v4509
    %4511 = vmatprep.mubr.bf16.mxu0 0
    %4512 = vmatmul.mubr.bf16.gmra.mrb[0].mxu0 %v4379
    %v4513 = vpop.f32.mrb[0].mxu0
    %v4514 = vadd.f32 %v4296, %v4513
    %v4515 = vpop.f32.mrb[0].mxu0
    %v4516 = vadd.f32 %v4298, %v4515
    %v4517 = vpop.f32.mrb[0].mxu0
    %v4518 = vadd.f32 %v4300, %v4517
    %v4519 = vpop.f32.mrb[0].mxu0
    %v4520 = vadd.f32 %v4302, %v4519
    %4521 = vmatprep.mubr.bf16.mxu0 0
    %4522 = vmatmul.mubr.bf16.gmra.mrb[0].mxu0 %v4380
    %v4523 = vpop.f32.mrb[0].mxu0
    %v4524 = vadd.f32 %v4306, %v4523
    %v4525 = vpop.f32.mrb[0].mxu0
    %v4526 = vadd.f32 %v4308, %v4525
    %v4527 = vpop.f32.mrb[0].mxu0
    %v4528 = vadd.f32 %v4310, %v4527
    %v4529 = vpop.f32.mrb[0].mxu0
    %v4530 = vadd.f32 %v4312, %v4529
    %4531 = vmatprep.mubr.bf16.mxu0 0
    %4532 = vmatmul.mubr.bf16.gmra.mrb[0].mxu0 %v4381
    %v4533 = vpop.f32.mrb[0].mxu0
    %v4534 = vadd.f32 %v4316, %v4533
    %v4535 = vpop.f32.mrb[0].mxu0
    %v4536 = vadd.f32 %v4318, %v4535
    %v4537 = vpop.f32.mrb[0].mxu0
    %v4538 = vadd.f32 %v4320, %v4537
    %v4539 = vpop.f32.mrb[0].mxu0
    %v4540 = vadd.f32 %v4322, %v4539
    %4541 = vmatprep.mubr.bf16.mxu0 0
    %4542 = vmatmul.mubr.bf16.gmra.mrb[0].mxu0 %v4382
    %v4543 = vpop.f32.mrb[0].mxu0
    %v4544 = vadd.f32 %v4326, %v4543
    %v4545 = vpop.f32.mrb[0].mxu0
    %v4546 = vadd.f32 %v4328, %v4545
    %v4547 = vpop.f32.mrb[0].mxu0
    %v4548 = vadd.f32 %v4330, %v4547
    %v4549 = vpop.f32.mrb[0].mxu0
    %v4550 = vadd.f32 %v4332, %v4549
    %4551 = vmatprep.mubr.bf16.mxu0 0
    %4552 = vmatmul.mubr.bf16.gmra.mrb[0].mxu0 %v4383
    %v4553 = vpop.f32.mrb[0].mxu0
    %v4554 = vadd.f32 %v4336, %v4553
    %v4555 = vpop.f32.mrb[0].mxu0
    %v4556 = vadd.f32 %v4338, %v4555
    %v4557 = vpop.f32.mrb[0].mxu0
    %v4558 = vadd.f32 %v4340, %v4557
    %v4559 = vpop.f32.mrb[0].mxu0
    %v4560 = vadd.f32 %v4342, %v4559
    %4561 = vdwg.mxu0
    %s4562 = scalar_lea.vmem [#allocation8], 128
    %v4563 = vld [vmem:[%s4562] sm:$0xf]
    %v4564 = vld [vmem:[%s4562 + $0x4] sm:$0xf]
    %v4565 = vld [vmem:[%s4562 + $0x8] sm:$0xf]
    %v4566 = vld [vmem:[%s4562 + $0xc] sm:$0xf]
    %v4567 = vld [vmem:[%s4562 + $0x10] sm:$0xf]
    %v4568 = vld [vmem:[%s4562 + $0x14] sm:$0xf]
    %v4569 = vld [vmem:[%s4562 + $0x18] sm:$0xf]
    %v4570 = vld [vmem:[%s4562 + $0x1c] sm:$0xf]
    %v4571 = vld [vmem:[%s4562 + $0x20] sm:$0xf]
    %v4572 = vld [vmem:[%s4562 + $0x24] sm:$0xf]
    %v4573 = vld [vmem:[%s4562 + $0x28] sm:$0xf]
    %v4574 = vld [vmem:[%s4562 + $0x2c] sm:$0xf]
    %v4575 = vld [vmem:[%s4562 + $0x30] sm:$0xf]
    %v4576 = vld [vmem:[%s4562 + $0x34] sm:$0xf]
    %v4577 = vld [vmem:[%s4562 + $0x38] sm:$0xf]
    %v4578 = vld [vmem:[%s4562 + $0x3c] sm:$0xf]
    %v4595 = vunpack.c.l.b16 %v4563
    %v4596 = vunpack.c.l.b16 %v4564
    %v4597 = vunpack.c.l.b16 %v4565
    %v4598 = vunpack.c.l.b16 %v4566
    %v4599 = vunpack.c.l.b16 %v4567
    %v4600 = vunpack.c.l.b16 %v4568
    %v4601 = vunpack.c.l.b16 %v4569
    %v4602 = vunpack.c.l.b16 %v4570
    %v4603 = vunpack.c.l.b16 %v4571
    %v4604 = vunpack.c.l.b16 %v4572
    %v4605 = vunpack.c.l.b16 %v4573
    %v4606 = vunpack.c.l.b16 %v4574
    %v4607 = vunpack.c.l.b16 %v4575
    %v4608 = vunpack.c.l.b16 %v4576
    %v4609 = vunpack.c.l.b16 %v4577
    %v4610 = vunpack.c.l.b16 %v4578
    %v4611 = vpack.c.b16 %v4596, %v4595
    %v4612 = vpack.c.b16 %v4598, %v4597
    %v4613 = vpack.c.b16 %v4600, %v4599
    %v4614 = vpack.c.b16 %v4602, %v4601
    %v4615 = vpack.c.b16 %v4604, %v4603
    %v4616 = vpack.c.b16 %v4606, %v4605
    %v4617 = vpack.c.b16 %v4608, %v4607
    %v4618 = vpack.c.b16 %v4610, %v4609
    %4627 = vrot.lane.b32.xlu0 %v4077, 111
    %v4628 = vpop.permute.xlu0 %4627
    %4629 = vrot.lane.b32.xlu0 %v4078, 111
    %v4630 = vpop.permute.xlu0 %4629
    %4631 = vrot.lane.b32.xlu0 %v4079, 111
    %v4632 = vpop.permute.xlu0 %4631
    %4633 = vrot.lane.b32.xlu0 %v4080, 111
    %v4634 = vpop.permute.xlu0 %4633
    %4635 = vrot.lane.b32.xlu0 %v4081, 111
    %v4636 = vpop.permute.xlu0 %4635
    %4637 = vrot.lane.b32.xlu0 %v4082, 111
    %v4638 = vpop.permute.xlu0 %4637
    %4639 = vrot.lane.b32.xlu0 %v4083, 111
    %v4640 = vpop.permute.xlu0 %4639
    %4641 = vrot.lane.b32.xlu0 %v4084, 111
    %v4642 = vpop.permute.xlu0 %4641
    %4643 = vrot.lane.b32.xlu0 %v4085, 111
    %v4644 = vpop.permute.xlu0 %4643
    %4645 = vrot.lane.b32.xlu0 %v4086, 111
    %v4646 = vpop.permute.xlu0 %4645
    %4647 = vrot.lane.b32.xlu0 %v4087, 111
    %v4648 = vpop.permute.xlu0 %4647
    %4649 = vrot.lane.b32.xlu0 %v4088, 111
    %v4650 = vpop.permute.xlu0 %4649
    %4651 = vrot.lane.b32.xlu0 %v4089, 111
    %v4652 = vpop.permute.xlu0 %4651
    %4653 = vrot.lane.b32.xlu0 %v4090, 111
    %v4654 = vpop.permute.xlu0 %4653
    %4655 = vrot.lane.b32.xlu0 %v4091, 111
    %v4656 = vpop.permute.xlu0 %4655
    %4657 = vrot.lane.b32.xlu0 %v4092, 111
    %v4658 = vpop.permute.xlu0 %4657
    %vm4659 = vcmask 908288
    %v4660 = vsel %vm4659, %v4628, %v4630
    %v4661 = vsel %vm4659, %v4632, %v4634
    %v4662 = vsel %vm4659, %v4636, %v4638
    %v4663 = vsel %vm4659, %v4640, %v4642
    %v4664 = vsel %vm4659, %v4644, %v4646
    %v4665 = vsel %vm4659, %v4648, %v4650
    %v4666 = vsel %vm4659, %v4652, %v4654
    %v4667 = vsel %vm4659, %v4656, %v4658
    %4684 = vmatprep.subr.bf16.mxu0 %v4630
    %4685 = vmatpush1.bf16.msra.mxu0 %v4660
    %4686 = vmatprep.subr.bf16.mxu0 %v4634
    %4687 = vmatpush1.bf16.msra.mxu0 %v4661
    %4688 = vmatprep.subr.bf16.mxu0 %v4638
    %4689 = vmatpush1.bf16.msra.mxu0 %v4662
    %4690 = vmatprep.subr.bf16.mxu0 %v4642
    %4691 = vmatpush1.bf16.msra.mxu0 %v4663
    %4692 = vmatprep.subr.bf16.mxu0 %v4646
    %4693 = vmatpush1.bf16.msra.mxu0 %v4664
    %4694 = vmatprep.subr.bf16.mxu0 %v4650
    %4695 = vmatpush1.bf16.msra.mxu0 %v4665
    %4696 = vmatprep.subr.bf16.mxu0 %v4654
    %4697 = vmatpush1.bf16.msra.mxu0 %v4666
    %4698 = vmatprep.subr.bf16.mxu0 %v4658
    %4699 = vmatpush1.bf16.msra.mxu0 %v4667
    %4700 = vmatprep.subr.bf16.mxu0 0
    %4701 = vmatpush1.bf16.msra.mxu0 0
    %4702 = vmatprep.subr.bf16.mxu0 0
    %4703 = vmatpush1.bf16.msra.mxu0 0
    %4704 = vmatprep.subr.bf16.mxu0 0
    %4705 = vmatpush1.bf16.msra.mxu0 0
    %4706 = vmatprep.subr.bf16.mxu0 0
    %4707 = vmatpush1.bf16.msra.mxu0 0
    %4708 = vmatprep.subr.bf16.mxu0 0
    %4709 = vmatpush1.bf16.msra.mxu0 0
    %4710 = vmatprep.subr.bf16.mxu0 0
    %4711 = vmatpush1.bf16.msra.mxu0 0
    %4712 = vmatprep.subr.bf16.mxu0 0
    %4713 = vmatpush1.bf16.msra.mxu0 0
    %4714 = vmatprep.subr.bf16.mxu0 0
    %4715 = vmatpush1.bf16.msra.mxu0 0
    %4716 = vmatprep.mubr.bf16.mxu0 0
    %4717 = vmatmul.mubr.bf16.gmra.mrb[0].mxu0 %v4611
    %v4718 = vpop.f32.mrb[0].mxu0
    %v4719 = vadd.f32 0.0, %v4718
    %v4720 = vpop.f32.mrb[0].mxu0
    %v4721 = vadd.f32 0.0, %v4720
    %v4722 = vpop.f32.mrb[0].mxu0
    %v4723 = vadd.f32 0.0, %v4722
    %v4724 = vpop.f32.mrb[0].mxu0
    %v4725 = vadd.f32 0.0, %v4724
    %4726 = vmatprep.mubr.bf16.mxu0 0
    %4727 = vmatmul.mubr.bf16.gmra.mrb[0].mxu0 %v4612
    %v4728 = vpop.f32.mrb[0].mxu0
    %v4729 = vadd.f32 0.0, %v4728
    %v4730 = vpop.f32.mrb[0].mxu0
    %v4731 = vadd.f32 0.0, %v4730
    %v4732 = vpop.f32.mrb[0].mxu0
    %v4733 = vadd.f32 0.0, %v4732
    %v4734 = vpop.f32.mrb[0].mxu0
    %v4735 = vadd.f32 0.0, %v4734
    %4736 = vmatprep.mubr.bf16.mxu0 0
    %4737 = vmatmul.mubr.bf16.gmra.mrb[0].mxu0 %v4613
    %v4738 = vpop.f32.mrb[0].mxu0
    %v4739 = vadd.f32 0.0, %v4738
    %v4740 = vpop.f32.mrb[0].mxu0
    %v4741 = vadd.f32 0.0, %v4740
    %v4742 = vpop.f32.mrb[0].mxu0
    %v4743 = vadd.f32 0.0, %v4742
    %v4744 = vpop.f32.mrb[0].mxu0
    %v4745 = vadd.f32 0.0, %v4744
    %4746 = vmatprep.mubr.bf16.mxu0 0
    %4747 = vmatmul.mubr.bf16.gmra.mrb[0].mxu0 %v4614
    %v4748 = vpop.f32.mrb[0].mxu0
    %v4749 = vadd.f32 0.0, %v4748
    %v4750 = vpop.f32.mrb[0].mxu0
    %v4751 = vadd.f32 0.0, %v4750
    %v4752 = vpop.f32.mrb[0].mxu0
    %v4753 = vadd.f32 0.0, %v4752
    %v4754 = vpop.f32.mrb[0].mxu0
    %v4755 = vadd.f32 0.0, %v4754
    %4756 = vmatprep.mubr.bf16.mxu0 0
    %4757 = vmatmul.mubr.bf16.gmra.mrb[0].mxu0 %v4615
    %v4758 = vpop.f32.mrb[0].mxu0
    %v4759 = vadd.f32 0.0, %v4758
    %v4760 = vpop.f32.mrb[0].mxu0
    %v4761 = vadd.f32 0.0, %v4760
    %v4762 = vpop.f32.mrb[0].mxu0
    %v4763 = vadd.f32 0.0, %v4762
    %v4764 = vpop.f32.mrb[0].mxu0
    %v4765 = vadd.f32 0.0, %v4764
    %4766 = vmatprep.mubr.bf16.mxu0 0
    %4767 = vmatmul.mubr.bf16.gmra.mrb[0].mxu0 %v4616
    %v4768 = vpop.f32.mrb[0].mxu0
    %v4769 = vadd.f32 0.0, %v4768
    %v4770 = vpop.f32.mrb[0].mxu0
    %v4771 = vadd.f32 0.0, %v4770
    %v4772 = vpop.f32.mrb[0].mxu0
    %v4773 = vadd.f32 0.0, %v4772
    %v4774 = vpop.f32.mrb[0].mxu0
    %v4775 = vadd.f32 0.0, %v4774
    %4776 = vmatprep.mubr.bf16.mxu0 0
    %4777 = vmatmul.mubr.bf16.gmra.mrb[0].mxu0 %v4617
    %v4778 = vpop.f32.mrb[0].mxu0
    %v4779 = vadd.f32 0.0, %v4778
    %v4780 = vpop.f32.mrb[0].mxu0
    %v4781 = vadd.f32 0.0, %v4780
    %v4782 = vpop.f32.mrb[0].mxu0
    %v4783 = vadd.f32 0.0, %v4782
    %v4784 = vpop.f32.mrb[0].mxu0
    %v4785 = vadd.f32 0.0, %v4784
    %4786 = vmatprep.mubr.bf16.mxu0 0
    %4787 = vmatmul.mubr.bf16.gmra.mrb[0].mxu0 %v4618
    %v4788 = vpop.f32.mrb[0].mxu0
    %v4789 = vadd.f32 0.0, %v4788
    %v4790 = vpop.f32.mrb[0].mxu0
    %v4791 = vadd.f32 0.0, %v4790
    %v4792 = vpop.f32.mrb[0].mxu0
    %v4793 = vadd.f32 0.0, %v4792
    %v4794 = vpop.f32.mrb[0].mxu0
    %v4795 = vadd.f32 0.0, %v4794
    %4796 = vdwg.mxu0
    %v4797 = vadd.f32 %v4484, %v4719
    %v4798 = vadd.f32 %v4486, %v4721
    %v4799 = vadd.f32 %v4488, %v4723
    %v4800 = vadd.f32 %v4490, %v4725
    %v4801 = vadd.f32 %v4494, %v4729
    %v4802 = vadd.f32 %v4496, %v4731
    %v4803 = vadd.f32 %v4498, %v4733
    %v4804 = vadd.f32 %v4500, %v4735
    %v4805 = vadd.f32 %v4504, %v4739
    %v4806 = vadd.f32 %v4506, %v4741
    %v4807 = vadd.f32 %v4508, %v4743
    %v4808 = vadd.f32 %v4510, %v4745
    %v4809 = vadd.f32 %v4514, %v4749
    %v4810 = vadd.f32 %v4516, %v4751
    %v4811 = vadd.f32 %v4518, %v4753
    %v4812 = vadd.f32 %v4520, %v4755
    %v4813 = vadd.f32 %v4524, %v4759
    %v4814 = vadd.f32 %v4526, %v4761
    %v4815 = vadd.f32 %v4528, %v4763
    %v4816 = vadd.f32 %v4530, %v4765
    %v4817 = vadd.f32 %v4534, %v4769
    %v4818 = vadd.f32 %v4536, %v4771
    %v4819 = vadd.f32 %v4538, %v4773
    %v4820 = vadd.f32 %v4540, %v4775
    %v4821 = vadd.f32 %v4544, %v4779
    %v4822 = vadd.f32 %v4546, %v4781
    %v4823 = vadd.f32 %v4548, %v4783
    %v4824 = vadd.f32 %v4550, %v4785
    %v4825 = vadd.f32 %v4554, %v4789
    %v4826 = vadd.f32 %v4556, %v4791
    %v4827 = vadd.f32 %v4558, %v4793
    %v4828 = vadd.f32 %v4560, %v4795
    %s4829 = scalar_lea.vmem [#allocation8], 192
    %v4830 = vld [vmem:[%s4829] sm:$0xf]
    %v4831 = vld [vmem:[%s4829 + $0x4] sm:$0xf]
    %v4832 = vld [vmem:[%s4829 + $0x8] sm:$0xf]
    %v4833 = vld [vmem:[%s4829 + $0xc] sm:$0xf]
    %v4834 = vld [vmem:[%s4829 + $0x10] sm:$0xf]
    %v4835 = vld [vmem:[%s4829 + $0x14] sm:$0xf]
    %v4836 = vld [vmem:[%s4829 + $0x18] sm:$0xf]
    %v4837 = vld [vmem:[%s4829 + $0x1c] sm:$0xf]
    %v4838 = vld [vmem:[%s4829 + $0x20] sm:$0xf]
    %v4839 = vld [vmem:[%s4829 + $0x24] sm:$0xf]
    %v4840 = vld [vmem:[%s4829 + $0x28] sm:$0xf]
    %v4841 = vld [vmem:[%s4829 + $0x2c] sm:$0xf]
    %v4842 = vld [vmem:[%s4829 + $0x30] sm:$0xf]
    %v4843 = vld [vmem:[%s4829 + $0x34] sm:$0xf]
    %v4844 = vld [vmem:[%s4829 + $0x38] sm:$0xf]
    %v4845 = vld [vmem:[%s4829 + $0x3c] sm:$0xf]
    %v4862 = vunpack.c.l.b16 %v4830
    %v4863 = vunpack.c.l.b16 %v4831
    %v4864 = vunpack.c.l.b16 %v4832
    %v4865 = vunpack.c.l.b16 %v4833
    %v4866 = vunpack.c.l.b16 %v4834
    %v4867 = vunpack.c.l.b16 %v4835
    %v4868 = vunpack.c.l.b16 %v4836
    %v4869 = vunpack.c.l.b16 %v4837
    %v4870 = vunpack.c.l.b16 %v4838
    %v4871 = vunpack.c.l.b16 %v4839
    %v4872 = vunpack.c.l.b16 %v4840
    %v4873 = vunpack.c.l.b16 %v4841
    %v4874 = vunpack.c.l.b16 %v4842
    %v4875 = vunpack.c.l.b16 %v4843
    %v4876 = vunpack.c.l.b16 %v4844
    %v4877 = vunpack.c.l.b16 %v4845
    %v4878 = vpack.c.b16 %v4863, %v4862
    %v4879 = vpack.c.b16 %v4865, %v4864
    %v4880 = vpack.c.b16 %v4867, %v4866
    %v4881 = vpack.c.b16 %v4869, %v4868
    %v4882 = vpack.c.b16 %v4871, %v4870
    %v4883 = vpack.c.b16 %v4873, %v4872
    %v4884 = vpack.c.b16 %v4875, %v4874
    %v4885 = vpack.c.b16 %v4877, %v4876
    %4894 = vrot.lane.b32.xlu0 %v4077, 97
    %v4895 = vpop.permute.xlu0 %4894
    %4896 = vrot.lane.b32.xlu0 %v4078, 97
    %v4897 = vpop.permute.xlu0 %4896
    %4898 = vrot.lane.b32.xlu0 %v4079, 97
    %v4899 = vpop.permute.xlu0 %4898
    %4900 = vrot.lane.b32.xlu0 %v4080, 97
    %v4901 = vpop.permute.xlu0 %4900
    %4902 = vrot.lane.b32.xlu0 %v4081, 97
    %v4903 = vpop.permute.xlu0 %4902
    %4904 = vrot.lane.b32.xlu0 %v4082, 97
    %v4905 = vpop.permute.xlu0 %4904
    %4906 = vrot.lane.b32.xlu0 %v4083, 97
    %v4907 = vpop.permute.xlu0 %4906
    %4908 = vrot.lane.b32.xlu0 %v4084, 97
    %v4909 = vpop.permute.xlu0 %4908
    %4910 = vrot.lane.b32.xlu0 %v4085, 97
    %v4911 = vpop.permute.xlu0 %4910
    %4912 = vrot.lane.b32.xlu0 %v4086, 97
    %v4913 = vpop.permute.xlu0 %4912
    %4914 = vrot.lane.b32.xlu0 %v4087, 97
    %v4915 = vpop.permute.xlu0 %4914
    %4916 = vrot.lane.b32.xlu0 %v4088, 97
    %v4917 = vpop.permute.xlu0 %4916
    %4918 = vrot.lane.b32.xlu0 %v4089, 97
    %v4919 = vpop.permute.xlu0 %4918
    %4920 = vrot.lane.b32.xlu0 %v4090, 97
    %v4921 = vpop.permute.xlu0 %4920
    %4922 = vrot.lane.b32.xlu0 %v4091, 97
    %v4923 = vpop.permute.xlu0 %4922
    %4924 = vrot.lane.b32.xlu0 %v4092, 97
    %v4925 = vpop.permute.xlu0 %4924
    %vm4926 = vcmask 793600
    %v4927 = vsel %vm4926, %v4895, %v4897
    %v4928 = vsel %vm4926, %v4899, %v4901
    %v4929 = vsel %vm4926, %v4903, %v4905
    %v4930 = vsel %vm4926, %v4907, %v4909
    %v4931 = vsel %vm4926, %v4911, %v4913
    %v4932 = vsel %vm4926, %v4915, %v4917
    %v4933 = vsel %vm4926, %v4919, %v4921
    %v4934 = vsel %vm4926, %v4923, %v4925
    %4951 = vmatprep.subr.bf16.mxu0 %v4897
    %4952 = vmatpush1.bf16.msra.mxu0 %v4927
    %4953 = vmatprep.subr.bf16.mxu0 %v4901
    %4954 = vmatpush1.bf16.msra.mxu0 %v4928
    %4955 = vmatprep.subr.bf16.mxu0 %v4905
    %4956 = vmatpush1.bf16.msra.mxu0 %v4929
    %4957 = vmatprep.subr.bf16.mxu0 %v4909
    %4958 = vmatpush1.bf16.msra.mxu0 %v4930
    %4959 = vmatprep.subr.bf16.mxu0 %v4913
    %4960 = vmatpush1.bf16.msra.mxu0 %v4931
    %4961 = vmatprep.subr.bf16.mxu0 %v4917
    %4962 = vmatpush1.bf16.msra.mxu0 %v4932
    %4963 = vmatprep.subr.bf16.mxu0 %v4921
    %4964 = vmatpush1.bf16.msra.mxu0 %v4933
    %4965 = vmatprep.subr.bf16.mxu0 %v4925
    %4966 = vmatpush1.bf16.msra.mxu0 %v4934
    %4967 = vmatprep.subr.bf16.mxu0 0
    %4968 = vmatpush1.bf16.msra.mxu0 0
    %4969 = vmatprep.subr.bf16.mxu0 0
    %4970 = vmatpush1.bf16.msra.mxu0 0
    %4971 = vmatprep.subr.bf16.mxu0 0
    %4972 = vmatpush1.bf16.msra.mxu0 0
    %4973 = vmatprep.subr.bf16.mxu0 0
    %4974 = vmatpush1.bf16.msra.mxu0 0
    %4975 = vmatprep.subr.bf16.mxu0 0
    %4976 = vmatpush1.bf16.msra.mxu0 0
    %4977 = vmatprep.subr.bf16.mxu0 0
    %4978 = vmatpush1.bf16.msra.mxu0 0
    %4979 = vmatprep.subr.bf16.mxu0 0
    %4980 = vmatpush1.bf16.msra.mxu0 0
    %4981 = vmatprep.subr.bf16.mxu0 0
    %4982 = vmatpush1.bf16.msra.mxu0 0
    %4983 = vmatprep.mubr.bf16.mxu0 0
    %4984 = vmatmul.mubr.bf16.gmra.mrb[0].mxu0 %v4878
    %v4985 = vpop.f32.mrb[0].mxu0
    %v4986 = vadd.f32 0.0, %v4985
    %v4987 = vpop.f32.mrb[0].mxu0
    %v4988 = vadd.f32 0.0, %v4987
    %v4989 = vpop.f32.mrb[0].mxu0
    %v4990 = vadd.f32 0.0, %v4989
    %v4991 = vpop.f32.mrb[0].mxu0
    %v4992 = vadd.f32 0.0, %v4991
    %4993 = vmatprep.mubr.bf16.mxu0 0
    %4994 = vmatmul.mubr.bf16.gmra.mrb[0].mxu0 %v4879
    %v4995 = vpop.f32.mrb[0].mxu0
    %v4996 = vadd.f32 0.0, %v4995
    %v4997 = vpop.f32.mrb[0].mxu0
    %v4998 = vadd.f32 0.0, %v4997
    %v4999 = vpop.f32.mrb[0].mxu0
    %v5000 = vadd.f32 0.0, %v4999
    %v5001 = vpop.f32.mrb[0].mxu0
    %v5002 = vadd.f32 0.0, %v5001
    %5003 = vmatprep.mubr.bf16.mxu0 0
    %5004 = vmatmul.mubr.bf16.gmra.mrb[0].mxu0 %v4880
    %v5005 = vpop.f32.mrb[0].mxu0
    %v5006 = vadd.f32 0.0, %v5005
    %v5007 = vpop.f32.mrb[0].mxu0
    %v5008 = vadd.f32 0.0, %v5007
    %v5009 = vpop.f32.mrb[0].mxu0
    %v5010 = vadd.f32 0.0, %v5009
    %v5011 = vpop.f32.mrb[0].mxu0
    %v5012 = vadd.f32 0.0, %v5011
    %5013 = vmatprep.mubr.bf16.mxu0 0
    %5014 = vmatmul.mubr.bf16.gmra.mrb[0].mxu0 %v4881
    %v5015 = vpop.f32.mrb[0].mxu0
    %v5016 = vadd.f32 0.0, %v5015
    %v5017 = vpop.f32.mrb[0].mxu0
    %v5018 = vadd.f32 0.0, %v5017
    %v5019 = vpop.f32.mrb[0].mxu0
    %v5020 = vadd.f32 0.0, %v5019
    %v5021 = vpop.f32.mrb[0].mxu0
    %v5022 = vadd.f32 0.0, %v5021
    %5023 = vmatprep.mubr.bf16.mxu0 0
    %5024 = vmatmul.mubr.bf16.gmra.mrb[0].mxu0 %v4882
    %v5025 = vpop.f32.mrb[0].mxu0
    %v5026 = vadd.f32 0.0, %v5025
    %v5027 = vpop.f32.mrb[0].mxu0
    %v5028 = vadd.f32 0.0, %v5027
    %v5029 = vpop.f32.mrb[0].mxu0
    %v5030 = vadd.f32 0.0, %v5029
    %v5031 = vpop.f32.mrb[0].mxu0
    %v5032 = vadd.f32 0.0, %v5031
    %5033 = vmatprep.mubr.bf16.mxu0 0
    %5034 = vmatmul.mubr.bf16.gmra.mrb[0].mxu0 %v4883
    %v5035 = vpop.f32.mrb[0].mxu0
    %v5036 = vadd.f32 0.0, %v5035
    %v5037 = vpop.f32.mrb[0].mxu0
    %v5038 = vadd.f32 0.0, %v5037
    %v5039 = vpop.f32.mrb[0].mxu0
    %v5040 = vadd.f32 0.0, %v5039
    %v5041 = vpop.f32.mrb[0].mxu0
    %v5042 = vadd.f32 0.0, %v5041
    %5043 = vmatprep.mubr.bf16.mxu0 0
    %5044 = vmatmul.mubr.bf16.gmra.mrb[0].mxu0 %v4884
    %v5045 = vpop.f32.mrb[0].mxu0
    %v5046 = vadd.f32 0.0, %v5045
    %v5047 = vpop.f32.mrb[0].mxu0
    %v5048 = vadd.f32 0.0, %v5047
    %v5049 = vpop.f32.mrb[0].mxu0
    %v5050 = vadd.f32 0.0, %v5049
    %v5051 = vpop.f32.mrb[0].mxu0
    %v5052 = vadd.f32 0.0, %v5051
    %5053 = vmatprep.mubr.bf16.mxu0 0
    %5054 = vmatmul.mubr.bf16.gmra.mrb[0].mxu0 %v4885
    %v5055 = vpop.f32.mrb[0].mxu0
    %v5056 = vadd.f32 0.0, %v5055
    %v5057 = vpop.f32.mrb[0].mxu0
    %v5058 = vadd.f32 0.0, %v5057
    %v5059 = vpop.f32.mrb[0].mxu0
    %v5060 = vadd.f32 0.0, %v5059
    %v5061 = vpop.f32.mrb[0].mxu0
    %v5062 = vadd.f32 0.0, %v5061
    %5063 = vdwg.mxu0
    %v5064 = vadd.f32 %v4797, %v4986
    %v5065 = vadd.f32 %v4798, %v4988
    %v5066 = vadd.f32 %v4799, %v4990
    %v5067 = vadd.f32 %v4800, %v4992
    %v5068 = vadd.f32 %v4801, %v4996
    %v5069 = vadd.f32 %v4802, %v4998
    %v5070 = vadd.f32 %v4803, %v5000
    %v5071 = vadd.f32 %v4804, %v5002
    %v5072 = vadd.f32 %v4805, %v5006
    %v5073 = vadd.f32 %v4806, %v5008
    %v5074 = vadd.f32 %v4807, %v5010
    %v5075 = vadd.f32 %v4808, %v5012
    %v5076 = vadd.f32 %v4809, %v5016
    %v5077 = vadd.f32 %v4810, %v5018
    %v5078 = vadd.f32 %v4811, %v5020
    %v5079 = vadd.f32 %v4812, %v5022
    %v5080 = vadd.f32 %v4813, %v5026
    %v5081 = vadd.f32 %v4814, %v5028
    %v5082 = vadd.f32 %v4815, %v5030
    %v5083 = vadd.f32 %v4816, %v5032
    %v5084 = vadd.f32 %v4817, %v5036
    %v5085 = vadd.f32 %v4818, %v5038
    %v5086 = vadd.f32 %v4819, %v5040
    %v5087 = vadd.f32 %v4820, %v5042
    %v5088 = vadd.f32 %v4821, %v5046
    %v5089 = vadd.f32 %v4822, %v5048
    %v5090 = vadd.f32 %v4823, %v5050
    %v5091 = vadd.f32 %v4824, %v5052
    %v5092 = vadd.f32 %v4825, %v5056
    %v5093 = vadd.f32 %v4826, %v5058
    %v5094 = vadd.f32 %v4827, %v5060
    %v5095 = vadd.f32 %v4828, %v5062
    %s5096 = scalar_lea.vmem [#allocation8], 256
    %v5097 = vld [vmem:[%s5096] sm:$0xf]
    %v5098 = vld [vmem:[%s5096 + $0x4] sm:$0xf]
    %v5099 = vld [vmem:[%s5096 + $0x8] sm:$0xf]
    %v5100 = vld [vmem:[%s5096 + $0xc] sm:$0xf]
    %v5101 = vld [vmem:[%s5096 + $0x10] sm:$0xf]
    %v5102 = vld [vmem:[%s5096 + $0x14] sm:$0xf]
    %v5103 = vld [vmem:[%s5096 + $0x18] sm:$0xf]
    %v5104 = vld [vmem:[%s5096 + $0x1c] sm:$0xf]
    %v5105 = vld [vmem:[%s5096 + $0x20] sm:$0xf]
    %v5106 = vld [vmem:[%s5096 + $0x24] sm:$0xf]
    %v5107 = vld [vmem:[%s5096 + $0x28] sm:$0xf]
    %v5108 = vld [vmem:[%s5096 + $0x2c] sm:$0xf]
    %v5109 = vld [vmem:[%s5096 + $0x30] sm:$0xf]
    %v5110 = vld [vmem:[%s5096 + $0x34] sm:$0xf]
    %v5111 = vld [vmem:[%s5096 + $0x38] sm:$0xf]
    %v5112 = vld [vmem:[%s5096 + $0x3c] sm:$0xf]
    %v5129 = vunpack.c.l.b16 %v5097
    %v5130 = vunpack.c.l.b16 %v5098
    %v5131 = vunpack.c.l.b16 %v5099
    %v5132 = vunpack.c.l.b16 %v5100
    %v5133 = vunpack.c.l.b16 %v5101
    %v5134 = vunpack.c.l.b16 %v5102
    %v5135 = vunpack.c.l.b16 %v5103
    %v5136 = vunpack.c.l.b16 %v5104
    %v5137 = vunpack.c.l.b16 %v5105
    %v5138 = vunpack.c.l.b16 %v5106
    %v5139 = vunpack.c.l.b16 %v5107
    %v5140 = vunpack.c.l.b16 %v5108
    %v5141 = vunpack.c.l.b16 %v5109
    %v5142 = vunpack.c.l.b16 %v5110
    %v5143 = vunpack.c.l.b16 %v5111
    %v5144 = vunpack.c.l.b16 %v5112
    %v5145 = vpack.c.b16 %v5130, %v5129
    %v5146 = vpack.c.b16 %v5132, %v5131
    %v5147 = vpack.c.b16 %v5134, %v5133
    %v5148 = vpack.c.b16 %v5136, %v5135
    %v5149 = vpack.c.b16 %v5138, %v5137
    %v5150 = vpack.c.b16 %v5140, %v5139
    %v5151 = vpack.c.b16 %v5142, %v5141
    %v5152 = vpack.c.b16 %v5144, %v5143
    %5161 = vrot.lane.b32.xlu0 %v4077, 96
    %v5162 = vpop.permute.xlu0 %5161
    %5163 = vrot.lane.b32.xlu0 %v4078, 96
    %v5164 = vpop.permute.xlu0 %5163
    %5165 = vrot.lane.b32.xlu0 %v4079, 96
    %v5166 = vpop.permute.xlu0 %5165
    %5167 = vrot.lane.b32.xlu0 %v4080, 96
    %v5168 = vpop.permute.xlu0 %5167
    %5169 = vrot.lane.b32.xlu0 %v4081, 96
    %v5170 = vpop.permute.xlu0 %5169
    %5171 = vrot.lane.b32.xlu0 %v4082, 96
    %v5172 = vpop.permute.xlu0 %5171
    %5173 = vrot.lane.b32.xlu0 %v4083, 96
    %v5174 = vpop.permute.xlu0 %5173
    %5175 = vrot.lane.b32.xlu0 %v4084, 96
    %v5176 = vpop.permute.xlu0 %5175
    %5177 = vrot.lane.b32.xlu0 %v4085, 96
    %v5178 = vpop.permute.xlu0 %5177
    %5179 = vrot.lane.b32.xlu0 %v4086, 96
    %v5180 = vpop.permute.xlu0 %5179
    %5181 = vrot.lane.b32.xlu0 %v4087, 96
    %v5182 = vpop.permute.xlu0 %5181
    %5183 = vrot.lane.b32.xlu0 %v4088, 96
    %v5184 = vpop.permute.xlu0 %5183
    %5185 = vrot.lane.b32.xlu0 %v4089, 96
    %v5186 = vpop.permute.xlu0 %5185
    %5187 = vrot.lane.b32.xlu0 %v4090, 96
    %v5188 = vpop.permute.xlu0 %5187
    %5189 = vrot.lane.b32.xlu0 %v4091, 96
    %v5190 = vpop.permute.xlu0 %5189
    %5191 = vrot.lane.b32.xlu0 %v4092, 96
    %v5192 = vpop.permute.xlu0 %5191
    %vm5193 = vcmask 785408
    %v5194 = vsel %vm5193, %v5162, %v5164
    %v5195 = vsel %vm5193, %v5166, %v5168
    %v5196 = vsel %vm5193, %v5170, %v5172
    %v5197 = vsel %vm5193, %v5174, %v5176
    %v5198 = vsel %vm5193, %v5178, %v5180
    %v5199 = vsel %vm5193, %v5182, %v5184
    %v5200 = vsel %vm5193, %v5186, %v5188
    %v5201 = vsel %vm5193, %v5190, %v5192
    %5218 = vmatprep.subr.bf16.mxu0 %v5164
    %5219 = vmatpush1.bf16.msra.mxu0 %v5194
    %5220 = vmatprep.subr.bf16.mxu0 %v5168
    %5221 = vmatpush1.bf16.msra.mxu0 %v5195
    %5222 = vmatprep.subr.bf16.mxu0 %v5172
    %5223 = vmatpush1.bf16.msra.mxu0 %v5196
    %5224 = vmatprep.subr.bf16.mxu0 %v5176
    %5225 = vmatpush1.bf16.msra.mxu0 %v5197
    %5226 = vmatprep.subr.bf16.mxu0 %v5180
    %5227 = vmatpush1.bf16.msra.mxu0 %v5198
    %5228 = vmatprep.subr.bf16.mxu0 %v5184
    %5229 = vmatpush1.bf16.msra.mxu0 %v5199
    %5230 = vmatprep.subr.bf16.mxu0 %v5188
    %5231 = vmatpush1.bf16.msra.mxu0 %v5200
    %5232 = vmatprep.subr.bf16.mxu0 %v5192
    %5233 = vmatpush1.bf16.msra.mxu0 %v5201
    %5234 = vmatprep.subr.bf16.mxu0 0
    %5235 = vmatpush1.bf16.msra.mxu0 0
    %5236 = vmatprep.subr.bf16.mxu0 0
    %5237 = vmatpush1.bf16.msra.mxu0 0
    %5238 = vmatprep.subr.bf16.mxu0 0
    %5239 = vmatpush1.bf16.msra.mxu0 0
    %5240 = vmatprep.subr.bf16.mxu0 0
    %5241 = vmatpush1.bf16.msra.mxu0 0
    %5242 = vmatprep.subr.bf16.mxu0 0
    %5243 = vmatpush1.bf16.msra.mxu0 0
    %5244 = vmatprep.subr.bf16.mxu0 0
    %5245 = vmatpush1.bf16.msra.mxu0 0
    %5246 = vmatprep.subr.bf16.mxu0 0
    %5247 = vmatpush1.bf16.msra.mxu0 0
    %5248 = vmatprep.subr.bf16.mxu0 0
    %5249 = vmatpush1.bf16.msra.mxu0 0
    %5250 = vmatprep.mubr.bf16.mxu0 0
    %5251 = vmatmul.mubr.bf16.gmra.mrb[0].mxu0 %v5145
    %v5252 = vpop.f32.mrb[0].mxu0
    %v5253 = vadd.f32 0.0, %v5252
    %v5254 = vpop.f32.mrb[0].mxu0
    %v5255 = vadd.f32 0.0, %v5254
    %v5256 = vpop.f32.mrb[0].mxu0
    %v5257 = vadd.f32 0.0, %v5256
    %v5258 = vpop.f32.mrb[0].mxu0
    %v5259 = vadd.f32 0.0, %v5258
    %5260 = vmatprep.mubr.bf16.mxu0 0
    %5261 = vmatmul.mubr.bf16.gmra.mrb[0].mxu0 %v5146
    %v5262 = vpop.f32.mrb[0].mxu0
    %v5263 = vadd.f32 0.0, %v5262
    %v5264 = vpop.f32.mrb[0].mxu0
    %v5265 = vadd.f32 0.0, %v5264
    %v5266 = vpop.f32.mrb[0].mxu0
    %v5267 = vadd.f32 0.0, %v5266
    %v5268 = vpop.f32.mrb[0].mxu0
    %v5269 = vadd.f32 0.0, %v5268
    %5270 = vmatprep.mubr.bf16.mxu0 0
    %5271 = vmatmul.mubr.bf16.gmra.mrb[0].mxu0 %v5147
    %v5272 = vpop.f32.mrb[0].mxu0
    %v5273 = vadd.f32 0.0, %v5272
    %v5274 = vpop.f32.mrb[0].mxu0
    %v5275 = vadd.f32 0.0, %v5274
    %v5276 = vpop.f32.mrb[0].mxu0
    %v5277 = vadd.f32 0.0, %v5276
    %v5278 = vpop.f32.mrb[0].mxu0
    %v5279 = vadd.f32 0.0, %v5278
    %5280 = vmatprep.mubr.bf16.mxu0 0
    %5281 = vmatmul.mubr.bf16.gmra.mrb[0].mxu0 %v5148
    %v5282 = vpop.f32.mrb[0].mxu0
    %v5283 = vadd.f32 0.0, %v5282
    %v5284 = vpop.f32.mrb[0].mxu0
    %v5285 = vadd.f32 0.0, %v5284
    %v5286 = vpop.f32.mrb[0].mxu0
    %v5287 = vadd.f32 0.0, %v5286
    %v5288 = vpop.f32.mrb[0].mxu0
    %v5289 = vadd.f32 0.0, %v5288
    %5290 = vmatprep.mubr.bf16.mxu0 0
    %5291 = vmatmul.mubr.bf16.gmra.mrb[0].mxu0 %v5149
    %v5292 = vpop.f32.mrb[0].mxu0
    %v5293 = vadd.f32 0.0, %v5292
    %v5294 = vpop.f32.mrb[0].mxu0
    %v5295 = vadd.f32 0.0, %v5294
    %v5296 = vpop.f32.mrb[0].mxu0
    %v5297 = vadd.f32 0.0, %v5296
    %v5298 = vpop.f32.mrb[0].mxu0
    %v5299 = vadd.f32 0.0, %v5298
    %5300 = vmatprep.mubr.bf16.mxu0 0
    %5301 = vmatmul.mubr.bf16.gmra.mrb[0].mxu0 %v5150
    %v5302 = vpop.f32.mrb[0].mxu0
    %v5303 = vadd.f32 0.0, %v5302
    %v5304 = vpop.f32.mrb[0].mxu0
    %v5305 = vadd.f32 0.0, %v5304
    %v5306 = vpop.f32.mrb[0].mxu0
    %v5307 = vadd.f32 0.0, %v5306
    %v5308 = vpop.f32.mrb[0].mxu0
    %v5309 = vadd.f32 0.0, %v5308
    %5310 = vmatprep.mubr.bf16.mxu0 0
    %5311 = vmatmul.mubr.bf16.gmra.mrb[0].mxu0 %v5151
    %v5312 = vpop.f32.mrb[0].mxu0
    %v5313 = vadd.f32 0.0, %v5312
    %v5314 = vpop.f32.mrb[0].mxu0
    %v5315 = vadd.f32 0.0, %v5314
    %v5316 = vpop.f32.mrb[0].mxu0
    %v5317 = vadd.f32 0.0, %v5316
    %v5318 = vpop.f32.mrb[0].mxu0
    %v5319 = vadd.f32 0.0, %v5318
    %5320 = vmatprep.mubr.bf16.mxu0 0
    %5321 = vmatmul.mubr.bf16.gmra.mrb[0].mxu0 %v5152
    %v5322 = vpop.f32.mrb[0].mxu0
    %v5323 = vadd.f32 0.0, %v5322
    %v5324 = vpop.f32.mrb[0].mxu0
    %v5325 = vadd.f32 0.0, %v5324
    %v5326 = vpop.f32.mrb[0].mxu0
    %v5327 = vadd.f32 0.0, %v5326
    %v5328 = vpop.f32.mrb[0].mxu0
    %v5329 = vadd.f32 0.0, %v5328
    %5330 = vdwg.mxu0
    %v5331 = vadd.f32 %v5064, %v5253
    %v5332 = vadd.f32 %v5065, %v5255
    %v5333 = vadd.f32 %v5066, %v5257
    %v5334 = vadd.f32 %v5067, %v5259
    %v5335 = vadd.f32 %v5068, %v5263
    %v5336 = vadd.f32 %v5069, %v5265
    %v5337 = vadd.f32 %v5070, %v5267
    %v5338 = vadd.f32 %v5071, %v5269
    %v5339 = vadd.f32 %v5072, %v5273
    %v5340 = vadd.f32 %v5073, %v5275
    %v5341 = vadd.f32 %v5074, %v5277
    %v5342 = vadd.f32 %v5075, %v5279
    %v5343 = vadd.f32 %v5076, %v5283
    %v5344 = vadd.f32 %v5077, %v5285
    %v5345 = vadd.f32 %v5078, %v5287
    %v5346 = vadd.f32 %v5079, %v5289
    %v5347 = vadd.f32 %v5080, %v5293
    %v5348 = vadd.f32 %v5081, %v5295
    %v5349 = vadd.f32 %v5082, %v5297
    %v5350 = vadd.f32 %v5083, %v5299
    %v5351 = vadd.f32 %v5084, %v5303
    %v5352 = vadd.f32 %v5085, %v5305
    %v5353 = vadd.f32 %v5086, %v5307
    %v5354 = vadd.f32 %v5087, %v5309
    %v5355 = vadd.f32 %v5088, %v5313
    %v5356 = vadd.f32 %v5089, %v5315
    %v5357 = vadd.f32 %v5090, %v5317
    %v5358 = vadd.f32 %v5091, %v5319
    %v5359 = vadd.f32 %v5092, %v5323
    %v5360 = vadd.f32 %v5093, %v5325
    %v5361 = vadd.f32 %v5094, %v5327
    %v5362 = vadd.f32 %v5095, %v5329
    %s5363 = scalar_lea.vmem [#allocation8], 320
    %v5364 = vld [vmem:[%s5363] sm:$0xf]
    %v5365 = vld [vmem:[%s5363 + $0x4] sm:$0xf]
    %v5366 = vld [vmem:[%s5363 + $0x8] sm:$0xf]
    %v5367 = vld [vmem:[%s5363 + $0xc] sm:$0xf]
    %v5368 = vld [vmem:[%s5363 + $0x10] sm:$0xf]
    %v5369 = vld [vmem:[%s5363 + $0x14] sm:$0xf]
    %v5370 = vld [vmem:[%s5363 + $0x18] sm:$0xf]
    %v5371 = vld [vmem:[%s5363 + $0x1c] sm:$0xf]
    %v5372 = vld [vmem:[%s5363 + $0x20] sm:$0xf]
    %v5373 = vld [vmem:[%s5363 + $0x24] sm:$0xf]
    %v5374 = vld [vmem:[%s5363 + $0x28] sm:$0xf]
    %v5375 = vld [vmem:[%s5363 + $0x2c] sm:$0xf]
    %v5376 = vld [vmem:[%s5363 + $0x30] sm:$0xf]
    %v5377 = vld [vmem:[%s5363 + $0x34] sm:$0xf]
    %v5378 = vld [vmem:[%s5363 + $0x38] sm:$0xf]
    %v5379 = vld [vmem:[%s5363 + $0x3c] sm:$0xf]
    %v5380 = vld [vmem:[#allocation5] sm:$0xff]
    %v5381 = vld [vmem:[#allocation5 + $0x8] sm:$0xff]
    %v5382 = vld [vmem:[#allocation5 + $0x10] sm:$0xff]
    %v5383 = vld [vmem:[#allocation5 + $0x18] sm:$0xff]
    %v5384 = vld [vmem:[#allocation5 + $0x20] sm:$0xff]
    %v5385 = vld [vmem:[#allocation5 + $0x28] sm:$0xff]
    %v5386 = vld [vmem:[#allocation5 + $0x30] sm:$0xff]
    %v5387 = vld [vmem:[#allocation5 + $0x38] sm:$0xff]
    %v5388 = vld [vmem:[#allocation5 + $0x40] sm:$0xff]
    %v5389 = vld [vmem:[#allocation5 + $0x48] sm:$0xff]
    %v5390 = vld [vmem:[#allocation5 + $0x50] sm:$0xff]
    %v5391 = vld [vmem:[#allocation5 + $0x58] sm:$0xff]
    %v5392 = vld [vmem:[#allocation5 + $0x60] sm:$0xff]
    %v5393 = vld [vmem:[#allocation5 + $0x68] sm:$0xff]
    %v5394 = vld [vmem:[#allocation5 + $0x70] sm:$0xff]
    %v5395 = vld [vmem:[#allocation5 + $0x78] sm:$0xff]
    %v5396 = vld [vmem:[#allocation5 + $0x80] sm:$0xff]
    %v5397 = vld [vmem:[#allocation5 + $0x88] sm:$0xff]
    %v5398 = vld [vmem:[#allocation5 + $0x90] sm:$0xff]
    %v5399 = vld [vmem:[#allocation5 + $0x98] sm:$0xff]
    %v5400 = vld [vmem:[#allocation5 + $0xa0] sm:$0xff]
    %v5401 = vld [vmem:[#allocation5 + $0xa8] sm:$0xff]
    %v5402 = vld [vmem:[#allocation5 + $0xb0] sm:$0xff]
    %v5403 = vld [vmem:[#allocation5 + $0xb8] sm:$0xff]
    %v5420 = vunpack.c.l.b16 %v5364
    %v5421 = vunpack.c.l.b16 %v5365
    %v5422 = vunpack.c.l.b16 %v5366
    %v5423 = vunpack.c.l.b16 %v5367
    %v5424 = vunpack.c.l.b16 %v5368
    %v5425 = vunpack.c.l.b16 %v5369
    %v5426 = vunpack.c.l.b16 %v5370
    %v5427 = vunpack.c.l.b16 %v5371
    %v5428 = vunpack.c.l.b16 %v5372
    %v5429 = vunpack.c.l.b16 %v5373
    %v5430 = vunpack.c.l.b16 %v5374
    %v5431 = vunpack.c.l.b16 %v5375
    %v5432 = vunpack.c.l.b16 %v5376
    %v5433 = vunpack.c.l.b16 %v5377
    %v5434 = vunpack.c.l.b16 %v5378
    %v5435 = vunpack.c.l.b16 %v5379
    %v5436 = vpack.c.b16 %v5421, %v5420
    %v5437 = vpack.c.b16 %v5423, %v5422
    %v5438 = vpack.c.b16 %v5425, %v5424
    %v5439 = vpack.c.b16 %v5427, %v5426
    %v5440 = vpack.c.b16 %v5429, %v5428
    %v5441 = vpack.c.b16 %v5431, %v5430
    %v5442 = vpack.c.b16 %v5433, %v5432
    %v5443 = vpack.c.b16 %v5435, %v5434
    %5476 = vrot.lane.b32.xlu0 %v5380, 95
    %v5477 = vpop.permute.xlu0 %5476
    %5478 = vrot.lane.b32.xlu0 %v5381, 95
    %v5479 = vpop.permute.xlu0 %5478
    %5480 = vrot.lane.b32.xlu0 %v5382, 95
    %v5481 = vpop.permute.xlu0 %5480
    %5482 = vrot.lane.b32.xlu0 %v5383, 95
    %v5483 = vpop.permute.xlu0 %5482
    %5484 = vrot.lane.b32.xlu0 %v5384, 95
    %v5485 = vpop.permute.xlu0 %5484
    %5486 = vrot.lane.b32.xlu0 %v5385, 95
    %v5487 = vpop.permute.xlu0 %5486
    %5488 = vrot.lane.b32.xlu0 %v5386, 95
    %v5489 = vpop.permute.xlu0 %5488
    %5490 = vrot.lane.b32.xlu0 %v5387, 95
    %v5491 = vpop.permute.xlu0 %5490
    %5492 = vrot.lane.b32.xlu0 %v5388, 95
    %v5493 = vpop.permute.xlu0 %5492
    %5494 = vrot.lane.b32.xlu0 %v5389, 95
    %v5495 = vpop.permute.xlu0 %5494
    %5496 = vrot.lane.b32.xlu0 %v5390, 95
    %v5497 = vpop.permute.xlu0 %5496
    %5498 = vrot.lane.b32.xlu0 %v5391, 95
    %v5499 = vpop.permute.xlu0 %5498
    %5500 = vrot.lane.b32.xlu0 %v5392, 95
    %v5501 = vpop.permute.xlu0 %5500
    %5502 = vrot.lane.b32.xlu0 %v5393, 95
    %v5503 = vpop.permute.xlu0 %5502
    %5504 = vrot.lane.b32.xlu0 %v5394, 95
    %v5505 = vpop.permute.xlu0 %5504
    %5506 = vrot.lane.b32.xlu0 %v5395, 95
    %v5507 = vpop.permute.xlu0 %5506
    %5508 = vrot.lane.b32.xlu0 %v5396, 95
    %v5509 = vpop.permute.xlu0 %5508
    %5510 = vrot.lane.b32.xlu0 %v5397, 95
    %v5511 = vpop.permute.xlu0 %5510
    %5512 = vrot.lane.b32.xlu0 %v5398, 95
    %v5513 = vpop.permute.xlu0 %5512
    %5514 = vrot.lane.b32.xlu0 %v5399, 95
    %v5515 = vpop.permute.xlu0 %5514
    %5516 = vrot.lane.b32.xlu0 %v5400, 95
    %v5517 = vpop.permute.xlu0 %5516
    %5518 = vrot.lane.b32.xlu0 %v5401, 95
    %v5519 = vpop.permute.xlu0 %5518
    %5520 = vrot.lane.b32.xlu0 %v5402, 95
    %v5521 = vpop.permute.xlu0 %5520
    %5522 = vrot.lane.b32.xlu0 %v5403, 95
    %v5523 = vpop.permute.xlu0 %5522
    %vm5524 = vcmask 777216
    %v5525 = vsel %vm5524, %v5477, %v5479
    %v5526 = vsel %vm5524, %v5479, %v5481
    %v5527 = vsel %vm5524, %v5483, %v5485
    %v5528 = vsel %vm5524, %v5485, %v5487
    %v5529 = vsel %vm5524, %v5489, %v5491
    %v5530 = vsel %vm5524, %v5491, %v5493
    %v5531 = vsel %vm5524, %v5495, %v5497
    %v5532 = vsel %vm5524, %v5497, %v5499
    %v5533 = vsel %vm5524, %v5501, %v5503
    %v5534 = vsel %vm5524, %v5503, %v5505
    %v5535 = vsel %vm5524, %v5507, %v5509
    %v5536 = vsel %vm5524, %v5509, %v5511
    %v5537 = vsel %vm5524, %v5513, %v5515
    %v5538 = vsel %vm5524, %v5515, %v5517
    %v5539 = vsel %vm5524, %v5519, %v5521
    %v5540 = vsel %vm5524, %v5521, %v5523
    %5557 = vmatprep.subr.bf16.mxu0 %v5526
    %5558 = vmatpush1.bf16.msra.mxu0 %v5525
    %5559 = vmatprep.subr.bf16.mxu0 %v5528
    %5560 = vmatpush1.bf16.msra.mxu0 %v5527
    %5561 = vmatprep.subr.bf16.mxu0 %v5530
    %5562 = vmatpush1.bf16.msra.mxu0 %v5529
    %5563 = vmatprep.subr.bf16.mxu0 %v5532
    %5564 = vmatpush1.bf16.msra.mxu0 %v5531
    %5565 = vmatprep.subr.bf16.mxu0 %v5534
    %5566 = vmatpush1.bf16.msra.mxu0 %v5533
    %5567 = vmatprep.subr.bf16.mxu0 %v5536
    %5568 = vmatpush1.bf16.msra.mxu0 %v5535
    %5569 = vmatprep.subr.bf16.mxu0 %v5538
    %5570 = vmatpush1.bf16.msra.mxu0 %v5537
    %5571 = vmatprep.subr.bf16.mxu0 %v5540
    %5572 = vmatpush1.bf16.msra.mxu0 %v5539
    %5573 = vmatprep.subr.bf16.mxu0 0
    %5574 = vmatpush1.bf16.msra.mxu0 0
    %5575 = vmatprep.subr.bf16.mxu0 0
    %5576 = vmatpush1.bf16.msra.mxu0 0
    %5577 = vmatprep.subr.bf16.mxu0 0
    %5578 = vmatpush1.bf16.msra.mxu0 0
    %5579 = vmatprep.subr.bf16.mxu0 0
    %5580 = vmatpush1.bf16.msra.mxu0 0
    %5581 = vmatprep.subr.bf16.mxu0 0
    %5582 = vmatpush1.bf16.msra.mxu0 0
    %5583 = vmatprep.subr.bf16.mxu0 0
    %5584 = vmatpush1.bf16.msra.mxu0 0
    %5585 = vmatprep.subr.bf16.mxu0 0
    %5586 = vmatpush1.bf16.msra.mxu0 0
    %5587 = vmatprep.subr.bf16.mxu0 0
    %5588 = vmatpush1.bf16.msra.mxu0 0
    %5589 = vmatprep.mubr.bf16.mxu0 0
    %5590 = vmatmul.mubr.bf16.gmra.mrb[0].mxu0 %v5436
    %v5591 = vpop.f32.mrb[0].mxu0
    %v5592 = vadd.f32 0.0, %v5591
    %v5593 = vpop.f32.mrb[0].mxu0
    %v5594 = vadd.f32 0.0, %v5593
    %v5595 = vpop.f32.mrb[0].mxu0
    %v5596 = vadd.f32 0.0, %v5595
    %v5597 = vpop.f32.mrb[0].mxu0
    %v5598 = vadd.f32 0.0, %v5597
    %5599 = vmatprep.mubr.bf16.mxu0 0
    %5600 = vmatmul.mubr.bf16.gmra.mrb[0].mxu0 %v5437
    %v5601 = vpop.f32.mrb[0].mxu0
    %v5602 = vadd.f32 0.0, %v5601
    %v5603 = vpop.f32.mrb[0].mxu0
    %v5604 = vadd.f32 0.0, %v5603
    %v5605 = vpop.f32.mrb[0].mxu0
    %v5606 = vadd.f32 0.0, %v5605
    %v5607 = vpop.f32.mrb[0].mxu0
    %v5608 = vadd.f32 0.0, %v5607
    %5609 = vmatprep.mubr.bf16.mxu0 0
    %5610 = vmatmul.mubr.bf16.gmra.mrb[0].mxu0 %v5438
    %v5611 = vpop.f32.mrb[0].mxu0
    %v5612 = vadd.f32 0.0, %v5611
    %v5613 = vpop.f32.mrb[0].mxu0
    %v5614 = vadd.f32 0.0, %v5613
    %v5615 = vpop.f32.mrb[0].mxu0
    %v5616 = vadd.f32 0.0, %v5615
    %v5617 = vpop.f32.mrb[0].mxu0
    %v5618 = vadd.f32 0.0, %v5617
    %5619 = vmatprep.mubr.bf16.mxu0 0
    %5620 = vmatmul.mubr.bf16.gmra.mrb[0].mxu0 %v5439
    %v5621 = vpop.f32.mrb[0].mxu0
    %v5622 = vadd.f32 0.0, %v5621
    %v5623 = vpop.f32.mrb[0].mxu0
    %v5624 = vadd.f32 0.0, %v5623
    %v5625 = vpop.f32.mrb[0].mxu0
    %v5626 = vadd.f32 0.0, %v5625
    %v5627 = vpop.f32.mrb[0].mxu0
    %v5628 = vadd.f32 0.0, %v5627
    %5629 = vmatprep.mubr.bf16.mxu0 0
    %5630 = vmatmul.mubr.bf16.gmra.mrb[0].mxu0 %v5440
    %v5631 = vpop.f32.mrb[0].mxu0
    %v5632 = vadd.f32 0.0, %v5631
    %v5633 = vpop.f32.mrb[0].mxu0
    %v5634 = vadd.f32 0.0, %v5633
    %v5635 = vpop.f32.mrb[0].mxu0
    %v5636 = vadd.f32 0.0, %v5635
    %v5637 = vpop.f32.mrb[0].mxu0
    %v5638 = vadd.f32 0.0, %v5637
    %5639 = vmatprep.mubr.bf16.mxu0 0
    %5640 = vmatmul.mubr.bf16.gmra.mrb[0].mxu0 %v5441
    %v5641 = vpop.f32.mrb[0].mxu0
    %v5642 = vadd.f32 0.0, %v5641
    %v5643 = vpop.f32.mrb[0].mxu0
    %v5644 = vadd.f32 0.0, %v5643
    %v5645 = vpop.f32.mrb[0].mxu0
    %v5646 = vadd.f32 0.0, %v5645
    %v5647 = vpop.f32.mrb[0].mxu0
    %v5648 = vadd.f32 0.0, %v5647
    %5649 = vmatprep.mubr.bf16.mxu0 0
    %5650 = vmatmul.mubr.bf16.gmra.mrb[0].mxu0 %v5442
    %v5651 = vpop.f32.mrb[0].mxu0
    %v5652 = vadd.f32 0.0, %v5651
    %v5653 = vpop.f32.mrb[0].mxu0
    %v5654 = vadd.f32 0.0, %v5653
    %v5655 = vpop.f32.mrb[0].mxu0
    %v5656 = vadd.f32 0.0, %v5655
    %v5657 = vpop.f32.mrb[0].mxu0
    %v5658 = vadd.f32 0.0, %v5657
    %5659 = vmatprep.mubr.bf16.mxu0 0
    %5660 = vmatmul.mubr.bf16.gmra.mrb[0].mxu0 %v5443
    %v5661 = vpop.f32.mrb[0].mxu0
    %v5662 = vadd.f32 0.0, %v5661
    %v5663 = vpop.f32.mrb[0].mxu0
    %v5664 = vadd.f32 0.0, %v5663
    %v5665 = vpop.f32.mrb[0].mxu0
    %v5666 = vadd.f32 0.0, %v5665
    %v5667 = vpop.f32.mrb[0].mxu0
    %v5668 = vadd.f32 0.0, %v5667
    %5669 = vdwg.mxu0
    %v5670 = vadd.f32 %v5331, %v5592
    %v5671 = vadd.f32 %v5332, %v5594
    %v5672 = vadd.f32 %v5333, %v5596
    %v5673 = vadd.f32 %v5334, %v5598
    %v5674 = vadd.f32 %v5335, %v5602
    %v5675 = vadd.f32 %v5336, %v5604
    %v5676 = vadd.f32 %v5337, %v5606
    %v5677 = vadd.f32 %v5338, %v5608
    %v5678 = vadd.f32 %v5339, %v5612
    %v5679 = vadd.f32 %v5340, %v5614
    %v5680 = vadd.f32 %v5341, %v5616
    %v5681 = vadd.f32 %v5342, %v5618
    %v5682 = vadd.f32 %v5343, %v5622
    %v5683 = vadd.f32 %v5344, %v5624
    %v5684 = vadd.f32 %v5345, %v5626
    %v5685 = vadd.f32 %v5346, %v5628
    %v5686 = vadd.f32 %v5347, %v5632
    %v5687 = vadd.f32 %v5348, %v5634
    %v5688 = vadd.f32 %v5349, %v5636
    %v5689 = vadd.f32 %v5350, %v5638
    %v5690 = vadd.f32 %v5351, %v5642
    %v5691 = vadd.f32 %v5352, %v5644
    %v5692 = vadd.f32 %v5353, %v5646
    %v5693 = vadd.f32 %v5354, %v5648
    %v5694 = vadd.f32 %v5355, %v5652
    %v5695 = vadd.f32 %v5356, %v5654
    %v5696 = vadd.f32 %v5357, %v5656
    %v5697 = vadd.f32 %v5358, %v5658
    %v5698 = vadd.f32 %v5359, %v5662
    %v5699 = vadd.f32 %v5360, %v5664
    %v5700 = vadd.f32 %v5361, %v5666
    %v5701 = vadd.f32 %v5362, %v5668
    %s5702 = scalar_lea.vmem [#allocation8], 384
    %v5703 = vld [vmem:[%s5702] sm:$0xf]
    %v5704 = vld [vmem:[%s5702 + $0x4] sm:$0xf]
    %v5705 = vld [vmem:[%s5702 + $0x8] sm:$0xf]
    %v5706 = vld [vmem:[%s5702 + $0xc] sm:$0xf]
    %v5707 = vld [vmem:[%s5702 + $0x10] sm:$0xf]
    %v5708 = vld [vmem:[%s5702 + $0x14] sm:$0xf]
    %v5709 = vld [vmem:[%s5702 + $0x18] sm:$0xf]
    %v5710 = vld [vmem:[%s5702 + $0x1c] sm:$0xf]
    %v5711 = vld [vmem:[%s5702 + $0x20] sm:$0xf]
    %v5712 = vld [vmem:[%s5702 + $0x24] sm:$0xf]
    %v5713 = vld [vmem:[%s5702 + $0x28] sm:$0xf]
    %v5714 = vld [vmem:[%s5702 + $0x2c] sm:$0xf]
    %v5715 = vld [vmem:[%s5702 + $0x30] sm:$0xf]
    %v5716 = vld [vmem:[%s5702 + $0x34] sm:$0xf]
    %v5717 = vld [vmem:[%s5702 + $0x38] sm:$0xf]
    %v5718 = vld [vmem:[%s5702 + $0x3c] sm:$0xf]
    %v5735 = vunpack.c.l.b16 %v5703
    %v5736 = vunpack.c.l.b16 %v5704
    %v5737 = vunpack.c.l.b16 %v5705
    %v5738 = vunpack.c.l.b16 %v5706
    %v5739 = vunpack.c.l.b16 %v5707
    %v5740 = vunpack.c.l.b16 %v5708
    %v5741 = vunpack.c.l.b16 %v5709
    %v5742 = vunpack.c.l.b16 %v5710
    %v5743 = vunpack.c.l.b16 %v5711
    %v5744 = vunpack.c.l.b16 %v5712
    %v5745 = vunpack.c.l.b16 %v5713
    %v5746 = vunpack.c.l.b16 %v5714
    %v5747 = vunpack.c.l.b16 %v5715
    %v5748 = vunpack.c.l.b16 %v5716
    %v5749 = vunpack.c.l.b16 %v5717
    %v5750 = vunpack.c.l.b16 %v5718
    %v5751 = vpack.c.b16 %v5736, %v5735
    %v5752 = vpack.c.b16 %v5738, %v5737
    %v5753 = vpack.c.b16 %v5740, %v5739
    %v5754 = vpack.c.b16 %v5742, %v5741
    %v5755 = vpack.c.b16 %v5744, %v5743
    %v5756 = vpack.c.b16 %v5746, %v5745
    %v5757 = vpack.c.b16 %v5748, %v5747
    %v5758 = vpack.c.b16 %v5750, %v5749
    %5767 = vrot.lane.b32.xlu0 %v5380, 81
    %v5768 = vpop.permute.xlu0 %5767
    %5769 = vrot.lane.b32.xlu0 %v5381, 81
    %v5770 = vpop.permute.xlu0 %5769
    %5771 = vrot.lane.b32.xlu0 %v5382, 81
    %v5772 = vpop.permute.xlu0 %5771
    %5773 = vrot.lane.b32.xlu0 %v5383, 81
    %v5774 = vpop.permute.xlu0 %5773
    %5775 = vrot.lane.b32.xlu0 %v5384, 81
    %v5776 = vpop.permute.xlu0 %5775
    %5777 = vrot.lane.b32.xlu0 %v5385, 81
    %v5778 = vpop.permute.xlu0 %5777
    %5779 = vrot.lane.b32.xlu0 %v5386, 81
    %v5780 = vpop.permute.xlu0 %5779
    %5781 = vrot.lane.b32.xlu0 %v5387, 81
    %v5782 = vpop.permute.xlu0 %5781
    %5783 = vrot.lane.b32.xlu0 %v5388, 81
    %v5784 = vpop.permute.xlu0 %5783
    %5785 = vrot.lane.b32.xlu0 %v5389, 81
    %v5786 = vpop.permute.xlu0 %5785
    %5787 = vrot.lane.b32.xlu0 %v5390, 81
    %v5788 = vpop.permute.xlu0 %5787
    %5789 = vrot.lane.b32.xlu0 %v5391, 81
    %v5790 = vpop.permute.xlu0 %5789
    %5791 = vrot.lane.b32.xlu0 %v5392, 81
    %v5792 = vpop.permute.xlu0 %5791
    %5793 = vrot.lane.b32.xlu0 %v5393, 81
    %v5794 = vpop.permute.xlu0 %5793
    %5795 = vrot.lane.b32.xlu0 %v5394, 81
    %v5796 = vpop.permute.xlu0 %5795
    %5797 = vrot.lane.b32.xlu0 %v5395, 81
    %v5798 = vpop.permute.xlu0 %5797
    %5799 = vrot.lane.b32.xlu0 %v5396, 81
    %v5800 = vpop.permute.xlu0 %5799
    %5801 = vrot.lane.b32.xlu0 %v5397, 81
    %v5802 = vpop.permute.xlu0 %5801
    %5803 = vrot.lane.b32.xlu0 %v5398, 81
    %v5804 = vpop.permute.xlu0 %5803
    %5805 = vrot.lane.b32.xlu0 %v5399, 81
    %v5806 = vpop.permute.xlu0 %5805
    %5807 = vrot.lane.b32.xlu0 %v5400, 81
    %v5808 = vpop.permute.xlu0 %5807
    %5809 = vrot.lane.b32.xlu0 %v5401, 81
    %v5810 = vpop.permute.xlu0 %5809
    %5811 = vrot.lane.b32.xlu0 %v5402, 81
    %v5812 = vpop.permute.xlu0 %5811
    %5813 = vrot.lane.b32.xlu0 %v5403, 81
    %v5814 = vpop.permute.xlu0 %5813
    %vm5815 = vcmask 662528
    %v5816 = vsel %vm5815, %v5768, %v5770
    %v5817 = vsel %vm5815, %v5770, %v5772
    %v5818 = vsel %vm5815, %v5774, %v5776
    %v5819 = vsel %vm5815, %v5776, %v5778
    %v5820 = vsel %vm5815, %v5780, %v5782
    %v5821 = vsel %vm5815, %v5782, %v5784
    %v5822 = vsel %vm5815, %v5786, %v5788
    %v5823 = vsel %vm5815, %v5788, %v5790
    %v5824 = vsel %vm5815, %v5792, %v5794
    %v5825 = vsel %vm5815, %v5794, %v5796
    %v5826 = vsel %vm5815, %v5798, %v5800
    %v5827 = vsel %vm5815, %v5800, %v5802
    %v5828 = vsel %vm5815, %v5804, %v5806
    %v5829 = vsel %vm5815, %v5806, %v5808
    %v5830 = vsel %vm5815, %v5810, %v5812
    %v5831 = vsel %vm5815, %v5812, %v5814
    %5848 = vmatprep.subr.bf16.mxu0 %v5817
    %5849 = vmatpush1.bf16.msra.mxu0 %v5816
    %5850 = vmatprep.subr.bf16.mxu0 %v5819
    %5851 = vmatpush1.bf16.msra.mxu0 %v5818
    %5852 = vmatprep.subr.bf16.mxu0 %v5821
    %5853 = vmatpush1.bf16.msra.mxu0 %v5820
    %5854 = vmatprep.subr.bf16.mxu0 %v5823
    %5855 = vmatpush1.bf16.msra.mxu0 %v5822
    %5856 = vmatprep.subr.bf16.mxu0 %v5825
    %5857 = vmatpush1.bf16.msra.mxu0 %v5824
    %5858 = vmatprep.subr.bf16.mxu0 %v5827
    %5859 = vmatpush1.bf16.msra.mxu0 %v5826
    %5860 = vmatprep.subr.bf16.mxu0 %v5829
    %5861 = vmatpush1.bf16.msra.mxu0 %v5828
    %5862 = vmatprep.subr.bf16.mxu0 %v5831
    %5863 = vmatpush1.bf16.msra.mxu0 %v5830
    %5864 = vmatprep.subr.bf16.mxu0 0
    %5865 = vmatpush1.bf16.msra.mxu0 0
    %5866 = vmatprep.subr.bf16.mxu0 0
    %5867 = vmatpush1.bf16.msra.mxu0 0
    %5868 = vmatprep.subr.bf16.mxu0 0
    %5869 = vmatpush1.bf16.msra.mxu0 0
    %5870 = vmatprep.subr.bf16.mxu0 0
    %5871 = vmatpush1.bf16.msra.mxu0 0
    %5872 = vmatprep.subr.bf16.mxu0 0
    %5873 = vmatpush1.bf16.msra.mxu0 0
    %5874 = vmatprep.subr.bf16.mxu0 0
    %5875 = vmatpush1.bf16.msra.mxu0 0
    %5876 = vmatprep.subr.bf16.mxu0 0
    %5877 = vmatpush1.bf16.msra.mxu0 0
    %5878 = vmatprep.subr.bf16.mxu0 0
    %5879 = vmatpush1.bf16.msra.mxu0 0
    %5880 = vmatprep.mubr.bf16.mxu0 0
    %5881 = vmatmul.mubr.bf16.gmra.mrb[0].mxu0 %v5751
    %v5882 = vpop.f32.mrb[0].mxu0
    %v5883 = vadd.f32 0.0, %v5882
    %v5884 = vpop.f32.mrb[0].mxu0
    %v5885 = vadd.f32 0.0, %v5884
    %v5886 = vpop.f32.mrb[0].mxu0
    %v5887 = vadd.f32 0.0, %v5886
    %v5888 = vpop.f32.mrb[0].mxu0
    %v5889 = vadd.f32 0.0, %v5888
    %5890 = vmatprep.mubr.bf16.mxu0 0
    %5891 = vmatmul.mubr.bf16.gmra.mrb[0].mxu0 %v5752
    %v5892 = vpop.f32.mrb[0].mxu0
    %v5893 = vadd.f32 0.0, %v5892
    %v5894 = vpop.f32.mrb[0].mxu0
    %v5895 = vadd.f32 0.0, %v5894
    %v5896 = vpop.f32.mrb[0].mxu0
    %v5897 = vadd.f32 0.0, %v5896
    %v5898 = vpop.f32.mrb[0].mxu0
    %v5899 = vadd.f32 0.0, %v5898
    %5900 = vmatprep.mubr.bf16.mxu0 0
    %5901 = vmatmul.mubr.bf16.gmra.mrb[0].mxu0 %v5753
    %v5902 = vpop.f32.mrb[0].mxu0
    %v5903 = vadd.f32 0.0, %v5902
    %v5904 = vpop.f32.mrb[0].mxu0
    %v5905 = vadd.f32 0.0, %v5904
    %v5906 = vpop.f32.mrb[0].mxu0
    %v5907 = vadd.f32 0.0, %v5906
    %v5908 = vpop.f32.mrb[0].mxu0
    %v5909 = vadd.f32 0.0, %v5908
    %5910 = vmatprep.mubr.bf16.mxu0 0
    %5911 = vmatmul.mubr.bf16.gmra.mrb[0].mxu0 %v5754
    %v5912 = vpop.f32.mrb[0].mxu0
    %v5913 = vadd.f32 0.0, %v5912
    %v5914 = vpop.f32.mrb[0].mxu0
    %v5915 = vadd.f32 0.0, %v5914
    %v5916 = vpop.f32.mrb[0].mxu0
    %v5917 = vadd.f32 0.0, %v5916
    %v5918 = vpop.f32.mrb[0].mxu0
    %v5919 = vadd.f32 0.0, %v5918
    %5920 = vmatprep.mubr.bf16.mxu0 0
    %5921 = vmatmul.mubr.bf16.gmra.mrb[0].mxu0 %v5755
    %v5922 = vpop.f32.mrb[0].mxu0
    %v5923 = vadd.f32 0.0, %v5922
    %v5924 = vpop.f32.mrb[0].mxu0
    %v5925 = vadd.f32 0.0, %v5924
    %v5926 = vpop.f32.mrb[0].mxu0
    %v5927 = vadd.f32 0.0, %v5926
    %v5928 = vpop.f32.mrb[0].mxu0
    %v5929 = vadd.f32 0.0, %v5928
    %5930 = vmatprep.mubr.bf16.mxu0 0
    %5931 = vmatmul.mubr.bf16.gmra.mrb[0].mxu0 %v5756
    %v5932 = vpop.f32.mrb[0].mxu0
    %v5933 = vadd.f32 0.0, %v5932
    %v5934 = vpop.f32.mrb[0].mxu0
    %v5935 = vadd.f32 0.0, %v5934
    %v5936 = vpop.f32.mrb[0].mxu0
    %v5937 = vadd.f32 0.0, %v5936
    %v5938 = vpop.f32.mrb[0].mxu0
    %v5939 = vadd.f32 0.0, %v5938
    %5940 = vmatprep.mubr.bf16.mxu0 0
    %5941 = vmatmul.mubr.bf16.gmra.mrb[0].mxu0 %v5757
    %v5942 = vpop.f32.mrb[0].mxu0
    %v5943 = vadd.f32 0.0, %v5942
    %v5944 = vpop.f32.mrb[0].mxu0
    %v5945 = vadd.f32 0.0, %v5944
    %v5946 = vpop.f32.mrb[0].mxu0
    %v5947 = vadd.f32 0.0, %v5946
    %v5948 = vpop.f32.mrb[0].mxu0
    %v5949 = vadd.f32 0.0, %v5948
    %5950 = vmatprep.mubr.bf16.mxu0 0
    %5951 = vmatmul.mubr.bf16.gmra.mrb[0].mxu0 %v5758
    %v5952 = vpop.f32.mrb[0].mxu0
    %v5953 = vadd.f32 0.0, %v5952
    %v5954 = vpop.f32.mrb[0].mxu0
    %v5955 = vadd.f32 0.0, %v5954
    %v5956 = vpop.f32.mrb[0].mxu0
    %v5957 = vadd.f32 0.0, %v5956
    %v5958 = vpop.f32.mrb[0].mxu0
    %v5959 = vadd.f32 0.0, %v5958
    %5960 = vdwg.mxu0
    %v5961 = vadd.f32 %v5670, %v5883
    %v5962 = vadd.f32 %v5671, %v5885
    %v5963 = vadd.f32 %v5672, %v5887
    %v5964 = vadd.f32 %v5673, %v5889
    %v5965 = vadd.f32 %v5674, %v5893
    %v5966 = vadd.f32 %v5675, %v5895
    %v5967 = vadd.f32 %v5676, %v5897
    %v5968 = vadd.f32 %v5677, %v5899
    %v5969 = vadd.f32 %v5678, %v5903
    %v5970 = vadd.f32 %v5679, %v5905
    %v5971 = vadd.f32 %v5680, %v5907
    %v5972 = vadd.f32 %v5681, %v5909
    %v5973 = vadd.f32 %v5682, %v5913
    %v5974 = vadd.f32 %v5683, %v5915
    %v5975 = vadd.f32 %v5684, %v5917
    %v5976 = vadd.f32 %v5685, %v5919
    %v5977 = vadd.f32 %v5686, %v5923
    %v5978 = vadd.f32 %v5687, %v5925
    %v5979 = vadd.f32 %v5688, %v5927
    %v5980 = vadd.f32 %v5689, %v5929
    %v5981 = vadd.f32 %v5690, %v5933
    %v5982 = vadd.f32 %v5691, %v5935
    %v5983 = vadd.f32 %v5692, %v5937
    %v5984 = vadd.f32 %v5693, %v5939
    %v5985 = vadd.f32 %v5694, %v5943
    %v5986 = vadd.f32 %v5695, %v5945
    %v5987 = vadd.f32 %v5696, %v5947
    %v5988 = vadd.f32 %v5697, %v5949
    %v5989 = vadd.f32 %v5698, %v5953
    %v5990 = vadd.f32 %v5699, %v5955
    %v5991 = vadd.f32 %v5700, %v5957
    %v5992 = vadd.f32 %v5701, %v5959
    %s5993 = scalar_lea.vmem [#allocation8], 448
    %v5994 = vld [vmem:[%s5993] sm:$0xf]
    %v5995 = vld [vmem:[%s5993 + $0x4] sm:$0xf]
    %v5996 = vld [vmem:[%s5993 + $0x8] sm:$0xf]
    %v5997 = vld [vmem:[%s5993 + $0xc] sm:$0xf]
    %v5998 = vld [vmem:[%s5993 + $0x10] sm:$0xf]
    %v5999 = vld [vmem:[%s5993 + $0x14] sm:$0xf]
    %v6000 = vld [vmem:[%s5993 + $0x18] sm:$0xf]
    %v6001 = vld [vmem:[%s5993 + $0x1c] sm:$0xf]
    %v6002 = vld [vmem:[%s5993 + $0x20] sm:$0xf]
    %v6003 = vld [vmem:[%s5993 + $0x24] sm:$0xf]
    %v6004 = vld [vmem:[%s5993 + $0x28] sm:$0xf]
    %v6005 = vld [vmem:[%s5993 + $0x2c] sm:$0xf]
    %v6006 = vld [vmem:[%s5993 + $0x30] sm:$0xf]
    %v6007 = vld [vmem:[%s5993 + $0x34] sm:$0xf]
    %v6008 = vld [vmem:[%s5993 + $0x38] sm:$0xf]
    %v6009 = vld [vmem:[%s5993 + $0x3c] sm:$0xf]
    %v6026 = vunpack.c.l.b16 %v5994
    %v6027 = vunpack.c.l.b16 %v5995
    %v6028 = vunpack.c.l.b16 %v5996
    %v6029 = vunpack.c.l.b16 %v5997
    %v6030 = vunpack.c.l.b16 %v5998
    %v6031 = vunpack.c.l.b16 %v5999
    %v6032 = vunpack.c.l.b16 %v6000
    %v6033 = vunpack.c.l.b16 %v6001
    %v6034 = vunpack.c.l.b16 %v6002
    %v6035 = vunpack.c.l.b16 %v6003
    %v6036 = vunpack.c.l.b16 %v6004
    %v6037 = vunpack.c.l.b16 %v6005
    %v6038 = vunpack.c.l.b16 %v6006
    %v6039 = vunpack.c.l.b16 %v6007
    %v6040 = vunpack.c.l.b16 %v6008
    %v6041 = vunpack.c.l.b16 %v6009
    %v6042 = vpack.c.b16 %v6027, %v6026
    %v6043 = vpack.c.b16 %v6029, %v6028
    %v6044 = vpack.c.b16 %v6031, %v6030
    %v6045 = vpack.c.b16 %v6033, %v6032
    %v6046 = vpack.c.b16 %v6035, %v6034
    %v6047 = vpack.c.b16 %v6037, %v6036
    %v6048 = vpack.c.b16 %v6039, %v6038
    %v6049 = vpack.c.b16 %v6041, %v6040
    %6058 = vrot.lane.b32.xlu0 %v5380, 80
    %v6059 = vpop.permute.xlu0 %6058
    %6060 = vrot.lane.b32.xlu0 %v5381, 80
    %v6061 = vpop.permute.xlu0 %6060
    %6062 = vrot.lane.b32.xlu0 %v5382, 80
    %v6063 = vpop.permute.xlu0 %6062
    %6064 = vrot.lane.b32.xlu0 %v5383, 80
    %v6065 = vpop.permute.xlu0 %6064
    %6066 = vrot.lane.b32.xlu0 %v5384, 80
    %v6067 = vpop.permute.xlu0 %6066
    %6068 = vrot.lane.b32.xlu0 %v5385, 80
    %v6069 = vpop.permute.xlu0 %6068
    %6070 = vrot.lane.b32.xlu0 %v5386, 80
    %v6071 = vpop.permute.xlu0 %6070
    %6072 = vrot.lane.b32.xlu0 %v5387, 80
    %v6073 = vpop.permute.xlu0 %6072
    %6074 = vrot.lane.b32.xlu0 %v5388, 80
    %v6075 = vpop.permute.xlu0 %6074
    %6076 = vrot.lane.b32.xlu0 %v5389, 80
    %v6077 = vpop.permute.xlu0 %6076
    %6078 = vrot.lane.b32.xlu0 %v5390, 80
    %v6079 = vpop.permute.xlu0 %6078
    %6080 = vrot.lane.b32.xlu0 %v5391, 80
    %v6081 = vpop.permute.xlu0 %6080
    %6082 = vrot.lane.b32.xlu0 %v5392, 80
    %v6083 = vpop.permute.xlu0 %6082
    %6084 = vrot.lane.b32.xlu0 %v5393, 80
    %v6085 = vpop.permute.xlu0 %6084
    %6086 = vrot.lane.b32.xlu0 %v5394, 80
    %v6087 = vpop.permute.xlu0 %6086
    %6088 = vrot.lane.b32.xlu0 %v5395, 80
    %v6089 = vpop.permute.xlu0 %6088
    %6090 = vrot.lane.b32.xlu0 %v5396, 80
    %v6091 = vpop.permute.xlu0 %6090
    %6092 = vrot.lane.b32.xlu0 %v5397, 80
    %v6093 = vpop.permute.xlu0 %6092
    %6094 = vrot.lane.b32.xlu0 %v5398, 80
    %v6095 = vpop.permute.xlu0 %6094
    %6096 = vrot.lane.b32.xlu0 %v5399, 80
    %v6097 = vpop.permute.xlu0 %6096
    %6098 = vrot.lane.b32.xlu0 %v5400, 80
    %v6099 = vpop.permute.xlu0 %6098
    %6100 = vrot.lane.b32.xlu0 %v5401, 80
    %v6101 = vpop.permute.xlu0 %6100
    %6102 = vrot.lane.b32.xlu0 %v5402, 80
    %v6103 = vpop.permute.xlu0 %6102
    %6104 = vrot.lane.b32.xlu0 %v5403, 80
    %v6105 = vpop.permute.xlu0 %6104
    %vm6106 = vcmask 654336
    %v6107 = vsel %vm6106, %v6059, %v6061
    %v6108 = vsel %vm6106, %v6061, %v6063
    %v6109 = vsel %vm6106, %v6065, %v6067
    %v6110 = vsel %vm6106, %v6067, %v6069
    %v6111 = vsel %vm6106, %v6071, %v6073
    %v6112 = vsel %vm6106, %v6073, %v6075
    %v6113 = vsel %vm6106, %v6077, %v6079
    %v6114 = vsel %vm6106, %v6079, %v6081
    %v6115 = vsel %vm6106, %v6083, %v6085
    %v6116 = vsel %vm6106, %v6085, %v6087
    %v6117 = vsel %vm6106, %v6089, %v6091
    %v6118 = vsel %vm6106, %v6091, %v6093
    %v6119 = vsel %vm6106, %v6095, %v6097
    %v6120 = vsel %vm6106, %v6097, %v6099
    %v6121 = vsel %vm6106, %v6101, %v6103
    %v6122 = vsel %vm6106, %v6103, %v6105
    %6139 = vmatprep.subr.bf16.mxu0 %v6108
    %6140 = vmatpush1.bf16.msra.mxu0 %v6107
    %6141 = vmatprep.subr.bf16.mxu0 %v6110
    %6142 = vmatpush1.bf16.msra.mxu0 %v6109
    %6143 = vmatprep.subr.bf16.mxu0 %v6112
    %6144 = vmatpush1.bf16.msra.mxu0 %v6111
    %6145 = vmatprep.subr.bf16.mxu0 %v6114
    %6146 = vmatpush1.bf16.msra.mxu0 %v6113
    %6147 = vmatprep.subr.bf16.mxu0 %v6116
    %6148 = vmatpush1.bf16.msra.mxu0 %v6115
    %6149 = vmatprep.subr.bf16.mxu0 %v6118
    %6150 = vmatpush1.bf16.msra.mxu0 %v6117
    %6151 = vmatprep.subr.bf16.mxu0 %v6120
    %6152 = vmatpush1.bf16.msra.mxu0 %v6119
    %6153 = vmatprep.subr.bf16.mxu0 %v6122
    %6154 = vmatpush1.bf16.msra.mxu0 %v6121
    %6155 = vmatprep.subr.bf16.mxu0 0
    %6156 = vmatpush1.bf16.msra.mxu0 0
    %6157 = vmatprep.subr.bf16.mxu0 0
    %6158 = vmatpush1.bf16.msra.mxu0 0
    %6159 = vmatprep.subr.bf16.mxu0 0
    %6160 = vmatpush1.bf16.msra.mxu0 0
    %6161 = vmatprep.subr.bf16.mxu0 0
    %6162 = vmatpush1.bf16.msra.mxu0 0
    %6163 = vmatprep.subr.bf16.mxu0 0
    %6164 = vmatpush1.bf16.msra.mxu0 0
    %6165 = vmatprep.subr.bf16.mxu0 0
    %6166 = vmatpush1.bf16.msra.mxu0 0
    %6167 = vmatprep.subr.bf16.mxu0 0
    %6168 = vmatpush1.bf16.msra.mxu0 0
    %6169 = vmatprep.subr.bf16.mxu0 0
    %6170 = vmatpush1.bf16.msra.mxu0 0
    %6171 = vmatprep.mubr.bf16.mxu0 0
    %6172 = vmatmul.mubr.bf16.gmra.mrb[0].mxu0 %v6042
    %v6173 = vpop.f32.mrb[0].mxu0
    %v6174 = vadd.f32 0.0, %v6173
    %v6175 = vpop.f32.mrb[0].mxu0
    %v6176 = vadd.f32 0.0, %v6175
    %v6177 = vpop.f32.mrb[0].mxu0
    %v6178 = vadd.f32 0.0, %v6177
    %v6179 = vpop.f32.mrb[0].mxu0
    %v6180 = vadd.f32 0.0, %v6179
    %6181 = vmatprep.mubr.bf16.mxu0 0
    %6182 = vmatmul.mubr.bf16.gmra.mrb[0].mxu0 %v6043
    %v6183 = vpop.f32.mrb[0].mxu0
    %v6184 = vadd.f32 0.0, %v6183
    %v6185 = vpop.f32.mrb[0].mxu0
    %v6186 = vadd.f32 0.0, %v6185
    %v6187 = vpop.f32.mrb[0].mxu0
    %v6188 = vadd.f32 0.0, %v6187
    %v6189 = vpop.f32.mrb[0].mxu0
    %v6190 = vadd.f32 0.0, %v6189
    %6191 = vmatprep.mubr.bf16.mxu0 0
    %6192 = vmatmul.mubr.bf16.gmra.mrb[0].mxu0 %v6044
    %v6193 = vpop.f32.mrb[0].mxu0
    %v6194 = vadd.f32 0.0, %v6193
    %v6195 = vpop.f32.mrb[0].mxu0
    %v6196 = vadd.f32 0.0, %v6195
    %v6197 = vpop.f32.mrb[0].mxu0
    %v6198 = vadd.f32 0.0, %v6197
    %v6199 = vpop.f32.mrb[0].mxu0
    %v6200 = vadd.f32 0.0, %v6199
    %6201 = vmatprep.mubr.bf16.mxu0 0
    %6202 = vmatmul.mubr.bf16.gmra.mrb[0].mxu0 %v6045
    %v6203 = vpop.f32.mrb[0].mxu0
    %v6204 = vadd.f32 0.0, %v6203
    %v6205 = vpop.f32.mrb[0].mxu0
    %v6206 = vadd.f32 0.0, %v6205
    %v6207 = vpop.f32.mrb[0].mxu0
    %v6208 = vadd.f32 0.0, %v6207
    %v6209 = vpop.f32.mrb[0].mxu0
    %v6210 = vadd.f32 0.0, %v6209
    %6211 = vmatprep.mubr.bf16.mxu0 0
    %6212 = vmatmul.mubr.bf16.gmra.mrb[0].mxu0 %v6046
    %v6213 = vpop.f32.mrb[0].mxu0
    %v6214 = vadd.f32 0.0, %v6213
    %v6215 = vpop.f32.mrb[0].mxu0
    %v6216 = vadd.f32 0.0, %v6215
    %v6217 = vpop.f32.mrb[0].mxu0
    %v6218 = vadd.f32 0.0, %v6217
    %v6219 = vpop.f32.mrb[0].mxu0
    %v6220 = vadd.f32 0.0, %v6219
    %6221 = vmatprep.mubr.bf16.mxu0 0
    %6222 = vmatmul.mubr.bf16.gmra.mrb[0].mxu0 %v6047
    %v6223 = vpop.f32.mrb[0].mxu0
    %v6224 = vadd.f32 0.0, %v6223
    %v6225 = vpop.f32.mrb[0].mxu0
    %v6226 = vadd.f32 0.0, %v6225
    %v6227 = vpop.f32.mrb[0].mxu0
    %v6228 = vadd.f32 0.0, %v6227
    %v6229 = vpop.f32.mrb[0].mxu0
    %v6230 = vadd.f32 0.0, %v6229
    %6231 = vmatprep.mubr.bf16.mxu0 0
    %6232 = vmatmul.mubr.bf16.gmra.mrb[0].mxu0 %v6048
    %v6233 = vpop.f32.mrb[0].mxu0
    %v6234 = vadd.f32 0.0, %v6233
    %v6235 = vpop.f32.mrb[0].mxu0
    %v6236 = vadd.f32 0.0, %v6235
    %v6237 = vpop.f32.mrb[0].mxu0
    %v6238 = vadd.f32 0.0, %v6237
    %v6239 = vpop.f32.mrb[0].mxu0
    %v6240 = vadd.f32 0.0, %v6239
    %6241 = vmatprep.mubr.bf16.mxu0 0
    %6242 = vmatmul.mubr.bf16.gmra.mrb[0].mxu0 %v6049
    %v6243 = vpop.f32.mrb[0].mxu0
    %v6244 = vadd.f32 0.0, %v6243
    %v6245 = vpop.f32.mrb[0].mxu0
    %v6246 = vadd.f32 0.0, %v6245
    %v6247 = vpop.f32.mrb[0].mxu0
    %v6248 = vadd.f32 0.0, %v6247
    %v6249 = vpop.f32.mrb[0].mxu0
    %v6250 = vadd.f32 0.0, %v6249
    %6251 = vdwg.mxu0
    %v6252 = vadd.f32 %v5961, %v6174
    %v6253 = vadd.f32 %v5962, %v6176
    %v6254 = vadd.f32 %v5963, %v6178
    %v6255 = vadd.f32 %v5964, %v6180
    %v6256 = vadd.f32 %v5965, %v6184
    %v6257 = vadd.f32 %v5966, %v6186
    %v6258 = vadd.f32 %v5967, %v6188
    %v6259 = vadd.f32 %v5968, %v6190
    %v6260 = vadd.f32 %v5969, %v6194
    %v6261 = vadd.f32 %v5970, %v6196
    %v6262 = vadd.f32 %v5971, %v6198
    %v6263 = vadd.f32 %v5972, %v6200
    %v6264 = vadd.f32 %v5973, %v6204
    %v6265 = vadd.f32 %v5974, %v6206
    %v6266 = vadd.f32 %v5975, %v6208
    %v6267 = vadd.f32 %v5976, %v6210
    %v6268 = vadd.f32 %v5977, %v6214
    %v6269 = vadd.f32 %v5978, %v6216
    %v6270 = vadd.f32 %v5979, %v6218
    %v6271 = vadd.f32 %v5980, %v6220
    %v6272 = vadd.f32 %v5981, %v6224
    %v6273 = vadd.f32 %v5982, %v6226
    %v6274 = vadd.f32 %v5983, %v6228
    %v6275 = vadd.f32 %v5984, %v6230
    %v6276 = vadd.f32 %v5985, %v6234
    %v6277 = vadd.f32 %v5986, %v6236
    %v6278 = vadd.f32 %v5987, %v6238
    %v6279 = vadd.f32 %v5988, %v6240
    %v6280 = vadd.f32 %v5989, %v6244
    %v6281 = vadd.f32 %v5990, %v6246
    %v6282 = vadd.f32 %v5991, %v6248
    %v6283 = vadd.f32 %v5992, %v6250
    %s6284 = scalar_lea.vmem [#allocation8], 512
    %v6285 = vld [vmem:[%s6284] sm:$0xf]
    %v6286 = vld [vmem:[%s6284 + $0x4] sm:$0xf]
    %v6287 = vld [vmem:[%s6284 + $0x8] sm:$0xf]
    %v6288 = vld [vmem:[%s6284 + $0xc] sm:$0xf]
    %v6289 = vld [vmem:[%s6284 + $0x10] sm:$0xf]
    %v6290 = vld [vmem:[%s6284 + $0x14] sm:$0xf]
    %v6291 = vld [vmem:[%s6284 + $0x18] sm:$0xf]
    %v6292 = vld [vmem:[%s6284 + $0x1c] sm:$0xf]
    %v6293 = vld [vmem:[%s6284 + $0x20] sm:$0xf]
    %v6294 = vld [vmem:[%s6284 + $0x24] sm:$0xf]
    %v6295 = vld [vmem:[%s6284 + $0x28] sm:$0xf]
    %v6296 = vld [vmem:[%s6284 + $0x2c] sm:$0xf]
    %v6297 = vld [vmem:[%s6284 + $0x30] sm:$0xf]
    %v6298 = vld [vmem:[%s6284 + $0x34] sm:$0xf]
    %v6299 = vld [vmem:[%s6284 + $0x38] sm:$0xf]
    %v6300 = vld [vmem:[%s6284 + $0x3c] sm:$0xf]
    %v6317 = vunpack.c.l.b16 %v6285
    %v6318 = vunpack.c.l.b16 %v6286
    %v6319 = vunpack.c.l.b16 %v6287
    %v6320 = vunpack.c.l.b16 %v6288
    %v6321 = vunpack.c.l.b16 %v6289
    %v6322 = vunpack.c.l.b16 %v6290
    %v6323 = vunpack.c.l.b16 %v6291
    %v6324 = vunpack.c.l.b16 %v6292
    %v6325 = vunpack.c.l.b16 %v6293
    %v6326 = vunpack.c.l.b16 %v6294
    %v6327 = vunpack.c.l.b16 %v6295
    %v6328 = vunpack.c.l.b16 %v6296
    %v6329 = vunpack.c.l.b16 %v6297
    %v6330 = vunpack.c.l.b16 %v6298
    %v6331 = vunpack.c.l.b16 %v6299
    %v6332 = vunpack.c.l.b16 %v6300
    %v6333 = vpack.c.b16 %v6318, %v6317
    %v6334 = vpack.c.b16 %v6320, %v6319
    %v6335 = vpack.c.b16 %v6322, %v6321
    %v6336 = vpack.c.b16 %v6324, %v6323
    %v6337 = vpack.c.b16 %v6326, %v6325
    %v6338 = vpack.c.b16 %v6328, %v6327
    %v6339 = vpack.c.b16 %v6330, %v6329
    %v6340 = vpack.c.b16 %v6332, %v6331
    %6349 = vrot.lane.b32.xlu0 %v5380, 79
    %v6350 = vpop.permute.xlu0 %6349
    %6351 = vrot.lane.b32.xlu0 %v5381, 79
    %v6352 = vpop.permute.xlu0 %6351
    %6353 = vrot.lane.b32.xlu0 %v5382, 79
    %v6354 = vpop.permute.xlu0 %6353
    %6355 = vrot.lane.b32.xlu0 %v5383, 79
    %v6356 = vpop.permute.xlu0 %6355
    %6357 = vrot.lane.b32.xlu0 %v5384, 79
    %v6358 = vpop.permute.xlu0 %6357
    %6359 = vrot.lane.b32.xlu0 %v5385, 79
    %v6360 = vpop.permute.xlu0 %6359
    %6361 = vrot.lane.b32.xlu0 %v5386, 79
    %v6362 = vpop.permute.xlu0 %6361
    %6363 = vrot.lane.b32.xlu0 %v5387, 79
    %v6364 = vpop.permute.xlu0 %6363
    %6365 = vrot.lane.b32.xlu0 %v5388, 79
    %v6366 = vpop.permute.xlu0 %6365
    %6367 = vrot.lane.b32.xlu0 %v5389, 79
    %v6368 = vpop.permute.xlu0 %6367
    %6369 = vrot.lane.b32.xlu0 %v5390, 79
    %v6370 = vpop.permute.xlu0 %6369
    %6371 = vrot.lane.b32.xlu0 %v5391, 79
    %v6372 = vpop.permute.xlu0 %6371
    %6373 = vrot.lane.b32.xlu0 %v5392, 79
    %v6374 = vpop.permute.xlu0 %6373
    %6375 = vrot.lane.b32.xlu0 %v5393, 79
    %v6376 = vpop.permute.xlu0 %6375
    %6377 = vrot.lane.b32.xlu0 %v5394, 79
    %v6378 = vpop.permute.xlu0 %6377
    %6379 = vrot.lane.b32.xlu0 %v5395, 79
    %v6380 = vpop.permute.xlu0 %6379
    %6381 = vrot.lane.b32.xlu0 %v5396, 79
    %v6382 = vpop.permute.xlu0 %6381
    %6383 = vrot.lane.b32.xlu0 %v5397, 79
    %v6384 = vpop.permute.xlu0 %6383
    %6385 = vrot.lane.b32.xlu0 %v5398, 79
    %v6386 = vpop.permute.xlu0 %6385
    %6387 = vrot.lane.b32.xlu0 %v5399, 79
    %v6388 = vpop.permute.xlu0 %6387
    %6389 = vrot.lane.b32.xlu0 %v5400, 79
    %v6390 = vpop.permute.xlu0 %6389
    %6391 = vrot.lane.b32.xlu0 %v5401, 79
    %v6392 = vpop.permute.xlu0 %6391
    %6393 = vrot.lane.b32.xlu0 %v5402, 79
    %v6394 = vpop.permute.xlu0 %6393
    %6395 = vrot.lane.b32.xlu0 %v5403, 79
    %v6396 = vpop.permute.xlu0 %6395
    %vm6397 = vcmask 646144
    %v6398 = vsel %vm6397, %v6350, %v6352
    %v6399 = vsel %vm6397, %v6352, %v6354
    %v6400 = vsel %vm6397, %v6356, %v6358
    %v6401 = vsel %vm6397, %v6358, %v6360
    %v6402 = vsel %vm6397, %v6362, %v6364
    %v6403 = vsel %vm6397, %v6364, %v6366
    %v6404 = vsel %vm6397, %v6368, %v6370
    %v6405 = vsel %vm6397, %v6370, %v6372
    %v6406 = vsel %vm6397, %v6374, %v6376
    %v6407 = vsel %vm6397, %v6376, %v6378
    %v6408 = vsel %vm6397, %v6380, %v6382
    %v6409 = vsel %vm6397, %v6382, %v6384
    %v6410 = vsel %vm6397, %v6386, %v6388
    %v6411 = vsel %vm6397, %v6388, %v6390
    %v6412 = vsel %vm6397, %v6392, %v6394
    %v6413 = vsel %vm6397, %v6394, %v6396
    %6430 = vmatprep.subr.bf16.mxu0 %v6399
    %6431 = vmatpush1.bf16.msra.mxu0 %v6398
    %6432 = vmatprep.subr.bf16.mxu0 %v6401
    %6433 = vmatpush1.bf16.msra.mxu0 %v6400
    %6434 = vmatprep.subr.bf16.mxu0 %v6403
    %6435 = vmatpush1.bf16.msra.mxu0 %v6402
    %6436 = vmatprep.subr.bf16.mxu0 %v6405
    %6437 = vmatpush1.bf16.msra.mxu0 %v6404
    %6438 = vmatprep.subr.bf16.mxu0 %v6407
    %6439 = vmatpush1.bf16.msra.mxu0 %v6406
    %6440 = vmatprep.subr.bf16.mxu0 %v6409
    %6441 = vmatpush1.bf16.msra.mxu0 %v6408
    %6442 = vmatprep.subr.bf16.mxu0 %v6411
    %6443 = vmatpush1.bf16.msra.mxu0 %v6410
    %6444 = vmatprep.subr.bf16.mxu0 %v6413
    %6445 = vmatpush1.bf16.msra.mxu0 %v6412
    %6446 = vmatprep.subr.bf16.mxu0 0
    %6447 = vmatpush1.bf16.msra.mxu0 0
    %6448 = vmatprep.subr.bf16.mxu0 0
    %6449 = vmatpush1.bf16.msra.mxu0 0
    %6450 = vmatprep.subr.bf16.mxu0 0
    %6451 = vmatpush1.bf16.msra.mxu0 0
    %6452 = vmatprep.subr.bf16.mxu0 0
    %6453 = vmatpush1.bf16.msra.mxu0 0
    %6454 = vmatprep.subr.bf16.mxu0 0
    %6455 = vmatpush1.bf16.msra.mxu0 0
    %6456 = vmatprep.subr.bf16.mxu0 0
    %6457 = vmatpush1.bf16.msra.mxu0 0
    %6458 = vmatprep.subr.bf16.mxu0 0
    %6459 = vmatpush1.bf16.msra.mxu0 0
    %6460 = vmatprep.subr.bf16.mxu0 0
    %6461 = vmatpush1.bf16.msra.mxu0 0
    %6462 = vmatprep.mubr.bf16.mxu0 0
    %6463 = vmatmul.mubr.bf16.gmra.mrb[0].mxu0 %v6333
    %v6464 = vpop.f32.mrb[0].mxu0
    %v6465 = vadd.f32 0.0, %v6464
    %v6466 = vpop.f32.mrb[0].mxu0
    %v6467 = vadd.f32 0.0, %v6466
    %v6468 = vpop.f32.mrb[0].mxu0
    %v6469 = vadd.f32 0.0, %v6468
    %v6470 = vpop.f32.mrb[0].mxu0
    %v6471 = vadd.f32 0.0, %v6470
    %6472 = vmatprep.mubr.bf16.mxu0 0
    %6473 = vmatmul.mubr.bf16.gmra.mrb[0].mxu0 %v6334
    %v6474 = vpop.f32.mrb[0].mxu0
    %v6475 = vadd.f32 0.0, %v6474
    %v6476 = vpop.f32.mrb[0].mxu0
    %v6477 = vadd.f32 0.0, %v6476
    %v6478 = vpop.f32.mrb[0].mxu0
    %v6479 = vadd.f32 0.0, %v6478
    %v6480 = vpop.f32.mrb[0].mxu0
    %v6481 = vadd.f32 0.0, %v6480
    %6482 = vmatprep.mubr.bf16.mxu0 0
    %6483 = vmatmul.mubr.bf16.gmra.mrb[0].mxu0 %v6335
    %v6484 = vpop.f32.mrb[0].mxu0
    %v6485 = vadd.f32 0.0, %v6484
    %v6486 = vpop.f32.mrb[0].mxu0
    %v6487 = vadd.f32 0.0, %v6486
    %v6488 = vpop.f32.mrb[0].mxu0
    %v6489 = vadd.f32 0.0, %v6488
    %v6490 = vpop.f32.mrb[0].mxu0
    %v6491 = vadd.f32 0.0, %v6490
    %6492 = vmatprep.mubr.bf16.mxu0 0
    %6493 = vmatmul.mubr.bf16.gmra.mrb[0].mxu0 %v6336
    %v6494 = vpop.f32.mrb[0].mxu0
    %v6495 = vadd.f32 0.0, %v6494
    %v6496 = vpop.f32.mrb[0].mxu0
    %v6497 = vadd.f32 0.0, %v6496
    %v6498 = vpop.f32.mrb[0].mxu0
    %v6499 = vadd.f32 0.0, %v6498
    %v6500 = vpop.f32.mrb[0].mxu0
    %v6501 = vadd.f32 0.0, %v6500
    %6502 = vmatprep.mubr.bf16.mxu0 0
    %6503 = vmatmul.mubr.bf16.gmra.mrb[0].mxu0 %v6337
    %v6504 = vpop.f32.mrb[0].mxu0
    %v6505 = vadd.f32 0.0, %v6504
    %v6506 = vpop.f32.mrb[0].mxu0
    %v6507 = vadd.f32 0.0, %v6506
    %v6508 = vpop.f32.mrb[0].mxu0
    %v6509 = vadd.f32 0.0, %v6508
    %v6510 = vpop.f32.mrb[0].mxu0
    %v6511 = vadd.f32 0.0, %v6510
    %6512 = vmatprep.mubr.bf16.mxu0 0
    %6513 = vmatmul.mubr.bf16.gmra.mrb[0].mxu0 %v6338
    %v6514 = vpop.f32.mrb[0].mxu0
    %v6515 = vadd.f32 0.0, %v6514
    %v6516 = vpop.f32.mrb[0].mxu0
    %v6517 = vadd.f32 0.0, %v6516
    %v6518 = vpop.f32.mrb[0].mxu0
    %v6519 = vadd.f32 0.0, %v6518
    %v6520 = vpop.f32.mrb[0].mxu0
    %v6521 = vadd.f32 0.0, %v6520
    %6522 = vmatprep.mubr.bf16.mxu0 0
    %6523 = vmatmul.mubr.bf16.gmra.mrb[0].mxu0 %v6339
    %v6524 = vpop.f32.mrb[0].mxu0
    %v6525 = vadd.f32 0.0, %v6524
    %v6526 = vpop.f32.mrb[0].mxu0
    %v6527 = vadd.f32 0.0, %v6526
    %v6528 = vpop.f32.mrb[0].mxu0
    %v6529 = vadd.f32 0.0, %v6528
    %v6530 = vpop.f32.mrb[0].mxu0
    %v6531 = vadd.f32 0.0, %v6530
    %6532 = vmatprep.mubr.bf16.mxu0 0
    %6533 = vmatmul.mubr.bf16.gmra.mrb[0].mxu0 %v6340
    %v6534 = vpop.f32.mrb[0].mxu0
    %v6535 = vadd.f32 0.0, %v6534
    %v6536 = vpop.f32.mrb[0].mxu0
    %v6537 = vadd.f32 0.0, %v6536
    %v6538 = vpop.f32.mrb[0].mxu0
    %v6539 = vadd.f32 0.0, %v6538
    %v6540 = vpop.f32.mrb[0].mxu0
    %v6541 = vadd.f32 0.0, %v6540
    %6542 = vdwg.mxu0
    %v6543 = vadd.f32 %v6252, %v6465
    %v6544 = vadd.f32 %v6253, %v6467
    %v6545 = vadd.f32 %v6254, %v6469
    %v6546 = vadd.f32 %v6255, %v6471
    %v6547 = vadd.f32 %v6256, %v6475
    %v6548 = vadd.f32 %v6257, %v6477
    %v6549 = vadd.f32 %v6258, %v6479
    %v6550 = vadd.f32 %v6259, %v6481
    %v6551 = vadd.f32 %v6260, %v6485
    %v6552 = vadd.f32 %v6261, %v6487
    %v6553 = vadd.f32 %v6262, %v6489
    %v6554 = vadd.f32 %v6263, %v6491
    %v6555 = vadd.f32 %v6264, %v6495
    %v6556 = vadd.f32 %v6265, %v6497
    %v6557 = vadd.f32 %v6266, %v6499
    %v6558 = vadd.f32 %v6267, %v6501
    %v6559 = vadd.f32 %v6268, %v6505
    %v6560 = vadd.f32 %v6269, %v6507
    %v6561 = vadd.f32 %v6270, %v6509
    %v6562 = vadd.f32 %v6271, %v6511
    %v6563 = vadd.f32 %v6272, %v6515
    %v6564 = vadd.f32 %v6273, %v6517
    %v6565 = vadd.f32 %v6274, %v6519
    %v6566 = vadd.f32 %v6275, %v6521
    %v6567 = vadd.f32 %v6276, %v6525
    %v6568 = vadd.f32 %v6277, %v6527
    %v6569 = vadd.f32 %v6278, %v6529
    %v6570 = vadd.f32 %v6279, %v6531
    %v6571 = vadd.f32 %v6280, %v6535
    %v6572 = vadd.f32 %v6281, %v6537
    %v6573 = vadd.f32 %v6282, %v6539
    %v6574 = vadd.f32 %v6283, %v6541
    %v6575 = vld [vmem:[%s5] sm:$0xff]
    %v6576 = vld [vmem:[%s5 + $0x8] sm:$0xff]
    %v6577 = vld [vmem:[%s5 + $0x10] sm:$0xff]
    %v6578 = vld [vmem:[%s5 + $0x18] sm:$0xff]
    %v6579 = vld [vmem:[%s5 + $0x20] sm:$0xff]
    %v6580 = vld [vmem:[%s5 + $0x28] sm:$0xff]
    %v6581 = vld [vmem:[%s5 + $0x30] sm:$0xff]
    %v6582 = vld [vmem:[%s5 + $0x38] sm:$0xff]
    %v6583 = vld [vmem:[%s5 + $0x40] sm:$0xff]
    %v6584 = vld [vmem:[%s5 + $0x48] sm:$0xff]
    %v6585 = vld [vmem:[%s5 + $0x50] sm:$0xff]
    %v6586 = vld [vmem:[%s5 + $0x58] sm:$0xff]
    %v6587 = vld [vmem:[%s5 + $0x60] sm:$0xff]
    %v6588 = vld [vmem:[%s5 + $0x68] sm:$0xff]
    %v6589 = vld [vmem:[%s5 + $0x70] sm:$0xff]
    %v6590 = vld [vmem:[%s5 + $0x78] sm:$0xff]
    %6592 = vset.pattern.permute.xlu0 0
    %6593 = vperm.xlu0 %6592, %v6575
    %v6594 = vpop.permute.xlu0 %6593
    %6597 = vset.pattern.permute.xlu0 0
    %6598 = vperm.xlu0 %6597, %v6576
    %v6599 = vpop.permute.xlu0 %6598
    %6602 = vset.pattern.permute.xlu0 0
    %6603 = vperm.xlu0 %6602, %v6577
    %v6604 = vpop.permute.xlu0 %6603
    %6607 = vset.pattern.permute.xlu0 0
    %6608 = vperm.xlu0 %6607, %v6578
    %v6609 = vpop.permute.xlu0 %6608
    %6612 = vset.pattern.permute.xlu0 0
    %6613 = vperm.xlu0 %6612, %v6579
    %v6614 = vpop.permute.xlu0 %6613
    %6617 = vset.pattern.permute.xlu0 0
    %6618 = vperm.xlu0 %6617, %v6580
    %v6619 = vpop.permute.xlu0 %6618
    %6622 = vset.pattern.permute.xlu0 0
    %6623 = vperm.xlu0 %6622, %v6581
    %v6624 = vpop.permute.xlu0 %6623
    %6627 = vset.pattern.permute.xlu0 0
    %6628 = vperm.xlu0 %6627, %v6582
    %v6629 = vpop.permute.xlu0 %6628
    %6632 = vset.pattern.permute.xlu0 0
    %6633 = vperm.xlu0 %6632, %v6583
    %v6634 = vpop.permute.xlu0 %6633
    %6637 = vset.pattern.permute.xlu0 0
    %6638 = vperm.xlu0 %6637, %v6584
    %v6639 = vpop.permute.xlu0 %6638
    %6642 = vset.pattern.permute.xlu0 0
    %6643 = vperm.xlu0 %6642, %v6585
    %v6644 = vpop.permute.xlu0 %6643
    %6647 = vset.pattern.permute.xlu0 0
    %6648 = vperm.xlu0 %6647, %v6586
    %v6649 = vpop.permute.xlu0 %6648
    %6652 = vset.pattern.permute.xlu0 0
    %6653 = vperm.xlu0 %6652, %v6587
    %v6654 = vpop.permute.xlu0 %6653
    %6657 = vset.pattern.permute.xlu0 0
    %6658 = vperm.xlu0 %6657, %v6588
    %v6659 = vpop.permute.xlu0 %6658
    %6662 = vset.pattern.permute.xlu0 0
    %6663 = vperm.xlu0 %6662, %v6589
    %v6664 = vpop.permute.xlu0 %6663
    %6667 = vset.pattern.permute.xlu0 0
    %6668 = vperm.xlu0 %6667, %v6590
    %v6669 = vpop.permute.xlu0 %6668
    %v6671 = vadd.f32 %v6543, %v6594
    %v6672 = vadd.f32 %v6544, %v6594
    %v6673 = vadd.f32 %v6545, %v6599
    %v6674 = vadd.f32 %v6546, %v6599
    %v6675 = vadd.f32 %v6547, %v6604
    %v6676 = vadd.f32 %v6548, %v6604
    %v6677 = vadd.f32 %v6549, %v6609
    %v6678 = vadd.f32 %v6550, %v6609
    %v6679 = vadd.f32 %v6551, %v6614
    %v6680 = vadd.f32 %v6552, %v6614
    %v6681 = vadd.f32 %v6553, %v6619
    %v6682 = vadd.f32 %v6554, %v6619
    %v6683 = vadd.f32 %v6555, %v6624
    %v6684 = vadd.f32 %v6556, %v6624
    %v6685 = vadd.f32 %v6557, %v6629
    %v6686 = vadd.f32 %v6558, %v6629
    %v6687 = vadd.f32 %v6559, %v6634
    %v6688 = vadd.f32 %v6560, %v6634
    %v6689 = vadd.f32 %v6561, %v6639
    %v6690 = vadd.f32 %v6562, %v6639
    %v6691 = vadd.f32 %v6563, %v6644
    %v6692 = vadd.f32 %v6564, %v6644
    %v6693 = vadd.f32 %v6565, %v6649
    %v6694 = vadd.f32 %v6566, %v6649
    %v6695 = vadd.f32 %v6567, %v6654
    %v6696 = vadd.f32 %v6568, %v6654
    %v6697 = vadd.f32 %v6569, %v6659
    %v6698 = vadd.f32 %v6570, %v6659
    %v6699 = vadd.f32 %v6571, %v6664
    %v6700 = vadd.f32 %v6572, %v6664
    %v6701 = vadd.f32 %v6573, %v6669
    %v6702 = vadd.f32 %v6574, %v6669
    %v6703 = vmax.f32 %v6671, 0.0
    %v6704 = vmax.f32 %v6672, 0.0
    %v6705 = vmax.f32 %v6673, 0.0
    %v6706 = vmax.f32 %v6674, 0.0
    %v6707 = vmax.f32 %v6675, 0.0
    %v6708 = vmax.f32 %v6676, 0.0
    %v6709 = vmax.f32 %v6677, 0.0
    %v6710 = vmax.f32 %v6678, 0.0
    %v6711 = vmax.f32 %v6679, 0.0
    %v6712 = vmax.f32 %v6680, 0.0
    %v6713 = vmax.f32 %v6681, 0.0
    %v6714 = vmax.f32 %v6682, 0.0
    %v6715 = vmax.f32 %v6683, 0.0
    %v6716 = vmax.f32 %v6684, 0.0
    %v6717 = vmax.f32 %v6685, 0.0
    %v6718 = vmax.f32 %v6686, 0.0
    %v6719 = vmax.f32 %v6687, 0.0
    %v6720 = vmax.f32 %v6688, 0.0
    %v6721 = vmax.f32 %v6689, 0.0
    %v6722 = vmax.f32 %v6690, 0.0
    %v6723 = vmax.f32 %v6691, 0.0
    %v6724 = vmax.f32 %v6692, 0.0
    %v6725 = vmax.f32 %v6693, 0.0
    %v6726 = vmax.f32 %v6694, 0.0
    %v6727 = vmax.f32 %v6695, 0.0
    %v6728 = vmax.f32 %v6696, 0.0
    %v6729 = vmax.f32 %v6697, 0.0
    %v6730 = vmax.f32 %v6698, 0.0
    %v6731 = vmax.f32 %v6699, 0.0
    %v6732 = vmax.f32 %v6700, 0.0
    %v6733 = vmax.f32 %v6701, 0.0
    %v6734 = vmax.f32 %v6702, 0.0
    %v6735 = vld [vmem:[%s8] sm:$0x3]
    %v6737 = vlaneseq
    %v6738 = vshrl.u32 %v6737, 7
    %v6739 = vsub.s32 0, %v6738
    %v6740 = vrot.slane %v6735, %v6739
    %v6741 = vlaneseq
    %v6742 = vshrl.u32 %v6741, 7
    %v6743 = vsub.s32 1, %v6742
    %v6744 = vrot.slane %v6735, %v6743
    %v6747 = vmul.f32 %v6703, %v6740
    %v6748 = vmul.f32 %v6704, %v6744
    %v6749 = vmul.f32 %v6705, %v6740
    %v6750 = vmul.f32 %v6706, %v6744
    %v6751 = vmul.f32 %v6707, %v6740
    %v6752 = vmul.f32 %v6708, %v6744
    %v6753 = vmul.f32 %v6709, %v6740
    %v6754 = vmul.f32 %v6710, %v6744
    %v6755 = vmul.f32 %v6711, %v6740
    %v6756 = vmul.f32 %v6712, %v6744
    %v6757 = vmul.f32 %v6713, %v6740
    %v6758 = vmul.f32 %v6714, %v6744
    %v6759 = vmul.f32 %v6715, %v6740
    %v6760 = vmul.f32 %v6716, %v6744
    %v6761 = vmul.f32 %v6717, %v6740
    %v6762 = vmul.f32 %v6718, %v6744
    %v6763 = vmul.f32 %v6719, %v6740
    %v6764 = vmul.f32 %v6720, %v6744
    %v6765 = vmul.f32 %v6721, %v6740
    %v6766 = vmul.f32 %v6722, %v6744
    %v6767 = vmul.f32 %v6723, %v6740
    %v6768 = vmul.f32 %v6724, %v6744
    %v6769 = vmul.f32 %v6725, %v6740
    %v6770 = vmul.f32 %v6726, %v6744
    %v6771 = vmul.f32 %v6727, %v6740
    %v6772 = vmul.f32 %v6728, %v6744
    %v6773 = vmul.f32 %v6729, %v6740
    %v6774 = vmul.f32 %v6730, %v6744
    %v6775 = vmul.f32 %v6731, %v6740
    %v6776 = vmul.f32 %v6732, %v6744
    %v6777 = vmul.f32 %v6733, %v6740
    %v6778 = vmul.f32 %v6734, %v6744
    %v6779 = vpack.c.bf16 %v6749, %v6747
    %v6780 = vpack.c.bf16 %v6750, %v6748
    %v6781 = vpack.c.bf16 %v6753, %v6751
    %v6782 = vpack.c.bf16 %v6754, %v6752
    %v6783 = vpack.c.bf16 %v6757, %v6755
    %v6784 = vpack.c.bf16 %v6758, %v6756
    %v6785 = vpack.c.bf16 %v6761, %v6759
    %v6786 = vpack.c.bf16 %v6762, %v6760
    %v6787 = vpack.c.bf16 %v6765, %v6763
    %v6788 = vpack.c.bf16 %v6766, %v6764
    %v6789 = vpack.c.bf16 %v6769, %v6767
    %v6790 = vpack.c.bf16 %v6770, %v6768
    %v6791 = vpack.c.bf16 %v6773, %v6771
    %v6792 = vpack.c.bf16 %v6774, %v6772
    %v6793 = vpack.c.bf16 %v6777, %v6775
    %v6794 = vpack.c.bf16 %v6778, %v6776
    %6811 = vrot.lane.b32.xlu0 %v6779, 32
    %v6812 = vpop.permute.xlu0 %6811
    %6813 = vrot.lane.b32.xlu0 %v6780, 32
    %v6814 = vpop.permute.xlu0 %6813
    %6815 = vrot.lane.b32.xlu0 %v6781, 32
    %v6816 = vpop.permute.xlu0 %6815
    %6817 = vrot.lane.b32.xlu0 %v6782, 32
    %v6818 = vpop.permute.xlu0 %6817
    %6819 = vrot.lane.b32.xlu0 %v6783, 32
    %v6820 = vpop.permute.xlu0 %6819
    %6821 = vrot.lane.b32.xlu0 %v6784, 32
    %v6822 = vpop.permute.xlu0 %6821
    %6823 = vrot.lane.b32.xlu0 %v6785, 32
    %v6824 = vpop.permute.xlu0 %6823
    %6825 = vrot.lane.b32.xlu0 %v6786, 32
    %v6826 = vpop.permute.xlu0 %6825
    %6827 = vrot.lane.b32.xlu0 %v6787, 32
    %v6828 = vpop.permute.xlu0 %6827
    %6829 = vrot.lane.b32.xlu0 %v6788, 32
    %v6830 = vpop.permute.xlu0 %6829
    %6831 = vrot.lane.b32.xlu0 %v6789, 32
    %v6832 = vpop.permute.xlu0 %6831
    %6833 = vrot.lane.b32.xlu0 %v6790, 32
    %v6834 = vpop.permute.xlu0 %6833
    %6835 = vrot.lane.b32.xlu0 %v6791, 32
    %v6836 = vpop.permute.xlu0 %6835
    %6837 = vrot.lane.b32.xlu0 %v6792, 32
    %v6838 = vpop.permute.xlu0 %6837
    %6839 = vrot.lane.b32.xlu0 %v6793, 32
    %v6840 = vpop.permute.xlu0 %6839
    %6841 = vrot.lane.b32.xlu0 %v6794, 32
    %v6842 = vpop.permute.xlu0 %6841
    %v6843 = vsel %vm4020, %v6812, %v6814
    %v6844 = vsel %vm4020, %v6816, %v6818
    %v6845 = vsel %vm4020, %v6820, %v6822
    %v6846 = vsel %vm4020, %v6824, %v6826
    %v6847 = vsel %vm4020, %v6828, %v6830
    %v6848 = vsel %vm4020, %v6832, %v6834
    %v6849 = vsel %vm4020, %v6836, %v6838
    %v6850 = vsel %vm4020, %v6840, %v6842
    %6867 = vst.msk [vmem:[#allocation6] sm:$0xff] %vm162, %v6812
    %6868 = vst [vmem:[#allocation6 + $0x8] sm:$0xff] %v6843
    %6869 = vst.msk [vmem:[#allocation6 + $0x18] sm:$0xff] %vm162, %v6816
    %6870 = vst [vmem:[#allocation6 + $0x20] sm:$0xff] %v6844
    %6871 = vst.msk [vmem:[#allocation6 + $0x30] sm:$0xff] %vm162, %v6820
    %6872 = vst [vmem:[#allocation6 + $0x38] sm:$0xff] %v6845
    %6873 = vst.msk [vmem:[#allocation6 + $0x48] sm:$0xff] %vm162, %v6824
    %6874 = vst [vmem:[#allocation6 + $0x50] sm:$0xff] %v6846
    %6875 = vst.msk [vmem:[#allocation6 + $0x60] sm:$0xff] %vm162, %v6828
    %6876 = vst [vmem:[#allocation6 + $0x68] sm:$0xff] %v6847
    %6877 = vst.msk [vmem:[#allocation6 + $0x78] sm:$0xff] %vm162, %v6832
    %6878 = vst [vmem:[#allocation6 + $0x80] sm:$0xff] %v6848
    %6879 = vst.msk [vmem:[#allocation6 + $0x90] sm:$0xff] %vm162, %v6836
    %6880 = vst [vmem:[#allocation6 + $0x98] sm:$0xff] %v6849
    %6881 = vst.msk [vmem:[#allocation6 + $0xa8] sm:$0xff] %vm162, %v6840
    %6882 = vst [vmem:[#allocation6 + $0xb0] sm:$0xff] %v6850
    %v6883 = vld [vmem:[#allocation10] sm:$0xf]
    %v6884 = vld [vmem:[#allocation10 + $0x4] sm:$0xf]
    %v6885 = vld [vmem:[#allocation10 + $0x8] sm:$0xf]
    %v6886 = vld [vmem:[#allocation10 + $0xc] sm:$0xf]
    %v6887 = vld [vmem:[#allocation10 + $0x10] sm:$0xf]
    %v6888 = vld [vmem:[#allocation10 + $0x14] sm:$0xf]
    %v6889 = vld [vmem:[#allocation10 + $0x18] sm:$0xf]
    %v6890 = vld [vmem:[#allocation10 + $0x1c] sm:$0xf]
    %v6891 = vld [vmem:[#allocation10 + $0x20] sm:$0xf]
    %v6892 = vld [vmem:[#allocation10 + $0x24] sm:$0xf]
    %v6893 = vld [vmem:[#allocation10 + $0x28] sm:$0xf]
    %v6894 = vld [vmem:[#allocation10 + $0x2c] sm:$0xf]
    %v6895 = vld [vmem:[#allocation10 + $0x30] sm:$0xf]
    %v6896 = vld [vmem:[#allocation10 + $0x34] sm:$0xf]
    %v6897 = vld [vmem:[#allocation10 + $0x38] sm:$0xf]
    %v6898 = vld [vmem:[#allocation10 + $0x3c] sm:$0xf]
    %v6899 = vld [vmem:[#allocation6] sm:$0xff]
    %v6900 = vld [vmem:[#allocation6 + $0x8] sm:$0xff]
    %v6901 = vld [vmem:[#allocation6 + $0x18] sm:$0xff]
    %v6902 = vld [vmem:[#allocation6 + $0x20] sm:$0xff]
    %v6903 = vld [vmem:[#allocation6 + $0x30] sm:$0xff]
    %v6904 = vld [vmem:[#allocation6 + $0x38] sm:$0xff]
    %v6905 = vld [vmem:[#allocation6 + $0x48] sm:$0xff]
    %v6906 = vld [vmem:[#allocation6 + $0x50] sm:$0xff]
    %v6907 = vld [vmem:[#allocation6 + $0x60] sm:$0xff]
    %v6908 = vld [vmem:[#allocation6 + $0x68] sm:$0xff]
    %v6909 = vld [vmem:[#allocation6 + $0x78] sm:$0xff]
    %v6910 = vld [vmem:[#allocation6 + $0x80] sm:$0xff]
    %v6911 = vld [vmem:[#allocation6 + $0x90] sm:$0xff]
    %v6912 = vld [vmem:[#allocation6 + $0x98] sm:$0xff]
    %v6913 = vld [vmem:[#allocation6 + $0xa8] sm:$0xff]
    %v6914 = vld [vmem:[#allocation6 + $0xb0] sm:$0xff]
    %s6915 = scalar_lea.vmem [#allocation10], 64
    %v6916 = vld [vmem:[%s6915] sm:$0xf]
    %v6917 = vld [vmem:[%s6915 + $0x4] sm:$0xf]
    %v6918 = vld [vmem:[%s6915 + $0x8] sm:$0xf]
    %v6919 = vld [vmem:[%s6915 + $0xc] sm:$0xf]
    %v6920 = vld [vmem:[%s6915 + $0x10] sm:$0xf]
    %v6921 = vld [vmem:[%s6915 + $0x14] sm:$0xf]
    %v6922 = vld [vmem:[%s6915 + $0x18] sm:$0xf]
    %v6923 = vld [vmem:[%s6915 + $0x1c] sm:$0xf]
    %v6924 = vld [vmem:[%s6915 + $0x20] sm:$0xf]
    %v6925 = vld [vmem:[%s6915 + $0x24] sm:$0xf]
    %v6926 = vld [vmem:[%s6915 + $0x28] sm:$0xf]
    %v6927 = vld [vmem:[%s6915 + $0x2c] sm:$0xf]
    %v6928 = vld [vmem:[%s6915 + $0x30] sm:$0xf]
    %v6929 = vld [vmem:[%s6915 + $0x34] sm:$0xf]
    %v6930 = vld [vmem:[%s6915 + $0x38] sm:$0xf]
    %v6931 = vld [vmem:[%s6915 + $0x3c] sm:$0xf]
    %v6948 = vunpack.c.l.b16 %v6916
    %v6949 = vunpack.c.l.b16 %v6917
    %v6950 = vunpack.c.l.b16 %v6918
    %v6951 = vunpack.c.l.b16 %v6919
    %v6952 = vunpack.c.l.b16 %v6920
    %v6953 = vunpack.c.l.b16 %v6921
    %v6954 = vunpack.c.l.b16 %v6922
    %v6955 = vunpack.c.l.b16 %v6923
    %v6956 = vunpack.c.l.b16 %v6924
    %v6957 = vunpack.c.l.b16 %v6925
    %v6958 = vunpack.c.l.b16 %v6926
    %v6959 = vunpack.c.l.b16 %v6927
    %v6960 = vunpack.c.l.b16 %v6928
    %v6961 = vunpack.c.l.b16 %v6929
    %v6962 = vunpack.c.l.b16 %v6930
    %v6963 = vunpack.c.l.b16 %v6931
    %v6964 = vpack.c.b16 %v6949, %v6948
    %v6965 = vpack.c.b16 %v6951, %v6950
    %v6966 = vpack.c.b16 %v6953, %v6952
    %v6967 = vpack.c.b16 %v6955, %v6954
    %v6968 = vpack.c.b16 %v6957, %v6956
    %v6969 = vpack.c.b16 %v6959, %v6958
    %v6970 = vpack.c.b16 %v6961, %v6960
    %v6971 = vpack.c.b16 %v6963, %v6962
    %6996 = vrot.lane.b32.xlu0 %v6899, 112
    %v6997 = vpop.permute.xlu0 %6996
    %6998 = vrot.lane.b32.xlu0 %v6900, 112
    %v6999 = vpop.permute.xlu0 %6998
    %7000 = vrot.lane.b32.xlu0 %v6901, 112
    %v7001 = vpop.permute.xlu0 %7000
    %7002 = vrot.lane.b32.xlu0 %v6902, 112
    %v7003 = vpop.permute.xlu0 %7002
    %7004 = vrot.lane.b32.xlu0 %v6903, 112
    %v7005 = vpop.permute.xlu0 %7004
    %7006 = vrot.lane.b32.xlu0 %v6904, 112
    %v7007 = vpop.permute.xlu0 %7006
    %7008 = vrot.lane.b32.xlu0 %v6905, 112
    %v7009 = vpop.permute.xlu0 %7008
    %7010 = vrot.lane.b32.xlu0 %v6906, 112
    %v7011 = vpop.permute.xlu0 %7010
    %7012 = vrot.lane.b32.xlu0 %v6907, 112
    %v7013 = vpop.permute.xlu0 %7012
    %7014 = vrot.lane.b32.xlu0 %v6908, 112
    %v7015 = vpop.permute.xlu0 %7014
    %7016 = vrot.lane.b32.xlu0 %v6909, 112
    %v7017 = vpop.permute.xlu0 %7016
    %7018 = vrot.lane.b32.xlu0 %v6910, 112
    %v7019 = vpop.permute.xlu0 %7018
    %7020 = vrot.lane.b32.xlu0 %v6911, 112
    %v7021 = vpop.permute.xlu0 %7020
    %7022 = vrot.lane.b32.xlu0 %v6912, 112
    %v7023 = vpop.permute.xlu0 %7022
    %7024 = vrot.lane.b32.xlu0 %v6913, 112
    %v7025 = vpop.permute.xlu0 %7024
    %7026 = vrot.lane.b32.xlu0 %v6914, 112
    %v7027 = vpop.permute.xlu0 %7026
    %v7028 = vsel %vm4206, %v6997, %v6999
    %v7029 = vsel %vm4206, %v7001, %v7003
    %v7030 = vsel %vm4206, %v7005, %v7007
    %v7031 = vsel %vm4206, %v7009, %v7011
    %v7032 = vsel %vm4206, %v7013, %v7015
    %v7033 = vsel %vm4206, %v7017, %v7019
    %v7034 = vsel %vm4206, %v7021, %v7023
    %v7035 = vsel %vm4206, %v7025, %v7027
    %7052 = vmatprep.subr.bf16.mxu0 %v6999
    %7053 = vmatpush1.bf16.msra.mxu0 %v7028
    %7054 = vmatprep.subr.bf16.mxu0 %v7003
    %7055 = vmatpush1.bf16.msra.mxu0 %v7029
    %7056 = vmatprep.subr.bf16.mxu0 %v7007
    %7057 = vmatpush1.bf16.msra.mxu0 %v7030
    %7058 = vmatprep.subr.bf16.mxu0 %v7011
    %7059 = vmatpush1.bf16.msra.mxu0 %v7031
    %7060 = vmatprep.subr.bf16.mxu0 %v7015
    %7061 = vmatpush1.bf16.msra.mxu0 %v7032
    %7062 = vmatprep.subr.bf16.mxu0 %v7019
    %7063 = vmatpush1.bf16.msra.mxu0 %v7033
    %7064 = vmatprep.subr.bf16.mxu0 %v7023
    %7065 = vmatpush1.bf16.msra.mxu0 %v7034
    %7066 = vmatprep.subr.bf16.mxu0 %v7027
    %7067 = vmatpush1.bf16.msra.mxu0 %v7035
    %7068 = vmatprep.subr.bf16.mxu0 0
    %7069 = vmatpush1.bf16.msra.mxu0 0
    %7070 = vmatprep.subr.bf16.mxu0 0
    %7071 = vmatpush1.bf16.msra.mxu0 0
    %7072 = vmatprep.subr.bf16.mxu0 0
    %7073 = vmatpush1.bf16.msra.mxu0 0
    %7074 = vmatprep.subr.bf16.mxu0 0
    %7075 = vmatpush1.bf16.msra.mxu0 0
    %7076 = vmatprep.subr.bf16.mxu0 0
    %7077 = vmatpush1.bf16.msra.mxu0 0
    %7078 = vmatprep.subr.bf16.mxu0 0
    %7079 = vmatpush1.bf16.msra.mxu0 0
    %7080 = vmatprep.subr.bf16.mxu0 0
    %7081 = vmatpush1.bf16.msra.mxu0 0
    %7082 = vmatprep.subr.bf16.mxu0 0
    %7083 = vmatpush1.bf16.msra.mxu0 0
    %7084 = vmatprep.mubr.bf16.mxu0 0
    %7085 = vmatmul.mubr.bf16.gmra.mrb[0].mxu0 %v6964
    %v7086 = vpop.f32.mrb[0].mxu0
    %v7087 = vadd.f32 0.0, %v7086
    %v7088 = vpop.f32.mrb[0].mxu0
    %v7089 = vadd.f32 0.0, %v7088
    %v7090 = vpop.f32.mrb[0].mxu0
    %v7091 = vadd.f32 0.0, %v7090
    %v7092 = vpop.f32.mrb[0].mxu0
    %v7093 = vadd.f32 0.0, %v7092
    %7094 = vmatprep.mubr.bf16.mxu0 0
    %7095 = vmatmul.mubr.bf16.gmra.mrb[0].mxu0 %v6965
    %v7096 = vpop.f32.mrb[0].mxu0
    %v7097 = vadd.f32 0.0, %v7096
    %v7098 = vpop.f32.mrb[0].mxu0
    %v7099 = vadd.f32 0.0, %v7098
    %v7100 = vpop.f32.mrb[0].mxu0
    %v7101 = vadd.f32 0.0, %v7100
    %v7102 = vpop.f32.mrb[0].mxu0
    %v7103 = vadd.f32 0.0, %v7102
    %7104 = vmatprep.mubr.bf16.mxu0 0
    %7105 = vmatmul.mubr.bf16.gmra.mrb[0].mxu0 %v6966
    %v7106 = vpop.f32.mrb[0].mxu0
    %v7107 = vadd.f32 0.0, %v7106
    %v7108 = vpop.f32.mrb[0].mxu0
    %v7109 = vadd.f32 0.0, %v7108
    %v7110 = vpop.f32.mrb[0].mxu0
    %v7111 = vadd.f32 0.0, %v7110
    %v7112 = vpop.f32.mrb[0].mxu0
    %v7113 = vadd.f32 0.0, %v7112
    %7114 = vmatprep.mubr.bf16.mxu0 0
    %7115 = vmatmul.mubr.bf16.gmra.mrb[0].mxu0 %v6967
    %v7116 = vpop.f32.mrb[0].mxu0
    %v7117 = vadd.f32 0.0, %v7116
    %v7118 = vpop.f32.mrb[0].mxu0
    %v7119 = vadd.f32 0.0, %v7118
    %v7120 = vpop.f32.mrb[0].mxu0
    %v7121 = vadd.f32 0.0, %v7120
    %v7122 = vpop.f32.mrb[0].mxu0
    %v7123 = vadd.f32 0.0, %v7122
    %7124 = vmatprep.mubr.bf16.mxu0 0
    %7125 = vmatmul.mubr.bf16.gmra.mrb[0].mxu0 %v6968
    %v7126 = vpop.f32.mrb[0].mxu0
    %v7127 = vadd.f32 0.0, %v7126
    %v7128 = vpop.f32.mrb[0].mxu0
    %v7129 = vadd.f32 0.0, %v7128
    %v7130 = vpop.f32.mrb[0].mxu0
    %v7131 = vadd.f32 0.0, %v7130
    %v7132 = vpop.f32.mrb[0].mxu0
    %v7133 = vadd.f32 0.0, %v7132
    %7134 = vmatprep.mubr.bf16.mxu0 0
    %7135 = vmatmul.mubr.bf16.gmra.mrb[0].mxu0 %v6969
    %v7136 = vpop.f32.mrb[0].mxu0
    %v7137 = vadd.f32 0.0, %v7136
    %v7138 = vpop.f32.mrb[0].mxu0
    %v7139 = vadd.f32 0.0, %v7138
    %v7140 = vpop.f32.mrb[0].mxu0
    %v7141 = vadd.f32 0.0, %v7140
    %v7142 = vpop.f32.mrb[0].mxu0
    %v7143 = vadd.f32 0.0, %v7142
    %7144 = vmatprep.mubr.bf16.mxu0 0
    %7145 = vmatmul.mubr.bf16.gmra.mrb[0].mxu0 %v6970
    %v7146 = vpop.f32.mrb[0].mxu0
    %v7147 = vadd.f32 0.0, %v7146
    %v7148 = vpop.f32.mrb[0].mxu0
    %v7149 = vadd.f32 0.0, %v7148
    %v7150 = vpop.f32.mrb[0].mxu0
    %v7151 = vadd.f32 0.0, %v7150
    %v7152 = vpop.f32.mrb[0].mxu0
    %v7153 = vadd.f32 0.0, %v7152
    %7154 = vmatprep.mubr.bf16.mxu0 0
    %7155 = vmatmul.mubr.bf16.gmra.mrb[0].mxu0 %v6971
    %v7156 = vpop.f32.mrb[0].mxu0
    %v7157 = vadd.f32 0.0, %v7156
    %v7158 = vpop.f32.mrb[0].mxu0
    %v7159 = vadd.f32 0.0, %v7158
    %v7160 = vpop.f32.mrb[0].mxu0
    %v7161 = vadd.f32 0.0, %v7160
    %v7162 = vpop.f32.mrb[0].mxu0
    %v7163 = vadd.f32 0.0, %v7162
    %7164 = vdwg.mxu0
    %v7181 = vunpack.c.l.b16 %v6883
    %v7182 = vunpack.c.l.b16 %v6884
    %v7183 = vunpack.c.l.b16 %v6885
    %v7184 = vunpack.c.l.b16 %v6886
    %v7185 = vunpack.c.l.b16 %v6887
    %v7186 = vunpack.c.l.b16 %v6888
    %v7187 = vunpack.c.l.b16 %v6889
    %v7188 = vunpack.c.l.b16 %v6890
    %v7189 = vunpack.c.l.b16 %v6891
    %v7190 = vunpack.c.l.b16 %v6892
    %v7191 = vunpack.c.l.b16 %v6893
    %v7192 = vunpack.c.l.b16 %v6894
    %v7193 = vunpack.c.l.b16 %v6895
    %v7194 = vunpack.c.l.b16 %v6896
    %v7195 = vunpack.c.l.b16 %v6897
    %v7196 = vunpack.c.l.b16 %v6898
    %v7197 = vpack.c.b16 %v7182, %v7181
    %v7198 = vpack.c.b16 %v7184, %v7183
    %v7199 = vpack.c.b16 %v7186, %v7185
    %v7200 = vpack.c.b16 %v7188, %v7187
    %v7201 = vpack.c.b16 %v7190, %v7189
    %v7202 = vpack.c.b16 %v7192, %v7191
    %v7203 = vpack.c.b16 %v7194, %v7193
    %v7204 = vpack.c.b16 %v7196, %v7195
    %7213 = vrot.lane.b32.xlu0 %v6899, 113
    %v7214 = vpop.permute.xlu0 %7213
    %7215 = vrot.lane.b32.xlu0 %v6900, 113
    %v7216 = vpop.permute.xlu0 %7215
    %7217 = vrot.lane.b32.xlu0 %v6901, 113
    %v7218 = vpop.permute.xlu0 %7217
    %7219 = vrot.lane.b32.xlu0 %v6902, 113
    %v7220 = vpop.permute.xlu0 %7219
    %7221 = vrot.lane.b32.xlu0 %v6903, 113
    %v7222 = vpop.permute.xlu0 %7221
    %7223 = vrot.lane.b32.xlu0 %v6904, 113
    %v7224 = vpop.permute.xlu0 %7223
    %7225 = vrot.lane.b32.xlu0 %v6905, 113
    %v7226 = vpop.permute.xlu0 %7225
    %7227 = vrot.lane.b32.xlu0 %v6906, 113
    %v7228 = vpop.permute.xlu0 %7227
    %7229 = vrot.lane.b32.xlu0 %v6907, 113
    %v7230 = vpop.permute.xlu0 %7229
    %7231 = vrot.lane.b32.xlu0 %v6908, 113
    %v7232 = vpop.permute.xlu0 %7231
    %7233 = vrot.lane.b32.xlu0 %v6909, 113
    %v7234 = vpop.permute.xlu0 %7233
    %7235 = vrot.lane.b32.xlu0 %v6910, 113
    %v7236 = vpop.permute.xlu0 %7235
    %7237 = vrot.lane.b32.xlu0 %v6911, 113
    %v7238 = vpop.permute.xlu0 %7237
    %7239 = vrot.lane.b32.xlu0 %v6912, 113
    %v7240 = vpop.permute.xlu0 %7239
    %7241 = vrot.lane.b32.xlu0 %v6913, 113
    %v7242 = vpop.permute.xlu0 %7241
    %7243 = vrot.lane.b32.xlu0 %v6914, 113
    %v7244 = vpop.permute.xlu0 %7243
    %v7245 = vsel %vm4424, %v7214, %v7216
    %v7246 = vsel %vm4424, %v7218, %v7220
    %v7247 = vsel %vm4424, %v7222, %v7224
    %v7248 = vsel %vm4424, %v7226, %v7228
    %v7249 = vsel %vm4424, %v7230, %v7232
    %v7250 = vsel %vm4424, %v7234, %v7236
    %v7251 = vsel %vm4424, %v7238, %v7240
    %v7252 = vsel %vm4424, %v7242, %v7244
    %7269 = vmatprep.subr.bf16.mxu0 %v7216
    %7270 = vmatpush1.bf16.msra.mxu0 %v7245
    %7271 = vmatprep.subr.bf16.mxu0 %v7220
    %7272 = vmatpush1.bf16.msra.mxu0 %v7246
    %7273 = vmatprep.subr.bf16.mxu0 %v7224
    %7274 = vmatpush1.bf16.msra.mxu0 %v7247
    %7275 = vmatprep.subr.bf16.mxu0 %v7228
    %7276 = vmatpush1.bf16.msra.mxu0 %v7248
    %7277 = vmatprep.subr.bf16.mxu0 %v7232
    %7278 = vmatpush1.bf16.msra.mxu0 %v7249
    %7279 = vmatprep.subr.bf16.mxu0 %v7236
    %7280 = vmatpush1.bf16.msra.mxu0 %v7250
    %7281 = vmatprep.subr.bf16.mxu0 %v7240
    %7282 = vmatpush1.bf16.msra.mxu0 %v7251
    %7283 = vmatprep.subr.bf16.mxu0 %v7244
    %7284 = vmatpush1.bf16.msra.mxu0 %v7252
    %7285 = vmatprep.subr.bf16.mxu0 0
    %7286 = vmatpush1.bf16.msra.mxu0 0
    %7287 = vmatprep.subr.bf16.mxu0 0
    %7288 = vmatpush1.bf16.msra.mxu0 0
    %7289 = vmatprep.subr.bf16.mxu0 0
    %7290 = vmatpush1.bf16.msra.mxu0 0
    %7291 = vmatprep.subr.bf16.mxu0 0
    %7292 = vmatpush1.bf16.msra.mxu0 0
    %7293 = vmatprep.subr.bf16.mxu0 0
    %7294 = vmatpush1.bf16.msra.mxu0 0
    %7295 = vmatprep.subr.bf16.mxu0 0
    %7296 = vmatpush1.bf16.msra.mxu0 0
    %7297 = vmatprep.subr.bf16.mxu0 0
    %7298 = vmatpush1.bf16.msra.mxu0 0
    %7299 = vmatprep.subr.bf16.mxu0 0
    %7300 = vmatpush1.bf16.msra.mxu0 0
    %7301 = vmatprep.mubr.bf16.mxu0 0
    %7302 = vmatmul.mubr.bf16.gmra.mrb[0].mxu0 %v7197
    %v7303 = vpop.f32.mrb[0].mxu0
    %v7304 = vadd.f32 %v7087, %v7303
    %v7305 = vpop.f32.mrb[0].mxu0
    %v7306 = vadd.f32 %v7089, %v7305
    %v7307 = vpop.f32.mrb[0].mxu0
    %v7308 = vadd.f32 %v7091, %v7307
    %v7309 = vpop.f32.mrb[0].mxu0
    %v7310 = vadd.f32 %v7093, %v7309
    %7311 = vmatprep.mubr.bf16.mxu0 0
    %7312 = vmatmul.mubr.bf16.gmra.mrb[0].mxu0 %v7198
    %v7313 = vpop.f32.mrb[0].mxu0
    %v7314 = vadd.f32 %v7097, %v7313
    %v7315 = vpop.f32.mrb[0].mxu0
    %v7316 = vadd.f32 %v7099, %v7315
    %v7317 = vpop.f32.mrb[0].mxu0
    %v7318 = vadd.f32 %v7101, %v7317
    %v7319 = vpop.f32.mrb[0].mxu0
    %v7320 = vadd.f32 %v7103, %v7319
    %7321 = vmatprep.mubr.bf16.mxu0 0
    %7322 = vmatmul.mubr.bf16.gmra.mrb[0].mxu0 %v7199
    %v7323 = vpop.f32.mrb[0].mxu0
    %v7324 = vadd.f32 %v7107, %v7323
    %v7325 = vpop.f32.mrb[0].mxu0
    %v7326 = vadd.f32 %v7109, %v7325
    %v7327 = vpop.f32.mrb[0].mxu0
    %v7328 = vadd.f32 %v7111, %v7327
    %v7329 = vpop.f32.mrb[0].mxu0
    %v7330 = vadd.f32 %v7113, %v7329
    %7331 = vmatprep.mubr.bf16.mxu0 0
    %7332 = vmatmul.mubr.bf16.gmra.mrb[0].mxu0 %v7200
    %v7333 = vpop.f32.mrb[0].mxu0
    %v7334 = vadd.f32 %v7117, %v7333
    %v7335 = vpop.f32.mrb[0].mxu0
    %v7336 = vadd.f32 %v7119, %v7335
    %v7337 = vpop.f32.mrb[0].mxu0
    %v7338 = vadd.f32 %v7121, %v7337
    %v7339 = vpop.f32.mrb[0].mxu0
    %v7340 = vadd.f32 %v7123, %v7339
    %7341 = vmatprep.mubr.bf16.mxu0 0
    %7342 = vmatmul.mubr.bf16.gmra.mrb[0].mxu0 %v7201
    %v7343 = vpop.f32.mrb[0].mxu0
    %v7344 = vadd.f32 %v7127, %v7343
    %v7345 = vpop.f32.mrb[0].mxu0
    %v7346 = vadd.f32 %v7129, %v7345
    %v7347 = vpop.f32.mrb[0].mxu0
    %v7348 = vadd.f32 %v7131, %v7347
    %v7349 = vpop.f32.mrb[0].mxu0
    %v7350 = vadd.f32 %v7133, %v7349
    %7351 = vmatprep.mubr.bf16.mxu0 0
    %7352 = vmatmul.mubr.bf16.gmra.mrb[0].mxu0 %v7202
    %v7353 = vpop.f32.mrb[0].mxu0
    %v7354 = vadd.f32 %v7137, %v7353
    %v7355 = vpop.f32.mrb[0].mxu0
    %v7356 = vadd.f32 %v7139, %v7355
    %v7357 = vpop.f32.mrb[0].mxu0
    %v7358 = vadd.f32 %v7141, %v7357
    %v7359 = vpop.f32.mrb[0].mxu0
    %v7360 = vadd.f32 %v7143, %v7359
    %7361 = vmatprep.mubr.bf16.mxu0 0
    %7362 = vmatmul.mubr.bf16.gmra.mrb[0].mxu0 %v7203
    %v7363 = vpop.f32.mrb[0].mxu0
    %v7364 = vadd.f32 %v7147, %v7363
    %v7365 = vpop.f32.mrb[0].mxu0
    %v7366 = vadd.f32 %v7149, %v7365
    %v7367 = vpop.f32.mrb[0].mxu0
    %v7368 = vadd.f32 %v7151, %v7367
    %v7369 = vpop.f32.mrb[0].mxu0
    %v7370 = vadd.f32 %v7153, %v7369
    %7371 = vmatprep.mubr.bf16.mxu0 0
    %7372 = vmatmul.mubr.bf16.gmra.mrb[0].mxu0 %v7204
    %v7373 = vpop.f32.mrb[0].mxu0
    %v7374 = vadd.f32 %v7157, %v7373
    %v7375 = vpop.f32.mrb[0].mxu0
    %v7376 = vadd.f32 %v7159, %v7375
    %v7377 = vpop.f32.mrb[0].mxu0
    %v7378 = vadd.f32 %v7161, %v7377
    %v7379 = vpop.f32.mrb[0].mxu0
    %v7380 = vadd.f32 %v7163, %v7379
    %7381 = vdwg.mxu0
    %s7382 = scalar_lea.vmem [#allocation10], 128
    %v7383 = vld [vmem:[%s7382] sm:$0xf]
    %v7384 = vld [vmem:[%s7382 + $0x4] sm:$0xf]
    %v7385 = vld [vmem:[%s7382 + $0x8] sm:$0xf]
    %v7386 = vld [vmem:[%s7382 + $0xc] sm:$0xf]
    %v7387 = vld [vmem:[%s7382 + $0x10] sm:$0xf]
    %v7388 = vld [vmem:[%s7382 + $0x14] sm:$0xf]
    %v7389 = vld [vmem:[%s7382 + $0x18] sm:$0xf]
    %v7390 = vld [vmem:[%s7382 + $0x1c] sm:$0xf]
    %v7391 = vld [vmem:[%s7382 + $0x20] sm:$0xf]
    %v7392 = vld [vmem:[%s7382 + $0x24] sm:$0xf]
    %v7393 = vld [vmem:[%s7382 + $0x28] sm:$0xf]
    %v7394 = vld [vmem:[%s7382 + $0x2c] sm:$0xf]
    %v7395 = vld [vmem:[%s7382 + $0x30] sm:$0xf]
    %v7396 = vld [vmem:[%s7382 + $0x34] sm:$0xf]
    %v7397 = vld [vmem:[%s7382 + $0x38] sm:$0xf]
    %v7398 = vld [vmem:[%s7382 + $0x3c] sm:$0xf]
    %v7415 = vunpack.c.l.b16 %v7383
    %v7416 = vunpack.c.l.b16 %v7384
    %v7417 = vunpack.c.l.b16 %v7385
    %v7418 = vunpack.c.l.b16 %v7386
    %v7419 = vunpack.c.l.b16 %v7387
    %v7420 = vunpack.c.l.b16 %v7388
    %v7421 = vunpack.c.l.b16 %v7389
    %v7422 = vunpack.c.l.b16 %v7390
    %v7423 = vunpack.c.l.b16 %v7391
    %v7424 = vunpack.c.l.b16 %v7392
    %v7425 = vunpack.c.l.b16 %v7393
    %v7426 = vunpack.c.l.b16 %v7394
    %v7427 = vunpack.c.l.b16 %v7395
    %v7428 = vunpack.c.l.b16 %v7396
    %v7429 = vunpack.c.l.b16 %v7397
    %v7430 = vunpack.c.l.b16 %v7398
    %v7431 = vpack.c.b16 %v7416, %v7415
    %v7432 = vpack.c.b16 %v7418, %v7417
    %v7433 = vpack.c.b16 %v7420, %v7419
    %v7434 = vpack.c.b16 %v7422, %v7421
    %v7435 = vpack.c.b16 %v7424, %v7423
    %v7436 = vpack.c.b16 %v7426, %v7425
    %v7437 = vpack.c.b16 %v7428, %v7427
    %v7438 = vpack.c.b16 %v7430, %v7429
    %7447 = vrot.lane.b32.xlu0 %v6899, 111
    %v7448 = vpop.permute.xlu0 %7447
    %7449 = vrot.lane.b32.xlu0 %v6900, 111
    %v7450 = vpop.permute.xlu0 %7449
    %7451 = vrot.lane.b32.xlu0 %v6901, 111
    %v7452 = vpop.permute.xlu0 %7451
    %7453 = vrot.lane.b32.xlu0 %v6902, 111
    %v7454 = vpop.permute.xlu0 %7453
    %7455 = vrot.lane.b32.xlu0 %v6903, 111
    %v7456 = vpop.permute.xlu0 %7455
    %7457 = vrot.lane.b32.xlu0 %v6904, 111
    %v7458 = vpop.permute.xlu0 %7457
    %7459 = vrot.lane.b32.xlu0 %v6905, 111
    %v7460 = vpop.permute.xlu0 %7459
    %7461 = vrot.lane.b32.xlu0 %v6906, 111
    %v7462 = vpop.permute.xlu0 %7461
    %7463 = vrot.lane.b32.xlu0 %v6907, 111
    %v7464 = vpop.permute.xlu0 %7463
    %7465 = vrot.lane.b32.xlu0 %v6908, 111
    %v7466 = vpop.permute.xlu0 %7465
    %7467 = vrot.lane.b32.xlu0 %v6909, 111
    %v7468 = vpop.permute.xlu0 %7467
    %7469 = vrot.lane.b32.xlu0 %v6910, 111
    %v7470 = vpop.permute.xlu0 %7469
    %7471 = vrot.lane.b32.xlu0 %v6911, 111
    %v7472 = vpop.permute.xlu0 %7471
    %7473 = vrot.lane.b32.xlu0 %v6912, 111
    %v7474 = vpop.permute.xlu0 %7473
    %7475 = vrot.lane.b32.xlu0 %v6913, 111
    %v7476 = vpop.permute.xlu0 %7475
    %7477 = vrot.lane.b32.xlu0 %v6914, 111
    %v7478 = vpop.permute.xlu0 %7477
    %v7479 = vsel %vm4659, %v7448, %v7450
    %v7480 = vsel %vm4659, %v7452, %v7454
    %v7481 = vsel %vm4659, %v7456, %v7458
    %v7482 = vsel %vm4659, %v7460, %v7462
    %v7483 = vsel %vm4659, %v7464, %v7466
    %v7484 = vsel %vm4659, %v7468, %v7470
    %v7485 = vsel %vm4659, %v7472, %v7474
    %v7486 = vsel %vm4659, %v7476, %v7478
    %7503 = vmatprep.subr.bf16.mxu0 %v7450
    %7504 = vmatpush1.bf16.msra.mxu0 %v7479
    %7505 = vmatprep.subr.bf16.mxu0 %v7454
    %7506 = vmatpush1.bf16.msra.mxu0 %v7480
    %7507 = vmatprep.subr.bf16.mxu0 %v7458
    %7508 = vmatpush1.bf16.msra.mxu0 %v7481
    %7509 = vmatprep.subr.bf16.mxu0 %v7462
    %7510 = vmatpush1.bf16.msra.mxu0 %v7482
    %7511 = vmatprep.subr.bf16.mxu0 %v7466
    %7512 = vmatpush1.bf16.msra.mxu0 %v7483
    %7513 = vmatprep.subr.bf16.mxu0 %v7470
    %7514 = vmatpush1.bf16.msra.mxu0 %v7484
    %7515 = vmatprep.subr.bf16.mxu0 %v7474
    %7516 = vmatpush1.bf16.msra.mxu0 %v7485
    %7517 = vmatprep.subr.bf16.mxu0 %v7478
    %7518 = vmatpush1.bf16.msra.mxu0 %v7486
    %7519 = vmatprep.subr.bf16.mxu0 0
    %7520 = vmatpush1.bf16.msra.mxu0 0
    %7521 = vmatprep.subr.bf16.mxu0 0
    %7522 = vmatpush1.bf16.msra.mxu0 0
    %7523 = vmatprep.subr.bf16.mxu0 0
    %7524 = vmatpush1.bf16.msra.mxu0 0
    %7525 = vmatprep.subr.bf16.mxu0 0
    %7526 = vmatpush1.bf16.msra.mxu0 0
    %7527 = vmatprep.subr.bf16.mxu0 0
    %7528 = vmatpush1.bf16.msra.mxu0 0
    %7529 = vmatprep.subr.bf16.mxu0 0
    %7530 = vmatpush1.bf16.msra.mxu0 0
    %7531 = vmatprep.subr.bf16.mxu0 0
    %7532 = vmatpush1.bf16.msra.mxu0 0
    %7533 = vmatprep.subr.bf16.mxu0 0
    %7534 = vmatpush1.bf16.msra.mxu0 0
    %7535 = vmatprep.mubr.bf16.mxu0 0
    %7536 = vmatmul.mubr.bf16.gmra.mrb[0].mxu0 %v7431
    %v7537 = vpop.f32.mrb[0].mxu0
    %v7538 = vadd.f32 0.0, %v7537
    %v7539 = vpop.f32.mrb[0].mxu0
    %v7540 = vadd.f32 0.0, %v7539
    %v7541 = vpop.f32.mrb[0].mxu0
    %v7542 = vadd.f32 0.0, %v7541
    %v7543 = vpop.f32.mrb[0].mxu0
    %v7544 = vadd.f32 0.0, %v7543
    %7545 = vmatprep.mubr.bf16.mxu0 0
    %7546 = vmatmul.mubr.bf16.gmra.mrb[0].mxu0 %v7432
    %v7547 = vpop.f32.mrb[0].mxu0
    %v7548 = vadd.f32 0.0, %v7547
    %v7549 = vpop.f32.mrb[0].mxu0
    %v7550 = vadd.f32 0.0, %v7549
    %v7551 = vpop.f32.mrb[0].mxu0
    %v7552 = vadd.f32 0.0, %v7551
    %v7553 = vpop.f32.mrb[0].mxu0
    %v7554 = vadd.f32 0.0, %v7553
    %7555 = vmatprep.mubr.bf16.mxu0 0
    %7556 = vmatmul.mubr.bf16.gmra.mrb[0].mxu0 %v7433
    %v7557 = vpop.f32.mrb[0].mxu0
    %v7558 = vadd.f32 0.0, %v7557
    %v7559 = vpop.f32.mrb[0].mxu0
    %v7560 = vadd.f32 0.0, %v7559
    %v7561 = vpop.f32.mrb[0].mxu0
    %v7562 = vadd.f32 0.0, %v7561
    %v7563 = vpop.f32.mrb[0].mxu0
    %v7564 = vadd.f32 0.0, %v7563
    %7565 = vmatprep.mubr.bf16.mxu0 0
    %7566 = vmatmul.mubr.bf16.gmra.mrb[0].mxu0 %v7434
    %v7567 = vpop.f32.mrb[0].mxu0
    %v7568 = vadd.f32 0.0, %v7567
    %v7569 = vpop.f32.mrb[0].mxu0
    %v7570 = vadd.f32 0.0, %v7569
    %v7571 = vpop.f32.mrb[0].mxu0
    %v7572 = vadd.f32 0.0, %v7571
    %v7573 = vpop.f32.mrb[0].mxu0
    %v7574 = vadd.f32 0.0, %v7573
    %7575 = vmatprep.mubr.bf16.mxu0 0
    %7576 = vmatmul.mubr.bf16.gmra.mrb[0].mxu0 %v7435
    %v7577 = vpop.f32.mrb[0].mxu0
    %v7578 = vadd.f32 0.0, %v7577
    %v7579 = vpop.f32.mrb[0].mxu0
    %v7580 = vadd.f32 0.0, %v7579
    %v7581 = vpop.f32.mrb[0].mxu0
    %v7582 = vadd.f32 0.0, %v7581
    %v7583 = vpop.f32.mrb[0].mxu0
    %v7584 = vadd.f32 0.0, %v7583
    %7585 = vmatprep.mubr.bf16.mxu0 0
    %7586 = vmatmul.mubr.bf16.gmra.mrb[0].mxu0 %v7436
    %v7587 = vpop.f32.mrb[0].mxu0
    %v7588 = vadd.f32 0.0, %v7587
    %v7589 = vpop.f32.mrb[0].mxu0
    %v7590 = vadd.f32 0.0, %v7589
    %v7591 = vpop.f32.mrb[0].mxu0
    %v7592 = vadd.f32 0.0, %v7591
    %v7593 = vpop.f32.mrb[0].mxu0
    %v7594 = vadd.f32 0.0, %v7593
    %7595 = vmatprep.mubr.bf16.mxu0 0
    %7596 = vmatmul.mubr.bf16.gmra.mrb[0].mxu0 %v7437
    %v7597 = vpop.f32.mrb[0].mxu0
    %v7598 = vadd.f32 0.0, %v7597
    %v7599 = vpop.f32.mrb[0].mxu0
    %v7600 = vadd.f32 0.0, %v7599
    %v7601 = vpop.f32.mrb[0].mxu0
    %v7602 = vadd.f32 0.0, %v7601
    %v7603 = vpop.f32.mrb[0].mxu0
    %v7604 = vadd.f32 0.0, %v7603
    %7605 = vmatprep.mubr.bf16.mxu0 0
    %7606 = vmatmul.mubr.bf16.gmra.mrb[0].mxu0 %v7438
    %v7607 = vpop.f32.mrb[0].mxu0
    %v7608 = vadd.f32 0.0, %v7607
    %v7609 = vpop.f32.mrb[0].mxu0
    %v7610 = vadd.f32 0.0, %v7609
    %v7611 = vpop.f32.mrb[0].mxu0
    %v7612 = vadd.f32 0.0, %v7611
    %v7613 = vpop.f32.mrb[0].mxu0
    %v7614 = vadd.f32 0.0, %v7613
    %7615 = vdwg.mxu0
    %v7616 = vadd.f32 %v7304, %v7538
    %v7617 = vadd.f32 %v7306, %v7540
    %v7618 = vadd.f32 %v7308, %v7542
    %v7619 = vadd.f32 %v7310, %v7544
    %v7620 = vadd.f32 %v7314, %v7548
    %v7621 = vadd.f32 %v7316, %v7550
    %v7622 = vadd.f32 %v7318, %v7552
    %v7623 = vadd.f32 %v7320, %v7554
    %v7624 = vadd.f32 %v7324, %v7558
    %v7625 = vadd.f32 %v7326, %v7560
    %v7626 = vadd.f32 %v7328, %v7562
    %v7627 = vadd.f32 %v7330, %v7564
    %v7628 = vadd.f32 %v7334, %v7568
    %v7629 = vadd.f32 %v7336, %v7570
    %v7630 = vadd.f32 %v7338, %v7572
    %v7631 = vadd.f32 %v7340, %v7574
    %v7632 = vadd.f32 %v7344, %v7578
    %v7633 = vadd.f32 %v7346, %v7580
    %v7634 = vadd.f32 %v7348, %v7582
    %v7635 = vadd.f32 %v7350, %v7584
    %v7636 = vadd.f32 %v7354, %v7588
    %v7637 = vadd.f32 %v7356, %v7590
    %v7638 = vadd.f32 %v7358, %v7592
    %v7639 = vadd.f32 %v7360, %v7594
    %v7640 = vadd.f32 %v7364, %v7598
    %v7641 = vadd.f32 %v7366, %v7600
    %v7642 = vadd.f32 %v7368, %v7602
    %v7643 = vadd.f32 %v7370, %v7604
    %v7644 = vadd.f32 %v7374, %v7608
    %v7645 = vadd.f32 %v7376, %v7610
    %v7646 = vadd.f32 %v7378, %v7612
    %v7647 = vadd.f32 %v7380, %v7614
    %s7648 = scalar_lea.vmem [#allocation10], 192
    %v7649 = vld [vmem:[%s7648] sm:$0xf]
    %v7650 = vld [vmem:[%s7648 + $0x4] sm:$0xf]
    %v7651 = vld [vmem:[%s7648 + $0x8] sm:$0xf]
    %v7652 = vld [vmem:[%s7648 + $0xc] sm:$0xf]
    %v7653 = vld [vmem:[%s7648 + $0x10] sm:$0xf]
    %v7654 = vld [vmem:[%s7648 + $0x14] sm:$0xf]
    %v7655 = vld [vmem:[%s7648 + $0x18] sm:$0xf]
    %v7656 = vld [vmem:[%s7648 + $0x1c] sm:$0xf]
    %v7657 = vld [vmem:[%s7648 + $0x20] sm:$0xf]
    %v7658 = vld [vmem:[%s7648 + $0x24] sm:$0xf]
    %v7659 = vld [vmem:[%s7648 + $0x28] sm:$0xf]
    %v7660 = vld [vmem:[%s7648 + $0x2c] sm:$0xf]
    %v7661 = vld [vmem:[%s7648 + $0x30] sm:$0xf]
    %v7662 = vld [vmem:[%s7648 + $0x34] sm:$0xf]
    %v7663 = vld [vmem:[%s7648 + $0x38] sm:$0xf]
    %v7664 = vld [vmem:[%s7648 + $0x3c] sm:$0xf]
    %v7681 = vunpack.c.l.b16 %v7649
    %v7682 = vunpack.c.l.b16 %v7650
    %v7683 = vunpack.c.l.b16 %v7651
    %v7684 = vunpack.c.l.b16 %v7652
    %v7685 = vunpack.c.l.b16 %v7653
    %v7686 = vunpack.c.l.b16 %v7654
    %v7687 = vunpack.c.l.b16 %v7655
    %v7688 = vunpack.c.l.b16 %v7656
    %v7689 = vunpack.c.l.b16 %v7657
    %v7690 = vunpack.c.l.b16 %v7658
    %v7691 = vunpack.c.l.b16 %v7659
    %v7692 = vunpack.c.l.b16 %v7660
    %v7693 = vunpack.c.l.b16 %v7661
    %v7694 = vunpack.c.l.b16 %v7662
    %v7695 = vunpack.c.l.b16 %v7663
    %v7696 = vunpack.c.l.b16 %v7664
    %v7697 = vpack.c.b16 %v7682, %v7681
    %v7698 = vpack.c.b16 %v7684, %v7683
    %v7699 = vpack.c.b16 %v7686, %v7685
    %v7700 = vpack.c.b16 %v7688, %v7687
    %v7701 = vpack.c.b16 %v7690, %v7689
    %v7702 = vpack.c.b16 %v7692, %v7691
    %v7703 = vpack.c.b16 %v7694, %v7693
    %v7704 = vpack.c.b16 %v7696, %v7695
    %7713 = vrot.lane.b32.xlu0 %v6899, 97
    %v7714 = vpop.permute.xlu0 %7713
    %7715 = vrot.lane.b32.xlu0 %v6900, 97
    %v7716 = vpop.permute.xlu0 %7715
    %7717 = vrot.lane.b32.xlu0 %v6901, 97
    %v7718 = vpop.permute.xlu0 %7717
    %7719 = vrot.lane.b32.xlu0 %v6902, 97
    %v7720 = vpop.permute.xlu0 %7719
    %7721 = vrot.lane.b32.xlu0 %v6903, 97
    %v7722 = vpop.permute.xlu0 %7721
    %7723 = vrot.lane.b32.xlu0 %v6904, 97
    %v7724 = vpop.permute.xlu0 %7723
    %7725 = vrot.lane.b32.xlu0 %v6905, 97
    %v7726 = vpop.permute.xlu0 %7725
    %7727 = vrot.lane.b32.xlu0 %v6906, 97
    %v7728 = vpop.permute.xlu0 %7727
    %7729 = vrot.lane.b32.xlu0 %v6907, 97
    %v7730 = vpop.permute.xlu0 %7729
    %7731 = vrot.lane.b32.xlu0 %v6908, 97
    %v7732 = vpop.permute.xlu0 %7731
    %7733 = vrot.lane.b32.xlu0 %v6909, 97
    %v7734 = vpop.permute.xlu0 %7733
    %7735 = vrot.lane.b32.xlu0 %v6910, 97
    %v7736 = vpop.permute.xlu0 %7735
    %7737 = vrot.lane.b32.xlu0 %v6911, 97
    %v7738 = vpop.permute.xlu0 %7737
    %7739 = vrot.lane.b32.xlu0 %v6912, 97
    %v7740 = vpop.permute.xlu0 %7739
    %7741 = vrot.lane.b32.xlu0 %v6913, 97
    %v7742 = vpop.permute.xlu0 %7741
    %7743 = vrot.lane.b32.xlu0 %v6914, 97
    %v7744 = vpop.permute.xlu0 %7743
    %v7745 = vsel %vm4926, %v7714, %v7716
    %v7746 = vsel %vm4926, %v7718, %v7720
    %v7747 = vsel %vm4926, %v7722, %v7724
    %v7748 = vsel %vm4926, %v7726, %v7728
    %v7749 = vsel %vm4926, %v7730, %v7732
    %v7750 = vsel %vm4926, %v7734, %v7736
    %v7751 = vsel %vm4926, %v7738, %v7740
    %v7752 = vsel %vm4926, %v7742, %v7744
    %7769 = vmatprep.subr.bf16.mxu0 %v7716
    %7770 = vmatpush1.bf16.msra.mxu0 %v7745
    %7771 = vmatprep.subr.bf16.mxu0 %v7720
    %7772 = vmatpush1.bf16.msra.mxu0 %v7746
    %7773 = vmatprep.subr.bf16.mxu0 %v7724
    %7774 = vmatpush1.bf16.msra.mxu0 %v7747
    %7775 = vmatprep.subr.bf16.mxu0 %v7728
    %7776 = vmatpush1.bf16.msra.mxu0 %v7748
    %7777 = vmatprep.subr.bf16.mxu0 %v7732
    %7778 = vmatpush1.bf16.msra.mxu0 %v7749
    %7779 = vmatprep.subr.bf16.mxu0 %v7736
    %7780 = vmatpush1.bf16.msra.mxu0 %v7750
    %7781 = vmatprep.subr.bf16.mxu0 %v7740
    %7782 = vmatpush1.bf16.msra.mxu0 %v7751
    %7783 = vmatprep.subr.bf16.mxu0 %v7744
    %7784 = vmatpush1.bf16.msra.mxu0 %v7752
    %7785 = vmatprep.subr.bf16.mxu0 0
    %7786 = vmatpush1.bf16.msra.mxu0 0
    %7787 = vmatprep.subr.bf16.mxu0 0
    %7788 = vmatpush1.bf16.msra.mxu0 0
    %7789 = vmatprep.subr.bf16.mxu0 0
    %7790 = vmatpush1.bf16.msra.mxu0 0
    %7791 = vmatprep.subr.bf16.mxu0 0
    %7792 = vmatpush1.bf16.msra.mxu0 0
    %7793 = vmatprep.subr.bf16.mxu0 0
    %7794 = vmatpush1.bf16.msra.mxu0 0
    %7795 = vmatprep.subr.bf16.mxu0 0
    %7796 = vmatpush1.bf16.msra.mxu0 0
    %7797 = vmatprep.subr.bf16.mxu0 0
    %7798 = vmatpush1.bf16.msra.mxu0 0
    %7799 = vmatprep.subr.bf16.mxu0 0
    %7800 = vmatpush1.bf16.msra.mxu0 0
    %7801 = vmatprep.mubr.bf16.mxu0 0
    %7802 = vmatmul.mubr.bf16.gmra.mrb[0].mxu0 %v7697
    %v7803 = vpop.f32.mrb[0].mxu0
    %v7804 = vadd.f32 0.0, %v7803
    %v7805 = vpop.f32.mrb[0].mxu0
    %v7806 = vadd.f32 0.0, %v7805
    %v7807 = vpop.f32.mrb[0].mxu0
    %v7808 = vadd.f32 0.0, %v7807
    %v7809 = vpop.f32.mrb[0].mxu0
    %v7810 = vadd.f32 0.0, %v7809
    %7811 = vmatprep.mubr.bf16.mxu0 0
    %7812 = vmatmul.mubr.bf16.gmra.mrb[0].mxu0 %v7698
    %v7813 = vpop.f32.mrb[0].mxu0
    %v7814 = vadd.f32 0.0, %v7813
    %v7815 = vpop.f32.mrb[0].mxu0
    %v7816 = vadd.f32 0.0, %v7815
    %v7817 = vpop.f32.mrb[0].mxu0
    %v7818 = vadd.f32 0.0, %v7817
    %v7819 = vpop.f32.mrb[0].mxu0
    %v7820 = vadd.f32 0.0, %v7819
    %7821 = vmatprep.mubr.bf16.mxu0 0
    %7822 = vmatmul.mubr.bf16.gmra.mrb[0].mxu0 %v7699
    %v7823 = vpop.f32.mrb[0].mxu0
    %v7824 = vadd.f32 0.0, %v7823
    %v7825 = vpop.f32.mrb[0].mxu0
    %v7826 = vadd.f32 0.0, %v7825
    %v7827 = vpop.f32.mrb[0].mxu0
    %v7828 = vadd.f32 0.0, %v7827
    %v7829 = vpop.f32.mrb[0].mxu0
    %v7830 = vadd.f32 0.0, %v7829
    %7831 = vmatprep.mubr.bf16.mxu0 0
    %7832 = vmatmul.mubr.bf16.gmra.mrb[0].mxu0 %v7700
    %v7833 = vpop.f32.mrb[0].mxu0
    %v7834 = vadd.f32 0.0, %v7833
    %v7835 = vpop.f32.mrb[0].mxu0
    %v7836 = vadd.f32 0.0, %v7835
    %v7837 = vpop.f32.mrb[0].mxu0
    %v7838 = vadd.f32 0.0, %v7837
    %v7839 = vpop.f32.mrb[0].mxu0
    %v7840 = vadd.f32 0.0, %v7839
    %7841 = vmatprep.mubr.bf16.mxu0 0
    %7842 = vmatmul.mubr.bf16.gmra.mrb[0].mxu0 %v7701
    %v7843 = vpop.f32.mrb[0].mxu0
    %v7844 = vadd.f32 0.0, %v7843
    %v7845 = vpop.f32.mrb[0].mxu0
    %v7846 = vadd.f32 0.0, %v7845
    %v7847 = vpop.f32.mrb[0].mxu0
    %v7848 = vadd.f32 0.0, %v7847
    %v7849 = vpop.f32.mrb[0].mxu0
    %v7850 = vadd.f32 0.0, %v7849
    %7851 = vmatprep.mubr.bf16.mxu0 0
    %7852 = vmatmul.mubr.bf16.gmra.mrb[0].mxu0 %v7702
    %v7853 = vpop.f32.mrb[0].mxu0
    %v7854 = vadd.f32 0.0, %v7853
    %v7855 = vpop.f32.mrb[0].mxu0
    %v7856 = vadd.f32 0.0, %v7855
    %v7857 = vpop.f32.mrb[0].mxu0
    %v7858 = vadd.f32 0.0, %v7857
    %v7859 = vpop.f32.mrb[0].mxu0
    %v7860 = vadd.f32 0.0, %v7859
    %7861 = vmatprep.mubr.bf16.mxu0 0
    %7862 = vmatmul.mubr.bf16.gmra.mrb[0].mxu0 %v7703
    %v7863 = vpop.f32.mrb[0].mxu0
    %v7864 = vadd.f32 0.0, %v7863
    %v7865 = vpop.f32.mrb[0].mxu0
    %v7866 = vadd.f32 0.0, %v7865
    %v7867 = vpop.f32.mrb[0].mxu0
    %v7868 = vadd.f32 0.0, %v7867
    %v7869 = vpop.f32.mrb[0].mxu0
    %v7870 = vadd.f32 0.0, %v7869
    %7871 = vmatprep.mubr.bf16.mxu0 0
    %7872 = vmatmul.mubr.bf16.gmra.mrb[0].mxu0 %v7704
    %v7873 = vpop.f32.mrb[0].mxu0
    %v7874 = vadd.f32 0.0, %v7873
    %v7875 = vpop.f32.mrb[0].mxu0
    %v7876 = vadd.f32 0.0, %v7875
    %v7877 = vpop.f32.mrb[0].mxu0
    %v7878 = vadd.f32 0.0, %v7877
    %v7879 = vpop.f32.mrb[0].mxu0
    %v7880 = vadd.f32 0.0, %v7879
    %7881 = vdwg.mxu0
    %v7882 = vadd.f32 %v7616, %v7804
    %v7883 = vadd.f32 %v7617, %v7806
    %v7884 = vadd.f32 %v7618, %v7808
    %v7885 = vadd.f32 %v7619, %v7810
    %v7886 = vadd.f32 %v7620, %v7814
    %v7887 = vadd.f32 %v7621, %v7816
    %v7888 = vadd.f32 %v7622, %v7818
    %v7889 = vadd.f32 %v7623, %v7820
    %v7890 = vadd.f32 %v7624, %v7824
    %v7891 = vadd.f32 %v7625, %v7826
    %v7892 = vadd.f32 %v7626, %v7828
    %v7893 = vadd.f32 %v7627, %v7830
    %v7894 = vadd.f32 %v7628, %v7834
    %v7895 = vadd.f32 %v7629, %v7836
    %v7896 = vadd.f32 %v7630, %v7838
    %v7897 = vadd.f32 %v7631, %v7840
    %v7898 = vadd.f32 %v7632, %v7844
    %v7899 = vadd.f32 %v7633, %v7846
    %v7900 = vadd.f32 %v7634, %v7848
    %v7901 = vadd.f32 %v7635, %v7850
    %v7902 = vadd.f32 %v7636, %v7854
    %v7903 = vadd.f32 %v7637, %v7856
    %v7904 = vadd.f32 %v7638, %v7858
    %v7905 = vadd.f32 %v7639, %v7860
    %v7906 = vadd.f32 %v7640, %v7864
    %v7907 = vadd.f32 %v7641, %v7866
    %v7908 = vadd.f32 %v7642, %v7868
    %v7909 = vadd.f32 %v7643, %v7870
    %v7910 = vadd.f32 %v7644, %v7874
    %v7911 = vadd.f32 %v7645, %v7876
    %v7912 = vadd.f32 %v7646, %v7878
    %v7913 = vadd.f32 %v7647, %v7880
    %s7914 = scalar_lea.vmem [#allocation10], 256
    %v7915 = vld [vmem:[%s7914] sm:$0xf]
    %v7916 = vld [vmem:[%s7914 + $0x4] sm:$0xf]
    %v7917 = vld [vmem:[%s7914 + $0x8] sm:$0xf]
    %v7918 = vld [vmem:[%s7914 + $0xc] sm:$0xf]
    %v7919 = vld [vmem:[%s7914 + $0x10] sm:$0xf]
    %v7920 = vld [vmem:[%s7914 + $0x14] sm:$0xf]
    %v7921 = vld [vmem:[%s7914 + $0x18] sm:$0xf]
    %v7922 = vld [vmem:[%s7914 + $0x1c] sm:$0xf]
    %v7923 = vld [vmem:[%s7914 + $0x20] sm:$0xf]
    %v7924 = vld [vmem:[%s7914 + $0x24] sm:$0xf]
    %v7925 = vld [vmem:[%s7914 + $0x28] sm:$0xf]
    %v7926 = vld [vmem:[%s7914 + $0x2c] sm:$0xf]
    %v7927 = vld [vmem:[%s7914 + $0x30] sm:$0xf]
    %v7928 = vld [vmem:[%s7914 + $0x34] sm:$0xf]
    %v7929 = vld [vmem:[%s7914 + $0x38] sm:$0xf]
    %v7930 = vld [vmem:[%s7914 + $0x3c] sm:$0xf]
    %v7947 = vunpack.c.l.b16 %v7915
    %v7948 = vunpack.c.l.b16 %v7916
    %v7949 = vunpack.c.l.b16 %v7917
    %v7950 = vunpack.c.l.b16 %v7918
    %v7951 = vunpack.c.l.b16 %v7919
    %v7952 = vunpack.c.l.b16 %v7920
    %v7953 = vunpack.c.l.b16 %v7921
    %v7954 = vunpack.c.l.b16 %v7922
    %v7955 = vunpack.c.l.b16 %v7923
    %v7956 = vunpack.c.l.b16 %v7924
    %v7957 = vunpack.c.l.b16 %v7925
    %v7958 = vunpack.c.l.b16 %v7926
    %v7959 = vunpack.c.l.b16 %v7927
    %v7960 = vunpack.c.l.b16 %v7928
    %v7961 = vunpack.c.l.b16 %v7929
    %v7962 = vunpack.c.l.b16 %v7930
    %v7963 = vpack.c.b16 %v7948, %v7947
    %v7964 = vpack.c.b16 %v7950, %v7949
    %v7965 = vpack.c.b16 %v7952, %v7951
    %v7966 = vpack.c.b16 %v7954, %v7953
    %v7967 = vpack.c.b16 %v7956, %v7955
    %v7968 = vpack.c.b16 %v7958, %v7957
    %v7969 = vpack.c.b16 %v7960, %v7959
    %v7970 = vpack.c.b16 %v7962, %v7961
    %7979 = vrot.lane.b32.xlu0 %v6899, 96
    %v7980 = vpop.permute.xlu0 %7979
    %7981 = vrot.lane.b32.xlu0 %v6900, 96
    %v7982 = vpop.permute.xlu0 %7981
    %7983 = vrot.lane.b32.xlu0 %v6901, 96
    %v7984 = vpop.permute.xlu0 %7983
    %7985 = vrot.lane.b32.xlu0 %v6902, 96
    %v7986 = vpop.permute.xlu0 %7985
    %7987 = vrot.lane.b32.xlu0 %v6903, 96
    %v7988 = vpop.permute.xlu0 %7987
    %7989 = vrot.lane.b32.xlu0 %v6904, 96
    %v7990 = vpop.permute.xlu0 %7989
    %7991 = vrot.lane.b32.xlu0 %v6905, 96
    %v7992 = vpop.permute.xlu0 %7991
    %7993 = vrot.lane.b32.xlu0 %v6906, 96
    %v7994 = vpop.permute.xlu0 %7993
    %7995 = vrot.lane.b32.xlu0 %v6907, 96
    %v7996 = vpop.permute.xlu0 %7995
    %7997 = vrot.lane.b32.xlu0 %v6908, 96
    %v7998 = vpop.permute.xlu0 %7997
    %7999 = vrot.lane.b32.xlu0 %v6909, 96
    %v8000 = vpop.permute.xlu0 %7999
    %8001 = vrot.lane.b32.xlu0 %v6910, 96
    %v8002 = vpop.permute.xlu0 %8001
    %8003 = vrot.lane.b32.xlu0 %v6911, 96
    %v8004 = vpop.permute.xlu0 %8003
    %8005 = vrot.lane.b32.xlu0 %v6912, 96
    %v8006 = vpop.permute.xlu0 %8005
    %8007 = vrot.lane.b32.xlu0 %v6913, 96
    %v8008 = vpop.permute.xlu0 %8007
    %8009 = vrot.lane.b32.xlu0 %v6914, 96
    %v8010 = vpop.permute.xlu0 %8009
    %v8011 = vsel %vm5193, %v7980, %v7982
    %v8012 = vsel %vm5193, %v7984, %v7986
    %v8013 = vsel %vm5193, %v7988, %v7990
    %v8014 = vsel %vm5193, %v7992, %v7994
    %v8015 = vsel %vm5193, %v7996, %v7998
    %v8016 = vsel %vm5193, %v8000, %v8002
    %v8017 = vsel %vm5193, %v8004, %v8006
    %v8018 = vsel %vm5193, %v8008, %v8010
    %8035 = vmatprep.subr.bf16.mxu0 %v7982
    %8036 = vmatpush1.bf16.msra.mxu0 %v8011
    %8037 = vmatprep.subr.bf16.mxu0 %v7986
    %8038 = vmatpush1.bf16.msra.mxu0 %v8012
    %8039 = vmatprep.subr.bf16.mxu0 %v7990
    %8040 = vmatpush1.bf16.msra.mxu0 %v8013
    %8041 = vmatprep.subr.bf16.mxu0 %v7994
    %8042 = vmatpush1.bf16.msra.mxu0 %v8014
    %8043 = vmatprep.subr.bf16.mxu0 %v7998
    %8044 = vmatpush1.bf16.msra.mxu0 %v8015
    %8045 = vmatprep.subr.bf16.mxu0 %v8002
    %8046 = vmatpush1.bf16.msra.mxu0 %v8016
    %8047 = vmatprep.subr.bf16.mxu0 %v8006
    %8048 = vmatpush1.bf16.msra.mxu0 %v8017
    %8049 = vmatprep.subr.bf16.mxu0 %v8010
    %8050 = vmatpush1.bf16.msra.mxu0 %v8018
    %8051 = vmatprep.subr.bf16.mxu0 0
    %8052 = vmatpush1.bf16.msra.mxu0 0
    %8053 = vmatprep.subr.bf16.mxu0 0
    %8054 = vmatpush1.bf16.msra.mxu0 0
    %8055 = vmatprep.subr.bf16.mxu0 0
    %8056 = vmatpush1.bf16.msra.mxu0 0
    %8057 = vmatprep.subr.bf16.mxu0 0
    %8058 = vmatpush1.bf16.msra.mxu0 0
    %8059 = vmatprep.subr.bf16.mxu0 0
    %8060 = vmatpush1.bf16.msra.mxu0 0
    %8061 = vmatprep.subr.bf16.mxu0 0
    %8062 = vmatpush1.bf16.msra.mxu0 0
    %8063 = vmatprep.subr.bf16.mxu0 0
    %8064 = vmatpush1.bf16.msra.mxu0 0
    %8065 = vmatprep.subr.bf16.mxu0 0
    %8066 = vmatpush1.bf16.msra.mxu0 0
    %8067 = vmatprep.mubr.bf16.mxu0 0
    %8068 = vmatmul.mubr.bf16.gmra.mrb[0].mxu0 %v7963
    %v8069 = vpop.f32.mrb[0].mxu0
    %v8070 = vadd.f32 0.0, %v8069
    %v8071 = vpop.f32.mrb[0].mxu0
    %v8072 = vadd.f32 0.0, %v8071
    %v8073 = vpop.f32.mrb[0].mxu0
    %v8074 = vadd.f32 0.0, %v8073
    %v8075 = vpop.f32.mrb[0].mxu0
    %v8076 = vadd.f32 0.0, %v8075
    %8077 = vmatprep.mubr.bf16.mxu0 0
    %8078 = vmatmul.mubr.bf16.gmra.mrb[0].mxu0 %v7964
    %v8079 = vpop.f32.mrb[0].mxu0
    %v8080 = vadd.f32 0.0, %v8079
    %v8081 = vpop.f32.mrb[0].mxu0
    %v8082 = vadd.f32 0.0, %v8081
    %v8083 = vpop.f32.mrb[0].mxu0
    %v8084 = vadd.f32 0.0, %v8083
    %v8085 = vpop.f32.mrb[0].mxu0
    %v8086 = vadd.f32 0.0, %v8085
    %8087 = vmatprep.mubr.bf16.mxu0 0
    %8088 = vmatmul.mubr.bf16.gmra.mrb[0].mxu0 %v7965
    %v8089 = vpop.f32.mrb[0].mxu0
    %v8090 = vadd.f32 0.0, %v8089
    %v8091 = vpop.f32.mrb[0].mxu0
    %v8092 = vadd.f32 0.0, %v8091
    %v8093 = vpop.f32.mrb[0].mxu0
    %v8094 = vadd.f32 0.0, %v8093
    %v8095 = vpop.f32.mrb[0].mxu0
    %v8096 = vadd.f32 0.0, %v8095
    %8097 = vmatprep.mubr.bf16.mxu0 0
    %8098 = vmatmul.mubr.bf16.gmra.mrb[0].mxu0 %v7966
    %v8099 = vpop.f32.mrb[0].mxu0
    %v8100 = vadd.f32 0.0, %v8099
    %v8101 = vpop.f32.mrb[0].mxu0
    %v8102 = vadd.f32 0.0, %v8101
    %v8103 = vpop.f32.mrb[0].mxu0
    %v8104 = vadd.f32 0.0, %v8103
    %v8105 = vpop.f32.mrb[0].mxu0
    %v8106 = vadd.f32 0.0, %v8105
    %8107 = vmatprep.mubr.bf16.mxu0 0
    %8108 = vmatmul.mubr.bf16.gmra.mrb[0].mxu0 %v7967
    %v8109 = vpop.f32.mrb[0].mxu0
    %v8110 = vadd.f32 0.0, %v8109
    %v8111 = vpop.f32.mrb[0].mxu0
    %v8112 = vadd.f32 0.0, %v8111
    %v8113 = vpop.f32.mrb[0].mxu0
    %v8114 = vadd.f32 0.0, %v8113
    %v8115 = vpop.f32.mrb[0].mxu0
    %v8116 = vadd.f32 0.0, %v8115
    %8117 = vmatprep.mubr.bf16.mxu0 0
    %8118 = vmatmul.mubr.bf16.gmra.mrb[0].mxu0 %v7968
    %v8119 = vpop.f32.mrb[0].mxu0
    %v8120 = vadd.f32 0.0, %v8119
    %v8121 = vpop.f32.mrb[0].mxu0
    %v8122 = vadd.f32 0.0, %v8121
    %v8123 = vpop.f32.mrb[0].mxu0
    %v8124 = vadd.f32 0.0, %v8123
    %v8125 = vpop.f32.mrb[0].mxu0
    %v8126 = vadd.f32 0.0, %v8125
    %8127 = vmatprep.mubr.bf16.mxu0 0
    %8128 = vmatmul.mubr.bf16.gmra.mrb[0].mxu0 %v7969
    %v8129 = vpop.f32.mrb[0].mxu0
    %v8130 = vadd.f32 0.0, %v8129
    %v8131 = vpop.f32.mrb[0].mxu0
    %v8132 = vadd.f32 0.0, %v8131
    %v8133 = vpop.f32.mrb[0].mxu0
    %v8134 = vadd.f32 0.0, %v8133
    %v8135 = vpop.f32.mrb[0].mxu0
    %v8136 = vadd.f32 0.0, %v8135
    %8137 = vmatprep.mubr.bf16.mxu0 0
    %8138 = vmatmul.mubr.bf16.gmra.mrb[0].mxu0 %v7970
    %v8139 = vpop.f32.mrb[0].mxu0
    %v8140 = vadd.f32 0.0, %v8139
    %v8141 = vpop.f32.mrb[0].mxu0
    %v8142 = vadd.f32 0.0, %v8141
    %v8143 = vpop.f32.mrb[0].mxu0
    %v8144 = vadd.f32 0.0, %v8143
    %v8145 = vpop.f32.mrb[0].mxu0
    %v8146 = vadd.f32 0.0, %v8145
    %8147 = vdwg.mxu0
    %v8148 = vadd.f32 %v7882, %v8070
    %v8149 = vadd.f32 %v7883, %v8072
    %v8150 = vadd.f32 %v7884, %v8074
    %v8151 = vadd.f32 %v7885, %v8076
    %v8152 = vadd.f32 %v7886, %v8080
    %v8153 = vadd.f32 %v7887, %v8082
    %v8154 = vadd.f32 %v7888, %v8084
    %v8155 = vadd.f32 %v7889, %v8086
    %v8156 = vadd.f32 %v7890, %v8090
    %v8157 = vadd.f32 %v7891, %v8092
    %v8158 = vadd.f32 %v7892, %v8094
    %v8159 = vadd.f32 %v7893, %v8096
    %v8160 = vadd.f32 %v7894, %v8100
    %v8161 = vadd.f32 %v7895, %v8102
    %v8162 = vadd.f32 %v7896, %v8104
    %v8163 = vadd.f32 %v7897, %v8106
    %v8164 = vadd.f32 %v7898, %v8110
    %v8165 = vadd.f32 %v7899, %v8112
    %v8166 = vadd.f32 %v7900, %v8114
    %v8167 = vadd.f32 %v7901, %v8116
    %v8168 = vadd.f32 %v7902, %v8120
    %v8169 = vadd.f32 %v7903, %v8122
    %v8170 = vadd.f32 %v7904, %v8124
    %v8171 = vadd.f32 %v7905, %v8126
    %v8172 = vadd.f32 %v7906, %v8130
    %v8173 = vadd.f32 %v7907, %v8132
    %v8174 = vadd.f32 %v7908, %v8134
    %v8175 = vadd.f32 %v7909, %v8136
    %v8176 = vadd.f32 %v7910, %v8140
    %v8177 = vadd.f32 %v7911, %v8142
    %v8178 = vadd.f32 %v7912, %v8144
    %v8179 = vadd.f32 %v7913, %v8146
    %s8180 = scalar_lea.vmem [#allocation10], 320
    %v8181 = vld [vmem:[%s8180] sm:$0xf]
    %v8182 = vld [vmem:[%s8180 + $0x4] sm:$0xf]
    %v8183 = vld [vmem:[%s8180 + $0x8] sm:$0xf]
    %v8184 = vld [vmem:[%s8180 + $0xc] sm:$0xf]
    %v8185 = vld [vmem:[%s8180 + $0x10] sm:$0xf]
    %v8186 = vld [vmem:[%s8180 + $0x14] sm:$0xf]
    %v8187 = vld [vmem:[%s8180 + $0x18] sm:$0xf]
    %v8188 = vld [vmem:[%s8180 + $0x1c] sm:$0xf]
    %v8189 = vld [vmem:[%s8180 + $0x20] sm:$0xf]
    %v8190 = vld [vmem:[%s8180 + $0x24] sm:$0xf]
    %v8191 = vld [vmem:[%s8180 + $0x28] sm:$0xf]
    %v8192 = vld [vmem:[%s8180 + $0x2c] sm:$0xf]
    %v8193 = vld [vmem:[%s8180 + $0x30] sm:$0xf]
    %v8194 = vld [vmem:[%s8180 + $0x34] sm:$0xf]
    %v8195 = vld [vmem:[%s8180 + $0x38] sm:$0xf]
    %v8196 = vld [vmem:[%s8180 + $0x3c] sm:$0xf]
    %v8197 = vld [vmem:[#allocation6] sm:$0xff]
    %v8198 = vld [vmem:[#allocation6 + $0x8] sm:$0xff]
    %v8199 = vld [vmem:[#allocation6 + $0x10] sm:$0xff]
    %v8200 = vld [vmem:[#allocation6 + $0x18] sm:$0xff]
    %v8201 = vld [vmem:[#allocation6 + $0x20] sm:$0xff]
    %v8202 = vld [vmem:[#allocation6 + $0x28] sm:$0xff]
    %v8203 = vld [vmem:[#allocation6 + $0x30] sm:$0xff]
    %v8204 = vld [vmem:[#allocation6 + $0x38] sm:$0xff]
    %v8205 = vld [vmem:[#allocation6 + $0x40] sm:$0xff]
    %v8206 = vld [vmem:[#allocation6 + $0x48] sm:$0xff]
    %v8207 = vld [vmem:[#allocation6 + $0x50] sm:$0xff]
    %v8208 = vld [vmem:[#allocation6 + $0x58] sm:$0xff]
    %v8209 = vld [vmem:[#allocation6 + $0x60] sm:$0xff]
    %v8210 = vld [vmem:[#allocation6 + $0x68] sm:$0xff]
    %v8211 = vld [vmem:[#allocation6 + $0x70] sm:$0xff]
    %v8212 = vld [vmem:[#allocation6 + $0x78] sm:$0xff]
    %v8213 = vld [vmem:[#allocation6 + $0x80] sm:$0xff]
    %v8214 = vld [vmem:[#allocation6 + $0x88] sm:$0xff]
    %v8215 = vld [vmem:[#allocation6 + $0x90] sm:$0xff]
    %v8216 = vld [vmem:[#allocation6 + $0x98] sm:$0xff]
    %v8217 = vld [vmem:[#allocation6 + $0xa0] sm:$0xff]
    %v8218 = vld [vmem:[#allocation6 + $0xa8] sm:$0xff]
    %v8219 = vld [vmem:[#allocation6 + $0xb0] sm:$0xff]
    %v8220 = vld [vmem:[#allocation6 + $0xb8] sm:$0xff]
    %v8237 = vunpack.c.l.b16 %v8181
    %v8238 = vunpack.c.l.b16 %v8182
    %v8239 = vunpack.c.l.b16 %v8183
    %v8240 = vunpack.c.l.b16 %v8184
    %v8241 = vunpack.c.l.b16 %v8185
    %v8242 = vunpack.c.l.b16 %v8186
    %v8243 = vunpack.c.l.b16 %v8187
    %v8244 = vunpack.c.l.b16 %v8188
    %v8245 = vunpack.c.l.b16 %v8189
    %v8246 = vunpack.c.l.b16 %v8190
    %v8247 = vunpack.c.l.b16 %v8191
    %v8248 = vunpack.c.l.b16 %v8192
    %v8249 = vunpack.c.l.b16 %v8193
    %v8250 = vunpack.c.l.b16 %v8194
    %v8251 = vunpack.c.l.b16 %v8195
    %v8252 = vunpack.c.l.b16 %v8196
    %v8253 = vpack.c.b16 %v8238, %v8237
    %v8254 = vpack.c.b16 %v8240, %v8239
    %v8255 = vpack.c.b16 %v8242, %v8241
    %v8256 = vpack.c.b16 %v8244, %v8243
    %v8257 = vpack.c.b16 %v8246, %v8245
    %v8258 = vpack.c.b16 %v8248, %v8247
    %v8259 = vpack.c.b16 %v8250, %v8249
    %v8260 = vpack.c.b16 %v8252, %v8251
    %8293 = vrot.lane.b32.xlu0 %v8197, 95
    %v8294 = vpop.permute.xlu0 %8293
    %8295 = vrot.lane.b32.xlu0 %v8198, 95
    %v8296 = vpop.permute.xlu0 %8295
    %8297 = vrot.lane.b32.xlu0 %v8199, 95
    %v8298 = vpop.permute.xlu0 %8297
    %8299 = vrot.lane.b32.xlu0 %v8200, 95
    %v8300 = vpop.permute.xlu0 %8299
    %8301 = vrot.lane.b32.xlu0 %v8201, 95
    %v8302 = vpop.permute.xlu0 %8301
    %8303 = vrot.lane.b32.xlu0 %v8202, 95
    %v8304 = vpop.permute.xlu0 %8303
    %8305 = vrot.lane.b32.xlu0 %v8203, 95
    %v8306 = vpop.permute.xlu0 %8305
    %8307 = vrot.lane.b32.xlu0 %v8204, 95
    %v8308 = vpop.permute.xlu0 %8307
    %8309 = vrot.lane.b32.xlu0 %v8205, 95
    %v8310 = vpop.permute.xlu0 %8309
    %8311 = vrot.lane.b32.xlu0 %v8206, 95
    %v8312 = vpop.permute.xlu0 %8311
    %8313 = vrot.lane.b32.xlu0 %v8207, 95
    %v8314 = vpop.permute.xlu0 %8313
    %8315 = vrot.lane.b32.xlu0 %v8208, 95
    %v8316 = vpop.permute.xlu0 %8315
    %8317 = vrot.lane.b32.xlu0 %v8209, 95
    %v8318 = vpop.permute.xlu0 %8317
    %8319 = vrot.lane.b32.xlu0 %v8210, 95
    %v8320 = vpop.permute.xlu0 %8319
    %8321 = vrot.lane.b32.xlu0 %v8211, 95
    %v8322 = vpop.permute.xlu0 %8321
    %8323 = vrot.lane.b32.xlu0 %v8212, 95
    %v8324 = vpop.permute.xlu0 %8323
    %8325 = vrot.lane.b32.xlu0 %v8213, 95
    %v8326 = vpop.permute.xlu0 %8325
    %8327 = vrot.lane.b32.xlu0 %v8214, 95
    %v8328 = vpop.permute.xlu0 %8327
    %8329 = vrot.lane.b32.xlu0 %v8215, 95
    %v8330 = vpop.permute.xlu0 %8329
    %8331 = vrot.lane.b32.xlu0 %v8216, 95
    %v8332 = vpop.permute.xlu0 %8331
    %8333 = vrot.lane.b32.xlu0 %v8217, 95
    %v8334 = vpop.permute.xlu0 %8333
    %8335 = vrot.lane.b32.xlu0 %v8218, 95
    %v8336 = vpop.permute.xlu0 %8335
    %8337 = vrot.lane.b32.xlu0 %v8219, 95
    %v8338 = vpop.permute.xlu0 %8337
    %8339 = vrot.lane.b32.xlu0 %v8220, 95
    %v8340 = vpop.permute.xlu0 %8339
    %v8341 = vsel %vm5524, %v8294, %v8296
    %v8342 = vsel %vm5524, %v8296, %v8298
    %v8343 = vsel %vm5524, %v8300, %v8302
    %v8344 = vsel %vm5524, %v8302, %v8304
    %v8345 = vsel %vm5524, %v8306, %v8308
    %v8346 = vsel %vm5524, %v8308, %v8310
    %v8347 = vsel %vm5524, %v8312, %v8314
    %v8348 = vsel %vm5524, %v8314, %v8316
    %v8349 = vsel %vm5524, %v8318, %v8320
    %v8350 = vsel %vm5524, %v8320, %v8322
    %v8351 = vsel %vm5524, %v8324, %v8326
    %v8352 = vsel %vm5524, %v8326, %v8328
    %v8353 = vsel %vm5524, %v8330, %v8332
    %v8354 = vsel %vm5524, %v8332, %v8334
    %v8355 = vsel %vm5524, %v8336, %v8338
    %v8356 = vsel %vm5524, %v8338, %v8340
    %8373 = vmatprep.subr.bf16.mxu0 %v8342
    %8374 = vmatpush1.bf16.msra.mxu0 %v8341
    %8375 = vmatprep.subr.bf16.mxu0 %v8344
    %8376 = vmatpush1.bf16.msra.mxu0 %v8343
    %8377 = vmatprep.subr.bf16.mxu0 %v8346
    %8378 = vmatpush1.bf16.msra.mxu0 %v8345
    %8379 = vmatprep.subr.bf16.mxu0 %v8348
    %8380 = vmatpush1.bf16.msra.mxu0 %v8347
    %8381 = vmatprep.subr.bf16.mxu0 %v8350
    %8382 = vmatpush1.bf16.msra.mxu0 %v8349
    %8383 = vmatprep.subr.bf16.mxu0 %v8352
    %8384 = vmatpush1.bf16.msra.mxu0 %v8351
    %8385 = vmatprep.subr.bf16.mxu0 %v8354
    %8386 = vmatpush1.bf16.msra.mxu0 %v8353
    %8387 = vmatprep.subr.bf16.mxu0 %v8356
    %8388 = vmatpush1.bf16.msra.mxu0 %v8355
    %8389 = vmatprep.subr.bf16.mxu0 0
    %8390 = vmatpush1.bf16.msra.mxu0 0
    %8391 = vmatprep.subr.bf16.mxu0 0
    %8392 = vmatpush1.bf16.msra.mxu0 0
    %8393 = vmatprep.subr.bf16.mxu0 0
    %8394 = vmatpush1.bf16.msra.mxu0 0
    %8395 = vmatprep.subr.bf16.mxu0 0
    %8396 = vmatpush1.bf16.msra.mxu0 0
    %8397 = vmatprep.subr.bf16.mxu0 0
    %8398 = vmatpush1.bf16.msra.mxu0 0
    %8399 = vmatprep.subr.bf16.mxu0 0
    %8400 = vmatpush1.bf16.msra.mxu0 0
    %8401 = vmatprep.subr.bf16.mxu0 0
    %8402 = vmatpush1.bf16.msra.mxu0 0
    %8403 = vmatprep.subr.bf16.mxu0 0
    %8404 = vmatpush1.bf16.msra.mxu0 0
    %8405 = vmatprep.mubr.bf16.mxu0 0
    %8406 = vmatmul.mubr.bf16.gmra.mrb[0].mxu0 %v8253
    %v8407 = vpop.f32.mrb[0].mxu0
    %v8408 = vadd.f32 0.0, %v8407
    %v8409 = vpop.f32.mrb[0].mxu0
    %v8410 = vadd.f32 0.0, %v8409
    %v8411 = vpop.f32.mrb[0].mxu0
    %v8412 = vadd.f32 0.0, %v8411
    %v8413 = vpop.f32.mrb[0].mxu0
    %v8414 = vadd.f32 0.0, %v8413
    %8415 = vmatprep.mubr.bf16.mxu0 0
    %8416 = vmatmul.mubr.bf16.gmra.mrb[0].mxu0 %v8254
    %v8417 = vpop.f32.mrb[0].mxu0
    %v8418 = vadd.f32 0.0, %v8417
    %v8419 = vpop.f32.mrb[0].mxu0
    %v8420 = vadd.f32 0.0, %v8419
    %v8421 = vpop.f32.mrb[0].mxu0
    %v8422 = vadd.f32 0.0, %v8421
    %v8423 = vpop.f32.mrb[0].mxu0
    %v8424 = vadd.f32 0.0, %v8423
    %8425 = vmatprep.mubr.bf16.mxu0 0
    %8426 = vmatmul.mubr.bf16.gmra.mrb[0].mxu0 %v8255
    %v8427 = vpop.f32.mrb[0].mxu0
    %v8428 = vadd.f32 0.0, %v8427
    %v8429 = vpop.f32.mrb[0].mxu0
    %v8430 = vadd.f32 0.0, %v8429
    %v8431 = vpop.f32.mrb[0].mxu0
    %v8432 = vadd.f32 0.0, %v8431
    %v8433 = vpop.f32.mrb[0].mxu0
    %v8434 = vadd.f32 0.0, %v8433
    %8435 = vmatprep.mubr.bf16.mxu0 0
    %8436 = vmatmul.mubr.bf16.gmra.mrb[0].mxu0 %v8256
    %v8437 = vpop.f32.mrb[0].mxu0
    %v8438 = vadd.f32 0.0, %v8437
    %v8439 = vpop.f32.mrb[0].mxu0
    %v8440 = vadd.f32 0.0, %v8439
    %v8441 = vpop.f32.mrb[0].mxu0
    %v8442 = vadd.f32 0.0, %v8441
    %v8443 = vpop.f32.mrb[0].mxu0
    %v8444 = vadd.f32 0.0, %v8443
    %8445 = vmatprep.mubr.bf16.mxu0 0
    %8446 = vmatmul.mubr.bf16.gmra.mrb[0].mxu0 %v8257
    %v8447 = vpop.f32.mrb[0].mxu0
    %v8448 = vadd.f32 0.0, %v8447
    %v8449 = vpop.f32.mrb[0].mxu0
    %v8450 = vadd.f32 0.0, %v8449
    %v8451 = vpop.f32.mrb[0].mxu0
    %v8452 = vadd.f32 0.0, %v8451
    %v8453 = vpop.f32.mrb[0].mxu0
    %v8454 = vadd.f32 0.0, %v8453
    %8455 = vmatprep.mubr.bf16.mxu0 0
    %8456 = vmatmul.mubr.bf16.gmra.mrb[0].mxu0 %v8258
    %v8457 = vpop.f32.mrb[0].mxu0
    %v8458 = vadd.f32 0.0, %v8457
    %v8459 = vpop.f32.mrb[0].mxu0
    %v8460 = vadd.f32 0.0, %v8459
    %v8461 = vpop.f32.mrb[0].mxu0
    %v8462 = vadd.f32 0.0, %v8461
    %v8463 = vpop.f32.mrb[0].mxu0
    %v8464 = vadd.f32 0.0, %v8463
    %8465 = vmatprep.mubr.bf16.mxu0 0
    %8466 = vmatmul.mubr.bf16.gmra.mrb[0].mxu0 %v8259
    %v8467 = vpop.f32.mrb[0].mxu0
    %v8468 = vadd.f32 0.0, %v8467
    %v8469 = vpop.f32.mrb[0].mxu0
    %v8470 = vadd.f32 0.0, %v8469
    %v8471 = vpop.f32.mrb[0].mxu0
    %v8472 = vadd.f32 0.0, %v8471
    %v8473 = vpop.f32.mrb[0].mxu0
    %v8474 = vadd.f32 0.0, %v8473
    %8475 = vmatprep.mubr.bf16.mxu0 0
    %8476 = vmatmul.mubr.bf16.gmra.mrb[0].mxu0 %v8260
    %v8477 = vpop.f32.mrb[0].mxu0
    %v8478 = vadd.f32 0.0, %v8477
    %v8479 = vpop.f32.mrb[0].mxu0
    %v8480 = vadd.f32 0.0, %v8479
    %v8481 = vpop.f32.mrb[0].mxu0
    %v8482 = vadd.f32 0.0, %v8481
    %v8483 = vpop.f32.mrb[0].mxu0
    %v8484 = vadd.f32 0.0, %v8483
    %8485 = vdwg.mxu0
    %v8486 = vadd.f32 %v8148, %v8408
    %v8487 = vadd.f32 %v8149, %v8410
    %v8488 = vadd.f32 %v8150, %v8412
    %v8489 = vadd.f32 %v8151, %v8414
    %v8490 = vadd.f32 %v8152, %v8418
    %v8491 = vadd.f32 %v8153, %v8420
    %v8492 = vadd.f32 %v8154, %v8422
    %v8493 = vadd.f32 %v8155, %v8424
    %v8494 = vadd.f32 %v8156, %v8428
    %v8495 = vadd.f32 %v8157, %v8430
    %v8496 = vadd.f32 %v8158, %v8432
    %v8497 = vadd.f32 %v8159, %v8434
    %v8498 = vadd.f32 %v8160, %v8438
    %v8499 = vadd.f32 %v8161, %v8440
    %v8500 = vadd.f32 %v8162, %v8442
    %v8501 = vadd.f32 %v8163, %v8444
    %v8502 = vadd.f32 %v8164, %v8448
    %v8503 = vadd.f32 %v8165, %v8450
    %v8504 = vadd.f32 %v8166, %v8452
    %v8505 = vadd.f32 %v8167, %v8454
    %v8506 = vadd.f32 %v8168, %v8458
    %v8507 = vadd.f32 %v8169, %v8460
    %v8508 = vadd.f32 %v8170, %v8462
    %v8509 = vadd.f32 %v8171, %v8464
    %v8510 = vadd.f32 %v8172, %v8468
    %v8511 = vadd.f32 %v8173, %v8470
    %v8512 = vadd.f32 %v8174, %v8472
    %v8513 = vadd.f32 %v8175, %v8474
    %v8514 = vadd.f32 %v8176, %v8478
    %v8515 = vadd.f32 %v8177, %v8480
    %v8516 = vadd.f32 %v8178, %v8482
    %v8517 = vadd.f32 %v8179, %v8484
    %s8518 = scalar_lea.vmem [#allocation10], 384
    %v8519 = vld [vmem:[%s8518] sm:$0xf]
    %v8520 = vld [vmem:[%s8518 + $0x4] sm:$0xf]
    %v8521 = vld [vmem:[%s8518 + $0x8] sm:$0xf]
    %v8522 = vld [vmem:[%s8518 + $0xc] sm:$0xf]
    %v8523 = vld [vmem:[%s8518 + $0x10] sm:$0xf]
    %v8524 = vld [vmem:[%s8518 + $0x14] sm:$0xf]
    %v8525 = vld [vmem:[%s8518 + $0x18] sm:$0xf]
    %v8526 = vld [vmem:[%s8518 + $0x1c] sm:$0xf]
    %v8527 = vld [vmem:[%s8518 + $0x20] sm:$0xf]
    %v8528 = vld [vmem:[%s8518 + $0x24] sm:$0xf]
    %v8529 = vld [vmem:[%s8518 + $0x28] sm:$0xf]
    %v8530 = vld [vmem:[%s8518 + $0x2c] sm:$0xf]
    %v8531 = vld [vmem:[%s8518 + $0x30] sm:$0xf]
    %v8532 = vld [vmem:[%s8518 + $0x34] sm:$0xf]
    %v8533 = vld [vmem:[%s8518 + $0x38] sm:$0xf]
    %v8534 = vld [vmem:[%s8518 + $0x3c] sm:$0xf]
    %v8551 = vunpack.c.l.b16 %v8519
    %v8552 = vunpack.c.l.b16 %v8520
    %v8553 = vunpack.c.l.b16 %v8521
    %v8554 = vunpack.c.l.b16 %v8522
    %v8555 = vunpack.c.l.b16 %v8523
    %v8556 = vunpack.c.l.b16 %v8524
    %v8557 = vunpack.c.l.b16 %v8525
    %v8558 = vunpack.c.l.b16 %v8526
    %v8559 = vunpack.c.l.b16 %v8527
    %v8560 = vunpack.c.l.b16 %v8528
    %v8561 = vunpack.c.l.b16 %v8529
    %v8562 = vunpack.c.l.b16 %v8530
    %v8563 = vunpack.c.l.b16 %v8531
    %v8564 = vunpack.c.l.b16 %v8532
    %v8565 = vunpack.c.l.b16 %v8533
    %v8566 = vunpack.c.l.b16 %v8534
    %v8567 = vpack.c.b16 %v8552, %v8551
    %v8568 = vpack.c.b16 %v8554, %v8553
    %v8569 = vpack.c.b16 %v8556, %v8555
    %v8570 = vpack.c.b16 %v8558, %v8557
    %v8571 = vpack.c.b16 %v8560, %v8559
    %v8572 = vpack.c.b16 %v8562, %v8561
    %v8573 = vpack.c.b16 %v8564, %v8563
    %v8574 = vpack.c.b16 %v8566, %v8565
    %8583 = vrot.lane.b32.xlu0 %v8197, 81
    %v8584 = vpop.permute.xlu0 %8583
    %8585 = vrot.lane.b32.xlu0 %v8198, 81
    %v8586 = vpop.permute.xlu0 %8585
    %8587 = vrot.lane.b32.xlu0 %v8199, 81
    %v8588 = vpop.permute.xlu0 %8587
    %8589 = vrot.lane.b32.xlu0 %v8200, 81
    %v8590 = vpop.permute.xlu0 %8589
    %8591 = vrot.lane.b32.xlu0 %v8201, 81
    %v8592 = vpop.permute.xlu0 %8591
    %8593 = vrot.lane.b32.xlu0 %v8202, 81
    %v8594 = vpop.permute.xlu0 %8593
    %8595 = vrot.lane.b32.xlu0 %v8203, 81
    %v8596 = vpop.permute.xlu0 %8595
    %8597 = vrot.lane.b32.xlu0 %v8204, 81
    %v8598 = vpop.permute.xlu0 %8597
    %8599 = vrot.lane.b32.xlu0 %v8205, 81
    %v8600 = vpop.permute.xlu0 %8599
    %8601 = vrot.lane.b32.xlu0 %v8206, 81
    %v8602 = vpop.permute.xlu0 %8601
    %8603 = vrot.lane.b32.xlu0 %v8207, 81
    %v8604 = vpop.permute.xlu0 %8603
    %8605 = vrot.lane.b32.xlu0 %v8208, 81
    %v8606 = vpop.permute.xlu0 %8605
    %8607 = vrot.lane.b32.xlu0 %v8209, 81
    %v8608 = vpop.permute.xlu0 %8607
    %8609 = vrot.lane.b32.xlu0 %v8210, 81
    %v8610 = vpop.permute.xlu0 %8609
    %8611 = vrot.lane.b32.xlu0 %v8211, 81
    %v8612 = vpop.permute.xlu0 %8611
    %8613 = vrot.lane.b32.xlu0 %v8212, 81
    %v8614 = vpop.permute.xlu0 %8613
    %8615 = vrot.lane.b32.xlu0 %v8213, 81
    %v8616 = vpop.permute.xlu0 %8615
    %8617 = vrot.lane.b32.xlu0 %v8214, 81
    %v8618 = vpop.permute.xlu0 %8617
    %8619 = vrot.lane.b32.xlu0 %v8215, 81
    %v8620 = vpop.permute.xlu0 %8619
    %8621 = vrot.lane.b32.xlu0 %v8216, 81
    %v8622 = vpop.permute.xlu0 %8621
    %8623 = vrot.lane.b32.xlu0 %v8217, 81
    %v8624 = vpop.permute.xlu0 %8623
    %8625 = vrot.lane.b32.xlu0 %v8218, 81
    %v8626 = vpop.permute.xlu0 %8625
    %8627 = vrot.lane.b32.xlu0 %v8219, 81
    %v8628 = vpop.permute.xlu0 %8627
    %8629 = vrot.lane.b32.xlu0 %v8220, 81
    %v8630 = vpop.permute.xlu0 %8629
    %v8631 = vsel %vm5815, %v8584, %v8586
    %v8632 = vsel %vm5815, %v8586, %v8588
    %v8633 = vsel %vm5815, %v8590, %v8592
    %v8634 = vsel %vm5815, %v8592, %v8594
    %v8635 = vsel %vm5815, %v8596, %v8598
    %v8636 = vsel %vm5815, %v8598, %v8600
    %v8637 = vsel %vm5815, %v8602, %v8604
    %v8638 = vsel %vm5815, %v8604, %v8606
    %v8639 = vsel %vm5815, %v8608, %v8610
    %v8640 = vsel %vm5815, %v8610, %v8612
    %v8641 = vsel %vm5815, %v8614, %v8616
    %v8642 = vsel %vm5815, %v8616, %v8618
    %v8643 = vsel %vm5815, %v8620, %v8622
    %v8644 = vsel %vm5815, %v8622, %v8624
    %v8645 = vsel %vm5815, %v8626, %v8628
    %v8646 = vsel %vm5815, %v8628, %v8630
    %8663 = vmatprep.subr.bf16.mxu0 %v8632
    %8664 = vmatpush1.bf16.msra.mxu0 %v8631
    %8665 = vmatprep.subr.bf16.mxu0 %v8634
    %8666 = vmatpush1.bf16.msra.mxu0 %v8633
    %8667 = vmatprep.subr.bf16.mxu0 %v8636
    %8668 = vmatpush1.bf16.msra.mxu0 %v8635
    %8669 = vmatprep.subr.bf16.mxu0 %v8638
    %8670 = vmatpush1.bf16.msra.mxu0 %v8637
    %8671 = vmatprep.subr.bf16.mxu0 %v8640
    %8672 = vmatpush1.bf16.msra.mxu0 %v8639
    %8673 = vmatprep.subr.bf16.mxu0 %v8642
    %8674 = vmatpush1.bf16.msra.mxu0 %v8641
    %8675 = vmatprep.subr.bf16.mxu0 %v8644
    %8676 = vmatpush1.bf16.msra.mxu0 %v8643
    %8677 = vmatprep.subr.bf16.mxu0 %v8646
    %8678 = vmatpush1.bf16.msra.mxu0 %v8645
    %8679 = vmatprep.subr.bf16.mxu0 0
    %8680 = vmatpush1.bf16.msra.mxu0 0
    %8681 = vmatprep.subr.bf16.mxu0 0
    %8682 = vmatpush1.bf16.msra.mxu0 0
    %8683 = vmatprep.subr.bf16.mxu0 0
    %8684 = vmatpush1.bf16.msra.mxu0 0
    %8685 = vmatprep.subr.bf16.mxu0 0
    %8686 = vmatpush1.bf16.msra.mxu0 0
    %8687 = vmatprep.subr.bf16.mxu0 0
    %8688 = vmatpush1.bf16.msra.mxu0 0
    %8689 = vmatprep.subr.bf16.mxu0 0
    %8690 = vmatpush1.bf16.msra.mxu0 0
    %8691 = vmatprep.subr.bf16.mxu0 0
    %8692 = vmatpush1.bf16.msra.mxu0 0
    %8693 = vmatprep.subr.bf16.mxu0 0
    %8694 = vmatpush1.bf16.msra.mxu0 0
    %8695 = vmatprep.mubr.bf16.mxu0 0
    %8696 = vmatmul.mubr.bf16.gmra.mrb[0].mxu0 %v8567
    %v8697 = vpop.f32.mrb[0].mxu0
    %v8698 = vadd.f32 0.0, %v8697
    %v8699 = vpop.f32.mrb[0].mxu0
    %v8700 = vadd.f32 0.0, %v8699
    %v8701 = vpop.f32.mrb[0].mxu0
    %v8702 = vadd.f32 0.0, %v8701
    %v8703 = vpop.f32.mrb[0].mxu0
    %v8704 = vadd.f32 0.0, %v8703
    %8705 = vmatprep.mubr.bf16.mxu0 0
    %8706 = vmatmul.mubr.bf16.gmra.mrb[0].mxu0 %v8568
    %v8707 = vpop.f32.mrb[0].mxu0
    %v8708 = vadd.f32 0.0, %v8707
    %v8709 = vpop.f32.mrb[0].mxu0
    %v8710 = vadd.f32 0.0, %v8709
    %v8711 = vpop.f32.mrb[0].mxu0
    %v8712 = vadd.f32 0.0, %v8711
    %v8713 = vpop.f32.mrb[0].mxu0
    %v8714 = vadd.f32 0.0, %v8713
    %8715 = vmatprep.mubr.bf16.mxu0 0
    %8716 = vmatmul.mubr.bf16.gmra.mrb[0].mxu0 %v8569
    %v8717 = vpop.f32.mrb[0].mxu0
    %v8718 = vadd.f32 0.0, %v8717
    %v8719 = vpop.f32.mrb[0].mxu0
    %v8720 = vadd.f32 0.0, %v8719
    %v8721 = vpop.f32.mrb[0].mxu0
    %v8722 = vadd.f32 0.0, %v8721
    %v8723 = vpop.f32.mrb[0].mxu0
    %v8724 = vadd.f32 0.0, %v8723
    %8725 = vmatprep.mubr.bf16.mxu0 0
    %8726 = vmatmul.mubr.bf16.gmra.mrb[0].mxu0 %v8570
    %v8727 = vpop.f32.mrb[0].mxu0
    %v8728 = vadd.f32 0.0, %v8727
    %v8729 = vpop.f32.mrb[0].mxu0
    %v8730 = vadd.f32 0.0, %v8729
    %v8731 = vpop.f32.mrb[0].mxu0
    %v8732 = vadd.f32 0.0, %v8731
    %v8733 = vpop.f32.mrb[0].mxu0
    %v8734 = vadd.f32 0.0, %v8733
    %8735 = vmatprep.mubr.bf16.mxu0 0
    %8736 = vmatmul.mubr.bf16.gmra.mrb[0].mxu0 %v8571
    %v8737 = vpop.f32.mrb[0].mxu0
    %v8738 = vadd.f32 0.0, %v8737
    %v8739 = vpop.f32.mrb[0].mxu0
    %v8740 = vadd.f32 0.0, %v8739
    %v8741 = vpop.f32.mrb[0].mxu0
    %v8742 = vadd.f32 0.0, %v8741
    %v8743 = vpop.f32.mrb[0].mxu0
    %v8744 = vadd.f32 0.0, %v8743
    %8745 = vmatprep.mubr.bf16.mxu0 0
    %8746 = vmatmul.mubr.bf16.gmra.mrb[0].mxu0 %v8572
    %v8747 = vpop.f32.mrb[0].mxu0
    %v8748 = vadd.f32 0.0, %v8747
    %v8749 = vpop.f32.mrb[0].mxu0
    %v8750 = vadd.f32 0.0, %v8749
    %v8751 = vpop.f32.mrb[0].mxu0
    %v8752 = vadd.f32 0.0, %v8751
    %v8753 = vpop.f32.mrb[0].mxu0
    %v8754 = vadd.f32 0.0, %v8753
    %8755 = vmatprep.mubr.bf16.mxu0 0
    %8756 = vmatmul.mubr.bf16.gmra.mrb[0].mxu0 %v8573
    %v8757 = vpop.f32.mrb[0].mxu0
    %v8758 = vadd.f32 0.0, %v8757
    %v8759 = vpop.f32.mrb[0].mxu0
    %v8760 = vadd.f32 0.0, %v8759
    %v8761 = vpop.f32.mrb[0].mxu0
    %v8762 = vadd.f32 0.0, %v8761
    %v8763 = vpop.f32.mrb[0].mxu0
    %v8764 = vadd.f32 0.0, %v8763
    %8765 = vmatprep.mubr.bf16.mxu0 0
    %8766 = vmatmul.mubr.bf16.gmra.mrb[0].mxu0 %v8574
    %v8767 = vpop.f32.mrb[0].mxu0
    %v8768 = vadd.f32 0.0, %v8767
    %v8769 = vpop.f32.mrb[0].mxu0
    %v8770 = vadd.f32 0.0, %v8769
    %v8771 = vpop.f32.mrb[0].mxu0
    %v8772 = vadd.f32 0.0, %v8771
    %v8773 = vpop.f32.mrb[0].mxu0
    %v8774 = vadd.f32 0.0, %v8773
    %8775 = vdwg.mxu0
    %v8776 = vadd.f32 %v8486, %v8698
    %v8777 = vadd.f32 %v8487, %v8700
    %v8778 = vadd.f32 %v8488, %v8702
    %v8779 = vadd.f32 %v8489, %v8704
    %v8780 = vadd.f32 %v8490, %v8708
    %v8781 = vadd.f32 %v8491, %v8710
    %v8782 = vadd.f32 %v8492, %v8712
    %v8783 = vadd.f32 %v8493, %v8714
    %v8784 = vadd.f32 %v8494, %v8718
    %v8785 = vadd.f32 %v8495, %v8720
    %v8786 = vadd.f32 %v8496, %v8722
    %v8787 = vadd.f32 %v8497, %v8724
    %v8788 = vadd.f32 %v8498, %v8728
    %v8789 = vadd.f32 %v8499, %v8730
    %v8790 = vadd.f32 %v8500, %v8732
    %v8791 = vadd.f32 %v8501, %v8734
    %v8792 = vadd.f32 %v8502, %v8738
    %v8793 = vadd.f32 %v8503, %v8740
    %v8794 = vadd.f32 %v8504, %v8742
    %v8795 = vadd.f32 %v8505, %v8744
    %v8796 = vadd.f32 %v8506, %v8748
    %v8797 = vadd.f32 %v8507, %v8750
    %v8798 = vadd.f32 %v8508, %v8752
    %v8799 = vadd.f32 %v8509, %v8754
    %v8800 = vadd.f32 %v8510, %v8758
    %v8801 = vadd.f32 %v8511, %v8760
    %v8802 = vadd.f32 %v8512, %v8762
    %v8803 = vadd.f32 %v8513, %v8764
    %v8804 = vadd.f32 %v8514, %v8768
    %v8805 = vadd.f32 %v8515, %v8770
    %v8806 = vadd.f32 %v8516, %v8772
    %v8807 = vadd.f32 %v8517, %v8774
    %s8808 = scalar_lea.vmem [#allocation10], 448
    %v8809 = vld [vmem:[%s8808] sm:$0xf]
    %v8810 = vld [vmem:[%s8808 + $0x4] sm:$0xf]
    %v8811 = vld [vmem:[%s8808 + $0x8] sm:$0xf]
    %v8812 = vld [vmem:[%s8808 + $0xc] sm:$0xf]
    %v8813 = vld [vmem:[%s8808 + $0x10] sm:$0xf]
    %v8814 = vld [vmem:[%s8808 + $0x14] sm:$0xf]
    %v8815 = vld [vmem:[%s8808 + $0x18] sm:$0xf]
    %v8816 = vld [vmem:[%s8808 + $0x1c] sm:$0xf]
    %v8817 = vld [vmem:[%s8808 + $0x20] sm:$0xf]
    %v8818 = vld [vmem:[%s8808 + $0x24] sm:$0xf]
    %v8819 = vld [vmem:[%s8808 + $0x28] sm:$0xf]
    %v8820 = vld [vmem:[%s8808 + $0x2c] sm:$0xf]
    %v8821 = vld [vmem:[%s8808 + $0x30] sm:$0xf]
    %v8822 = vld [vmem:[%s8808 + $0x34] sm:$0xf]
    %v8823 = vld [vmem:[%s8808 + $0x38] sm:$0xf]
    %v8824 = vld [vmem:[%s8808 + $0x3c] sm:$0xf]
    %v8841 = vunpack.c.l.b16 %v8809
    %v8842 = vunpack.c.l.b16 %v8810
    %v8843 = vunpack.c.l.b16 %v8811
    %v8844 = vunpack.c.l.b16 %v8812
    %v8845 = vunpack.c.l.b16 %v8813
    %v8846 = vunpack.c.l.b16 %v8814
    %v8847 = vunpack.c.l.b16 %v8815
    %v8848 = vunpack.c.l.b16 %v8816
    %v8849 = vunpack.c.l.b16 %v8817
    %v8850 = vunpack.c.l.b16 %v8818
    %v8851 = vunpack.c.l.b16 %v8819
    %v8852 = vunpack.c.l.b16 %v8820
    %v8853 = vunpack.c.l.b16 %v8821
    %v8854 = vunpack.c.l.b16 %v8822
    %v8855 = vunpack.c.l.b16 %v8823
    %v8856 = vunpack.c.l.b16 %v8824
    %v8857 = vpack.c.b16 %v8842, %v8841
    %v8858 = vpack.c.b16 %v8844, %v8843
    %v8859 = vpack.c.b16 %v8846, %v8845
    %v8860 = vpack.c.b16 %v8848, %v8847
    %v8861 = vpack.c.b16 %v8850, %v8849
    %v8862 = vpack.c.b16 %v8852, %v8851
    %v8863 = vpack.c.b16 %v8854, %v8853
    %v8864 = vpack.c.b16 %v8856, %v8855
    %8873 = vrot.lane.b32.xlu0 %v8197, 80
    %v8874 = vpop.permute.xlu0 %8873
    %8875 = vrot.lane.b32.xlu0 %v8198, 80
    %v8876 = vpop.permute.xlu0 %8875
    %8877 = vrot.lane.b32.xlu0 %v8199, 80
    %v8878 = vpop.permute.xlu0 %8877
    %8879 = vrot.lane.b32.xlu0 %v8200, 80
    %v8880 = vpop.permute.xlu0 %8879
    %8881 = vrot.lane.b32.xlu0 %v8201, 80
    %v8882 = vpop.permute.xlu0 %8881
    %8883 = vrot.lane.b32.xlu0 %v8202, 80
    %v8884 = vpop.permute.xlu0 %8883
    %8885 = vrot.lane.b32.xlu0 %v8203, 80
    %v8886 = vpop.permute.xlu0 %8885
    %8887 = vrot.lane.b32.xlu0 %v8204, 80
    %v8888 = vpop.permute.xlu0 %8887
    %8889 = vrot.lane.b32.xlu0 %v8205, 80
    %v8890 = vpop.permute.xlu0 %8889
    %8891 = vrot.lane.b32.xlu0 %v8206, 80
    %v8892 = vpop.permute.xlu0 %8891
    %8893 = vrot.lane.b32.xlu0 %v8207, 80
    %v8894 = vpop.permute.xlu0 %8893
    %8895 = vrot.lane.b32.xlu0 %v8208, 80
    %v8896 = vpop.permute.xlu0 %8895
    %8897 = vrot.lane.b32.xlu0 %v8209, 80
    %v8898 = vpop.permute.xlu0 %8897
    %8899 = vrot.lane.b32.xlu0 %v8210, 80
    %v8900 = vpop.permute.xlu0 %8899
    %8901 = vrot.lane.b32.xlu0 %v8211, 80
    %v8902 = vpop.permute.xlu0 %8901
    %8903 = vrot.lane.b32.xlu0 %v8212, 80
    %v8904 = vpop.permute.xlu0 %8903
    %8905 = vrot.lane.b32.xlu0 %v8213, 80
    %v8906 = vpop.permute.xlu0 %8905
    %8907 = vrot.lane.b32.xlu0 %v8214, 80
    %v8908 = vpop.permute.xlu0 %8907
    %8909 = vrot.lane.b32.xlu0 %v8215, 80
    %v8910 = vpop.permute.xlu0 %8909
    %8911 = vrot.lane.b32.xlu0 %v8216, 80
    %v8912 = vpop.permute.xlu0 %8911
    %8913 = vrot.lane.b32.xlu0 %v8217, 80
    %v8914 = vpop.permute.xlu0 %8913
    %8915 = vrot.lane.b32.xlu0 %v8218, 80
    %v8916 = vpop.permute.xlu0 %8915
    %8917 = vrot.lane.b32.xlu0 %v8219, 80
    %v8918 = vpop.permute.xlu0 %8917
    %8919 = vrot.lane.b32.xlu0 %v8220, 80
    %v8920 = vpop.permute.xlu0 %8919
    %v8921 = vsel %vm6106, %v8874, %v8876
    %v8922 = vsel %vm6106, %v8876, %v8878
    %v8923 = vsel %vm6106, %v8880, %v8882
    %v8924 = vsel %vm6106, %v8882, %v8884
    %v8925 = vsel %vm6106, %v8886, %v8888
    %v8926 = vsel %vm6106, %v8888, %v8890
    %v8927 = vsel %vm6106, %v8892, %v8894
    %v8928 = vsel %vm6106, %v8894, %v8896
    %v8929 = vsel %vm6106, %v8898, %v8900
    %v8930 = vsel %vm6106, %v8900, %v8902
    %v8931 = vsel %vm6106, %v8904, %v8906
    %v8932 = vsel %vm6106, %v8906, %v8908
    %v8933 = vsel %vm6106, %v8910, %v8912
    %v8934 = vsel %vm6106, %v8912, %v8914
    %v8935 = vsel %vm6106, %v8916, %v8918
    %v8936 = vsel %vm6106, %v8918, %v8920
    %8953 = vmatprep.subr.bf16.mxu0 %v8922
    %8954 = vmatpush1.bf16.msra.mxu0 %v8921
    %8955 = vmatprep.subr.bf16.mxu0 %v8924
    %8956 = vmatpush1.bf16.msra.mxu0 %v8923
    %8957 = vmatprep.subr.bf16.mxu0 %v8926
    %8958 = vmatpush1.bf16.msra.mxu0 %v8925
    %8959 = vmatprep.subr.bf16.mxu0 %v8928
    %8960 = vmatpush1.bf16.msra.mxu0 %v8927
    %8961 = vmatprep.subr.bf16.mxu0 %v8930
    %8962 = vmatpush1.bf16.msra.mxu0 %v8929
    %8963 = vmatprep.subr.bf16.mxu0 %v8932
    %8964 = vmatpush1.bf16.msra.mxu0 %v8931
    %8965 = vmatprep.subr.bf16.mxu0 %v8934
    %8966 = vmatpush1.bf16.msra.mxu0 %v8933
    %8967 = vmatprep.subr.bf16.mxu0 %v8936
    %8968 = vmatpush1.bf16.msra.mxu0 %v8935
    %8969 = vmatprep.subr.bf16.mxu0 0
    %8970 = vmatpush1.bf16.msra.mxu0 0
    %8971 = vmatprep.subr.bf16.mxu0 0
    %8972 = vmatpush1.bf16.msra.mxu0 0
    %8973 = vmatprep.subr.bf16.mxu0 0
    %8974 = vmatpush1.bf16.msra.mxu0 0
    %8975 = vmatprep.subr.bf16.mxu0 0
    %8976 = vmatpush1.bf16.msra.mxu0 0
    %8977 = vmatprep.subr.bf16.mxu0 0
    %8978 = vmatpush1.bf16.msra.mxu0 0
    %8979 = vmatprep.subr.bf16.mxu0 0
    %8980 = vmatpush1.bf16.msra.mxu0 0
    %8981 = vmatprep.subr.bf16.mxu0 0
    %8982 = vmatpush1.bf16.msra.mxu0 0
    %8983 = vmatprep.subr.bf16.mxu0 0
    %8984 = vmatpush1.bf16.msra.mxu0 0
    %8985 = vmatprep.mubr.bf16.mxu0 0
    %8986 = vmatmul.mubr.bf16.gmra.mrb[0].mxu0 %v8857
    %v8987 = vpop.f32.mrb[0].mxu0
    %v8988 = vadd.f32 0.0, %v8987
    %v8989 = vpop.f32.mrb[0].mxu0
    %v8990 = vadd.f32 0.0, %v8989
    %v8991 = vpop.f32.mrb[0].mxu0
    %v8992 = vadd.f32 0.0, %v8991
    %v8993 = vpop.f32.mrb[0].mxu0
    %v8994 = vadd.f32 0.0, %v8993
    %8995 = vmatprep.mubr.bf16.mxu0 0
    %8996 = vmatmul.mubr.bf16.gmra.mrb[0].mxu0 %v8858
    %v8997 = vpop.f32.mrb[0].mxu0
    %v8998 = vadd.f32 0.0, %v8997
    %v8999 = vpop.f32.mrb[0].mxu0
    %v9000 = vadd.f32 0.0, %v8999
    %v9001 = vpop.f32.mrb[0].mxu0
    %v9002 = vadd.f32 0.0, %v9001
    %v9003 = vpop.f32.mrb[0].mxu0
    %v9004 = vadd.f32 0.0, %v9003
    %9005 = vmatprep.mubr.bf16.mxu0 0
    %9006 = vmatmul.mubr.bf16.gmra.mrb[0].mxu0 %v8859
    %v9007 = vpop.f32.mrb[0].mxu0
    %v9008 = vadd.f32 0.0, %v9007
    %v9009 = vpop.f32.mrb[0].mxu0
    %v9010 = vadd.f32 0.0, %v9009
    %v9011 = vpop.f32.mrb[0].mxu0
    %v9012 = vadd.f32 0.0, %v9011
    %v9013 = vpop.f32.mrb[0].mxu0
    %v9014 = vadd.f32 0.0, %v9013
    %9015 = vmatprep.mubr.bf16.mxu0 0
    %9016 = vmatmul.mubr.bf16.gmra.mrb[0].mxu0 %v8860
    %v9017 = vpop.f32.mrb[0].mxu0
    %v9018 = vadd.f32 0.0, %v9017
    %v9019 = vpop.f32.mrb[0].mxu0
    %v9020 = vadd.f32 0.0, %v9019
    %v9021 = vpop.f32.mrb[0].mxu0
    %v9022 = vadd.f32 0.0, %v9021
    %v9023 = vpop.f32.mrb[0].mxu0
    %v9024 = vadd.f32 0.0, %v9023
    %9025 = vmatprep.mubr.bf16.mxu0 0
    %9026 = vmatmul.mubr.bf16.gmra.mrb[0].mxu0 %v8861
    %v9027 = vpop.f32.mrb[0].mxu0
    %v9028 = vadd.f32 0.0, %v9027
    %v9029 = vpop.f32.mrb[0].mxu0
    %v9030 = vadd.f32 0.0, %v9029
    %v9031 = vpop.f32.mrb[0].mxu0
    %v9032 = vadd.f32 0.0, %v9031
    %v9033 = vpop.f32.mrb[0].mxu0
    %v9034 = vadd.f32 0.0, %v9033
    %9035 = vmatprep.mubr.bf16.mxu0 0
    %9036 = vmatmul.mubr.bf16.gmra.mrb[0].mxu0 %v8862
    %v9037 = vpop.f32.mrb[0].mxu0
    %v9038 = vadd.f32 0.0, %v9037
    %v9039 = vpop.f32.mrb[0].mxu0
    %v9040 = vadd.f32 0.0, %v9039
    %v9041 = vpop.f32.mrb[0].mxu0
    %v9042 = vadd.f32 0.0, %v9041
    %v9043 = vpop.f32.mrb[0].mxu0
    %v9044 = vadd.f32 0.0, %v9043
    %9045 = vmatprep.mubr.bf16.mxu0 0
    %9046 = vmatmul.mubr.bf16.gmra.mrb[0].mxu0 %v8863
    %v9047 = vpop.f32.mrb[0].mxu0
    %v9048 = vadd.f32 0.0, %v9047
    %v9049 = vpop.f32.mrb[0].mxu0
    %v9050 = vadd.f32 0.0, %v9049
    %v9051 = vpop.f32.mrb[0].mxu0
    %v9052 = vadd.f32 0.0, %v9051
    %v9053 = vpop.f32.mrb[0].mxu0
    %v9054 = vadd.f32 0.0, %v9053
    %9055 = vmatprep.mubr.bf16.mxu0 0
    %9056 = vmatmul.mubr.bf16.gmra.mrb[0].mxu0 %v8864
    %v9057 = vpop.f32.mrb[0].mxu0
    %v9058 = vadd.f32 0.0, %v9057
    %v9059 = vpop.f32.mrb[0].mxu0
    %v9060 = vadd.f32 0.0, %v9059
    %v9061 = vpop.f32.mrb[0].mxu0
    %v9062 = vadd.f32 0.0, %v9061
    %v9063 = vpop.f32.mrb[0].mxu0
    %v9064 = vadd.f32 0.0, %v9063
    %9065 = vdwg.mxu0
    %v9066 = vadd.f32 %v8776, %v8988
    %v9067 = vadd.f32 %v8777, %v8990
    %v9068 = vadd.f32 %v8778, %v8992
    %v9069 = vadd.f32 %v8779, %v8994
    %v9070 = vadd.f32 %v8780, %v8998
    %v9071 = vadd.f32 %v8781, %v9000
    %v9072 = vadd.f32 %v8782, %v9002
    %v9073 = vadd.f32 %v8783, %v9004
    %v9074 = vadd.f32 %v8784, %v9008
    %v9075 = vadd.f32 %v8785, %v9010
    %v9076 = vadd.f32 %v8786, %v9012
    %v9077 = vadd.f32 %v8787, %v9014
    %v9078 = vadd.f32 %v8788, %v9018
    %v9079 = vadd.f32 %v8789, %v9020
    %v9080 = vadd.f32 %v8790, %v9022
    %v9081 = vadd.f32 %v8791, %v9024
    %v9082 = vadd.f32 %v8792, %v9028
    %v9083 = vadd.f32 %v8793, %v9030
    %v9084 = vadd.f32 %v8794, %v9032
    %v9085 = vadd.f32 %v8795, %v9034
    %v9086 = vadd.f32 %v8796, %v9038
    %v9087 = vadd.f32 %v8797, %v9040
    %v9088 = vadd.f32 %v8798, %v9042
    %v9089 = vadd.f32 %v8799, %v9044
    %v9090 = vadd.f32 %v8800, %v9048
    %v9091 = vadd.f32 %v8801, %v9050
    %v9092 = vadd.f32 %v8802, %v9052
    %v9093 = vadd.f32 %v8803, %v9054
    %v9094 = vadd.f32 %v8804, %v9058
    %v9095 = vadd.f32 %v8805, %v9060
    %v9096 = vadd.f32 %v8806, %v9062
    %v9097 = vadd.f32 %v8807, %v9064
    %s9098 = scalar_lea.vmem [#allocation10], 512
    %v9099 = vld [vmem:[%s9098] sm:$0xf]
    %v9100 = vld [vmem:[%s9098 + $0x4] sm:$0xf]
    %v9101 = vld [vmem:[%s9098 + $0x8] sm:$0xf]
    %v9102 = vld [vmem:[%s9098 + $0xc] sm:$0xf]
    %v9103 = vld [vmem:[%s9098 + $0x10] sm:$0xf]
    %v9104 = vld [vmem:[%s9098 + $0x14] sm:$0xf]
    %v9105 = vld [vmem:[%s9098 + $0x18] sm:$0xf]
    %v9106 = vld [vmem:[%s9098 + $0x1c] sm:$0xf]
    %v9107 = vld [vmem:[%s9098 + $0x20] sm:$0xf]
    %v9108 = vld [vmem:[%s9098 + $0x24] sm:$0xf]
    %v9109 = vld [vmem:[%s9098 + $0x28] sm:$0xf]
    %v9110 = vld [vmem:[%s9098 + $0x2c] sm:$0xf]
    %v9111 = vld [vmem:[%s9098 + $0x30] sm:$0xf]
    %v9112 = vld [vmem:[%s9098 + $0x34] sm:$0xf]
    %v9113 = vld [vmem:[%s9098 + $0x38] sm:$0xf]
    %v9114 = vld [vmem:[%s9098 + $0x3c] sm:$0xf]
    %v9131 = vunpack.c.l.b16 %v9099
    %v9132 = vunpack.c.l.b16 %v9100
    %v9133 = vunpack.c.l.b16 %v9101
    %v9134 = vunpack.c.l.b16 %v9102
    %v9135 = vunpack.c.l.b16 %v9103
    %v9136 = vunpack.c.l.b16 %v9104
    %v9137 = vunpack.c.l.b16 %v9105
    %v9138 = vunpack.c.l.b16 %v9106
    %v9139 = vunpack.c.l.b16 %v9107
    %v9140 = vunpack.c.l.b16 %v9108
    %v9141 = vunpack.c.l.b16 %v9109
    %v9142 = vunpack.c.l.b16 %v9110
    %v9143 = vunpack.c.l.b16 %v9111
    %v9144 = vunpack.c.l.b16 %v9112
    %v9145 = vunpack.c.l.b16 %v9113
    %v9146 = vunpack.c.l.b16 %v9114
    %v9147 = vpack.c.b16 %v9132, %v9131
    %v9148 = vpack.c.b16 %v9134, %v9133
    %v9149 = vpack.c.b16 %v9136, %v9135
    %v9150 = vpack.c.b16 %v9138, %v9137
    %v9151 = vpack.c.b16 %v9140, %v9139
    %v9152 = vpack.c.b16 %v9142, %v9141
    %v9153 = vpack.c.b16 %v9144, %v9143
    %v9154 = vpack.c.b16 %v9146, %v9145
    %9163 = vrot.lane.b32.xlu0 %v8197, 79
    %v9164 = vpop.permute.xlu0 %9163
    %9165 = vrot.lane.b32.xlu0 %v8198, 79
    %v9166 = vpop.permute.xlu0 %9165
    %9167 = vrot.lane.b32.xlu0 %v8199, 79
    %v9168 = vpop.permute.xlu0 %9167
    %9169 = vrot.lane.b32.xlu0 %v8200, 79
    %v9170 = vpop.permute.xlu0 %9169
    %9171 = vrot.lane.b32.xlu0 %v8201, 79
    %v9172 = vpop.permute.xlu0 %9171
    %9173 = vrot.lane.b32.xlu0 %v8202, 79
    %v9174 = vpop.permute.xlu0 %9173
    %9175 = vrot.lane.b32.xlu0 %v8203, 79
    %v9176 = vpop.permute.xlu0 %9175
    %9177 = vrot.lane.b32.xlu0 %v8204, 79
    %v9178 = vpop.permute.xlu0 %9177
    %9179 = vrot.lane.b32.xlu0 %v8205, 79
    %v9180 = vpop.permute.xlu0 %9179
    %9181 = vrot.lane.b32.xlu0 %v8206, 79
    %v9182 = vpop.permute.xlu0 %9181
    %9183 = vrot.lane.b32.xlu0 %v8207, 79
    %v9184 = vpop.permute.xlu0 %9183
    %9185 = vrot.lane.b32.xlu0 %v8208, 79
    %v9186 = vpop.permute.xlu0 %9185
    %9187 = vrot.lane.b32.xlu0 %v8209, 79
    %v9188 = vpop.permute.xlu0 %9187
    %9189 = vrot.lane.b32.xlu0 %v8210, 79
    %v9190 = vpop.permute.xlu0 %9189
    %9191 = vrot.lane.b32.xlu0 %v8211, 79
    %v9192 = vpop.permute.xlu0 %9191
    %9193 = vrot.lane.b32.xlu0 %v8212, 79
    %v9194 = vpop.permute.xlu0 %9193
    %9195 = vrot.lane.b32.xlu0 %v8213, 79
    %v9196 = vpop.permute.xlu0 %9195
    %9197 = vrot.lane.b32.xlu0 %v8214, 79
    %v9198 = vpop.permute.xlu0 %9197
    %9199 = vrot.lane.b32.xlu0 %v8215, 79
    %v9200 = vpop.permute.xlu0 %9199
    %9201 = vrot.lane.b32.xlu0 %v8216, 79
    %v9202 = vpop.permute.xlu0 %9201
    %9203 = vrot.lane.b32.xlu0 %v8217, 79
    %v9204 = vpop.permute.xlu0 %9203
    %9205 = vrot.lane.b32.xlu0 %v8218, 79
    %v9206 = vpop.permute.xlu0 %9205
    %9207 = vrot.lane.b32.xlu0 %v8219, 79
    %v9208 = vpop.permute.xlu0 %9207
    %9209 = vrot.lane.b32.xlu0 %v8220, 79
    %v9210 = vpop.permute.xlu0 %9209
    %v9211 = vsel %vm6397, %v9164, %v9166
    %v9212 = vsel %vm6397, %v9166, %v9168
    %v9213 = vsel %vm6397, %v9170, %v9172
    %v9214 = vsel %vm6397, %v9172, %v9174
    %v9215 = vsel %vm6397, %v9176, %v9178
    %v9216 = vsel %vm6397, %v9178, %v9180
    %v9217 = vsel %vm6397, %v9182, %v9184
    %v9218 = vsel %vm6397, %v9184, %v9186
    %v9219 = vsel %vm6397, %v9188, %v9190
    %v9220 = vsel %vm6397, %v9190, %v9192
    %v9221 = vsel %vm6397, %v9194, %v9196
    %v9222 = vsel %vm6397, %v9196, %v9198
    %v9223 = vsel %vm6397, %v9200, %v9202
    %v9224 = vsel %vm6397, %v9202, %v9204
    %v9225 = vsel %vm6397, %v9206, %v9208
    %v9226 = vsel %vm6397, %v9208, %v9210
    %9243 = vmatprep.subr.bf16.mxu0 %v9212
    %9244 = vmatpush1.bf16.msra.mxu0 %v9211
    %9245 = vmatprep.subr.bf16.mxu0 %v9214
    %9246 = vmatpush1.bf16.msra.mxu0 %v9213
    %9247 = vmatprep.subr.bf16.mxu0 %v9216
    %9248 = vmatpush1.bf16.msra.mxu0 %v9215
    %9249 = vmatprep.subr.bf16.mxu0 %v9218
    %9250 = vmatpush1.bf16.msra.mxu0 %v9217
    %9251 = vmatprep.subr.bf16.mxu0 %v9220
    %9252 = vmatpush1.bf16.msra.mxu0 %v9219
    %9253 = vmatprep.subr.bf16.mxu0 %v9222
    %9254 = vmatpush1.bf16.msra.mxu0 %v9221
    %9255 = vmatprep.subr.bf16.mxu0 %v9224
    %9256 = vmatpush1.bf16.msra.mxu0 %v9223
    %9257 = vmatprep.subr.bf16.mxu0 %v9226
    %9258 = vmatpush1.bf16.msra.mxu0 %v9225
    %9259 = vmatprep.subr.bf16.mxu0 0
    %9260 = vmatpush1.bf16.msra.mxu0 0
    %9261 = vmatprep.subr.bf16.mxu0 0
    %9262 = vmatpush1.bf16.msra.mxu0 0
    %9263 = vmatprep.subr.bf16.mxu0 0
    %9264 = vmatpush1.bf16.msra.mxu0 0
    %9265 = vmatprep.subr.bf16.mxu0 0
    %9266 = vmatpush1.bf16.msra.mxu0 0
    %9267 = vmatprep.subr.bf16.mxu0 0
    %9268 = vmatpush1.bf16.msra.mxu0 0
    %9269 = vmatprep.subr.bf16.mxu0 0
    %9270 = vmatpush1.bf16.msra.mxu0 0
    %9271 = vmatprep.subr.bf16.mxu0 0
    %9272 = vmatpush1.bf16.msra.mxu0 0
    %9273 = vmatprep.subr.bf16.mxu0 0
    %9274 = vmatpush1.bf16.msra.mxu0 0
    %9275 = vmatprep.mubr.bf16.mxu0 0
    %9276 = vmatmul.mubr.bf16.gmra.mrb[0].mxu0 %v9147
    %v9277 = vpop.f32.mrb[0].mxu0
    %v9278 = vadd.f32 0.0, %v9277
    %v9279 = vpop.f32.mrb[0].mxu0
    %v9280 = vadd.f32 0.0, %v9279
    %v9281 = vpop.f32.mrb[0].mxu0
    %v9282 = vadd.f32 0.0, %v9281
    %v9283 = vpop.f32.mrb[0].mxu0
    %v9284 = vadd.f32 0.0, %v9283
    %9285 = vmatprep.mubr.bf16.mxu0 0
    %9286 = vmatmul.mubr.bf16.gmra.mrb[0].mxu0 %v9148
    %v9287 = vpop.f32.mrb[0].mxu0
    %v9288 = vadd.f32 0.0, %v9287
    %v9289 = vpop.f32.mrb[0].mxu0
    %v9290 = vadd.f32 0.0, %v9289
    %v9291 = vpop.f32.mrb[0].mxu0
    %v9292 = vadd.f32 0.0, %v9291
    %v9293 = vpop.f32.mrb[0].mxu0
    %v9294 = vadd.f32 0.0, %v9293
    %9295 = vmatprep.mubr.bf16.mxu0 0
    %9296 = vmatmul.mubr.bf16.gmra.mrb[0].mxu0 %v9149
    %v9297 = vpop.f32.mrb[0].mxu0
    %v9298 = vadd.f32 0.0, %v9297
    %v9299 = vpop.f32.mrb[0].mxu0
    %v9300 = vadd.f32 0.0, %v9299
    %v9301 = vpop.f32.mrb[0].mxu0
    %v9302 = vadd.f32 0.0, %v9301
    %v9303 = vpop.f32.mrb[0].mxu0
    %v9304 = vadd.f32 0.0, %v9303
    %9305 = vmatprep.mubr.bf16.mxu0 0
    %9306 = vmatmul.mubr.bf16.gmra.mrb[0].mxu0 %v9150
    %v9307 = vpop.f32.mrb[0].mxu0
    %v9308 = vadd.f32 0.0, %v9307
    %v9309 = vpop.f32.mrb[0].mxu0
    %v9310 = vadd.f32 0.0, %v9309
    %v9311 = vpop.f32.mrb[0].mxu0
    %v9312 = vadd.f32 0.0, %v9311
    %v9313 = vpop.f32.mrb[0].mxu0
    %v9314 = vadd.f32 0.0, %v9313
    %9315 = vmatprep.mubr.bf16.mxu0 0
    %9316 = vmatmul.mubr.bf16.gmra.mrb[0].mxu0 %v9151
    %v9317 = vpop.f32.mrb[0].mxu0
    %v9318 = vadd.f32 0.0, %v9317
    %v9319 = vpop.f32.mrb[0].mxu0
    %v9320 = vadd.f32 0.0, %v9319
    %v9321 = vpop.f32.mrb[0].mxu0
    %v9322 = vadd.f32 0.0, %v9321
    %v9323 = vpop.f32.mrb[0].mxu0
    %v9324 = vadd.f32 0.0, %v9323
    %9325 = vmatprep.mubr.bf16.mxu0 0
    %9326 = vmatmul.mubr.bf16.gmra.mrb[0].mxu0 %v9152
    %v9327 = vpop.f32.mrb[0].mxu0
    %v9328 = vadd.f32 0.0, %v9327
    %v9329 = vpop.f32.mrb[0].mxu0
    %v9330 = vadd.f32 0.0, %v9329
    %v9331 = vpop.f32.mrb[0].mxu0
    %v9332 = vadd.f32 0.0, %v9331
    %v9333 = vpop.f32.mrb[0].mxu0
    %v9334 = vadd.f32 0.0, %v9333
    %9335 = vmatprep.mubr.bf16.mxu0 0
    %9336 = vmatmul.mubr.bf16.gmra.mrb[0].mxu0 %v9153
    %v9337 = vpop.f32.mrb[0].mxu0
    %v9338 = vadd.f32 0.0, %v9337
    %v9339 = vpop.f32.mrb[0].mxu0
    %v9340 = vadd.f32 0.0, %v9339
    %v9341 = vpop.f32.mrb[0].mxu0
    %v9342 = vadd.f32 0.0, %v9341
    %v9343 = vpop.f32.mrb[0].mxu0
    %v9344 = vadd.f32 0.0, %v9343
    %9345 = vmatprep.mubr.bf16.mxu0 0
    %9346 = vmatmul.mubr.bf16.gmra.mrb[0].mxu0 %v9154
    %v9347 = vpop.f32.mrb[0].mxu0
    %v9348 = vadd.f32 0.0, %v9347
    %v9349 = vpop.f32.mrb[0].mxu0
    %v9350 = vadd.f32 0.0, %v9349
    %v9351 = vpop.f32.mrb[0].mxu0
    %v9352 = vadd.f32 0.0, %v9351
    %v9353 = vpop.f32.mrb[0].mxu0
    %v9354 = vadd.f32 0.0, %v9353
    %9355 = vdwg.mxu0
    %v9356 = vadd.f32 %v9066, %v9278
    %v9357 = vadd.f32 %v9067, %v9280
    %v9358 = vadd.f32 %v9068, %v9282
    %v9359 = vadd.f32 %v9069, %v9284
    %v9360 = vadd.f32 %v9070, %v9288
    %v9361 = vadd.f32 %v9071, %v9290
    %v9362 = vadd.f32 %v9072, %v9292
    %v9363 = vadd.f32 %v9073, %v9294
    %v9364 = vadd.f32 %v9074, %v9298
    %v9365 = vadd.f32 %v9075, %v9300
    %v9366 = vadd.f32 %v9076, %v9302
    %v9367 = vadd.f32 %v9077, %v9304
    %v9368 = vadd.f32 %v9078, %v9308
    %v9369 = vadd.f32 %v9079, %v9310
    %v9370 = vadd.f32 %v9080, %v9312
    %v9371 = vadd.f32 %v9081, %v9314
    %v9372 = vadd.f32 %v9082, %v9318
    %v9373 = vadd.f32 %v9083, %v9320
    %v9374 = vadd.f32 %v9084, %v9322
    %v9375 = vadd.f32 %v9085, %v9324
    %v9376 = vadd.f32 %v9086, %v9328
    %v9377 = vadd.f32 %v9087, %v9330
    %v9378 = vadd.f32 %v9088, %v9332
    %v9379 = vadd.f32 %v9089, %v9334
    %v9380 = vadd.f32 %v9090, %v9338
    %v9381 = vadd.f32 %v9091, %v9340
    %v9382 = vadd.f32 %v9092, %v9342
    %v9383 = vadd.f32 %v9093, %v9344
    %v9384 = vadd.f32 %v9094, %v9348
    %v9385 = vadd.f32 %v9095, %v9350
    %v9386 = vadd.f32 %v9096, %v9352
    %v9387 = vadd.f32 %v9097, %v9354
    %v9388 = vld [vmem:[%s7] sm:$0xff]
    %v9389 = vld [vmem:[%s7 + $0x8] sm:$0xff]
    %v9390 = vld [vmem:[%s7 + $0x10] sm:$0xff]
    %v9391 = vld [vmem:[%s7 + $0x18] sm:$0xff]
    %v9392 = vld [vmem:[%s7 + $0x20] sm:$0xff]
    %v9393 = vld [vmem:[%s7 + $0x28] sm:$0xff]
    %v9394 = vld [vmem:[%s7 + $0x30] sm:$0xff]
    %v9395 = vld [vmem:[%s7 + $0x38] sm:$0xff]
    %v9396 = vld [vmem:[%s7 + $0x40] sm:$0xff]
    %v9397 = vld [vmem:[%s7 + $0x48] sm:$0xff]
    %v9398 = vld [vmem:[%s7 + $0x50] sm:$0xff]
    %v9399 = vld [vmem:[%s7 + $0x58] sm:$0xff]
    %v9400 = vld [vmem:[%s7 + $0x60] sm:$0xff]
    %v9401 = vld [vmem:[%s7 + $0x68] sm:$0xff]
    %v9402 = vld [vmem:[%s7 + $0x70] sm:$0xff]
    %v9403 = vld [vmem:[%s7 + $0x78] sm:$0xff]
    %9405 = vset.pattern.permute.xlu0 0
    %9406 = vperm.xlu0 %9405, %v9388
    %v9407 = vpop.permute.xlu0 %9406
    %9410 = vset.pattern.permute.xlu0 0
    %9411 = vperm.xlu0 %9410, %v9389
    %v9412 = vpop.permute.xlu0 %9411
    %9415 = vset.pattern.permute.xlu0 0
    %9416 = vperm.xlu0 %9415, %v9390
    %v9417 = vpop.permute.xlu0 %9416
    %9420 = vset.pattern.permute.xlu0 0
    %9421 = vperm.xlu0 %9420, %v9391
    %v9422 = vpop.permute.xlu0 %9421
    %9425 = vset.pattern.permute.xlu0 0
    %9426 = vperm.xlu0 %9425, %v9392
    %v9427 = vpop.permute.xlu0 %9426
    %9430 = vset.pattern.permute.xlu0 0
    %9431 = vperm.xlu0 %9430, %v9393
    %v9432 = vpop.permute.xlu0 %9431
    %9435 = vset.pattern.permute.xlu0 0
    %9436 = vperm.xlu0 %9435, %v9394
    %v9437 = vpop.permute.xlu0 %9436
    %9440 = vset.pattern.permute.xlu0 0
    %9441 = vperm.xlu0 %9440, %v9395
    %v9442 = vpop.permute.xlu0 %9441
    %9445 = vset.pattern.permute.xlu0 0
    %9446 = vperm.xlu0 %9445, %v9396
    %v9447 = vpop.permute.xlu0 %9446
    %9450 = vset.pattern.permute.xlu0 0
    %9451 = vperm.xlu0 %9450, %v9397
    %v9452 = vpop.permute.xlu0 %9451
    %9455 = vset.pattern.permute.xlu0 0
    %9456 = vperm.xlu0 %9455, %v9398
    %v9457 = vpop.permute.xlu0 %9456
    %9460 = vset.pattern.permute.xlu0 0
    %9461 = vperm.xlu0 %9460, %v9399
    %v9462 = vpop.permute.xlu0 %9461
    %9465 = vset.pattern.permute.xlu0 0
    %9466 = vperm.xlu0 %9465, %v9400
    %v9467 = vpop.permute.xlu0 %9466
    %9470 = vset.pattern.permute.xlu0 0
    %9471 = vperm.xlu0 %9470, %v9401
    %v9472 = vpop.permute.xlu0 %9471
    %9475 = vset.pattern.permute.xlu0 0
    %9476 = vperm.xlu0 %9475, %v9402
    %v9477 = vpop.permute.xlu0 %9476
    %9480 = vset.pattern.permute.xlu0 0
    %9481 = vperm.xlu0 %9480, %v9403
    %v9482 = vpop.permute.xlu0 %9481
    %v9484 = vadd.f32 %v9356, %v9407
    %v9485 = vadd.f32 %v9357, %v9407
    %v9486 = vadd.f32 %v9358, %v9412
    %v9487 = vadd.f32 %v9359, %v9412
    %v9488 = vadd.f32 %v9360, %v9417
    %v9489 = vadd.f32 %v9361, %v9417
    %v9490 = vadd.f32 %v9362, %v9422
    %v9491 = vadd.f32 %v9363, %v9422
    %v9492 = vadd.f32 %v9364, %v9427
    %v9493 = vadd.f32 %v9365, %v9427
    %v9494 = vadd.f32 %v9366, %v9432
    %v9495 = vadd.f32 %v9367, %v9432
    %v9496 = vadd.f32 %v9368, %v9437
    %v9497 = vadd.f32 %v9369, %v9437
    %v9498 = vadd.f32 %v9370, %v9442
    %v9499 = vadd.f32 %v9371, %v9442
    %v9500 = vadd.f32 %v9372, %v9447
    %v9501 = vadd.f32 %v9373, %v9447
    %v9502 = vadd.f32 %v9374, %v9452
    %v9503 = vadd.f32 %v9375, %v9452
    %v9504 = vadd.f32 %v9376, %v9457
    %v9505 = vadd.f32 %v9377, %v9457
    %v9506 = vadd.f32 %v9378, %v9462
    %v9507 = vadd.f32 %v9379, %v9462
    %v9508 = vadd.f32 %v9380, %v9467
    %v9509 = vadd.f32 %v9381, %v9467
    %v9510 = vadd.f32 %v9382, %v9472
    %v9511 = vadd.f32 %v9383, %v9472
    %v9512 = vadd.f32 %v9384, %v9477
    %v9513 = vadd.f32 %v9385, %v9477
    %v9514 = vadd.f32 %v9386, %v9482
    %v9515 = vadd.f32 %v9387, %v9482
    %v9516 = vmax.f32 %v9484, 0.0
    %v9517 = vmax.f32 %v9485, 0.0
    %v9518 = vmax.f32 %v9486, 0.0
    %v9519 = vmax.f32 %v9487, 0.0
    %v9520 = vmax.f32 %v9488, 0.0
    %v9521 = vmax.f32 %v9489, 0.0
    %v9522 = vmax.f32 %v9490, 0.0
    %v9523 = vmax.f32 %v9491, 0.0
    %v9524 = vmax.f32 %v9492, 0.0
    %v9525 = vmax.f32 %v9493, 0.0
    %v9526 = vmax.f32 %v9494, 0.0
    %v9527 = vmax.f32 %v9495, 0.0
    %v9528 = vmax.f32 %v9496, 0.0
    %v9529 = vmax.f32 %v9497, 0.0
    %v9530 = vmax.f32 %v9498, 0.0
    %v9531 = vmax.f32 %v9499, 0.0
    %v9532 = vmax.f32 %v9500, 0.0
    %v9533 = vmax.f32 %v9501, 0.0
    %v9534 = vmax.f32 %v9502, 0.0
    %v9535 = vmax.f32 %v9503, 0.0
    %v9536 = vmax.f32 %v9504, 0.0
    %v9537 = vmax.f32 %v9505, 0.0
    %v9538 = vmax.f32 %v9506, 0.0
    %v9539 = vmax.f32 %v9507, 0.0
    %v9540 = vmax.f32 %v9508, 0.0
    %v9541 = vmax.f32 %v9509, 0.0
    %v9542 = vmax.f32 %v9510, 0.0
    %v9543 = vmax.f32 %v9511, 0.0
    %v9544 = vmax.f32 %v9512, 0.0
    %v9545 = vmax.f32 %v9513, 0.0
    %v9546 = vmax.f32 %v9514, 0.0
    %v9547 = vmax.f32 %v9515, 0.0
    %v9548 = vpack.c.bf16 %v9518, %v9516
    %v9549 = vpack.c.bf16 %v9519, %v9517
    %v9550 = vpack.c.bf16 %v9522, %v9520
    %v9551 = vpack.c.bf16 %v9523, %v9521
    %v9552 = vpack.c.bf16 %v9526, %v9524
    %v9553 = vpack.c.bf16 %v9527, %v9525
    %v9554 = vpack.c.bf16 %v9530, %v9528
    %v9555 = vpack.c.bf16 %v9531, %v9529
    %v9556 = vpack.c.bf16 %v9534, %v9532
    %v9557 = vpack.c.bf16 %v9535, %v9533
    %v9558 = vpack.c.bf16 %v9538, %v9536
    %v9559 = vpack.c.bf16 %v9539, %v9537
    %v9560 = vpack.c.bf16 %v9542, %v9540
    %v9561 = vpack.c.bf16 %v9543, %v9541
    %v9562 = vpack.c.bf16 %v9546, %v9544
    %v9563 = vpack.c.bf16 %v9547, %v9545
    %9564 = vst [vmem:[#allocation7] sm:$0xff] %v9548
    %9565 = vst.msk [vmem:[#allocation7 + $0x8] sm:$0xff] %vm592, %v9549
    %9566 = vst [vmem:[#allocation7 + $0x10] sm:$0xff] %v9550
    %9567 = vst.msk [vmem:[#allocation7 + $0x18] sm:$0xff] %vm592, %v9551
    %9568 = vst [vmem:[#allocation7 + $0x20] sm:$0xff] %v9552
    %9569 = vst.msk [vmem:[#allocation7 + $0x28] sm:$0xff] %vm592, %v9553
    %9570 = vst [vmem:[#allocation7 + $0x30] sm:$0xff] %v9554
    %9571 = vst.msk [vmem:[#allocation7 + $0x38] sm:$0xff] %vm592, %v9555
    %9572 = vst [vmem:[#allocation7 + $0x40] sm:$0xff] %v9556
    %9573 = vst.msk [vmem:[#allocation7 + $0x48] sm:$0xff] %vm592, %v9557
    %9574 = vst [vmem:[#allocation7 + $0x50] sm:$0xff] %v9558
    %9575 = vst.msk [vmem:[#allocation7 + $0x58] sm:$0xff] %vm592, %v9559
    %9576 = vst [vmem:[#allocation7 + $0x60] sm:$0xff] %v9560
    %9577 = vst.msk [vmem:[#allocation7 + $0x68] sm:$0xff] %vm592, %v9561
    %9578 = vst [vmem:[#allocation7 + $0x70] sm:$0xff] %v9562
    %9579 = vst.msk [vmem:[#allocation7 + $0x78] sm:$0xff] %vm592, %v9563
    %v9580 = vld [vmem:[#allocation7] sm:$0xff]
    %v9581 = vld [vmem:[#allocation7 + $0x8] sm:$0xff]
    %v9582 = vld [vmem:[#allocation7 + $0x10] sm:$0xff]
    %v9583 = vld [vmem:[#allocation7 + $0x18] sm:$0xff]
    %v9584 = vld [vmem:[#allocation7 + $0x20] sm:$0xff]
    %v9585 = vld [vmem:[#allocation7 + $0x28] sm:$0xff]
    %v9586 = vld [vmem:[#allocation7 + $0x30] sm:$0xff]
    %v9587 = vld [vmem:[#allocation7 + $0x38] sm:$0xff]
    %v9588 = vld [vmem:[#allocation7 + $0x40] sm:$0xff]
    %v9589 = vld [vmem:[#allocation7 + $0x48] sm:$0xff]
    %v9590 = vld [vmem:[#allocation7 + $0x50] sm:$0xff]
    %v9591 = vld [vmem:[#allocation7 + $0x58] sm:$0xff]
    %v9592 = vld [vmem:[#allocation7 + $0x60] sm:$0xff]
    %v9593 = vld [vmem:[#allocation7 + $0x68] sm:$0xff]
    %v9594 = vld [vmem:[#allocation7 + $0x70] sm:$0xff]
    %v9595 = vld [vmem:[#allocation7 + $0x78] sm:$0xff]
    %9612 = vrot.lane.b32.xlu0 %v9580, 127
    %v9613 = vpop.permute.xlu0 %9612
    %9614 = vrot.lane.b32.xlu0 %v9581, 127
    %v9615 = vpop.permute.xlu0 %9614
    %9616 = vrot.lane.b32.xlu0 %v9582, 127
    %v9617 = vpop.permute.xlu0 %9616
    %9618 = vrot.lane.b32.xlu0 %v9583, 127
    %v9619 = vpop.permute.xlu0 %9618
    %9620 = vrot.lane.b32.xlu0 %v9584, 127
    %v9621 = vpop.permute.xlu0 %9620
    %9622 = vrot.lane.b32.xlu0 %v9585, 127
    %v9623 = vpop.permute.xlu0 %9622
    %9624 = vrot.lane.b32.xlu0 %v9586, 127
    %v9625 = vpop.permute.xlu0 %9624
    %9626 = vrot.lane.b32.xlu0 %v9587, 127
    %v9627 = vpop.permute.xlu0 %9626
    %9628 = vrot.lane.b32.xlu0 %v9588, 127
    %v9629 = vpop.permute.xlu0 %9628
    %9630 = vrot.lane.b32.xlu0 %v9589, 127
    %v9631 = vpop.permute.xlu0 %9630
    %9632 = vrot.lane.b32.xlu0 %v9590, 127
    %v9633 = vpop.permute.xlu0 %9632
    %9634 = vrot.lane.b32.xlu0 %v9591, 127
    %v9635 = vpop.permute.xlu0 %9634
    %9636 = vrot.lane.b32.xlu0 %v9592, 127
    %v9637 = vpop.permute.xlu0 %9636
    %9638 = vrot.lane.b32.xlu0 %v9593, 127
    %v9639 = vpop.permute.xlu0 %9638
    %9640 = vrot.lane.b32.xlu0 %v9594, 127
    %v9641 = vpop.permute.xlu0 %9640
    %9642 = vrot.lane.b32.xlu0 %v9595, 127
    %v9643 = vpop.permute.xlu0 %9642
    %v9644 = vsel %vm2185, %v9613, %v9615
    %v9645 = vsel %vm2185, %v9617, %v9619
    %v9646 = vsel %vm2185, %v9621, %v9623
    %v9647 = vsel %vm2185, %v9625, %v9627
    %v9648 = vsel %vm2185, %v9629, %v9631
    %v9649 = vsel %vm2185, %v9633, %v9635
    %v9650 = vsel %vm2185, %v9637, %v9639
    %v9651 = vsel %vm2185, %v9641, %v9643
    %v9668 = vmax.bf16 %v9580, %v9644
    %v9669 = vmax.bf16 %v9581, %v9615
    %v9670 = vmax.bf16 %v9582, %v9645
    %v9671 = vmax.bf16 %v9583, %v9619
    %v9672 = vmax.bf16 %v9584, %v9646
    %v9673 = vmax.bf16 %v9585, %v9623
    %v9674 = vmax.bf16 %v9586, %v9647
    %v9675 = vmax.bf16 %v9587, %v9627
    %v9676 = vmax.bf16 %v9588, %v9648
    %v9677 = vmax.bf16 %v9589, %v9631
    %v9678 = vmax.bf16 %v9590, %v9649
    %v9679 = vmax.bf16 %v9591, %v9635
    %v9680 = vmax.bf16 %v9592, %v9650
    %v9681 = vmax.bf16 %v9593, %v9639
    %v9682 = vmax.bf16 %v9594, %v9651
    %v9683 = vmax.bf16 %v9595, %v9643
    %9684 = vrot.lane.b32.xlu0 %v9580, 112
    %v9685 = vpop.permute.xlu0 %9684
    %9686 = vrot.lane.b32.xlu0 %v9581, 112
    %v9687 = vpop.permute.xlu0 %9686
    %9688 = vrot.lane.b32.xlu0 %v9582, 112
    %v9689 = vpop.permute.xlu0 %9688
    %9690 = vrot.lane.b32.xlu0 %v9583, 112
    %v9691 = vpop.permute.xlu0 %9690
    %9692 = vrot.lane.b32.xlu0 %v9584, 112
    %v9693 = vpop.permute.xlu0 %9692
    %9694 = vrot.lane.b32.xlu0 %v9585, 112
    %v9695 = vpop.permute.xlu0 %9694
    %9696 = vrot.lane.b32.xlu0 %v9586, 112
    %v9697 = vpop.permute.xlu0 %9696
    %9698 = vrot.lane.b32.xlu0 %v9587, 112
    %v9699 = vpop.permute.xlu0 %9698
    %9700 = vrot.lane.b32.xlu0 %v9588, 112
    %v9701 = vpop.permute.xlu0 %9700
    %9702 = vrot.lane.b32.xlu0 %v9589, 112
    %v9703 = vpop.permute.xlu0 %9702
    %9704 = vrot.lane.b32.xlu0 %v9590, 112
    %v9705 = vpop.permute.xlu0 %9704
    %9706 = vrot.lane.b32.xlu0 %v9591, 112
    %v9707 = vpop.permute.xlu0 %9706
    %9708 = vrot.lane.b32.xlu0 %v9592, 112
    %v9709 = vpop.permute.xlu0 %9708
    %9710 = vrot.lane.b32.xlu0 %v9593, 112
    %v9711 = vpop.permute.xlu0 %9710
    %9712 = vrot.lane.b32.xlu0 %v9594, 112
    %v9713 = vpop.permute.xlu0 %9712
    %9714 = vrot.lane.b32.xlu0 %v9595, 112
    %v9715 = vpop.permute.xlu0 %9714
    %v9716 = vsel %vm4206, %v9685, %v9687
    %v9717 = vsel %vm4206, %v9689, %v9691
    %v9718 = vsel %vm4206, %v9693, %v9695
    %v9719 = vsel %vm4206, %v9697, %v9699
    %v9720 = vsel %vm4206, %v9701, %v9703
    %v9721 = vsel %vm4206, %v9705, %v9707
    %v9722 = vsel %vm4206, %v9709, %v9711
    %v9723 = vsel %vm4206, %v9713, %v9715
    %v9740 = vmax.bf16 %v9668, %v9716
    %v9741 = vmax.bf16 %v9669, %v9687
    %v9742 = vmax.bf16 %v9670, %v9717
    %v9743 = vmax.bf16 %v9671, %v9691
    %v9744 = vmax.bf16 %v9672, %v9718
    %v9745 = vmax.bf16 %v9673, %v9695
    %v9746 = vmax.bf16 %v9674, %v9719
    %v9747 = vmax.bf16 %v9675, %v9699
    %v9748 = vmax.bf16 %v9676, %v9720
    %v9749 = vmax.bf16 %v9677, %v9703
    %v9750 = vmax.bf16 %v9678, %v9721
    %v9751 = vmax.bf16 %v9679, %v9707
    %v9752 = vmax.bf16 %v9680, %v9722
    %v9753 = vmax.bf16 %v9681, %v9711
    %v9754 = vmax.bf16 %v9682, %v9723
    %v9755 = vmax.bf16 %v9683, %v9715
    %9756 = vrot.lane.b32.xlu0 %v9580, 111
    %v9757 = vpop.permute.xlu0 %9756
    %9758 = vrot.lane.b32.xlu0 %v9581, 111
    %v9759 = vpop.permute.xlu0 %9758
    %9760 = vrot.lane.b32.xlu0 %v9582, 111
    %v9761 = vpop.permute.xlu0 %9760
    %9762 = vrot.lane.b32.xlu0 %v9583, 111
    %v9763 = vpop.permute.xlu0 %9762
    %9764 = vrot.lane.b32.xlu0 %v9584, 111
    %v9765 = vpop.permute.xlu0 %9764
    %9766 = vrot.lane.b32.xlu0 %v9585, 111
    %v9767 = vpop.permute.xlu0 %9766
    %9768 = vrot.lane.b32.xlu0 %v9586, 111
    %v9769 = vpop.permute.xlu0 %9768
    %9770 = vrot.lane.b32.xlu0 %v9587, 111
    %v9771 = vpop.permute.xlu0 %9770
    %9772 = vrot.lane.b32.xlu0 %v9588, 111
    %v9773 = vpop.permute.xlu0 %9772
    %9774 = vrot.lane.b32.xlu0 %v9589, 111
    %v9775 = vpop.permute.xlu0 %9774
    %9776 = vrot.lane.b32.xlu0 %v9590, 111
    %v9777 = vpop.permute.xlu0 %9776
    %9778 = vrot.lane.b32.xlu0 %v9591, 111
    %v9779 = vpop.permute.xlu0 %9778
    %9780 = vrot.lane.b32.xlu0 %v9592, 111
    %v9781 = vpop.permute.xlu0 %9780
    %9782 = vrot.lane.b32.xlu0 %v9593, 111
    %v9783 = vpop.permute.xlu0 %9782
    %9784 = vrot.lane.b32.xlu0 %v9594, 111
    %v9785 = vpop.permute.xlu0 %9784
    %9786 = vrot.lane.b32.xlu0 %v9595, 111
    %v9787 = vpop.permute.xlu0 %9786
    %v9788 = vsel %vm4659, %v9757, %v9759
    %v9789 = vsel %vm4659, %v9761, %v9763
    %v9790 = vsel %vm4659, %v9765, %v9767
    %v9791 = vsel %vm4659, %v9769, %v9771
    %v9792 = vsel %vm4659, %v9773, %v9775
    %v9793 = vsel %vm4659, %v9777, %v9779
    %v9794 = vsel %vm4659, %v9781, %v9783
    %v9795 = vsel %vm4659, %v9785, %v9787
    %v9812 = vmax.bf16 %v9740, %v9788
    %v9813 = vmax.bf16 %v9741, %v9759
    %v9814 = vmax.bf16 %v9742, %v9789
    %v9815 = vmax.bf16 %v9743, %v9763
    %v9816 = vmax.bf16 %v9744, %v9790
    %v9817 = vmax.bf16 %v9745, %v9767
    %v9818 = vmax.bf16 %v9746, %v9791
    %v9819 = vmax.bf16 %v9747, %v9771
    %v9820 = vmax.bf16 %v9748, %v9792
    %v9821 = vmax.bf16 %v9749, %v9775
    %v9822 = vmax.bf16 %v9750, %v9793
    %v9823 = vmax.bf16 %v9751, %v9779
    %v9824 = vmax.bf16 %v9752, %v9794
    %v9825 = vmax.bf16 %v9753, %v9783
    %v9826 = vmax.bf16 %v9754, %v9795
    %v9827 = vmax.bf16 %v9755, %v9787
    %v9828 = vld [vmem:[%s9] sm:$0xf]
    %v9829 = vld [vmem:[%s9 + $0x4] sm:$0xf]
    %v9830 = vld [vmem:[%s9 + $0x8] sm:$0xf]
    %v9831 = vld [vmem:[%s9 + $0xc] sm:$0xf]
    %v9832 = vld [vmem:[%s9 + $0x10] sm:$0xf]
    %v9833 = vld [vmem:[%s9 + $0x14] sm:$0xf]
    %v9834 = vld [vmem:[%s9 + $0x18] sm:$0xf]
    %v9835 = vld [vmem:[%s9 + $0x1c] sm:$0xf]
    %v9836 = vld [vmem:[%s9 + $0x20] sm:$0xf]
    %v9837 = vld [vmem:[%s9 + $0x24] sm:$0xf]
    %v9838 = vld [vmem:[%s9 + $0x28] sm:$0xf]
    %v9839 = vld [vmem:[%s9 + $0x2c] sm:$0xf]
    %v9840 = vld [vmem:[%s9 + $0x30] sm:$0xf]
    %v9841 = vld [vmem:[%s9 + $0x34] sm:$0xf]
    %v9842 = vld [vmem:[%s9 + $0x38] sm:$0xf]
    %v9843 = vld [vmem:[%s9 + $0x3c] sm:$0xf]
    %v9844 = vld [vmem:[%s9 + $0x40] sm:$0xf]
    %v9845 = vld [vmem:[%s9 + $0x44] sm:$0xf]
    %v9846 = vld [vmem:[%s9 + $0x48] sm:$0xf]
    %v9847 = vld [vmem:[%s9 + $0x4c] sm:$0xf]
    %v9848 = vld [vmem:[%s9 + $0x50] sm:$0xf]
    %v9849 = vld [vmem:[%s9 + $0x54] sm:$0xf]
    %v9850 = vld [vmem:[%s9 + $0x58] sm:$0xf]
    %v9851 = vld [vmem:[%s9 + $0x5c] sm:$0xf]
    %v9852 = vld [vmem:[%s9 + $0x60] sm:$0xf]
    %v9853 = vld [vmem:[%s9 + $0x64] sm:$0xf]
    %v9854 = vld [vmem:[%s9 + $0x68] sm:$0xf]
    %v9855 = vld [vmem:[%s9 + $0x6c] sm:$0xf]
    %v9884 = vunpack.c.l.b16 %v9828
    %v9885 = vunpack.c.l.b16 %v9829
    %v9886 = vunpack.c.l.b16 %v9830
    %v9887 = vunpack.c.l.b16 %v9831
    %v9888 = vunpack.c.l.b16 %v9832
    %v9889 = vunpack.c.l.b16 %v9833
    %v9890 = vunpack.c.l.b16 %v9834
    %v9891 = vunpack.c.l.b16 %v9835
    %v9892 = vunpack.c.l.b16 %v9836
    %v9893 = vunpack.c.l.b16 %v9837
    %v9894 = vunpack.c.l.b16 %v9838
    %v9895 = vunpack.c.l.b16 %v9839
    %v9896 = vunpack.c.l.b16 %v9840
    %v9897 = vunpack.c.l.b16 %v9841
    %v9898 = vunpack.c.l.b16 %v9842
    %v9899 = vunpack.c.l.b16 %v9843
    %v9900 = vunpack.c.l.b16 %v9844
    %v9901 = vunpack.c.l.b16 %v9845
    %v9902 = vunpack.c.l.b16 %v9846
    %v9903 = vunpack.c.l.b16 %v9847
    %v9904 = vunpack.c.l.b16 %v9848
    %v9905 = vunpack.c.l.b16 %v9849
    %v9906 = vunpack.c.l.b16 %v9850
    %v9907 = vunpack.c.l.b16 %v9851
    %v9908 = vunpack.c.l.b16 %v9852
    %v9909 = vunpack.c.l.b16 %v9853
    %v9910 = vunpack.c.l.b16 %v9854
    %v9911 = vunpack.c.l.b16 %v9855
    %v9912 = vpack.c.b16 %v9885, %v9884
    %v9913 = vpack.c.b16 %v9887, %v9886
    %v9914 = vpack.c.b16 %v9889, %v9888
    %v9915 = vpack.c.b16 %v9891, %v9890
    %v9916 = vpack.c.b16 %v9893, %v9892
    %v9917 = vpack.c.b16 %v9895, %v9894
    %v9918 = vpack.c.b16 %v9897, %v9896
    %v9919 = vpack.c.b16 %v9899, %v9898
    %v9920 = vpack.c.b16 %v9901, %v9900
    %v9921 = vpack.c.b16 %v9903, %v9902
    %v9922 = vpack.c.b16 %v9905, %v9904
    %v9923 = vpack.c.b16 %v9907, %v9906
    %v9924 = vpack.c.b16 %v9909, %v9908
    %v9925 = vpack.c.b16 %v9911, %v9910
    %v9941 = vsel %vm592, %v9813, 0
    %v9944 = vsel %vm592, %v9815, 0
    %v9947 = vsel %vm592, %v9817, 0
    %v9950 = vsel %vm592, %v9819, 0
    %v9953 = vsel %vm592, %v9821, 0
    %v9956 = vsel %vm592, %v9823, 0
    %v9959 = vsel %vm592, %v9825, 0
    %v9962 = vsel %vm592, %v9827, 0
    %9964 = vmatprep.subr.bf16.mxu0 0
    %9965 = vmatpush1.bf16.msra.mxu0 %v9912
    %9966 = vmatprep.subr.bf16.mxu0 0
    %9967 = vmatpush1.bf16.msra.mxu0 %v9913
    %9968 = vmatprep.subr.bf16.mxu0 0
    %9969 = vmatpush1.bf16.msra.mxu0 %v9914
    %9970 = vmatprep.subr.bf16.mxu0 0
    %9971 = vmatpush1.bf16.msra.mxu0 %v9915
    %9972 = vmatprep.subr.bf16.mxu0 0
    %9973 = vmatpush1.bf16.msra.mxu0 %v9916
    %9974 = vmatprep.subr.bf16.mxu0 0
    %9975 = vmatpush1.bf16.msra.mxu0 %v9917
    %9976 = vmatprep.subr.bf16.mxu0 0
    %9977 = vmatpush1.bf16.msra.mxu0 %v9918
    %9978 = vmatprep.subr.bf16.mxu0 0
    %9979 = vmatpush1.bf16.msra.mxu0 %v9919
    %9980 = vmatprep.subr.bf16.mxu0 0
    %9981 = vmatpush1.bf16.msra.mxu0 %v9920
    %9982 = vmatprep.subr.bf16.mxu0 0
    %9983 = vmatpush1.bf16.msra.mxu0 %v9921
    %9984 = vmatprep.subr.bf16.mxu0 0
    %9985 = vmatpush1.bf16.msra.mxu0 %v9922
    %9986 = vmatprep.subr.bf16.mxu0 0
    %9987 = vmatpush1.bf16.msra.mxu0 %v9923
    %9988 = vmatprep.subr.bf16.mxu0 0
    %9989 = vmatpush1.bf16.msra.mxu0 %v9924
    %9990 = vmatprep.subr.bf16.mxu0 0
    %9991 = vmatpush1.bf16.msra.mxu0 %v9925
    %9992 = vmatprep.subr.bf16.mxu0 0
    %9993 = vmatpush1.bf16.msra.mxu0 0
    %9994 = vmatprep.subr.bf16.mxu0 0
    %9995 = vmatpush1.bf16.msra.mxu0 0
    %9996 = vmatprep.mubr.bf16.mxu0 %v9941
    %9997 = vmatmul.mubr.bf16.gmra.mrb[0].mxu0 %v9812
    %v9998 = vpop.f32.mrb[0].mxu0
    %v9999 = vadd.f32 0.0, %v9998
    %v10000 = vpop.f32.mrb[0].mxu0
    %v10001 = vpop.f32.mrb[0].mxu0
    %v10002 = vadd.f32 0.0, %v10001
    %v10003 = vpop.f32.mrb[0].mxu0
    %10004 = vmatprep.mubr.bf16.mxu0 %v9944
    %10005 = vmatmul.mubr.bf16.gmra.mrb[0].mxu0 %v9814
    %v10006 = vpop.f32.mrb[0].mxu0
    %v10007 = vadd.f32 0.0, %v10006
    %v10008 = vpop.f32.mrb[0].mxu0
    %v10009 = vpop.f32.mrb[0].mxu0
    %v10010 = vadd.f32 0.0, %v10009
    %v10011 = vpop.f32.mrb[0].mxu0
    %10012 = vmatprep.mubr.bf16.mxu0 %v9947
    %10013 = vmatmul.mubr.bf16.gmra.mrb[0].mxu0 %v9816
    %v10014 = vpop.f32.mrb[0].mxu0
    %v10015 = vadd.f32 0.0, %v10014
    %v10016 = vpop.f32.mrb[0].mxu0
    %v10017 = vpop.f32.mrb[0].mxu0
    %v10018 = vadd.f32 0.0, %v10017
    %v10019 = vpop.f32.mrb[0].mxu0
    %10020 = vmatprep.mubr.bf16.mxu0 %v9950
    %10021 = vmatmul.mubr.bf16.gmra.mrb[0].mxu0 %v9818
    %v10022 = vpop.f32.mrb[0].mxu0
    %v10023 = vadd.f32 0.0, %v10022
    %v10024 = vpop.f32.mrb[0].mxu0
    %v10025 = vpop.f32.mrb[0].mxu0
    %v10026 = vadd.f32 0.0, %v10025
    %v10027 = vpop.f32.mrb[0].mxu0
    %10028 = vmatprep.mubr.bf16.mxu0 %v9953
    %10029 = vmatmul.mubr.bf16.gmra.mrb[0].mxu0 %v9820
    %v10030 = vpop.f32.mrb[0].mxu0
    %v10031 = vadd.f32 0.0, %v10030
    %v10032 = vpop.f32.mrb[0].mxu0
    %v10033 = vpop.f32.mrb[0].mxu0
    %v10034 = vadd.f32 0.0, %v10033
    %v10035 = vpop.f32.mrb[0].mxu0
    %10036 = vmatprep.mubr.bf16.mxu0 %v9956
    %10037 = vmatmul.mubr.bf16.gmra.mrb[0].mxu0 %v9822
    %v10038 = vpop.f32.mrb[0].mxu0
    %v10039 = vadd.f32 0.0, %v10038
    %v10040 = vpop.f32.mrb[0].mxu0
    %v10041 = vpop.f32.mrb[0].mxu0
    %v10042 = vadd.f32 0.0, %v10041
    %v10043 = vpop.f32.mrb[0].mxu0
    %10044 = vmatprep.mubr.bf16.mxu0 %v9959
    %10045 = vmatmul.mubr.bf16.gmra.mrb[0].mxu0 %v9824
    %v10046 = vpop.f32.mrb[0].mxu0
    %v10047 = vadd.f32 0.0, %v10046
    %v10048 = vpop.f32.mrb[0].mxu0
    %v10049 = vpop.f32.mrb[0].mxu0
    %v10050 = vadd.f32 0.0, %v10049
    %v10051 = vpop.f32.mrb[0].mxu0
    %10052 = vmatprep.mubr.bf16.mxu0 %v9962
    %10053 = vmatmul.mubr.bf16.gmra.mrb[0].mxu0 %v9826
    %v10054 = vpop.f32.mrb[0].mxu0
    %v10055 = vadd.f32 0.0, %v10054
    %v10056 = vpop.f32.mrb[0].mxu0
    %v10057 = vpop.f32.mrb[0].mxu0
    %v10058 = vadd.f32 0.0, %v10057
    %v10059 = vpop.f32.mrb[0].mxu0
    %10060 = vdwg.mxu0
    %vm10061 = vcmask 400384
    %10062 = vst.msk [vmem:[%s11] sm:$0xff] %vm10061, %v9999
    %10063 = vst.msk [vmem:[%s11 + $0x8] sm:$0xff] %vm10061, %v10002
    %10064 = vst.msk [vmem:[%s11 + $0x10] sm:$0xff] %vm10061, %v10007
    %10065 = vst.msk [vmem:[%s11 + $0x18] sm:$0xff] %vm10061, %v10010
    %10066 = vst.msk [vmem:[%s11 + $0x20] sm:$0xff] %vm10061, %v10015
    %10067 = vst.msk [vmem:[%s11 + $0x28] sm:$0xff] %vm10061, %v10018
    %10068 = vst.msk [vmem:[%s11 + $0x30] sm:$0xff] %vm10061, %v10023
    %10069 = vst.msk [vmem:[%s11 + $0x38] sm:$0xff] %vm10061, %v10026
    %10070 = vst.msk [vmem:[%s11 + $0x40] sm:$0xff] %vm10061, %v10031
    %10071 = vst.msk [vmem:[%s11 + $0x48] sm:$0xff] %vm10061, %v10034
    %10072 = vst.msk [vmem:[%s11 + $0x50] sm:$0xff] %vm10061, %v10039
    %10073 = vst.msk [vmem:[%s11 + $0x58] sm:$0xff] %vm10061, %v10042
    %10074 = vst.msk [vmem:[%s11 + $0x60] sm:$0xff] %vm10061, %v10047
    %10075 = vst.msk [vmem:[%s11 + $0x68] sm:$0xff] %vm10061, %v10050
    %10076 = vst.msk [vmem:[%s11 + $0x70] sm:$0xff] %vm10061, %v10055
    %10077 = vst.msk [vmem:[%s11 + $0x78] sm:$0xff] %vm10061, %v10058
    // Predicated region
    $region54: #{fmnist_cnn_forward.2} parent=1 // pred_check
      _
    $region55: #{fmnist_cnn_forward.2} parent=1 // pred_check_branch
      %10079 = sbr.rel (0) target = $region57
    $region56: #{fmnist_cnn_forward.2} parent=1 // pred_region
      _
    $region57: #{fmnist_cnn_forward.2} parent=1 // pred_fallthru
      _
    // Predicated region
    $region58: #{fmnist_cnn_forward.2} parent=1 // pred_check
      _
    $region59: #{fmnist_cnn_forward.2} parent=1 // pred_check_branch
      %10081 = sbr.rel (0) target = $region61
    $region60: #{fmnist_cnn_forward.2} parent=1 // pred_region
      _
    $region61: #{fmnist_cnn_forward.2} parent=1 // pred_fallthru
      _
    %10082 = vsyncpa [#allocation9], 1
    %10083 = vsyncpa [#allocation11], 1

</llo_original>
